<compile_context>
chip_gen: v6e
topology: v6e:2x2x1
jax: 0.10.0
libtpu: 0.0.40
codegen_flags: <defaults>
</compile_context>

<pallas_src>
import functools

import jax
import jax.numpy as jnp
from jax.experimental import pallas as pl
from jax.experimental.pallas import tpu as pltpu

EPS = 1e-6
NUM_GROUPS = 32


def _is_tpu_v6_or_newer():
    try:
        kind = jax.devices()[0].device_kind.lower()
    except Exception:
        return False
    return ("v6" in kind) or ("v7" in kind)


def _pick_tile(n, candidates):
    for t in candidates:
        if n % t == 0:
            return t
    return n


# --------------------------- fused kernel ---------------------------------
def _fused_attn_kernel(x_ref, gamma_ref, beta_ref, fold_ref, bcast_ref,
                       w_ref, b_ref, pw_ref, pb_ref,
                       o_ref, q_sc, k_sc, v_sc, *, tq, c, cp):
    qi = pl.program_id(1)

    # ----- prologue: GroupNorm stats + normalize + fused qkv (once per b) ---
    @pl.when(qi == 0)
    def _():
        x = x_ref[0]                                           # (HW, C) f32
        # two-pass group statistics (numerically safer than E[x^2] - E[x]^2)
        csum = jnp.sum(x, axis=0, keepdims=True)               # (1, C)
        gmean = jnp.dot(csum, fold_ref[...],
                        preferred_element_type=jnp.float32)     # (1, G)
        mean = jnp.dot(gmean, bcast_ref[...],
                       preferred_element_type=jnp.float32)      # (1, C)
        d = x - mean
        csq = jnp.sum(d * d, axis=0, keepdims=True)            # (1, C)
        gvar = jnp.dot(csq, fold_ref[...],
                       preferred_element_type=jnp.float32)
        var = jnp.dot(gvar, bcast_ref[...],
                      preferred_element_type=jnp.float32)       # biased var
        inv = jax.lax.rsqrt(var + EPS)
        scale = inv * gamma_ref[...]
        shift = beta_ref[...] - mean * scale

        xn = (x * scale + shift).astype(jnp.bfloat16)
        # one wide (HW,C)x(C,2C+Cp) bf16 MXU matmul; softmax scale is already
        # folded into the q columns, the ones column for the row-sum trick is
        # folded into the v bias (column c of the v block).
        qkv = jnp.dot(xn, w_ref[...],
                      preferred_element_type=jnp.float32) + b_ref[...]
        q_sc[...] = qkv[:, :c].astype(jnp.bfloat16)
        k_sc[...] = qkv[:, c:2 * c].astype(jnp.bfloat16)
        v_sc[...] = qkv[:, 2 * c:].astype(jnp.bfloat16)

    # ----- attention for this q tile: full-KV, single-pass softmax ----------
    q0 = pl.multiple_of(qi * tq, tq)
    q = q_sc[pl.ds(q0, tq), :]                                  # (tq, C) bf16
    # q @ k^T without materializing k.T (contract on the C axis of both)
    s = jax.lax.dot_general(q, k_sc[...], (((1,), (1,)), ((), ())),
                            preferred_element_type=jnp.float32)  # (tq, HW) f32
    m = jnp.max(s, axis=-1, keepdims=True)
    p = jnp.exp(s - m)                                          # f32 (portable)
    pv = jnp.dot(p.astype(jnp.bfloat16), v_sc[...],
                 preferred_element_type=jnp.float32)            # (tq, cp) f32
    if cp > c:
        # ones column folded into V: column c of pv is the softmax row-sum,
        # accumulated in f32 on the MXU (no XLU cross-lane reduction).
        h = pv[:, :c] * pl.reciprocal(pv[:, c:c + 1], approx=True)
    else:
        l = jnp.sum(p, axis=-1, keepdims=True)
        h = pv * pl.reciprocal(l, approx=True)
    proj = jnp.dot(h.astype(jnp.bfloat16), pw_ref[...],
                   preferred_element_type=jnp.float32) + pb_ref[...]
    o_ref[0] = x_ref[0, pl.ds(q0, tq), :] + proj                # residual f32


# ------------------------------ wrapper -----------------------------------
def attn_block(x_nchw, params, *, tile_q=None):
    """x_nchw: (B, C, H, W) float32. Returns (B, C, H, W) float32."""
    B, C, H, W = x_nchw.shape
    assert C % NUM_GROUPS == 0, "GroupNorm(32) requires C % 32 == 0"
    HW = H * W
    cg = C // NUM_GROUPS

    modern = _is_tpu_v6_or_newer()          # v6e / v7x
    cand = (512, 1024, 256, 128, 64, 32, 16, 8) if modern \
        else (256, 512, 128, 1024, 64, 32, 16, 8)
    tq = tile_q or _pick_tile(HW, cand)
    assert HW % tq == 0
    num_q = HW // tq
    cp = C + 128 if modern else C           # padded V width (ones col at c)

    # NCHW -> (B, HW, C)  (layout plumbing only; see TODO at top of file)
    x = jnp.transpose(x_nchw, (0, 2, 3, 1)).reshape(B, HW, C).astype(jnp.float32)

    gamma = params["gamma"].reshape(1, C).astype(jnp.float32)
    beta = params["beta"].reshape(1, C).astype(jnp.float32)

    # tiny one-hot group fold / broadcast matrices (C*32 each, not C*C)
    gidx = jnp.arange(C) // cg
    onehot = (gidx[:, None] == jnp.arange(NUM_GROUPS)[None, :]).astype(jnp.float32)
    fold = onehot / float(HW * cg)          # (C, 32), includes the 1/(HW*cg)
    bcast = onehot.T                        # (32, C)

    # fused qkv weights (in=C, out=2C+cp); softmax scale folded into q,
    # ones column for the row-sum trick folded into the v bias (modern only).
    attn_scale = float(int(C)) ** (-0.5)
    wq = params["qw"].T.astype(jnp.float32) * attn_scale
    wk = params["kw"].T.astype(jnp.float32)
    wv = params["vw"].T.astype(jnp.float32)
    bq = params["qb"].astype(jnp.float32) * attn_scale
    bk = params["kb"].astype(jnp.float32)
    bv = params["vb"].astype(jnp.float32)
    if modern:
        wv = jnp.concatenate([wv, jnp.zeros((C, cp - C), jnp.float32)], axis=1)
        bv = jnp.concatenate([bv, jnp.ones((1,), jnp.float32),
                              jnp.zeros((cp - C - 1,), jnp.float32)], axis=0)
    qkv_w = jnp.concatenate([wq, wk, wv], axis=1).astype(jnp.bfloat16)   # (C, 2C+cp)
    qkv_b = jnp.concatenate([bq, bk, bv], axis=0).reshape(1, 2 * C + cp).astype(jnp.float32)
    pw = params["pw"].T.astype(jnp.bfloat16)
    pb = params["pb"].reshape(1, C).astype(jnp.float32)

    kernel = functools.partial(_fused_attn_kernel, tq=tq, c=C, cp=cp)
    out = pl.pallas_call(
        kernel,
        out_shape=jax.ShapeDtypeStruct((B, HW, C), jnp.float32),
        grid_spec=pltpu.PrefetchScalarGridSpec(
            num_scalar_prefetch=0,
            grid=(B, num_q),
            in_specs=[
                pl.BlockSpec((1, HW, C), lambda b, qi: (b, 0, 0)),       # x (resident per b)
                pl.BlockSpec((1, C), lambda b, qi: (0, 0)),              # gamma
                pl.BlockSpec((1, C), lambda b, qi: (0, 0)),              # beta
                pl.BlockSpec((C, NUM_GROUPS), lambda b, qi: (0, 0)),     # fold
                pl.BlockSpec((NUM_GROUPS, C), lambda b, qi: (0, 0)),     # bcast
                pl.BlockSpec((C, 2 * C + cp), lambda b, qi: (0, 0)),     # qkv W
                pl.BlockSpec((1, 2 * C + cp), lambda b, qi: (0, 0)),     # qkv b
                pl.BlockSpec((C, C), lambda b, qi: (0, 0)),              # proj W
                pl.BlockSpec((1, C), lambda b, qi: (0, 0)),              # proj b
            ],
            out_specs=pl.BlockSpec((1, tq, C), lambda b, qi: (b, qi, 0)),
            scratch_shapes=[
                pltpu.VMEM((HW, C), jnp.bfloat16),    # q (pre-scaled)
                pltpu.VMEM((HW, C), jnp.bfloat16),    # k
                pltpu.VMEM((HW, cp), jnp.bfloat16),   # v (+ ones column on v6e/v7x)
            ],
        ),
        compiler_params=pltpu.CompilerParams(
            dimension_semantics=("parallel", "arbitrary"),
            vmem_limit_bytes=48 * 1024 * 1024),
    )(x, gamma, beta, fold, bcast, qkv_w, qkv_b, pw, pb)

    return jnp.transpose(out.reshape(B, H, W, C), (0, 3, 1, 2))


# ----------------------------- reference ----------------------------------
def ref_forward(x, params):
    """Pure-JAX f32 reference mirroring the PyTorch forward (NCHW)."""
    B, C, H, W = x.shape
    G = NUM_GROUPS
    xg = x.reshape(B, G, C // G, H, W)
    mean = xg.mean(axis=(2, 3, 4), keepdims=True)
    var = xg.var(axis=(2, 3, 4), keepdims=True)
    xn = ((xg - mean) / jnp.sqrt(var + EPS)).reshape(B, C, H, W)
    xn = xn * params["gamma"][None, :, None, None] + params["beta"][None, :, None, None]

    def conv1(w, b, t):
        return jnp.einsum("oc,bchw->bohw", w, t) + b[None, :, None, None]

    q = conv1(params["qw"], params["qb"], xn)
    k = conv1(params["kw"], params["kb"], xn)
    v = conv1(params["vw"], params["vb"], xn)
    HW = H * W
    q = q.reshape(B, C, HW).transpose(0, 2, 1)
    k = k.reshape(B, C, HW)
    w_ = jnp.einsum("bic,bcj->bij", q, k) * (float(int(C)) ** (-0.5))
    w_ = jax.nn.softmax(w_, axis=2)
    v = v.reshape(B, C, HW)
    h = jnp.einsum("bcj,bij->bci", v, w_).reshape(B, C, H, W)
    h = conv1(params["pw"], params["pb"], h)
    return x + h


def init_params(key, C):
    ks = jax.random.split(key, 10)
    return {
        "gamma": 1.0 + 0.1 * jax.random.normal(ks[0], (C,), jnp.float32),
        "beta": 0.1 * jax.random.normal(ks[1], (C,), jnp.float32),
        "qw": 0.1 * jax.random.normal(ks[2], (C, C), jnp.float32),
        "qb": 0.1 * jax.random.normal(ks[3], (C,), jnp.float32),
        "kw": 0.1 * jax.random.normal(ks[4], (C, C), jnp.float32),
        "kb": 0.1 * jax.random.normal(ks[5], (C,), jnp.float32),
        "vw": 0.1 * jax.random.normal(ks[6], (C, C), jnp.float32),
        "vb": 0.1 * jax.random.normal(ks[7], (C,), jnp.float32),
        "pw": 0.1 * jax.random.normal(ks[8], (C, C), jnp.float32),
        "pb": 0.1 * jax.random.normal(ks[9], (C,), jnp.float32),
    }


if __name__ == "__main__":
    # GroupNorm(32) needs C % 32 == 0; C=128 keeps the last dim lane-dense.
    # H=W=32 -> HW=1024 exercises the prologue + a 2-step q-tile loop.
    B, C, H, W = 2, 128, 32, 32
    key = jax.random.PRNGKey(0)
    kx, kp = jax.random.split(key)
    x = jax.random.normal(kx, (B, C, H, W), jnp.float32)
    params = init_params(kp, C)

    out = jax.block_until_ready(jax.jit(attn_block)(x, params))
    ref = ref_forward(x, params)

    assert out.shape == (B, C, H, W)
    err = float(jnp.max(jnp.abs(out - ref)))
    # bf16 MXU matmuls (f32 accumulation) + approx reciprocal vs pure-f32 ref.
    assert err < 5e-2, f"max abs err {err}"
    print("KERNEL_OK")
</pallas_src>

<mosaic_0001>
module attributes {stable_mosaic.version = 11 : i64} {
  func.func @_fused_attn_kernel(%arg0: i32, %arg1: i32, %arg2: memref<1x1024x128xf32, #tpu.memory_space<vmem>>, %arg3: memref<1x128xf32, #tpu.memory_space<vmem>>, %arg4: memref<1x128xf32, #tpu.memory_space<vmem>>, %arg5: memref<128x32xf32, #tpu.memory_space<vmem>>, %arg6: memref<32x128xf32, #tpu.memory_space<vmem>>, %arg7: memref<128x384xbf16, #tpu.memory_space<vmem>>, %arg8: memref<1x384xf32, #tpu.memory_space<vmem>>, %arg9: memref<128x128xbf16, #tpu.memory_space<vmem>>, %arg10: memref<1x128xf32, #tpu.memory_space<vmem>>, %arg11: memref<1x256x128xf32, #tpu.memory_space<vmem>>, %arg12: memref<1024x128xbf16, #tpu.memory_space<vmem>>, %arg13: memref<1024x128xbf16, #tpu.memory_space<vmem>>, %arg14: memref<1024x128xbf16, #tpu.memory_space<vmem>>) attributes {dimension_semantics = [#tpu.dimension_semantics<parallel>, #tpu.dimension_semantics<arbitrary>], iteration_bounds = array<i64: 2, 4>, scalar_prefetch = 0 : i64, scratch_operands = 3 : i64, tpu.core_type = #tpu.core_type<tc>, window_params = [{transform_indices = @transform_0, window_bounds = array<i64: 1, 1024, 128>}, {pipeline_mode = #tpu.pipeline_mode<synchronous>, transform_indices = @transform_1, window_bounds = array<i64: 1, 128>}, {pipeline_mode = #tpu.pipeline_mode<synchronous>, transform_indices = @transform_2, window_bounds = array<i64: 1, 128>}, {pipeline_mode = #tpu.pipeline_mode<synchronous>, transform_indices = @transform_3, window_bounds = array<i64: 128, 32>}, {pipeline_mode = #tpu.pipeline_mode<synchronous>, transform_indices = @transform_4, window_bounds = array<i64: 32, 128>}, {pipeline_mode = #tpu.pipeline_mode<synchronous>, transform_indices = @transform_5, window_bounds = array<i64: 128, 384>}, {pipeline_mode = #tpu.pipeline_mode<synchronous>, transform_indices = @transform_6, window_bounds = array<i64: 1, 384>}, {pipeline_mode = #tpu.pipeline_mode<synchronous>, transform_indices = @transform_7, window_bounds = array<i64: 128, 128>}, {pipeline_mode = #tpu.pipeline_mode<synchronous>, transform_indices = @transform_8, window_bounds = array<i64: 1, 128>}, {transform_indices = @transform_9, window_bounds = array<i64: 1, 256, 128>}]} {
    %c0_i32 = arith.constant 0 : i32
    %0 = arith.cmpi eq, %arg1, %c0_i32 : i32
    %1 = arith.extui %0 : i1 to i32
    %c0_i32_0 = arith.constant 0 : i32
    %2 = arith.cmpi ne, %1, %c0_i32_0 : i32
    scf.if %2 {
      %c0_18 = arith.constant 0 : index
      %c0_19 = arith.constant 0 : index
      %c0_20 = arith.constant 0 : index
      %35 = vector.load %arg2[%c0_18, %c0_19, %c0_20] : memref<1x1024x128xf32, #tpu.memory_space<vmem>>, vector<1x1024x128xf32>
      %36 = vector.shape_cast %35 : vector<1x1024x128xf32> to vector<1024x128xf32>
      %cst_21 = arith.constant dense<0.000000e+00> : vector<128xf32>
      %37 = vector.multi_reduction <add>, %36, %cst_21 [0] : vector<1024x128xf32> to vector<128xf32>
      %38 = vector.shape_cast %37 : vector<128xf32> to vector<1x128xf32>
      %c0_22 = arith.constant 0 : index
      %c0_23 = arith.constant 0 : index
      %39 = vector.load %arg5[%c0_22, %c0_23] : memref<128x32xf32, #tpu.memory_space<vmem>>, vector<128x32xf32>
      %cst_24 = arith.constant dense<0.000000e+00> : vector<1x32xf32>
      %40 = tpu.matmul %38, %39, %cst_24 {dimension_numbers = #tpu.dot_dimension_numbers<[1], [0], [0], [1], [0, 0, 1, 1], [], []>} : vector<1x128xf32>, vector<128x32xf32>, vector<1x32xf32> -> vector<1x32xf32>
      %c0_25 = arith.constant 0 : index
      %c0_26 = arith.constant 0 : index
      %41 = vector.load %arg6[%c0_25, %c0_26] : memref<32x128xf32, #tpu.memory_space<vmem>>, vector<32x128xf32>
      %cst_27 = arith.constant dense<0.000000e+00> : vector<1x128xf32>
      %42 = tpu.matmul %40, %41, %cst_27 {dimension_numbers = #tpu.dot_dimension_numbers<[1], [0], [0], [1], [0, 0, 1, 1], [], []>} : vector<1x32xf32>, vector<32x128xf32>, vector<1x128xf32> -> vector<1x128xf32>
      %43 = vector.broadcast %42 : vector<1x128xf32> to vector<1024x128xf32>
      %44 = arith.subf %36, %43 : vector<1024x128xf32>
      %45 = arith.mulf %44, %44 : vector<1024x128xf32>
      %cst_28 = arith.constant dense<0.000000e+00> : vector<128xf32>
      %46 = vector.multi_reduction <add>, %45, %cst_28 [0] : vector<1024x128xf32> to vector<128xf32>
      %47 = vector.shape_cast %46 : vector<128xf32> to vector<1x128xf32>
      %c0_29 = arith.constant 0 : index
      %c0_30 = arith.constant 0 : index
      %48 = vector.load %arg5[%c0_29, %c0_30] : memref<128x32xf32, #tpu.memory_space<vmem>>, vector<128x32xf32>
      %cst_31 = arith.constant dense<0.000000e+00> : vector<1x32xf32>
      %49 = tpu.matmul %47, %48, %cst_31 {dimension_numbers = #tpu.dot_dimension_numbers<[1], [0], [0], [1], [0, 0, 1, 1], [], []>} : vector<1x128xf32>, vector<128x32xf32>, vector<1x32xf32> -> vector<1x32xf32>
      %c0_32 = arith.constant 0 : index
      %c0_33 = arith.constant 0 : index
      %50 = vector.load %arg6[%c0_32, %c0_33] : memref<32x128xf32, #tpu.memory_space<vmem>>, vector<32x128xf32>
      %cst_34 = arith.constant dense<0.000000e+00> : vector<1x128xf32>
      %51 = tpu.matmul %49, %50, %cst_34 {dimension_numbers = #tpu.dot_dimension_numbers<[1], [0], [0], [1], [0, 0, 1, 1], [], []>} : vector<1x32xf32>, vector<32x128xf32>, vector<1x128xf32> -> vector<1x128xf32>
      %cst_35 = arith.constant 9.99999997E-7 : f32
      %52 = vector.broadcast %cst_35 : f32 to vector<1x128xf32>
      %53 = arith.addf %51, %52 : vector<1x128xf32>
      %54 = math.rsqrt %53 : vector<1x128xf32>
      %c0_36 = arith.constant 0 : index
      %c0_37 = arith.constant 0 : index
      %55 = vector.load %arg3[%c0_36, %c0_37] : memref<1x128xf32, #tpu.memory_space<vmem>>, vector<1x128xf32>
      %56 = arith.mulf %54, %55 : vector<1x128xf32>
      %c0_38 = arith.constant 0 : index
      %c0_39 = arith.constant 0 : index
      %57 = vector.load %arg4[%c0_38, %c0_39] : memref<1x128xf32, #tpu.memory_space<vmem>>, vector<1x128xf32>
      %58 = arith.mulf %42, %56 : vector<1x128xf32>
      %59 = arith.subf %57, %58 : vector<1x128xf32>
      %60 = vector.broadcast %56 : vector<1x128xf32> to vector<1024x128xf32>
      %61 = arith.mulf %36, %60 : vector<1024x128xf32>
      %62 = vector.broadcast %59 : vector<1x128xf32> to vector<1024x128xf32>
      %63 = arith.addf %61, %62 : vector<1024x128xf32>
      %64 = arith.truncf %63 : vector<1024x128xf32> to vector<1024x128xbf16>
      %c0_40 = arith.constant 0 : index
      %c0_41 = arith.constant 0 : index
      %65 = vector.load %arg7[%c0_40, %c0_41] : memref<128x384xbf16, #tpu.memory_space<vmem>>, vector<128x384xbf16>
      %cst_42 = arith.constant dense<0.000000e+00> : vector<1024x384xf32>
      %66 = tpu.matmul %64, %65, %cst_42 {dimension_numbers = #tpu.dot_dimension_numbers<[1], [0], [0], [1], [0, 0, 1, 1], [], []>} : vector<1024x128xbf16>, vector<128x384xbf16>, vector<1024x384xf32> -> vector<1024x384xf32>
      %c0_43 = arith.constant 0 : index
      %c0_44 = arith.constant 0 : index
      %67 = vector.load %arg8[%c0_43, %c0_44] : memref<1x384xf32, #tpu.memory_space<vmem>>, vector<1x384xf32>
      %68 = vector.broadcast %67 : vector<1x384xf32> to vector<1024x384xf32>
      %69 = arith.addf %66, %68 : vector<1024x384xf32>
      %70 = vector.extract_strided_slice %69 {offsets = [0, 0], sizes = [1024, 128], strides = [1, 1]} : vector<1024x384xf32> to vector<1024x128xf32>
      %71 = arith.truncf %70 : vector<1024x128xf32> to vector<1024x128xbf16>
      %c0_45 = arith.constant 0 : index
      %c0_46 = arith.constant 0 : index
      %72 = vector.load %arg12[%c0_45, %c0_46] : memref<1024x128xbf16, #tpu.memory_space<vmem>>, vector<1024x128xbf16>
      tpu.vector_store %arg12[%c0_45, %c0_46], %71 {strides = array<i32>} : memref<1024x128xbf16, #tpu.memory_space<vmem>>, vector<1024x128xbf16>,
      %73 = vector.extract_strided_slice %69 {offsets = [0, 128], sizes = [1024, 128], strides = [1, 1]} : vector<1024x384xf32> to vector<1024x128xf32>
      %74 = arith.truncf %73 : vector<1024x128xf32> to vector<1024x128xbf16>
      %c0_47 = arith.constant 0 : index
      %c0_48 = arith.constant 0 : index
      %75 = vector.load %arg13[%c0_47, %c0_48] : memref<1024x128xbf16, #tpu.memory_space<vmem>>, vector<1024x128xbf16>
      tpu.vector_store %arg13[%c0_47, %c0_48], %74 {strides = array<i32>} : memref<1024x128xbf16, #tpu.memory_space<vmem>>, vector<1024x128xbf16>,
      %76 = vector.extract_strided_slice %69 {offsets = [0, 256], sizes = [1024, 128], strides = [1, 1]} : vector<1024x384xf32> to vector<1024x128xf32>
      %77 = arith.truncf %76 : vector<1024x128xf32> to vector<1024x128xbf16>
      %c0_49 = arith.constant 0 : index
      %c0_50 = arith.constant 0 : index
      %78 = vector.load %arg14[%c0_49, %c0_50] : memref<1024x128xbf16, #tpu.memory_space<vmem>>, vector<1024x128xbf16>
      tpu.vector_store %arg14[%c0_49, %c0_50], %77 {strides = array<i32>} : memref<1024x128xbf16, #tpu.memory_space<vmem>>, vector<1024x128xbf16>,
    } else {
    }
    %c256_i32 = arith.constant 256 : i32
    %3 = arith.muli %arg1, %c256_i32 : i32
    %4 = tpu.assume_multiple %3, 256 : i32
    %5 = arith.index_cast %4 : i32 to index
    %c0 = arith.constant 0 : index
    %6 = vector.load %arg12[%5, %c0] : memref<1024x128xbf16, #tpu.memory_space<vmem>>, vector<256x128xbf16>
    %c0_1 = arith.constant 0 : index
    %c0_2 = arith.constant 0 : index
    %7 = vector.load %arg13[%c0_1, %c0_2] : memref<1024x128xbf16, #tpu.memory_space<vmem>>, vector<1024x128xbf16>
    %cst = arith.constant dense<0.000000e+00> : vector<256x1024xf32>
    %8 = tpu.matmul %6, %7, %cst {dimension_numbers = #tpu.dot_dimension_numbers<[1], [1], [0], [0], [0, 0, 1, 0], [], []>} : vector<256x128xbf16>, vector<1024x128xbf16>, vector<256x1024xf32> -> vector<256x1024xf32>
    %cst_3 = arith.constant dense<0xFF800000> : vector<256xf32>
    %9 = vector.multi_reduction <maximumf>, %8, %cst_3 [1] : vector<256x1024xf32> to vector<256xf32>
    %10 = vector.shape_cast %9 : vector<256xf32> to vector<256x1xf32>
    %11 = vector.broadcast %10 : vector<256x1xf32> to vector<256x1024xf32>
    %12 = arith.subf %8, %11 : vector<256x1024xf32>
    %13 = math.exp %12 : vector<256x1024xf32>
    %14 = arith.truncf %13 : vector<256x1024xf32> to vector<256x1024xbf16>
    %c0_4 = arith.constant 0 : index
    %c0_5 = arith.constant 0 : index
    %15 = vector.load %arg14[%c0_4, %c0_5] : memref<1024x128xbf16, #tpu.memory_space<vmem>>, vector<1024x128xbf16>
    %cst_6 = arith.constant dense<0.000000e+00> : vector<256x128xf32>
    %16 = tpu.matmul %14, %15, %cst_6 {dimension_numbers = #tpu.dot_dimension_numbers<[1], [0], [0], [1], [0, 0, 1, 1], [], []>} : vector<256x1024xbf16>, vector<1024x128xbf16>, vector<256x128xf32> -> vector<256x128xf32>
    %cst_7 = arith.constant dense<0.000000e+00> : vector<256xf32>
    %17 = vector.multi_reduction <add>, %13, %cst_7 [1] : vector<256x1024xf32> to vector<256xf32>
    %18 = vector.shape_cast %17 : vector<256xf32> to vector<256x1xf32>
    %19 = tpu.reciprocal %18 {approx = true} : vector<256x1xf32> -> vector<256x1xf32>
    %20 = vector.broadcast %19 : vector<256x1xf32> to vector<256x128xf32>
    %21 = arith.mulf %16, %20 : vector<256x128xf32>
    %22 = arith.truncf %21 : vector<256x128xf32> to vector<256x128xbf16>
    %c0_8 = arith.constant 0 : index
    %c0_9 = arith.constant 0 : index
    %23 = vector.load %arg9[%c0_8, %c0_9] : memref<128x128xbf16, #tpu.memory_space<vmem>>, vector<128x128xbf16>
    %cst_10 = arith.constant dense<0.000000e+00> : vector<256x128xf32>
    %24 = tpu.matmul %22, %23, %cst_10 {dimension_numbers = #tpu.dot_dimension_numbers<[1], [0], [0], [1], [0, 0, 1, 1], [], []>} : vector<256x128xbf16>, vector<128x128xbf16>, vector<256x128xf32> -> vector<256x128xf32>
    %c0_11 = arith.constant 0 : index
    %c0_12 = arith.constant 0 : index
    %25 = vector.load %arg10[%c0_11, %c0_12] : memref<1x128xf32, #tpu.memory_space<vmem>>, vector<1x128xf32>
    %26 = vector.broadcast %25 : vector<1x128xf32> to vector<256x128xf32>
    %27 = arith.addf %24, %26 : vector<256x128xf32>
    %c0_13 = arith.constant 0 : index
    %28 = arith.index_cast %4 : i32 to index
    %c0_14 = arith.constant 0 : index
    %29 = vector.load %arg2[%c0_13, %28, %c0_14] : memref<1x1024x128xf32, #tpu.memory_space<vmem>>, vector<1x256x128xf32>
    %30 = vector.shape_cast %29 : vector<1x256x128xf32> to vector<256x128xf32>
    %31 = arith.addf %30, %27 : vector<256x128xf32>
    %c0_15 = arith.constant 0 : index
    %c0_16 = arith.constant 0 : index
    %c0_17 = arith.constant 0 : index
    %32 = vector.load %arg11[%c0_15, %c0_16, %c0_17] : memref<1x256x128xf32, #tpu.memory_space<vmem>>, vector<1x256x128xf32>
    %33 = vector.shape_cast %32 : vector<1x256x128xf32> to vector<256x128xf32>
    %34 = vector.shape_cast %31 : vector<256x128xf32> to vector<1x256x128xf32>
    tpu.vector_store %arg11[%c0_15, %c0_16, %c0_17], %34 {strides = array<i32>} : memref<1x256x128xf32, #tpu.memory_space<vmem>>, vector<1x256x128xf32>,
    return
  }
  func.func @transform_0(%arg0: i32, %arg1: i32) -> (i32, i32, i32) {
    %c0_i32 = arith.constant 0 : i32
    %c0_i32_0 = arith.constant 0 : i32
    %c0_i32_1 = arith.constant 0 : i32
    return %arg0, %c0_i32, %c0_i32_0 : i32, i32, i32
  }
  func.func @transform_1(%arg0: i32, %arg1: i32) -> (i32, i32) {
    %c0_i32 = arith.constant 0 : i32
    %c0_i32_0 = arith.constant 0 : i32
    %c0_i32_1 = arith.constant 0 : i32
    return %c0_i32, %c0_i32_0 : i32, i32
  }
  func.func @transform_2(%arg0: i32, %arg1: i32) -> (i32, i32) {
    %c0_i32 = arith.constant 0 : i32
    %c0_i32_0 = arith.constant 0 : i32
    %c0_i32_1 = arith.constant 0 : i32
    return %c0_i32, %c0_i32_0 : i32, i32
  }
  func.func @transform_3(%arg0: i32, %arg1: i32) -> (i32, i32) {
    %c0_i32 = arith.constant 0 : i32
    %c0_i32_0 = arith.constant 0 : i32
    %c0_i32_1 = arith.constant 0 : i32
    return %c0_i32, %c0_i32_0 : i32, i32
  }
  func.func @transform_4(%arg0: i32, %arg1: i32) -> (i32, i32) {
    %c0_i32 = arith.constant 0 : i32
    %c0_i32_0 = arith.constant 0 : i32
    %c0_i32_1 = arith.constant 0 : i32
    return %c0_i32, %c0_i32_0 : i32, i32
  }
  func.func @transform_5(%arg0: i32, %arg1: i32) -> (i32, i32) {
    %c0_i32 = arith.constant 0 : i32
    %c0_i32_0 = arith.constant 0 : i32
    %c0_i32_1 = arith.constant 0 : i32
    return %c0_i32, %c0_i32_0 : i32, i32
  }
  func.func @transform_6(%arg0: i32, %arg1: i32) -> (i32, i32) {
    %c0_i32 = arith.constant 0 : i32
    %c0_i32_0 = arith.constant 0 : i32
    %c0_i32_1 = arith.constant 0 : i32
    return %c0_i32, %c0_i32_0 : i32, i32
  }
  func.func @transform_7(%arg0: i32, %arg1: i32) -> (i32, i32) {
    %c0_i32 = arith.constant 0 : i32
    %c0_i32_0 = arith.constant 0 : i32
    %c0_i32_1 = arith.constant 0 : i32
    return %c0_i32, %c0_i32_0 : i32, i32
  }
  func.func @transform_8(%arg0: i32, %arg1: i32) -> (i32, i32) {
    %c0_i32 = arith.constant 0 : i32
    %c0_i32_0 = arith.constant 0 : i32
    %c0_i32_1 = arith.constant 0 : i32
    return %c0_i32, %c0_i32_0 : i32, i32
  }
  func.func @transform_9(%arg0: i32, %arg1: i32) -> (i32, i32, i32) {
    %c0_i32 = arith.constant 0 : i32
    %c0_i32_0 = arith.constant 0 : i32
    return %arg0, %arg1, %c0_i32 : i32, i32, i32
  }
}

</mosaic_0001>

<llo_original>
// kernel: attn_block.1
$region0: #{attn_block.1}
  #allocation0 [shape = 'u32[]', space=smem, size = 0x4, offset = 0x4, fixed_abs, tag = 'smem constant byte address 0x4 - core index']
  #allocation1 [shape = 'u32[144,128]{1,0:T(1,128)}', space=vmem, size = 0x12000, scoped, tag = 'internal scratch']
  #allocation2 [shape = 'bf16[1024,128]{1,0:T(8,128)(2,1)}', space=vmem, size = 0x40000, scoped, tag = 'scratch operand']
  #allocation3 [shape = 'bf16[1024,128]{1,0:T(8,128)(2,1)}', space=vmem, size = 0x40000, scoped, tag = 'scratch operand']
  #allocation4 [shape = 'bf16[1024,128]{1,0:T(8,128)(2,1)}', space=vmem, size = 0x40000, scoped, tag = 'scratch operand']
  %s0 = inlined_call_operand.hbm [shape: f32[2,1024,128], index: 0, kind: input, shape index: {}]
  %s1 = inlined_call_operand.vmem [shape: f32[1,128], index: 1, kind: input, shape index: {}]
  %s2 = inlined_call_operand.vmem [shape: f32[1,128], index: 2, kind: input, shape index: {}]
  %s3 = inlined_call_operand.vmem [shape: f32[128,32], index: 3, kind: input, shape index: {}]
  %s4 = inlined_call_operand.vmem [shape: f32[32,128], index: 4, kind: input, shape index: {}]
  %s5 = inlined_call_operand.vmem [shape: bf16[128,384], index: 5, kind: input, shape index: {}]
  %s6 = inlined_call_operand.vmem [shape: f32[1,384], index: 6, kind: input, shape index: {}]
  %s7 = inlined_call_operand.vmem [shape: bf16[128,128], index: 7, kind: input, shape index: {}]
  %s8 = inlined_call_operand.vmem [shape: f32[1,128], index: 8, kind: input, shape index: {}]
  %s9 = inlined_call_operand.hbm [shape: f32[2,1024,128], index: 9, kind: output, shape index: {}]
  %s10 = sld [smem:[#allocation0]]
  $region77: #{attn_block.1} parent=0
    _
  %s12 = ssub.s32 1, %s10
  %s13 = scalar_select 0, %s12, %s10
  $region1: #{attn_block.1} parent=0
    #allocation5 [shape = 'u8[1048576]{0}', space=vmem, size = 0x100000, scoped, tag = 'input window, operand 0']
    #allocation6 [shape = 's32[2]{0}', space=sflag, size = 0x8, scoped, tag = 'scoped memory for attn_block.1']
    #allocation7 [shape = 's32[2]{0}', space=sflag, size = 0x8, scoped, tag = 'scoped memory for attn_block.1']
    #allocation8 [shape = 'u8[262144]{0}', space=vmem, size = 0x40000, scoped, tag = 'output window, operand 0']
    %14 = vsyncpa [#allocation6], 0
    %s15 = scalar_lea.sflag [#allocation6], 1
    %16 = vsyncpa %s15, 0
    %17 = vsyncpa [#allocation7], 0
    %s18 = scalar_lea.sflag [#allocation7], 1
    %19 = vsyncpa %s18, 0
    loop: start=0, step=1, limit=10
    $region2: #{attn_block.1} parent=1 // loop_pre_header
      _
    $region3: #{attn_block.1} parent=1 // loop_header
      %s21 = sphi 0, %s25
      %p22 = scmp.ge.s32.totalorder %s21, 10
      %s28 = sphi 0, %s40
      %s29 = sphi 0, %s36
      %s30 = sphi 0, %s28
      %s31 = sphi 0, %s29
      %s32 = sphi 0, %s30
      %s33 = sphi 0, %s31
      %s43 = sphi 0, %s45
      %s46 = sphi 0, %s43
      %s47 = sphi 0, %s46
      %s63 = sphi 0, %s47
      %s67 = sphi 0, %s67
      %s69 = sphi 0, %s67
      %s70 = sphi 0, %s69
      %s84 = sphi 0, %s70
      %s88 = sphi 0, %s88
      %s90 = sphi 0, %s88
      %s91 = sphi 0, %s90
      %s105 = sphi 0, %s91
      %s109 = sphi 0, %s109
      %s111 = sphi 0, %s109
      %s112 = sphi 0, %s111
      %s126 = sphi 0, %s112
      %s130 = sphi 0, %s130
      %s132 = sphi 0, %s130
      %s133 = sphi 0, %s132
      %s147 = sphi 0, %s133
      %s151 = sphi 0, %s151
      %s153 = sphi 0, %s151
      %s154 = sphi 0, %s153
      %s168 = sphi 0, %s154
      %s172 = sphi 0, %s172
      %s174 = sphi 0, %s172
      %s175 = sphi 0, %s174
      %s189 = sphi 0, %s175
      %s193 = sphi 0, %s193
      %s195 = sphi 0, %s193
      %s196 = sphi 0, %s195
      %s210 = sphi 0, %s196
      %s214 = sphi 0, %s214
      %s216 = sphi 0, %s214
      %s217 = sphi 0, %s216
      %s231 = sphi 0, %s217
      %s239 = sphi 0, %s241
      %s242 = sphi 0, %s239
      %s243 = sphi 0, %s242
      %s259 = sphi 0, %s243
    $region4: #{attn_block.1} parent=1 // loop_header_branch
      %24 = sbr.rel (%p22) target = $region8
    $region5: #{attn_block.1} parent=1 // loop_body
      %s26 = ssub.s32 %s21, 1
      %s27 = ssub.s32 %s21, 2
      %s34 = sadd.s32 1, %s29
      %p35 = scmp.ge.s32.totalorder %s34, 4
      %s36 = scalar_select %p35, 0, %s34
      %s37 = sadd.s32 1, %s28
      %s38 = scalar_select %p35, %s37, %s28
      %p39 = scmp.ge.s32.totalorder %s38, 2
      %s40 = scalar_select %p39, 0, %s38
      %s41 = ssub.s32 %s28, %s40
      %p42 = scmp.eq.s32.totalorder %s41, 0
      %s44 = sadd.s32 %s43, 1
      %s45 = scalar_select %p42, %s43, %s44
      %p48 = pneg %p42
      %p49 = scmp.eq.s32.totalorder %s21, 7
      %p50 = por %p48, %p49
      %p51 = scmp.ne.s32.totalorder %s43, %s46
      %p52 = scmp.eq.s32.totalorder %s21, 0
      %p53 = por %p51, %p52
      %p54 = scmp.ne.s32.totalorder %s43, %s46
      %p55 = scmp.eq.s32.totalorder %s26, 7
      %p56 = por %p54, %p55
      %p57 = scmp.ne.s32.totalorder %s46, %s47
      %p58 = scmp.eq.s32.totalorder %s26, 0
      %p59 = por %p57, %p58
      %p60 = scmp.ne.s32.totalorder %s46, %s47
      %p61 = scmp.eq.s32.totalorder %s27, 7
      %p62 = por %p60, %p61
      %p64 = scmp.ne.s32.totalorder %s47, %s63
      %p65 = scmp.eq.s32.totalorder %s27, 0
      %p66 = por %p64, %p65
      %s68 = sadd.s32 %s67, 1
      %p71 = scmp.eq.s32.totalorder %s21, 7
      %p72 = scmp.ne.s32.totalorder %s67, %s69
      %p73 = scmp.eq.s32.totalorder %s21, 0
      %p74 = por %p72, %p73
      %p75 = scmp.ne.s32.totalorder %s67, %s69
      %p76 = scmp.eq.s32.totalorder %s26, 7
      %p77 = por %p75, %p76
      %p78 = scmp.ne.s32.totalorder %s69, %s70
      %p79 = scmp.eq.s32.totalorder %s26, 0
      %p80 = por %p78, %p79
      %p81 = scmp.ne.s32.totalorder %s69, %s70
      %p82 = scmp.eq.s32.totalorder %s27, 7
      %p83 = por %p81, %p82
      %p85 = scmp.ne.s32.totalorder %s70, %s84
      %p86 = scmp.eq.s32.totalorder %s27, 0
      %p87 = por %p85, %p86
      %s89 = sadd.s32 %s88, 1
      %p92 = scmp.eq.s32.totalorder %s21, 7
      %p93 = scmp.ne.s32.totalorder %s88, %s90
      %p94 = scmp.eq.s32.totalorder %s21, 0
      %p95 = por %p93, %p94
      %p96 = scmp.ne.s32.totalorder %s88, %s90
      %p97 = scmp.eq.s32.totalorder %s26, 7
      %p98 = por %p96, %p97
      %p99 = scmp.ne.s32.totalorder %s90, %s91
      %p100 = scmp.eq.s32.totalorder %s26, 0
      %p101 = por %p99, %p100
      %p102 = scmp.ne.s32.totalorder %s90, %s91
      %p103 = scmp.eq.s32.totalorder %s27, 7
      %p104 = por %p102, %p103
      %p106 = scmp.ne.s32.totalorder %s91, %s105
      %p107 = scmp.eq.s32.totalorder %s27, 0
      %p108 = por %p106, %p107
      %s110 = sadd.s32 %s109, 1
      %p113 = scmp.eq.s32.totalorder %s21, 7
      %p114 = scmp.ne.s32.totalorder %s109, %s111
      %p115 = scmp.eq.s32.totalorder %s21, 0
      %p116 = por %p114, %p115
      %p117 = scmp.ne.s32.totalorder %s109, %s111
      %p118 = scmp.eq.s32.totalorder %s26, 7
      %p119 = por %p117, %p118
      %p120 = scmp.ne.s32.totalorder %s111, %s112
      %p121 = scmp.eq.s32.totalorder %s26, 0
      %p122 = por %p120, %p121
      %p123 = scmp.ne.s32.totalorder %s111, %s112
      %p124 = scmp.eq.s32.totalorder %s27, 7
      %p125 = por %p123, %p124
      %p127 = scmp.ne.s32.totalorder %s112, %s126
      %p128 = scmp.eq.s32.totalorder %s27, 0
      %p129 = por %p127, %p128
      %s131 = sadd.s32 %s130, 1
      %p134 = scmp.eq.s32.totalorder %s21, 7
      %p135 = scmp.ne.s32.totalorder %s130, %s132
      %p136 = scmp.eq.s32.totalorder %s21, 0
      %p137 = por %p135, %p136
      %p138 = scmp.ne.s32.totalorder %s130, %s132
      %p139 = scmp.eq.s32.totalorder %s26, 7
      %p140 = por %p138, %p139
      %p141 = scmp.ne.s32.totalorder %s132, %s133
      %p142 = scmp.eq.s32.totalorder %s26, 0
      %p143 = por %p141, %p142
      %p144 = scmp.ne.s32.totalorder %s132, %s133
      %p145 = scmp.eq.s32.totalorder %s27, 7
      %p146 = por %p144, %p145
      %p148 = scmp.ne.s32.totalorder %s133, %s147
      %p149 = scmp.eq.s32.totalorder %s27, 0
      %p150 = por %p148, %p149
      %s152 = sadd.s32 %s151, 1
      %p155 = scmp.eq.s32.totalorder %s21, 7
      %p156 = scmp.ne.s32.totalorder %s151, %s153
      %p157 = scmp.eq.s32.totalorder %s21, 0
      %p158 = por %p156, %p157
      %p159 = scmp.ne.s32.totalorder %s151, %s153
      %p160 = scmp.eq.s32.totalorder %s26, 7
      %p161 = por %p159, %p160
      %p162 = scmp.ne.s32.totalorder %s153, %s154
      %p163 = scmp.eq.s32.totalorder %s26, 0
      %p164 = por %p162, %p163
      %p165 = scmp.ne.s32.totalorder %s153, %s154
      %p166 = scmp.eq.s32.totalorder %s27, 7
      %p167 = por %p165, %p166
      %p169 = scmp.ne.s32.totalorder %s154, %s168
      %p170 = scmp.eq.s32.totalorder %s27, 0
      %p171 = por %p169, %p170
      %s173 = sadd.s32 %s172, 1
      %p176 = scmp.eq.s32.totalorder %s21, 7
      %p177 = scmp.ne.s32.totalorder %s172, %s174
      %p178 = scmp.eq.s32.totalorder %s21, 0
      %p179 = por %p177, %p178
      %p180 = scmp.ne.s32.totalorder %s172, %s174
      %p181 = scmp.eq.s32.totalorder %s26, 7
      %p182 = por %p180, %p181
      %p183 = scmp.ne.s32.totalorder %s174, %s175
      %p184 = scmp.eq.s32.totalorder %s26, 0
      %p185 = por %p183, %p184
      %p186 = scmp.ne.s32.totalorder %s174, %s175
      %p187 = scmp.eq.s32.totalorder %s27, 7
      %p188 = por %p186, %p187
      %p190 = scmp.ne.s32.totalorder %s175, %s189
      %p191 = scmp.eq.s32.totalorder %s27, 0
      %p192 = por %p190, %p191
      %s194 = sadd.s32 %s193, 1
      %p197 = scmp.eq.s32.totalorder %s21, 7
      %p198 = scmp.ne.s32.totalorder %s193, %s195
      %p199 = scmp.eq.s32.totalorder %s21, 0
      %p200 = por %p198, %p199
      %p201 = scmp.ne.s32.totalorder %s193, %s195
      %p202 = scmp.eq.s32.totalorder %s26, 7
      %p203 = por %p201, %p202
      %p204 = scmp.ne.s32.totalorder %s195, %s196
      %p205 = scmp.eq.s32.totalorder %s26, 0
      %p206 = por %p204, %p205
      %p207 = scmp.ne.s32.totalorder %s195, %s196
      %p208 = scmp.eq.s32.totalorder %s27, 7
      %p209 = por %p207, %p208
      %p211 = scmp.ne.s32.totalorder %s196, %s210
      %p212 = scmp.eq.s32.totalorder %s27, 0
      %p213 = por %p211, %p212
      %s215 = sadd.s32 %s214, 1
      %p218 = scmp.eq.s32.totalorder %s21, 7
      %p219 = scmp.ne.s32.totalorder %s214, %s216
      %p220 = scmp.eq.s32.totalorder %s21, 0
      %p221 = por %p219, %p220
      %p222 = scmp.ne.s32.totalorder %s214, %s216
      %p223 = scmp.eq.s32.totalorder %s26, 7
      %p224 = por %p222, %p223
      %p225 = scmp.ne.s32.totalorder %s216, %s217
      %p226 = scmp.eq.s32.totalorder %s26, 0
      %p227 = por %p225, %p226
      %p228 = scmp.ne.s32.totalorder %s216, %s217
      %p229 = scmp.eq.s32.totalorder %s27, 7
      %p230 = por %p228, %p229
      %p232 = scmp.ne.s32.totalorder %s217, %s231
      %p233 = scmp.eq.s32.totalorder %s27, 0
      %p234 = por %p232, %p233
      %s235 = ssub.s32 %s28, %s40
      %s236 = ssub.s32 %s29, %s36
      %s237 = sor.u32 %s235, %s236
      %p238 = scmp.eq.s32.totalorder %s237, 0
      %s240 = sadd.s32 %s239, 1
      %s241 = scalar_select %p238, %s239, %s240
      %p244 = pneg %p238
      %p245 = scmp.eq.s32.totalorder %s21, 7
      %p246 = por %p244, %p245
      %p247 = scmp.ne.s32.totalorder %s239, %s242
      %p248 = scmp.eq.s32.totalorder %s21, 0
      %p249 = por %p247, %p248
      %p250 = scmp.ne.s32.totalorder %s239, %s242
      %p251 = scmp.eq.s32.totalorder %s26, 7
      %p252 = por %p250, %p251
      %p253 = scmp.ne.s32.totalorder %s242, %s243
      %p254 = scmp.eq.s32.totalorder %s26, 0
      %p255 = por %p253, %p254
      %p256 = scmp.ne.s32.totalorder %s242, %s243
      %p257 = scmp.eq.s32.totalorder %s27, 7
      %p258 = por %p256, %p257
      %p260 = scmp.ne.s32.totalorder %s243, %s259
      %p261 = scmp.eq.s32.totalorder %s27, 0
      %p262 = por %p260, %p261
      %p263 = scmp.le.s32.totalorder 1, %s21
      %p264 = scmp.lt.s32.totalorder %s21, 9
      %p265 = pnand %p263, %p264
      %p266 = pneg %p265
      // Predicated region
      $region9: #{attn_block.1} parent=5 // pred_check
        _
      $region10: #{attn_block.1} parent=5 // pred_check_branch
        %268 = sbr.rel (%p265) target = $region12
      $region11: #{attn_block.1} parent=5 // pred_region
        %s269 = ssub.s32 %s21, 1
        // Predicated region
        $region13: #{attn_block.1} parent=11 // pred_check
          %p270 = pneg %p80
        $region14: #{attn_block.1} parent=11 // pred_check_branch
          %272 = sbr.rel (%p270) target = $region16
        $region15: #{attn_block.1} parent=11 // pred_region
          _
        $region16: #{attn_block.1} parent=11 // pred_fallthru
          _
        // Predicated region
        $region17: #{attn_block.1} parent=11 // pred_check
          %p273 = pneg %p101
        $region18: #{attn_block.1} parent=11 // pred_check_branch
          %275 = sbr.rel (%p273) target = $region20
        $region19: #{attn_block.1} parent=11 // pred_region
          _
        $region20: #{attn_block.1} parent=11 // pred_fallthru
          _
        // Predicated region
        $region21: #{attn_block.1} parent=11 // pred_check
          %p276 = pneg %p122
        $region22: #{attn_block.1} parent=11 // pred_check_branch
          %278 = sbr.rel (%p276) target = $region24
        $region23: #{attn_block.1} parent=11 // pred_region
          _
        $region24: #{attn_block.1} parent=11 // pred_fallthru
          _
        // Predicated region
        $region25: #{attn_block.1} parent=11 // pred_check
          %p279 = pneg %p143
        $region26: #{attn_block.1} parent=11 // pred_check_branch
          %281 = sbr.rel (%p279) target = $region28
        $region27: #{attn_block.1} parent=11 // pred_region
          _
        $region28: #{attn_block.1} parent=11 // pred_fallthru
          _
        // Predicated region
        $region29: #{attn_block.1} parent=11 // pred_check
          %p282 = pneg %p164
        $region30: #{attn_block.1} parent=11 // pred_check_branch
          %284 = sbr.rel (%p282) target = $region32
        $region31: #{attn_block.1} parent=11 // pred_region
          _
        $region32: #{attn_block.1} parent=11 // pred_fallthru
          _
        // Predicated region
        $region33: #{attn_block.1} parent=11 // pred_check
          %p285 = pneg %p185
        $region34: #{attn_block.1} parent=11 // pred_check_branch
          %287 = sbr.rel (%p285) target = $region36
        $region35: #{attn_block.1} parent=11 // pred_region
          _
        $region36: #{attn_block.1} parent=11 // pred_fallthru
          _
        // Predicated region
        $region37: #{attn_block.1} parent=11 // pred_check
          %p288 = pneg %p206
        $region38: #{attn_block.1} parent=11 // pred_check_branch
          %290 = sbr.rel (%p288) target = $region40
        $region39: #{attn_block.1} parent=11 // pred_region
          _
        $region40: #{attn_block.1} parent=11 // pred_fallthru
          _
        // Predicated region
        $region41: #{attn_block.1} parent=11 // pred_check
          %p291 = pneg %p227
        $region42: #{attn_block.1} parent=11 // pred_check_branch
          %293 = sbr.rel (%p291) target = $region44
        $region43: #{attn_block.1} parent=11 // pred_region
          _
        $region44: #{attn_block.1} parent=11 // pred_fallthru
          _
      $region12: #{attn_block.1} parent=5 // pred_fallthru
        _
      %p294 = scmp.lt.s32.totalorder %s21, 8
      // Predicated region
      $region45: #{attn_block.1} parent=5 // pred_check
        %p295 = pneg %p294
      $region46: #{attn_block.1} parent=5 // pred_check_branch
        %297 = sbr.rel (%p295) target = $region48
      $region47: #{attn_block.1} parent=5 // pred_region
        // Predicated region
        $region49: #{attn_block.1} parent=47 // pred_check
          %p298 = pneg %p53
        $region50: #{attn_block.1} parent=47 // pred_check_branch
          %300 = sbr.rel (%p298) target = $region52
        $region51: #{attn_block.1} parent=47 // pred_region
          %s301 = sand.u32 %s43, 1
          %s302 = scalar_lea.sflag [#allocation6], %s301
          %s303 = sand.u32 %s43, 1
          %s304 = smul.addr %s303, 1024
          %s305 = scalar_lea.vmem [#allocation5], %s304
          %s307 = ssub.s32 16384, 16384
          %308 = vsyncadd %s302, %s307
          %s309 = smul.addr %s28, 128
          %s310 = smul.addr %s309, 128
          %s311 = scalar_lea.hbm %s0, %s310
          %s312 = sshll.u32 %s305, 4
          %s313 = int_to_ptr.vmem [resolvable:$true] %s312
          %318 = dma.hbm_to_vmem [thread:$0]  %s311, 16384, %s313, %s302, 128, 128, 8
        $region52: #{attn_block.1} parent=47 // pred_fallthru
          _
      $region48: #{attn_block.1} parent=5 // pred_fallthru
        _
      %p319 = scmp.le.s32.totalorder 1, %s21
      %p320 = scmp.lt.s32.totalorder %s21, 9
      %p321 = pnand %p319, %p320
      %p322 = pneg %p321
      // Predicated region
      $region53: #{attn_block.1} parent=5 // pred_check
        _
      $region54: #{attn_block.1} parent=5 // pred_check_branch
        %324 = sbr.rel (%p321) target = $region56
      $region55: #{attn_block.1} parent=5 // pred_region
        %s325 = ssub.s32 %s21, 1
        %s326 = sand.u32 %s46, 1
        %s327 = scalar_lea.sflag [#allocation6], %s326
        %s328 = sand.u32 %s46, 1
        %s329 = smul.addr %s328, 1024
        %s330 = scalar_lea.vmem [#allocation5], %s329
        // Predicated region
        $region57: #{attn_block.1} parent=55 // pred_check
          %p331 = pneg %p59
        $region58: #{attn_block.1} parent=55 // pred_check_branch
          %333 = sbr.rel (%p331) target = $region60
        $region59: #{attn_block.1} parent=55 // pred_region
          %334 = dma.done %s327, 16384
        $region60: #{attn_block.1} parent=55 // pred_fallthru
          _
        %s335 = sand.u32 %s46, 1
        %s336 = scalar_lea.sflag [#allocation6], %s335
        %s337 = sand.u32 %s46, 1
        %s338 = smul.addr %s337, 1024
        %s339 = scalar_lea.vmem [#allocation5], %s338
        %p340 = pneg %p59
        %p341 = pneg %p56
        %p342 = pneg %p80
        %p343 = pneg %p77
        %p344 = pneg %p101
        %p345 = pneg %p98
        %p346 = pneg %p122
        %p347 = pneg %p119
        %p348 = pneg %p143
        %p349 = pneg %p140
        %p350 = pneg %p164
        %p351 = pneg %p161
        %p352 = pneg %p185
        %p353 = pneg %p182
        %p354 = pneg %p206
        %p355 = pneg %p203
        %p356 = pneg %p227
        %p357 = pneg %p224
        %p358 = pneg %p255
        %p359 = pneg %p252
        %s360 = sand.u32 %s242, 1
        %s361 = scalar_lea.sflag [#allocation7], %s360
        %s362 = sand.u32 %s242, 1
        %s363 = smul.addr %s362, 256
        %s364 = scalar_lea.vmem [#allocation8], %s363
        %s365 = smul.u32 32, %s31
        %p367 = scmp.eq.s32.totalorder %s31, 0
        // Predicated region
        $region61: #{attn_block.1} parent=55 // pred_check
          %p368 = pneg %p367
        $region62: #{attn_block.1} parent=55 // pred_check_branch
          %370 = sbr.rel (%p368) target = $region64
        $region63: #{attn_block.1} parent=55 // pred_region
          %v371 = vld [vmem:[%s330] sm:$0xff]
          %v372 = vld [vmem:[%s330 + $0x8] sm:$0xff]
          %v373 = vld [vmem:[%s330 + $0x10] sm:$0xff]
          %v374 = vld [vmem:[%s330 + $0x18] sm:$0xff]
          %v375 = vld [vmem:[%s330 + $0x20] sm:$0xff]
          %v376 = vld [vmem:[%s330 + $0x28] sm:$0xff]
          %v377 = vld [vmem:[%s330 + $0x30] sm:$0xff]
          %v378 = vld [vmem:[%s330 + $0x38] sm:$0xff]
          %v379 = vld [vmem:[%s330 + $0x40] sm:$0xff]
          %v380 = vld [vmem:[%s330 + $0x48] sm:$0xff]
          %v381 = vld [vmem:[%s330 + $0x50] sm:$0xff]
          %v382 = vld [vmem:[%s330 + $0x58] sm:$0xff]
          %v383 = vld [vmem:[%s330 + $0x60] sm:$0xff]
          %v384 = vld [vmem:[%s330 + $0x68] sm:$0xff]
          %v385 = vld [vmem:[%s330 + $0x70] sm:$0xff]
          %v386 = vld [vmem:[%s330 + $0x78] sm:$0xff]
          %v387 = vld [vmem:[%s330 + $0x80] sm:$0xff]
          %v388 = vld [vmem:[%s330 + $0x88] sm:$0xff]
          %v389 = vld [vmem:[%s330 + $0x90] sm:$0xff]
          %v390 = vld [vmem:[%s330 + $0x98] sm:$0xff]
          %v391 = vld [vmem:[%s330 + $0xa0] sm:$0xff]
          %v392 = vld [vmem:[%s330 + $0xa8] sm:$0xff]
          %v393 = vld [vmem:[%s330 + $0xb0] sm:$0xff]
          %v394 = vld [vmem:[%s330 + $0xb8] sm:$0xff]
          %v395 = vld [vmem:[%s330 + $0xc0] sm:$0xff]
          %v396 = vld [vmem:[%s330 + $0xc8] sm:$0xff]
          %v397 = vld [vmem:[%s330 + $0xd0] sm:$0xff]
          %v398 = vld [vmem:[%s330 + $0xd8] sm:$0xff]
          %v399 = vld [vmem:[%s330 + $0xe0] sm:$0xff]
          %v400 = vld [vmem:[%s330 + $0xe8] sm:$0xff]
          %v401 = vld [vmem:[%s330 + $0xf0] sm:$0xff]
          %v402 = vld [vmem:[%s330 + $0xf8] sm:$0xff]
          %v403 = vld [vmem:[%s330 + $0x100] sm:$0xff]
          %v404 = vld [vmem:[%s330 + $0x108] sm:$0xff]
          %v405 = vld [vmem:[%s330 + $0x110] sm:$0xff]
          %v406 = vld [vmem:[%s330 + $0x118] sm:$0xff]
          %v407 = vld [vmem:[%s330 + $0x120] sm:$0xff]
          %v408 = vld [vmem:[%s330 + $0x128] sm:$0xff]
          %v409 = vld [vmem:[%s330 + $0x130] sm:$0xff]
          %v410 = vld [vmem:[%s330 + $0x138] sm:$0xff]
          %v411 = vld [vmem:[%s330 + $0x140] sm:$0xff]
          %v412 = vld [vmem:[%s330 + $0x148] sm:$0xff]
          %v413 = vld [vmem:[%s330 + $0x150] sm:$0xff]
          %v414 = vld [vmem:[%s330 + $0x158] sm:$0xff]
          %v415 = vld [vmem:[%s330 + $0x160] sm:$0xff]
          %v416 = vld [vmem:[%s330 + $0x168] sm:$0xff]
          %v417 = vld [vmem:[%s330 + $0x170] sm:$0xff]
          %v418 = vld [vmem:[%s330 + $0x178] sm:$0xff]
          %v419 = vld [vmem:[%s330 + $0x180] sm:$0xff]
          %v420 = vld [vmem:[%s330 + $0x188] sm:$0xff]
          %v421 = vld [vmem:[%s330 + $0x190] sm:$0xff]
          %v422 = vld [vmem:[%s330 + $0x198] sm:$0xff]
          %v423 = vld [vmem:[%s330 + $0x1a0] sm:$0xff]
          %v424 = vld [vmem:[%s330 + $0x1a8] sm:$0xff]
          %v425 = vld [vmem:[%s330 + $0x1b0] sm:$0xff]
          %v426 = vld [vmem:[%s330 + $0x1b8] sm:$0xff]
          %v427 = vld [vmem:[%s330 + $0x1c0] sm:$0xff]
          %v428 = vld [vmem:[%s330 + $0x1c8] sm:$0xff]
          %v429 = vld [vmem:[%s330 + $0x1d0] sm:$0xff]
          %v430 = vld [vmem:[%s330 + $0x1d8] sm:$0xff]
          %v431 = vld [vmem:[%s330 + $0x1e0] sm:$0xff]
          %v432 = vld [vmem:[%s330 + $0x1e8] sm:$0xff]
          %v433 = vld [vmem:[%s330 + $0x1f0] sm:$0xff]
          %v434 = vld [vmem:[%s330 + $0x1f8] sm:$0xff]
          %v435 = vld [vmem:[%s330 + $0x200] sm:$0xff]
          %v436 = vld [vmem:[%s330 + $0x208] sm:$0xff]
          %v437 = vld [vmem:[%s330 + $0x210] sm:$0xff]
          %v438 = vld [vmem:[%s330 + $0x218] sm:$0xff]
          %v439 = vld [vmem:[%s330 + $0x220] sm:$0xff]
          %v440 = vld [vmem:[%s330 + $0x228] sm:$0xff]
          %v441 = vld [vmem:[%s330 + $0x230] sm:$0xff]
          %v442 = vld [vmem:[%s330 + $0x238] sm:$0xff]
          %v443 = vld [vmem:[%s330 + $0x240] sm:$0xff]
          %v444 = vld [vmem:[%s330 + $0x248] sm:$0xff]
          %v445 = vld [vmem:[%s330 + $0x250] sm:$0xff]
          %v446 = vld [vmem:[%s330 + $0x258] sm:$0xff]
          %v447 = vld [vmem:[%s330 + $0x260] sm:$0xff]
          %v448 = vld [vmem:[%s330 + $0x268] sm:$0xff]
          %v449 = vld [vmem:[%s330 + $0x270] sm:$0xff]
          %v450 = vld [vmem:[%s330 + $0x278] sm:$0xff]
          %v451 = vld [vmem:[%s330 + $0x280] sm:$0xff]
          %v452 = vld [vmem:[%s330 + $0x288] sm:$0xff]
          %v453 = vld [vmem:[%s330 + $0x290] sm:$0xff]
          %v454 = vld [vmem:[%s330 + $0x298] sm:$0xff]
          %v455 = vld [vmem:[%s330 + $0x2a0] sm:$0xff]
          %v456 = vld [vmem:[%s330 + $0x2a8] sm:$0xff]
          %v457 = vld [vmem:[%s330 + $0x2b0] sm:$0xff]
          %v458 = vld [vmem:[%s330 + $0x2b8] sm:$0xff]
          %v459 = vld [vmem:[%s330 + $0x2c0] sm:$0xff]
          %v460 = vld [vmem:[%s330 + $0x2c8] sm:$0xff]
          %v461 = vld [vmem:[%s330 + $0x2d0] sm:$0xff]
          %v462 = vld [vmem:[%s330 + $0x2d8] sm:$0xff]
          %v463 = vld [vmem:[%s330 + $0x2e0] sm:$0xff]
          %v464 = vld [vmem:[%s330 + $0x2e8] sm:$0xff]
          %v465 = vld [vmem:[%s330 + $0x2f0] sm:$0xff]
          %v466 = vld [vmem:[%s330 + $0x2f8] sm:$0xff]
          %v467 = vld [vmem:[%s330 + $0x300] sm:$0xff]
          %v468 = vld [vmem:[%s330 + $0x308] sm:$0xff]
          %v469 = vld [vmem:[%s330 + $0x310] sm:$0xff]
          %v470 = vld [vmem:[%s330 + $0x318] sm:$0xff]
          %v471 = vld [vmem:[%s330 + $0x320] sm:$0xff]
          %v472 = vld [vmem:[%s330 + $0x328] sm:$0xff]
          %v473 = vld [vmem:[%s330 + $0x330] sm:$0xff]
          %v474 = vld [vmem:[%s330 + $0x338] sm:$0xff]
          %v475 = vld [vmem:[%s330 + $0x340] sm:$0xff]
          %v476 = vld [vmem:[%s330 + $0x348] sm:$0xff]
          %v477 = vld [vmem:[%s330 + $0x350] sm:$0xff]
          %v478 = vld [vmem:[%s330 + $0x358] sm:$0xff]
          %v479 = vld [vmem:[%s330 + $0x360] sm:$0xff]
          %v480 = vld [vmem:[%s330 + $0x368] sm:$0xff]
          %v481 = vld [vmem:[%s330 + $0x370] sm:$0xff]
          %v482 = vld [vmem:[%s330 + $0x378] sm:$0xff]
          %v483 = vld [vmem:[%s330 + $0x380] sm:$0xff]
          %v484 = vld [vmem:[%s330 + $0x388] sm:$0xff]
          %v485 = vld [vmem:[%s330 + $0x390] sm:$0xff]
          %v486 = vld [vmem:[%s330 + $0x398] sm:$0xff]
          %v487 = vld [vmem:[%s330 + $0x3a0] sm:$0xff]
          %v488 = vld [vmem:[%s330 + $0x3a8] sm:$0xff]
          %v489 = vld [vmem:[%s330 + $0x3b0] sm:$0xff]
          %v490 = vld [vmem:[%s330 + $0x3b8] sm:$0xff]
          %v491 = vld [vmem:[%s330 + $0x3c0] sm:$0xff]
          %v492 = vld [vmem:[%s330 + $0x3c8] sm:$0xff]
          %v493 = vld [vmem:[%s330 + $0x3d0] sm:$0xff]
          %v494 = vld [vmem:[%s330 + $0x3d8] sm:$0xff]
          %v495 = vld [vmem:[%s330 + $0x3e0] sm:$0xff]
          %v496 = vld [vmem:[%s330 + $0x3e8] sm:$0xff]
          %v497 = vld [vmem:[%s330 + $0x3f0] sm:$0xff]
          %v498 = vld [vmem:[%s330 + $0x3f8] sm:$0xff]
          %v499 = vadd.f32 %v371, %v372
          %v500 = vadd.f32 %v499, %v373
          %v501 = vadd.f32 %v500, %v374
          %v502 = vadd.f32 %v501, %v375
          %v503 = vadd.f32 %v502, %v376
          %v504 = vadd.f32 %v503, %v377
          %v505 = vadd.f32 %v504, %v378
          %v506 = vadd.f32 %v505, %v379
          %v507 = vadd.f32 %v506, %v380
          %v508 = vadd.f32 %v507, %v381
          %v509 = vadd.f32 %v508, %v382
          %v510 = vadd.f32 %v509, %v383
          %v511 = vadd.f32 %v510, %v384
          %v512 = vadd.f32 %v511, %v385
          %v513 = vadd.f32 %v512, %v386
          %v514 = vadd.f32 %v513, %v387
          %v515 = vadd.f32 %v514, %v388
          %v516 = vadd.f32 %v515, %v389
          %v517 = vadd.f32 %v516, %v390
          %v518 = vadd.f32 %v517, %v391
          %v519 = vadd.f32 %v518, %v392
          %v520 = vadd.f32 %v519, %v393
          %v521 = vadd.f32 %v520, %v394
          %v522 = vadd.f32 %v521, %v395
          %v523 = vadd.f32 %v522, %v396
          %v524 = vadd.f32 %v523, %v397
          %v525 = vadd.f32 %v524, %v398
          %v526 = vadd.f32 %v525, %v399
          %v527 = vadd.f32 %v526, %v400
          %v528 = vadd.f32 %v527, %v401
          %v529 = vadd.f32 %v528, %v402
          %v530 = vadd.f32 %v529, %v403
          %v531 = vadd.f32 %v530, %v404
          %v532 = vadd.f32 %v531, %v405
          %v533 = vadd.f32 %v532, %v406
          %v534 = vadd.f32 %v533, %v407
          %v535 = vadd.f32 %v534, %v408
          %v536 = vadd.f32 %v535, %v409
          %v537 = vadd.f32 %v536, %v410
          %v538 = vadd.f32 %v537, %v411
          %v539 = vadd.f32 %v538, %v412
          %v540 = vadd.f32 %v539, %v413
          %v541 = vadd.f32 %v540, %v414
          %v542 = vadd.f32 %v541, %v415
          %v543 = vadd.f32 %v542, %v416
          %v544 = vadd.f32 %v543, %v417
          %v545 = vadd.f32 %v544, %v418
          %v546 = vadd.f32 %v545, %v419
          %v547 = vadd.f32 %v546, %v420
          %v548 = vadd.f32 %v547, %v421
          %v549 = vadd.f32 %v548, %v422
          %v550 = vadd.f32 %v549, %v423
          %v551 = vadd.f32 %v550, %v424
          %v552 = vadd.f32 %v551, %v425
          %v553 = vadd.f32 %v552, %v426
          %v554 = vadd.f32 %v553, %v427
          %v555 = vadd.f32 %v554, %v428
          %v556 = vadd.f32 %v555, %v429
          %v557 = vadd.f32 %v556, %v430
          %v558 = vadd.f32 %v557, %v431
          %v559 = vadd.f32 %v558, %v432
          %v560 = vadd.f32 %v559, %v433
          %v561 = vadd.f32 %v560, %v434
          %v562 = vadd.f32 %v561, %v435
          %v563 = vadd.f32 %v562, %v436
          %v564 = vadd.f32 %v563, %v437
          %v565 = vadd.f32 %v564, %v438
          %v566 = vadd.f32 %v565, %v439
          %v567 = vadd.f32 %v566, %v440
          %v568 = vadd.f32 %v567, %v441
          %v569 = vadd.f32 %v568, %v442
          %v570 = vadd.f32 %v569, %v443
          %v571 = vadd.f32 %v570, %v444
          %v572 = vadd.f32 %v571, %v445
          %v573 = vadd.f32 %v572, %v446
          %v574 = vadd.f32 %v573, %v447
          %v575 = vadd.f32 %v574, %v448
          %v576 = vadd.f32 %v575, %v449
          %v577 = vadd.f32 %v576, %v450
          %v578 = vadd.f32 %v577, %v451
          %v579 = vadd.f32 %v578, %v452
          %v580 = vadd.f32 %v579, %v453
          %v581 = vadd.f32 %v580, %v454
          %v582 = vadd.f32 %v581, %v455
          %v583 = vadd.f32 %v582, %v456
          %v584 = vadd.f32 %v583, %v457
          %v585 = vadd.f32 %v584, %v458
          %v586 = vadd.f32 %v585, %v459
          %v587 = vadd.f32 %v586, %v460
          %v588 = vadd.f32 %v587, %v461
          %v589 = vadd.f32 %v588, %v462
          %v590 = vadd.f32 %v589, %v463
          %v591 = vadd.f32 %v590, %v464
          %v592 = vadd.f32 %v591, %v465
          %v593 = vadd.f32 %v592, %v466
          %v594 = vadd.f32 %v593, %v467
          %v595 = vadd.f32 %v594, %v468
          %v596 = vadd.f32 %v595, %v469
          %v597 = vadd.f32 %v596, %v470
          %v598 = vadd.f32 %v597, %v471
          %v599 = vadd.f32 %v598, %v472
          %v600 = vadd.f32 %v599, %v473
          %v601 = vadd.f32 %v600, %v474
          %v602 = vadd.f32 %v601, %v475
          %v603 = vadd.f32 %v602, %v476
          %v604 = vadd.f32 %v603, %v477
          %v605 = vadd.f32 %v604, %v478
          %v606 = vadd.f32 %v605, %v479
          %v607 = vadd.f32 %v606, %v480
          %v608 = vadd.f32 %v607, %v481
          %v609 = vadd.f32 %v608, %v482
          %v610 = vadd.f32 %v609, %v483
          %v611 = vadd.f32 %v610, %v484
          %v612 = vadd.f32 %v611, %v485
          %v613 = vadd.f32 %v612, %v486
          %v614 = vadd.f32 %v613, %v487
          %v615 = vadd.f32 %v614, %v488
          %v616 = vadd.f32 %v615, %v489
          %v617 = vadd.f32 %v616, %v490
          %v618 = vadd.f32 %v617, %v491
          %v619 = vadd.f32 %v618, %v492
          %v620 = vadd.f32 %v619, %v493
          %v621 = vadd.f32 %v620, %v494
          %v622 = vadd.f32 %v621, %v495
          %v623 = vadd.f32 %v622, %v496
          %v624 = vadd.f32 %v623, %v497
          %v625 = vadd.f32 %v624, %v498
          %v626 = vrot.slane %v625, 4
          %v627 = vadd.f32 %v625, %v626
          %v628 = vrot.slane %v627, 2
          %v629 = vadd.f32 %v627, %v628
          %v630 = vrot.slane %v629, 1
          %v631 = vadd.f32 %v629, %v630
          %v632 = vld [vmem:[%s3] sm:$0xff]
          %v633 = vld [vmem:[%s3 + $0x8] sm:$0xff]
          %v634 = vld [vmem:[%s3 + $0x10] sm:$0xff]
          %v635 = vld [vmem:[%s3 + $0x18] sm:$0xff]
          %v636 = vld [vmem:[%s3 + $0x20] sm:$0xff]
          %v637 = vld [vmem:[%s3 + $0x28] sm:$0xff]
          %v638 = vld [vmem:[%s3 + $0x30] sm:$0xff]
          %v639 = vld [vmem:[%s3 + $0x38] sm:$0xff]
          %v640 = vld [vmem:[%s3 + $0x40] sm:$0xff]
          %v641 = vld [vmem:[%s3 + $0x48] sm:$0xff]
          %v642 = vld [vmem:[%s3 + $0x50] sm:$0xff]
          %v643 = vld [vmem:[%s3 + $0x58] sm:$0xff]
          %v644 = vld [vmem:[%s3 + $0x60] sm:$0xff]
          %v645 = vld [vmem:[%s3 + $0x68] sm:$0xff]
          %v646 = vld [vmem:[%s3 + $0x70] sm:$0xff]
          %v647 = vld [vmem:[%s3 + $0x78] sm:$0xff]
          %648 = vmatprep.subr.mxu0 0.0
          %649 = vmatpush1.msra.mxu0 %v647
          %650 = vmatprep.subr.mxu0 0.0
          %651 = vmatpush1.msra.mxu0 %v646
          %652 = vmatprep.subr.mxu0 0.0
          %653 = vmatpush1.msra.mxu0 %v645
          %654 = vmatprep.subr.mxu0 0.0
          %655 = vmatpush1.msra.mxu0 %v644
          %656 = vmatprep.subr.mxu0 0.0
          %657 = vmatpush1.msra.mxu0 %v643
          %658 = vmatprep.subr.mxu0 0.0
          %659 = vmatpush1.msra.mxu0 %v642
          %660 = vmatprep.subr.mxu0 0.0
          %661 = vmatpush1.msra.mxu0 %v641
          %662 = vmatprep.subr.mxu0 0.0
          %663 = vmatpush1.msra.mxu0 %v640
          %664 = vmatprep.subr.mxu0 0.0
          %665 = vmatpush1.msra.mxu0 %v639
          %666 = vmatprep.subr.mxu0 0.0
          %667 = vmatpush1.msra.mxu0 %v638
          %668 = vmatprep.subr.mxu0 0.0
          %669 = vmatpush1.msra.mxu0 %v637
          %670 = vmatprep.subr.mxu0 0.0
          %671 = vmatpush1.msra.mxu0 %v636
          %672 = vmatprep.subr.mxu0 0.0
          %673 = vmatpush1.msra.mxu0 %v635
          %674 = vmatprep.subr.mxu0 0.0
          %675 = vmatpush1.msra.mxu0 %v634
          %676 = vmatprep.subr.mxu0 0.0
          %677 = vmatpush1.msra.mxu0 %v633
          %678 = vmatprep.subr.mxu0 0.0
          %679 = vmatpush1.msra.mxu0 %v632
          %680 = vmatprep.subr.mxu0 0.0
          %681 = vmatpush2.msra.mxu0 0.0
          %682 = vmatprep.subr.mxu0 0.0
          %683 = vmatpush2.msra.mxu0 0.0
          %684 = vmatprep.subr.mxu0 0.0
          %685 = vmatpush2.msra.mxu0 0.0
          %686 = vmatprep.subr.mxu0 0.0
          %687 = vmatpush2.msra.mxu0 0.0
          %688 = vmatprep.subr.mxu0 0.0
          %689 = vmatpush2.msra.mxu0 0.0
          %690 = vmatprep.subr.mxu0 0.0
          %691 = vmatpush2.msra.mxu0 0.0
          %692 = vmatprep.subr.mxu0 0.0
          %693 = vmatpush2.msra.mxu0 0.0
          %694 = vmatprep.subr.mxu0 0.0
          %695 = vmatpush2.msra.mxu0 0.0
          %696 = vmatprep.subr.mxu0 0.0
          %697 = vmatpush2.msra.mxu0 0.0
          %698 = vmatprep.subr.mxu0 0.0
          %699 = vmatpush2.msra.mxu0 0.0
          %700 = vmatprep.subr.mxu0 0.0
          %701 = vmatpush2.msra.mxu0 0.0
          %702 = vmatprep.subr.mxu0 0.0
          %703 = vmatpush2.msra.mxu0 0.0
          %704 = vmatprep.subr.mxu0 0.0
          %705 = vmatpush2.msra.mxu0 0.0
          %706 = vmatprep.subr.mxu0 0.0
          %707 = vmatpush2.msra.mxu0 0.0
          %708 = vmatprep.subr.mxu0 0.0
          %709 = vmatpush2.msra.mxu0 0.0
          %710 = vmatprep.subr.mxu0 0.0
          %711 = vmatpush2.msra.mxu0 0.0
          %712 = vmatprep.mubr.f32.mxu0 0.0
          %713 = vmatmul.mubr.f32.gmra.mxu0 %v631
          %v714 = vpop.f32.mrf.mxu0
          %v715 = vadd.f32 0.0, %v714
          %v716 = vpop.f32.mrf.mxu0
          %717 = vdwg.mxu0
          %v718 = vld [vmem:[%s4] sm:$0xff]
          %v719 = vld [vmem:[%s4 + $0x8] sm:$0xff]
          %v720 = vld [vmem:[%s4 + $0x10] sm:$0xff]
          %v721 = vld [vmem:[%s4 + $0x18] sm:$0xff]
          %vm722 = vcmask 261120
          %v724 = vsel %vm722, %v715, 0
          %726 = vmatprep.subr.mxu0 0.0
          %727 = vmatpush1.msra.mxu0 0.0
          %728 = vmatprep.subr.mxu0 0.0
          %729 = vmatpush1.msra.mxu0 0.0
          %730 = vmatprep.subr.mxu0 0.0
          %731 = vmatpush1.msra.mxu0 0.0
          %732 = vmatprep.subr.mxu0 0.0
          %733 = vmatpush1.msra.mxu0 0.0
          %734 = vmatprep.subr.mxu0 0.0
          %735 = vmatpush1.msra.mxu0 0.0
          %736 = vmatprep.subr.mxu0 0.0
          %737 = vmatpush1.msra.mxu0 0.0
          %738 = vmatprep.subr.mxu0 0.0
          %739 = vmatpush1.msra.mxu0 0.0
          %740 = vmatprep.subr.mxu0 0.0
          %741 = vmatpush1.msra.mxu0 0.0
          %742 = vmatprep.subr.mxu0 0.0
          %743 = vmatpush1.msra.mxu0 0.0
          %744 = vmatprep.subr.mxu0 0.0
          %745 = vmatpush1.msra.mxu0 0.0
          %746 = vmatprep.subr.mxu0 0.0
          %747 = vmatpush1.msra.mxu0 0.0
          %748 = vmatprep.subr.mxu0 0.0
          %749 = vmatpush1.msra.mxu0 0.0
          %750 = vmatprep.subr.mxu0 0.0
          %751 = vmatpush1.msra.mxu0 %v721
          %752 = vmatprep.subr.mxu0 0.0
          %753 = vmatpush1.msra.mxu0 %v720
          %754 = vmatprep.subr.mxu0 0.0
          %755 = vmatpush1.msra.mxu0 %v719
          %756 = vmatprep.subr.mxu0 0.0
          %757 = vmatpush1.msra.mxu0 %v718
          %758 = vmatprep.subr.mxu0 0.0
          %759 = vmatpush2.msra.mxu0 0.0
          %760 = vmatprep.subr.mxu0 0.0
          %761 = vmatpush2.msra.mxu0 0.0
          %762 = vmatprep.subr.mxu0 0.0
          %763 = vmatpush2.msra.mxu0 0.0
          %764 = vmatprep.subr.mxu0 0.0
          %765 = vmatpush2.msra.mxu0 0.0
          %766 = vmatprep.subr.mxu0 0.0
          %767 = vmatpush2.msra.mxu0 0.0
          %768 = vmatprep.subr.mxu0 0.0
          %769 = vmatpush2.msra.mxu0 0.0
          %770 = vmatprep.subr.mxu0 0.0
          %771 = vmatpush2.msra.mxu0 0.0
          %772 = vmatprep.subr.mxu0 0.0
          %773 = vmatpush2.msra.mxu0 0.0
          %774 = vmatprep.subr.mxu0 0.0
          %775 = vmatpush2.msra.mxu0 0.0
          %776 = vmatprep.subr.mxu0 0.0
          %777 = vmatpush2.msra.mxu0 0.0
          %778 = vmatprep.subr.mxu0 0.0
          %779 = vmatpush2.msra.mxu0 0.0
          %780 = vmatprep.subr.mxu0 0.0
          %781 = vmatpush2.msra.mxu0 0.0
          %782 = vmatprep.subr.mxu0 0.0
          %783 = vmatpush2.msra.mxu0 0.0
          %784 = vmatprep.subr.mxu0 0.0
          %785 = vmatpush2.msra.mxu0 0.0
          %786 = vmatprep.subr.mxu0 0.0
          %787 = vmatpush2.msra.mxu0 0.0
          %788 = vmatprep.subr.mxu0 0.0
          %789 = vmatpush2.msra.mxu0 0.0
          %790 = vmatprep.mubr.f32.mxu0 0.0
          %791 = vmatmul.mubr.f32.gmra.mxu0 %v724
          %v792 = vpop.f32.mrf.mxu0
          %v793 = vadd.f32 0.0, %v792
          %v794 = vpop.f32.mrf.mxu0
          %795 = vdwg.mxu0
          %v796 = vlaneseq
          %v797 = vshrl.u32 %v796, 7
          %v798 = vsub.s32 0, %v797
          %v799 = vrot.slane %v793, %v798
          %v800 = vsub.f32 %v371, %v799
          %v801 = vsub.f32 %v372, %v799
          %v802 = vsub.f32 %v373, %v799
          %v803 = vsub.f32 %v374, %v799
          %v804 = vsub.f32 %v375, %v799
          %v805 = vsub.f32 %v376, %v799
          %v806 = vsub.f32 %v377, %v799
          %v807 = vsub.f32 %v378, %v799
          %v808 = vsub.f32 %v379, %v799
          %v809 = vsub.f32 %v380, %v799
          %v810 = vsub.f32 %v381, %v799
          %v811 = vsub.f32 %v382, %v799
          %v812 = vsub.f32 %v383, %v799
          %v813 = vsub.f32 %v384, %v799
          %v814 = vsub.f32 %v385, %v799
          %v815 = vsub.f32 %v386, %v799
          %v816 = vsub.f32 %v387, %v799
          %v817 = vsub.f32 %v388, %v799
          %v818 = vsub.f32 %v389, %v799
          %v819 = vsub.f32 %v390, %v799
          %v820 = vsub.f32 %v391, %v799
          %v821 = vsub.f32 %v392, %v799
          %v822 = vsub.f32 %v393, %v799
          %v823 = vsub.f32 %v394, %v799
          %v824 = vsub.f32 %v395, %v799
          %v825 = vsub.f32 %v396, %v799
          %v826 = vsub.f32 %v397, %v799
          %v827 = vsub.f32 %v398, %v799
          %v828 = vsub.f32 %v399, %v799
          %v829 = vsub.f32 %v400, %v799
          %v830 = vsub.f32 %v401, %v799
          %v831 = vsub.f32 %v402, %v799
          %v832 = vsub.f32 %v403, %v799
          %v833 = vsub.f32 %v404, %v799
          %v834 = vsub.f32 %v405, %v799
          %v835 = vsub.f32 %v406, %v799
          %v836 = vsub.f32 %v407, %v799
          %v837 = vsub.f32 %v408, %v799
          %v838 = vsub.f32 %v409, %v799
          %v839 = vsub.f32 %v410, %v799
          %v840 = vsub.f32 %v411, %v799
          %v841 = vsub.f32 %v412, %v799
          %v842 = vsub.f32 %v413, %v799
          %v843 = vsub.f32 %v414, %v799
          %v844 = vsub.f32 %v415, %v799
          %v845 = vsub.f32 %v416, %v799
          %v846 = vsub.f32 %v417, %v799
          %v847 = vsub.f32 %v418, %v799
          %v848 = vsub.f32 %v419, %v799
          %v849 = vsub.f32 %v420, %v799
          %v850 = vsub.f32 %v421, %v799
          %v851 = vsub.f32 %v422, %v799
          %v852 = vsub.f32 %v423, %v799
          %v853 = vsub.f32 %v424, %v799
          %v854 = vsub.f32 %v425, %v799
          %v855 = vsub.f32 %v426, %v799
          %v856 = vsub.f32 %v427, %v799
          %v857 = vsub.f32 %v428, %v799
          %v858 = vsub.f32 %v429, %v799
          %v859 = vsub.f32 %v430, %v799
          %v860 = vsub.f32 %v431, %v799
          %v861 = vsub.f32 %v432, %v799
          %v862 = vsub.f32 %v433, %v799
          %v863 = vsub.f32 %v434, %v799
          %v864 = vsub.f32 %v435, %v799
          %v865 = vsub.f32 %v436, %v799
          %v866 = vsub.f32 %v437, %v799
          %v867 = vsub.f32 %v438, %v799
          %v868 = vsub.f32 %v439, %v799
          %v869 = vsub.f32 %v440, %v799
          %v870 = vsub.f32 %v441, %v799
          %v871 = vsub.f32 %v442, %v799
          %v872 = vsub.f32 %v443, %v799
          %v873 = vsub.f32 %v444, %v799
          %v874 = vsub.f32 %v445, %v799
          %v875 = vsub.f32 %v446, %v799
          %v876 = vsub.f32 %v447, %v799
          %v877 = vsub.f32 %v448, %v799
          %v878 = vsub.f32 %v449, %v799
          %v879 = vsub.f32 %v450, %v799
          %v880 = vsub.f32 %v451, %v799
          %v881 = vsub.f32 %v452, %v799
          %v882 = vsub.f32 %v453, %v799
          %v883 = vsub.f32 %v454, %v799
          %v884 = vsub.f32 %v455, %v799
          %v885 = vsub.f32 %v456, %v799
          %v886 = vsub.f32 %v457, %v799
          %v887 = vsub.f32 %v458, %v799
          %v888 = vsub.f32 %v459, %v799
          %v889 = vsub.f32 %v460, %v799
          %v890 = vsub.f32 %v461, %v799
          %v891 = vsub.f32 %v462, %v799
          %v892 = vsub.f32 %v463, %v799
          %v893 = vsub.f32 %v464, %v799
          %v894 = vsub.f32 %v465, %v799
          %v895 = vsub.f32 %v466, %v799
          %v896 = vsub.f32 %v467, %v799
          %v897 = vsub.f32 %v468, %v799
          %v898 = vsub.f32 %v469, %v799
          %v899 = vsub.f32 %v470, %v799
          %v900 = vsub.f32 %v471, %v799
          %v901 = vsub.f32 %v472, %v799
          %v902 = vsub.f32 %v473, %v799
          %v903 = vsub.f32 %v474, %v799
          %v904 = vsub.f32 %v475, %v799
          %v905 = vsub.f32 %v476, %v799
          %v906 = vsub.f32 %v477, %v799
          %v907 = vsub.f32 %v478, %v799
          %v908 = vsub.f32 %v479, %v799
          %v909 = vsub.f32 %v480, %v799
          %v910 = vsub.f32 %v481, %v799
          %v911 = vsub.f32 %v482, %v799
          %v912 = vsub.f32 %v483, %v799
          %v913 = vsub.f32 %v484, %v799
          %v914 = vsub.f32 %v485, %v799
          %v915 = vsub.f32 %v486, %v799
          %v916 = vsub.f32 %v487, %v799
          %v917 = vsub.f32 %v488, %v799
          %v918 = vsub.f32 %v489, %v799
          %v919 = vsub.f32 %v490, %v799
          %v920 = vsub.f32 %v491, %v799
          %v921 = vsub.f32 %v492, %v799
          %v922 = vsub.f32 %v493, %v799
          %v923 = vsub.f32 %v494, %v799
          %v924 = vsub.f32 %v495, %v799
          %v925 = vsub.f32 %v496, %v799
          %v926 = vsub.f32 %v497, %v799
          %v927 = vsub.f32 %v498, %v799
          %v928 = vmul.f32 %v800, %v800
          %v929 = vmul.f32 %v801, %v801
          %v930 = vmul.f32 %v802, %v802
          %v931 = vmul.f32 %v803, %v803
          %v932 = vmul.f32 %v804, %v804
          %v933 = vmul.f32 %v805, %v805
          %v934 = vmul.f32 %v806, %v806
          %v935 = vmul.f32 %v807, %v807
          %v936 = vmul.f32 %v808, %v808
          %v937 = vmul.f32 %v809, %v809
          %v938 = vmul.f32 %v810, %v810
          %v939 = vmul.f32 %v811, %v811
          %v940 = vmul.f32 %v812, %v812
          %v941 = vmul.f32 %v813, %v813
          %v942 = vmul.f32 %v814, %v814
          %v943 = vmul.f32 %v815, %v815
          %v944 = vmul.f32 %v816, %v816
          %v945 = vmul.f32 %v817, %v817
          %v946 = vmul.f32 %v818, %v818
          %v947 = vmul.f32 %v819, %v819
          %v948 = vmul.f32 %v820, %v820
          %v949 = vmul.f32 %v821, %v821
          %v950 = vmul.f32 %v822, %v822
          %v951 = vmul.f32 %v823, %v823
          %v952 = vmul.f32 %v824, %v824
          %v953 = vmul.f32 %v825, %v825
          %v954 = vmul.f32 %v826, %v826
          %v955 = vmul.f32 %v827, %v827
          %v956 = vmul.f32 %v828, %v828
          %v957 = vmul.f32 %v829, %v829
          %v958 = vmul.f32 %v830, %v830
          %v959 = vmul.f32 %v831, %v831
          %v960 = vmul.f32 %v832, %v832
          %v961 = vmul.f32 %v833, %v833
          %v962 = vmul.f32 %v834, %v834
          %v963 = vmul.f32 %v835, %v835
          %v964 = vmul.f32 %v836, %v836
          %v965 = vmul.f32 %v837, %v837
          %v966 = vmul.f32 %v838, %v838
          %v967 = vmul.f32 %v839, %v839
          %v968 = vmul.f32 %v840, %v840
          %v969 = vmul.f32 %v841, %v841
          %v970 = vmul.f32 %v842, %v842
          %v971 = vmul.f32 %v843, %v843
          %v972 = vmul.f32 %v844, %v844
          %v973 = vmul.f32 %v845, %v845
          %v974 = vmul.f32 %v846, %v846
          %v975 = vmul.f32 %v847, %v847
          %v976 = vmul.f32 %v848, %v848
          %v977 = vmul.f32 %v849, %v849
          %v978 = vmul.f32 %v850, %v850
          %v979 = vmul.f32 %v851, %v851
          %v980 = vmul.f32 %v852, %v852
          %v981 = vmul.f32 %v853, %v853
          %v982 = vmul.f32 %v854, %v854
          %v983 = vmul.f32 %v855, %v855
          %v984 = vmul.f32 %v856, %v856
          %v985 = vmul.f32 %v857, %v857
          %v986 = vmul.f32 %v858, %v858
          %v987 = vmul.f32 %v859, %v859
          %v988 = vmul.f32 %v860, %v860
          %v989 = vmul.f32 %v861, %v861
          %v990 = vmul.f32 %v862, %v862
          %v991 = vmul.f32 %v863, %v863
          %v992 = vmul.f32 %v864, %v864
          %v993 = vmul.f32 %v865, %v865
          %v994 = vmul.f32 %v866, %v866
          %v995 = vmul.f32 %v867, %v867
          %v996 = vmul.f32 %v868, %v868
          %v997 = vmul.f32 %v869, %v869
          %v998 = vmul.f32 %v870, %v870
          %v999 = vmul.f32 %v871, %v871
          %v1000 = vmul.f32 %v872, %v872
          %v1001 = vmul.f32 %v873, %v873
          %v1002 = vmul.f32 %v874, %v874
          %v1003 = vmul.f32 %v875, %v875
          %v1004 = vmul.f32 %v876, %v876
          %v1005 = vmul.f32 %v877, %v877
          %v1006 = vmul.f32 %v878, %v878
          %v1007 = vmul.f32 %v879, %v879
          %v1008 = vmul.f32 %v880, %v880
          %v1009 = vmul.f32 %v881, %v881
          %v1010 = vmul.f32 %v882, %v882
          %v1011 = vmul.f32 %v883, %v883
          %v1012 = vmul.f32 %v884, %v884
          %v1013 = vmul.f32 %v885, %v885
          %v1014 = vmul.f32 %v886, %v886
          %v1015 = vmul.f32 %v887, %v887
          %v1016 = vmul.f32 %v888, %v888
          %v1017 = vmul.f32 %v889, %v889
          %v1018 = vmul.f32 %v890, %v890
          %v1019 = vmul.f32 %v891, %v891
          %v1020 = vmul.f32 %v892, %v892
          %v1021 = vmul.f32 %v893, %v893
          %v1022 = vmul.f32 %v894, %v894
          %v1023 = vmul.f32 %v895, %v895
          %v1024 = vmul.f32 %v896, %v896
          %v1025 = vmul.f32 %v897, %v897
          %v1026 = vmul.f32 %v898, %v898
          %v1027 = vmul.f32 %v899, %v899
          %v1028 = vmul.f32 %v900, %v900
          %v1029 = vmul.f32 %v901, %v901
          %v1030 = vmul.f32 %v902, %v902
          %v1031 = vmul.f32 %v903, %v903
          %v1032 = vmul.f32 %v904, %v904
          %v1033 = vmul.f32 %v905, %v905
          %v1034 = vmul.f32 %v906, %v906
          %v1035 = vmul.f32 %v907, %v907
          %v1036 = vmul.f32 %v908, %v908
          %v1037 = vmul.f32 %v909, %v909
          %v1038 = vmul.f32 %v910, %v910
          %v1039 = vmul.f32 %v911, %v911
          %v1040 = vmul.f32 %v912, %v912
          %v1041 = vmul.f32 %v913, %v913
          %v1042 = vmul.f32 %v914, %v914
          %v1043 = vmul.f32 %v915, %v915
          %v1044 = vmul.f32 %v916, %v916
          %v1045 = vmul.f32 %v917, %v917
          %v1046 = vmul.f32 %v918, %v918
          %v1047 = vmul.f32 %v919, %v919
          %v1048 = vmul.f32 %v920, %v920
          %v1049 = vmul.f32 %v921, %v921
          %v1050 = vmul.f32 %v922, %v922
          %v1051 = vmul.f32 %v923, %v923
          %v1052 = vmul.f32 %v924, %v924
          %v1053 = vmul.f32 %v925, %v925
          %v1054 = vmul.f32 %v926, %v926
          %v1055 = vmul.f32 %v927, %v927
          %v1056 = vadd.f32 %v928, %v929
          %v1057 = vadd.f32 %v1056, %v930
          %v1058 = vadd.f32 %v1057, %v931
          %v1059 = vadd.f32 %v1058, %v932
          %v1060 = vadd.f32 %v1059, %v933
          %v1061 = vadd.f32 %v1060, %v934
          %v1062 = vadd.f32 %v1061, %v935
          %v1063 = vadd.f32 %v1062, %v936
          %v1064 = vadd.f32 %v1063, %v937
          %v1065 = vadd.f32 %v1064, %v938
          %v1066 = vadd.f32 %v1065, %v939
          %v1067 = vadd.f32 %v1066, %v940
          %v1068 = vadd.f32 %v1067, %v941
          %v1069 = vadd.f32 %v1068, %v942
          %v1070 = vadd.f32 %v1069, %v943
          %v1071 = vadd.f32 %v1070, %v944
          %v1072 = vadd.f32 %v1071, %v945
          %v1073 = vadd.f32 %v1072, %v946
          %v1074 = vadd.f32 %v1073, %v947
          %v1075 = vadd.f32 %v1074, %v948
          %v1076 = vadd.f32 %v1075, %v949
          %v1077 = vadd.f32 %v1076, %v950
          %v1078 = vadd.f32 %v1077, %v951
          %v1079 = vadd.f32 %v1078, %v952
          %v1080 = vadd.f32 %v1079, %v953
          %v1081 = vadd.f32 %v1080, %v954
          %v1082 = vadd.f32 %v1081, %v955
          %v1083 = vadd.f32 %v1082, %v956
          %v1084 = vadd.f32 %v1083, %v957
          %v1085 = vadd.f32 %v1084, %v958
          %v1086 = vadd.f32 %v1085, %v959
          %v1087 = vadd.f32 %v1086, %v960
          %v1088 = vadd.f32 %v1087, %v961
          %v1089 = vadd.f32 %v1088, %v962
          %v1090 = vadd.f32 %v1089, %v963
          %v1091 = vadd.f32 %v1090, %v964
          %v1092 = vadd.f32 %v1091, %v965
          %v1093 = vadd.f32 %v1092, %v966
          %v1094 = vadd.f32 %v1093, %v967
          %v1095 = vadd.f32 %v1094, %v968
          %v1096 = vadd.f32 %v1095, %v969
          %v1097 = vadd.f32 %v1096, %v970
          %v1098 = vadd.f32 %v1097, %v971
          %v1099 = vadd.f32 %v1098, %v972
          %v1100 = vadd.f32 %v1099, %v973
          %v1101 = vadd.f32 %v1100, %v974
          %v1102 = vadd.f32 %v1101, %v975
          %v1103 = vadd.f32 %v1102, %v976
          %v1104 = vadd.f32 %v1103, %v977
          %v1105 = vadd.f32 %v1104, %v978
          %v1106 = vadd.f32 %v1105, %v979
          %v1107 = vadd.f32 %v1106, %v980
          %v1108 = vadd.f32 %v1107, %v981
          %v1109 = vadd.f32 %v1108, %v982
          %v1110 = vadd.f32 %v1109, %v983
          %v1111 = vadd.f32 %v1110, %v984
          %v1112 = vadd.f32 %v1111, %v985
          %v1113 = vadd.f32 %v1112, %v986
          %v1114 = vadd.f32 %v1113, %v987
          %v1115 = vadd.f32 %v1114, %v988
          %v1116 = vadd.f32 %v1115, %v989
          %v1117 = vadd.f32 %v1116, %v990
          %v1118 = vadd.f32 %v1117, %v991
          %v1119 = vadd.f32 %v1118, %v992
          %v1120 = vadd.f32 %v1119, %v993
          %v1121 = vadd.f32 %v1120, %v994
          %v1122 = vadd.f32 %v1121, %v995
          %v1123 = vadd.f32 %v1122, %v996
          %v1124 = vadd.f32 %v1123, %v997
          %v1125 = vadd.f32 %v1124, %v998
          %v1126 = vadd.f32 %v1125, %v999
          %v1127 = vadd.f32 %v1126, %v1000
          %v1128 = vadd.f32 %v1127, %v1001
          %v1129 = vadd.f32 %v1128, %v1002
          %v1130 = vadd.f32 %v1129, %v1003
          %v1131 = vadd.f32 %v1130, %v1004
          %v1132 = vadd.f32 %v1131, %v1005
          %v1133 = vadd.f32 %v1132, %v1006
          %v1134 = vadd.f32 %v1133, %v1007
          %v1135 = vadd.f32 %v1134, %v1008
          %v1136 = vadd.f32 %v1135, %v1009
          %v1137 = vadd.f32 %v1136, %v1010
          %v1138 = vadd.f32 %v1137, %v1011
          %v1139 = vadd.f32 %v1138, %v1012
          %v1140 = vadd.f32 %v1139, %v1013
          %v1141 = vadd.f32 %v1140, %v1014
          %v1142 = vadd.f32 %v1141, %v1015
          %v1143 = vadd.f32 %v1142, %v1016
          %v1144 = vadd.f32 %v1143, %v1017
          %v1145 = vadd.f32 %v1144, %v1018
          %v1146 = vadd.f32 %v1145, %v1019
          %v1147 = vadd.f32 %v1146, %v1020
          %v1148 = vadd.f32 %v1147, %v1021
          %v1149 = vadd.f32 %v1148, %v1022
          %v1150 = vadd.f32 %v1149, %v1023
          %v1151 = vadd.f32 %v1150, %v1024
          %v1152 = vadd.f32 %v1151, %v1025
          %v1153 = vadd.f32 %v1152, %v1026
          %v1154 = vadd.f32 %v1153, %v1027
          %v1155 = vadd.f32 %v1154, %v1028
          %v1156 = vadd.f32 %v1155, %v1029
          %v1157 = vadd.f32 %v1156, %v1030
          %v1158 = vadd.f32 %v1157, %v1031
          %v1159 = vadd.f32 %v1158, %v1032
          %v1160 = vadd.f32 %v1159, %v1033
          %v1161 = vadd.f32 %v1160, %v1034
          %v1162 = vadd.f32 %v1161, %v1035
          %v1163 = vadd.f32 %v1162, %v1036
          %v1164 = vadd.f32 %v1163, %v1037
          %v1165 = vadd.f32 %v1164, %v1038
          %v1166 = vadd.f32 %v1165, %v1039
          %v1167 = vadd.f32 %v1166, %v1040
          %v1168 = vadd.f32 %v1167, %v1041
          %v1169 = vadd.f32 %v1168, %v1042
          %v1170 = vadd.f32 %v1169, %v1043
          %v1171 = vadd.f32 %v1170, %v1044
          %v1172 = vadd.f32 %v1171, %v1045
          %v1173 = vadd.f32 %v1172, %v1046
          %v1174 = vadd.f32 %v1173, %v1047
          %v1175 = vadd.f32 %v1174, %v1048
          %v1176 = vadd.f32 %v1175, %v1049
          %v1177 = vadd.f32 %v1176, %v1050
          %v1178 = vadd.f32 %v1177, %v1051
          %v1179 = vadd.f32 %v1178, %v1052
          %v1180 = vadd.f32 %v1179, %v1053
          %v1181 = vadd.f32 %v1180, %v1054
          %v1182 = vadd.f32 %v1181, %v1055
          %v1183 = vrot.slane %v1182, 4
          %v1184 = vadd.f32 %v1182, %v1183
          %v1185 = vrot.slane %v1184, 2
          %v1186 = vadd.f32 %v1184, %v1185
          %v1187 = vrot.slane %v1186, 1
          %v1188 = vadd.f32 %v1186, %v1187
          %1189 = vmatprep.subr.mxu0 0.0
          %1190 = vmatpush1.msra.mxu0 %v647
          %1191 = vmatprep.subr.mxu0 0.0
          %1192 = vmatpush1.msra.mxu0 %v646
          %1193 = vmatprep.subr.mxu0 0.0
          %1194 = vmatpush1.msra.mxu0 %v645
          %1195 = vmatprep.subr.mxu0 0.0
          %1196 = vmatpush1.msra.mxu0 %v644
          %1197 = vmatprep.subr.mxu0 0.0
          %1198 = vmatpush1.msra.mxu0 %v643
          %1199 = vmatprep.subr.mxu0 0.0
          %1200 = vmatpush1.msra.mxu0 %v642
          %1201 = vmatprep.subr.mxu0 0.0
          %1202 = vmatpush1.msra.mxu0 %v641
          %1203 = vmatprep.subr.mxu0 0.0
          %1204 = vmatpush1.msra.mxu0 %v640
          %1205 = vmatprep.subr.mxu0 0.0
          %1206 = vmatpush1.msra.mxu0 %v639
          %1207 = vmatprep.subr.mxu0 0.0
          %1208 = vmatpush1.msra.mxu0 %v638
          %1209 = vmatprep.subr.mxu0 0.0
          %1210 = vmatpush1.msra.mxu0 %v637
          %1211 = vmatprep.subr.mxu0 0.0
          %1212 = vmatpush1.msra.mxu0 %v636
          %1213 = vmatprep.subr.mxu0 0.0
          %1214 = vmatpush1.msra.mxu0 %v635
          %1215 = vmatprep.subr.mxu0 0.0
          %1216 = vmatpush1.msra.mxu0 %v634
          %1217 = vmatprep.subr.mxu0 0.0
          %1218 = vmatpush1.msra.mxu0 %v633
          %1219 = vmatprep.subr.mxu0 0.0
          %1220 = vmatpush1.msra.mxu0 %v632
          %1221 = vmatprep.subr.mxu0 0.0
          %1222 = vmatpush2.msra.mxu0 0.0
          %1223 = vmatprep.subr.mxu0 0.0
          %1224 = vmatpush2.msra.mxu0 0.0
          %1225 = vmatprep.subr.mxu0 0.0
          %1226 = vmatpush2.msra.mxu0 0.0
          %1227 = vmatprep.subr.mxu0 0.0
          %1228 = vmatpush2.msra.mxu0 0.0
          %1229 = vmatprep.subr.mxu0 0.0
          %1230 = vmatpush2.msra.mxu0 0.0
          %1231 = vmatprep.subr.mxu0 0.0
          %1232 = vmatpush2.msra.mxu0 0.0
          %1233 = vmatprep.subr.mxu0 0.0
          %1234 = vmatpush2.msra.mxu0 0.0
          %1235 = vmatprep.subr.mxu0 0.0
          %1236 = vmatpush2.msra.mxu0 0.0
          %1237 = vmatprep.subr.mxu0 0.0
          %1238 = vmatpush2.msra.mxu0 0.0
          %1239 = vmatprep.subr.mxu0 0.0
          %1240 = vmatpush2.msra.mxu0 0.0
          %1241 = vmatprep.subr.mxu0 0.0
          %1242 = vmatpush2.msra.mxu0 0.0
          %1243 = vmatprep.subr.mxu0 0.0
          %1244 = vmatpush2.msra.mxu0 0.0
          %1245 = vmatprep.subr.mxu0 0.0
          %1246 = vmatpush2.msra.mxu0 0.0
          %1247 = vmatprep.subr.mxu0 0.0
          %1248 = vmatpush2.msra.mxu0 0.0
          %1249 = vmatprep.subr.mxu0 0.0
          %1250 = vmatpush2.msra.mxu0 0.0
          %1251 = vmatprep.subr.mxu0 0.0
          %1252 = vmatpush2.msra.mxu0 0.0
          %1253 = vmatprep.mubr.f32.mxu0 0.0
          %1254 = vmatmul.mubr.f32.gmra.mxu0 %v1188
          %v1255 = vpop.f32.mrf.mxu0
          %v1256 = vadd.f32 0.0, %v1255
          %v1257 = vpop.f32.mrf.mxu0
          %1258 = vdwg.mxu0
          %v1260 = vsel %vm722, %v1256, 0
          %1262 = vmatprep.subr.mxu0 0.0
          %1263 = vmatpush1.msra.mxu0 0.0
          %1264 = vmatprep.subr.mxu0 0.0
          %1265 = vmatpush1.msra.mxu0 0.0
          %1266 = vmatprep.subr.mxu0 0.0
          %1267 = vmatpush1.msra.mxu0 0.0
          %1268 = vmatprep.subr.mxu0 0.0
          %1269 = vmatpush1.msra.mxu0 0.0
          %1270 = vmatprep.subr.mxu0 0.0
          %1271 = vmatpush1.msra.mxu0 0.0
          %1272 = vmatprep.subr.mxu0 0.0
          %1273 = vmatpush1.msra.mxu0 0.0
          %1274 = vmatprep.subr.mxu0 0.0
          %1275 = vmatpush1.msra.mxu0 0.0
          %1276 = vmatprep.subr.mxu0 0.0
          %1277 = vmatpush1.msra.mxu0 0.0
          %1278 = vmatprep.subr.mxu0 0.0
          %1279 = vmatpush1.msra.mxu0 0.0
          %1280 = vmatprep.subr.mxu0 0.0
          %1281 = vmatpush1.msra.mxu0 0.0
          %1282 = vmatprep.subr.mxu0 0.0
          %1283 = vmatpush1.msra.mxu0 0.0
          %1284 = vmatprep.subr.mxu0 0.0
          %1285 = vmatpush1.msra.mxu0 0.0
          %1286 = vmatprep.subr.mxu0 0.0
          %1287 = vmatpush1.msra.mxu0 %v721
          %1288 = vmatprep.subr.mxu0 0.0
          %1289 = vmatpush1.msra.mxu0 %v720
          %1290 = vmatprep.subr.mxu0 0.0
          %1291 = vmatpush1.msra.mxu0 %v719
          %1292 = vmatprep.subr.mxu0 0.0
          %1293 = vmatpush1.msra.mxu0 %v718
          %1294 = vmatprep.subr.mxu0 0.0
          %1295 = vmatpush2.msra.mxu0 0.0
          %1296 = vmatprep.subr.mxu0 0.0
          %1297 = vmatpush2.msra.mxu0 0.0
          %1298 = vmatprep.subr.mxu0 0.0
          %1299 = vmatpush2.msra.mxu0 0.0
          %1300 = vmatprep.subr.mxu0 0.0
          %1301 = vmatpush2.msra.mxu0 0.0
          %1302 = vmatprep.subr.mxu0 0.0
          %1303 = vmatpush2.msra.mxu0 0.0
          %1304 = vmatprep.subr.mxu0 0.0
          %1305 = vmatpush2.msra.mxu0 0.0
          %1306 = vmatprep.subr.mxu0 0.0
          %1307 = vmatpush2.msra.mxu0 0.0
          %1308 = vmatprep.subr.mxu0 0.0
          %1309 = vmatpush2.msra.mxu0 0.0
          %1310 = vmatprep.subr.mxu0 0.0
          %1311 = vmatpush2.msra.mxu0 0.0
          %1312 = vmatprep.subr.mxu0 0.0
          %1313 = vmatpush2.msra.mxu0 0.0
          %1314 = vmatprep.subr.mxu0 0.0
          %1315 = vmatpush2.msra.mxu0 0.0
          %1316 = vmatprep.subr.mxu0 0.0
          %1317 = vmatpush2.msra.mxu0 0.0
          %1318 = vmatprep.subr.mxu0 0.0
          %1319 = vmatpush2.msra.mxu0 0.0
          %1320 = vmatprep.subr.mxu0 0.0
          %1321 = vmatpush2.msra.mxu0 0.0
          %1322 = vmatprep.subr.mxu0 0.0
          %1323 = vmatpush2.msra.mxu0 0.0
          %1324 = vmatprep.subr.mxu0 0.0
          %1325 = vmatpush2.msra.mxu0 0.0
          %1326 = vmatprep.mubr.f32.mxu0 0.0
          %1327 = vmatmul.mubr.f32.gmra.mxu0 %v1260
          %v1328 = vpop.f32.mrf.mxu0
          %v1329 = vadd.f32 1e-06, %v1328
          %v1330 = vpop.f32.mrf.mxu0
          %1331 = vdwg.mxu0
          %v1332 = vrsqrt.pop %v1329
          %v1333 = vld [vmem:[%s1] sm:$0x1]
          %v1334 = vmul.f32 %v1332, %v1333
          %v1335 = vld [vmem:[%s2] sm:$0x1]
          %v1336 = vmul.f32 %v793, %v1334
          %v1337 = vsub.f32 %v1335, %v1336
          %v1338 = vlaneseq
          %v1339 = vshrl.u32 %v1338, 7
          %v1340 = vsub.s32 0, %v1339
          %v1341 = vrot.slane %v1334, %v1340
          %v1342 = vmul.f32 %v371, %v1341
          %v1343 = vmul.f32 %v372, %v1341
          %v1344 = vmul.f32 %v373, %v1341
          %v1345 = vmul.f32 %v374, %v1341
          %v1346 = vmul.f32 %v375, %v1341
          %v1347 = vmul.f32 %v376, %v1341
          %v1348 = vmul.f32 %v377, %v1341
          %v1349 = vmul.f32 %v378, %v1341
          %v1350 = vmul.f32 %v379, %v1341
          %v1351 = vmul.f32 %v380, %v1341
          %v1352 = vmul.f32 %v381, %v1341
          %v1353 = vmul.f32 %v382, %v1341
          %v1354 = vmul.f32 %v383, %v1341
          %v1355 = vmul.f32 %v384, %v1341
          %v1356 = vmul.f32 %v385, %v1341
          %v1357 = vmul.f32 %v386, %v1341
          %v1358 = vmul.f32 %v387, %v1341
          %v1359 = vmul.f32 %v388, %v1341
          %v1360 = vmul.f32 %v389, %v1341
          %v1361 = vmul.f32 %v390, %v1341
          %v1362 = vmul.f32 %v391, %v1341
          %v1363 = vmul.f32 %v392, %v1341
          %v1364 = vmul.f32 %v393, %v1341
          %v1365 = vmul.f32 %v394, %v1341
          %v1366 = vmul.f32 %v395, %v1341
          %v1367 = vmul.f32 %v396, %v1341
          %v1368 = vmul.f32 %v397, %v1341
          %v1369 = vmul.f32 %v398, %v1341
          %v1370 = vmul.f32 %v399, %v1341
          %v1371 = vmul.f32 %v400, %v1341
          %v1372 = vmul.f32 %v401, %v1341
          %v1373 = vmul.f32 %v402, %v1341
          %v1374 = vmul.f32 %v403, %v1341
          %v1375 = vmul.f32 %v404, %v1341
          %v1376 = vmul.f32 %v405, %v1341
          %v1377 = vmul.f32 %v406, %v1341
          %v1378 = vmul.f32 %v407, %v1341
          %v1379 = vmul.f32 %v408, %v1341
          %v1380 = vmul.f32 %v409, %v1341
          %v1381 = vmul.f32 %v410, %v1341
          %v1382 = vmul.f32 %v411, %v1341
          %v1383 = vmul.f32 %v412, %v1341
          %v1384 = vmul.f32 %v413, %v1341
          %v1385 = vmul.f32 %v414, %v1341
          %v1386 = vmul.f32 %v415, %v1341
          %v1387 = vmul.f32 %v416, %v1341
          %v1388 = vmul.f32 %v417, %v1341
          %v1389 = vmul.f32 %v418, %v1341
          %v1390 = vmul.f32 %v419, %v1341
          %v1391 = vmul.f32 %v420, %v1341
          %v1392 = vmul.f32 %v421, %v1341
          %v1393 = vmul.f32 %v422, %v1341
          %v1394 = vmul.f32 %v423, %v1341
          %v1395 = vmul.f32 %v424, %v1341
          %v1396 = vmul.f32 %v425, %v1341
          %v1397 = vmul.f32 %v426, %v1341
          %v1398 = vmul.f32 %v427, %v1341
          %v1399 = vmul.f32 %v428, %v1341
          %v1400 = vmul.f32 %v429, %v1341
          %v1401 = vmul.f32 %v430, %v1341
          %v1402 = vmul.f32 %v431, %v1341
          %v1403 = vmul.f32 %v432, %v1341
          %v1404 = vmul.f32 %v433, %v1341
          %v1405 = vmul.f32 %v434, %v1341
          %v1406 = vmul.f32 %v435, %v1341
          %v1407 = vmul.f32 %v436, %v1341
          %v1408 = vmul.f32 %v437, %v1341
          %v1409 = vmul.f32 %v438, %v1341
          %v1410 = vmul.f32 %v439, %v1341
          %v1411 = vmul.f32 %v440, %v1341
          %v1412 = vmul.f32 %v441, %v1341
          %v1413 = vmul.f32 %v442, %v1341
          %v1414 = vmul.f32 %v443, %v1341
          %v1415 = vmul.f32 %v444, %v1341
          %v1416 = vmul.f32 %v445, %v1341
          %v1417 = vmul.f32 %v446, %v1341
          %v1418 = vmul.f32 %v447, %v1341
          %v1419 = vmul.f32 %v448, %v1341
          %v1420 = vmul.f32 %v449, %v1341
          %v1421 = vmul.f32 %v450, %v1341
          %v1422 = vmul.f32 %v451, %v1341
          %v1423 = vmul.f32 %v452, %v1341
          %v1424 = vmul.f32 %v453, %v1341
          %v1425 = vmul.f32 %v454, %v1341
          %v1426 = vmul.f32 %v455, %v1341
          %v1427 = vmul.f32 %v456, %v1341
          %v1428 = vmul.f32 %v457, %v1341
          %v1429 = vmul.f32 %v458, %v1341
          %v1430 = vmul.f32 %v459, %v1341
          %v1431 = vmul.f32 %v460, %v1341
          %v1432 = vmul.f32 %v461, %v1341
          %v1433 = vmul.f32 %v462, %v1341
          %v1434 = vmul.f32 %v463, %v1341
          %v1435 = vmul.f32 %v464, %v1341
          %v1436 = vmul.f32 %v465, %v1341
          %v1437 = vmul.f32 %v466, %v1341
          %v1438 = vmul.f32 %v467, %v1341
          %v1439 = vmul.f32 %v468, %v1341
          %v1440 = vmul.f32 %v469, %v1341
          %v1441 = vmul.f32 %v470, %v1341
          %v1442 = vmul.f32 %v471, %v1341
          %v1443 = vmul.f32 %v472, %v1341
          %v1444 = vmul.f32 %v473, %v1341
          %v1445 = vmul.f32 %v474, %v1341
          %v1446 = vmul.f32 %v475, %v1341
          %v1447 = vmul.f32 %v476, %v1341
          %v1448 = vmul.f32 %v477, %v1341
          %v1449 = vmul.f32 %v478, %v1341
          %v1450 = vmul.f32 %v479, %v1341
          %v1451 = vmul.f32 %v480, %v1341
          %v1452 = vmul.f32 %v481, %v1341
          %v1453 = vmul.f32 %v482, %v1341
          %v1454 = vmul.f32 %v483, %v1341
          %v1455 = vmul.f32 %v484, %v1341
          %v1456 = vmul.f32 %v485, %v1341
          %v1457 = vmul.f32 %v486, %v1341
          %v1458 = vmul.f32 %v487, %v1341
          %v1459 = vmul.f32 %v488, %v1341
          %v1460 = vmul.f32 %v489, %v1341
          %v1461 = vmul.f32 %v490, %v1341
          %v1462 = vmul.f32 %v491, %v1341
          %v1463 = vmul.f32 %v492, %v1341
          %v1464 = vmul.f32 %v493, %v1341
          %v1465 = vmul.f32 %v494, %v1341
          %v1466 = vmul.f32 %v495, %v1341
          %v1467 = vmul.f32 %v496, %v1341
          %v1468 = vmul.f32 %v497, %v1341
          %v1469 = vmul.f32 %v498, %v1341
          %v1471 = vlaneseq
          %v1472 = vshrl.u32 %v1471, 7
          %v1473 = vsub.s32 0, %v1472
          %v1474 = vrot.slane %v1337, %v1473
          %v1476 = vadd.f32 %v1342, %v1474
          %v1477 = vadd.f32 %v1343, %v1474
          %v1478 = vadd.f32 %v1344, %v1474
          %v1479 = vadd.f32 %v1345, %v1474
          %v1480 = vadd.f32 %v1346, %v1474
          %v1481 = vadd.f32 %v1347, %v1474
          %v1482 = vadd.f32 %v1348, %v1474
          %v1483 = vadd.f32 %v1349, %v1474
          %v1484 = vadd.f32 %v1350, %v1474
          %v1485 = vadd.f32 %v1351, %v1474
          %v1486 = vadd.f32 %v1352, %v1474
          %v1487 = vadd.f32 %v1353, %v1474
          %v1488 = vadd.f32 %v1354, %v1474
          %v1489 = vadd.f32 %v1355, %v1474
          %v1490 = vadd.f32 %v1356, %v1474
          %v1491 = vadd.f32 %v1357, %v1474
          %v1492 = vadd.f32 %v1358, %v1474
          %v1493 = vadd.f32 %v1359, %v1474
          %v1494 = vadd.f32 %v1360, %v1474
          %v1495 = vadd.f32 %v1361, %v1474
          %v1496 = vadd.f32 %v1362, %v1474
          %v1497 = vadd.f32 %v1363, %v1474
          %v1498 = vadd.f32 %v1364, %v1474
          %v1499 = vadd.f32 %v1365, %v1474
          %v1500 = vadd.f32 %v1366, %v1474
          %v1501 = vadd.f32 %v1367, %v1474
          %v1502 = vadd.f32 %v1368, %v1474
          %v1503 = vadd.f32 %v1369, %v1474
          %v1504 = vadd.f32 %v1370, %v1474
          %v1505 = vadd.f32 %v1371, %v1474
          %v1506 = vadd.f32 %v1372, %v1474
          %v1507 = vadd.f32 %v1373, %v1474
          %v1508 = vadd.f32 %v1374, %v1474
          %v1509 = vadd.f32 %v1375, %v1474
          %v1510 = vadd.f32 %v1376, %v1474
          %v1511 = vadd.f32 %v1377, %v1474
          %v1512 = vadd.f32 %v1378, %v1474
          %v1513 = vadd.f32 %v1379, %v1474
          %v1514 = vadd.f32 %v1380, %v1474
          %v1515 = vadd.f32 %v1381, %v1474
          %v1516 = vadd.f32 %v1382, %v1474
          %v1517 = vadd.f32 %v1383, %v1474
          %v1518 = vadd.f32 %v1384, %v1474
          %v1519 = vadd.f32 %v1385, %v1474
          %v1520 = vadd.f32 %v1386, %v1474
          %v1521 = vadd.f32 %v1387, %v1474
          %v1522 = vadd.f32 %v1388, %v1474
          %v1523 = vadd.f32 %v1389, %v1474
          %v1524 = vadd.f32 %v1390, %v1474
          %v1525 = vadd.f32 %v1391, %v1474
          %v1526 = vadd.f32 %v1392, %v1474
          %v1527 = vadd.f32 %v1393, %v1474
          %v1528 = vadd.f32 %v1394, %v1474
          %v1529 = vadd.f32 %v1395, %v1474
          %v1530 = vadd.f32 %v1396, %v1474
          %v1531 = vadd.f32 %v1397, %v1474
          %v1532 = vadd.f32 %v1398, %v1474
          %v1533 = vadd.f32 %v1399, %v1474
          %v1534 = vadd.f32 %v1400, %v1474
          %v1535 = vadd.f32 %v1401, %v1474
          %v1536 = vadd.f32 %v1402, %v1474
          %v1537 = vadd.f32 %v1403, %v1474
          %v1538 = vadd.f32 %v1404, %v1474
          %v1539 = vadd.f32 %v1405, %v1474
          %v1540 = vadd.f32 %v1406, %v1474
          %v1541 = vadd.f32 %v1407, %v1474
          %v1542 = vadd.f32 %v1408, %v1474
          %v1543 = vadd.f32 %v1409, %v1474
          %v1544 = vadd.f32 %v1410, %v1474
          %v1545 = vadd.f32 %v1411, %v1474
          %v1546 = vadd.f32 %v1412, %v1474
          %v1547 = vadd.f32 %v1413, %v1474
          %v1548 = vadd.f32 %v1414, %v1474
          %v1549 = vadd.f32 %v1415, %v1474
          %v1550 = vadd.f32 %v1416, %v1474
          %v1551 = vadd.f32 %v1417, %v1474
          %v1552 = vadd.f32 %v1418, %v1474
          %v1553 = vadd.f32 %v1419, %v1474
          %v1554 = vadd.f32 %v1420, %v1474
          %v1555 = vadd.f32 %v1421, %v1474
          %v1556 = vadd.f32 %v1422, %v1474
          %v1557 = vadd.f32 %v1423, %v1474
          %v1558 = vadd.f32 %v1424, %v1474
          %v1559 = vadd.f32 %v1425, %v1474
          %v1560 = vadd.f32 %v1426, %v1474
          %v1561 = vadd.f32 %v1427, %v1474
          %v1562 = vadd.f32 %v1428, %v1474
          %v1563 = vadd.f32 %v1429, %v1474
          %v1564 = vadd.f32 %v1430, %v1474
          %v1565 = vadd.f32 %v1431, %v1474
          %v1566 = vadd.f32 %v1432, %v1474
          %v1567 = vadd.f32 %v1433, %v1474
          %v1568 = vadd.f32 %v1434, %v1474
          %v1569 = vadd.f32 %v1435, %v1474
          %v1570 = vadd.f32 %v1436, %v1474
          %v1571 = vadd.f32 %v1437, %v1474
          %v1572 = vadd.f32 %v1438, %v1474
          %v1573 = vadd.f32 %v1439, %v1474
          %v1574 = vadd.f32 %v1440, %v1474
          %v1575 = vadd.f32 %v1441, %v1474
          %v1576 = vadd.f32 %v1442, %v1474
          %v1577 = vadd.f32 %v1443, %v1474
          %v1578 = vadd.f32 %v1444, %v1474
          %v1579 = vadd.f32 %v1445, %v1474
          %v1580 = vadd.f32 %v1446, %v1474
          %v1581 = vadd.f32 %v1447, %v1474
          %v1582 = vadd.f32 %v1448, %v1474
          %v1583 = vadd.f32 %v1449, %v1474
          %v1584 = vadd.f32 %v1450, %v1474
          %v1585 = vadd.f32 %v1451, %v1474
          %v1586 = vadd.f32 %v1452, %v1474
          %v1587 = vadd.f32 %v1453, %v1474
          %v1588 = vadd.f32 %v1454, %v1474
          %v1589 = vadd.f32 %v1455, %v1474
          %v1590 = vadd.f32 %v1456, %v1474
          %v1591 = vadd.f32 %v1457, %v1474
          %v1592 = vadd.f32 %v1458, %v1474
          %v1593 = vadd.f32 %v1459, %v1474
          %v1594 = vadd.f32 %v1460, %v1474
          %v1595 = vadd.f32 %v1461, %v1474
          %v1596 = vadd.f32 %v1462, %v1474
          %v1597 = vadd.f32 %v1463, %v1474
          %v1598 = vadd.f32 %v1464, %v1474
          %v1599 = vadd.f32 %v1465, %v1474
          %v1600 = vadd.f32 %v1466, %v1474
          %v1601 = vadd.f32 %v1467, %v1474
          %v1602 = vadd.f32 %v1468, %v1474
          %v1603 = vadd.f32 %v1469, %v1474
          %v1604 = vpack.c.bf16 %v1477, %v1476
          %v1605 = vpack.c.bf16 %v1479, %v1478
          %v1606 = vpack.c.bf16 %v1481, %v1480
          %v1607 = vpack.c.bf16 %v1483, %v1482
          %v1608 = vpack.c.bf16 %v1485, %v1484
          %v1609 = vpack.c.bf16 %v1487, %v1486
          %v1610 = vpack.c.bf16 %v1489, %v1488
          %v1611 = vpack.c.bf16 %v1491, %v1490
          %v1612 = vpack.c.bf16 %v1493, %v1492
          %v1613 = vpack.c.bf16 %v1495, %v1494
          %v1614 = vpack.c.bf16 %v1497, %v1496
          %v1615 = vpack.c.bf16 %v1499, %v1498
          %v1616 = vpack.c.bf16 %v1501, %v1500
          %v1617 = vpack.c.bf16 %v1503, %v1502
          %v1618 = vpack.c.bf16 %v1505, %v1504
          %v1619 = vpack.c.bf16 %v1507, %v1506
          %v1620 = vpack.c.bf16 %v1509, %v1508
          %v1621 = vpack.c.bf16 %v1511, %v1510
          %v1622 = vpack.c.bf16 %v1513, %v1512
          %v1623 = vpack.c.bf16 %v1515, %v1514
          %v1624 = vpack.c.bf16 %v1517, %v1516
          %v1625 = vpack.c.bf16 %v1519, %v1518
          %v1626 = vpack.c.bf16 %v1521, %v1520
          %v1627 = vpack.c.bf16 %v1523, %v1522
          %v1628 = vpack.c.bf16 %v1525, %v1524
          %v1629 = vpack.c.bf16 %v1527, %v1526
          %v1630 = vpack.c.bf16 %v1529, %v1528
          %v1631 = vpack.c.bf16 %v1531, %v1530
          %v1632 = vpack.c.bf16 %v1533, %v1532
          %v1633 = vpack.c.bf16 %v1535, %v1534
          %v1634 = vpack.c.bf16 %v1537, %v1536
          %v1635 = vpack.c.bf16 %v1539, %v1538
          %v1636 = vpack.c.bf16 %v1541, %v1540
          %v1637 = vpack.c.bf16 %v1543, %v1542
          %v1638 = vpack.c.bf16 %v1545, %v1544
          %v1639 = vpack.c.bf16 %v1547, %v1546
          %v1640 = vpack.c.bf16 %v1549, %v1548
          %v1641 = vpack.c.bf16 %v1551, %v1550
          %v1642 = vpack.c.bf16 %v1553, %v1552
          %v1643 = vpack.c.bf16 %v1555, %v1554
          %v1644 = vpack.c.bf16 %v1557, %v1556
          %v1645 = vpack.c.bf16 %v1559, %v1558
          %v1646 = vpack.c.bf16 %v1561, %v1560
          %v1647 = vpack.c.bf16 %v1563, %v1562
          %v1648 = vpack.c.bf16 %v1565, %v1564
          %v1649 = vpack.c.bf16 %v1567, %v1566
          %v1650 = vpack.c.bf16 %v1569, %v1568
          %v1651 = vpack.c.bf16 %v1571, %v1570
          %v1652 = vpack.c.bf16 %v1573, %v1572
          %v1653 = vpack.c.bf16 %v1575, %v1574
          %v1654 = vpack.c.bf16 %v1577, %v1576
          %v1655 = vpack.c.bf16 %v1579, %v1578
          %v1656 = vpack.c.bf16 %v1581, %v1580
          %v1657 = vpack.c.bf16 %v1583, %v1582
          %v1658 = vpack.c.bf16 %v1585, %v1584
          %v1659 = vpack.c.bf16 %v1587, %v1586
          %v1660 = vpack.c.bf16 %v1589, %v1588
          %v1661 = vpack.c.bf16 %v1591, %v1590
          %v1662 = vpack.c.bf16 %v1593, %v1592
          %v1663 = vpack.c.bf16 %v1595, %v1594
          %v1664 = vpack.c.bf16 %v1597, %v1596
          %v1665 = vpack.c.bf16 %v1599, %v1598
          %v1666 = vpack.c.bf16 %v1601, %v1600
          %v1667 = vpack.c.bf16 %v1603, %v1602
          %v1668 = vld [vmem:[%s5] sm:$0xff]
          %v1669 = vld [vmem:[%s5 + $0x8] sm:$0xf]
          %v1670 = vld [vmem:[%s5 + $0xc] sm:$0xff]
          %v1671 = vld [vmem:[%s5 + $0x14] sm:$0xf]
          %v1672 = vld [vmem:[%s5 + $0x18] sm:$0xff]
          %v1673 = vld [vmem:[%s5 + $0x20] sm:$0xf]
          %v1674 = vld [vmem:[%s5 + $0x24] sm:$0xff]
          %v1675 = vld [vmem:[%s5 + $0x2c] sm:$0xf]
          %v1676 = vld [vmem:[%s5 + $0x30] sm:$0xff]
          %v1677 = vld [vmem:[%s5 + $0x38] sm:$0xf]
          %v1678 = vld [vmem:[%s5 + $0x3c] sm:$0xff]
          %v1679 = vld [vmem:[%s5 + $0x44] sm:$0xf]
          %v1680 = vld [vmem:[%s5 + $0x48] sm:$0xff]
          %v1681 = vld [vmem:[%s5 + $0x50] sm:$0xf]
          %v1682 = vld [vmem:[%s5 + $0x54] sm:$0xff]
          %v1683 = vld [vmem:[%s5 + $0x5c] sm:$0xf]
          %v1684 = vld [vmem:[%s5 + $0x60] sm:$0xff]
          %v1685 = vld [vmem:[%s5 + $0x68] sm:$0xf]
          %v1686 = vld [vmem:[%s5 + $0x6c] sm:$0xff]
          %v1687 = vld [vmem:[%s5 + $0x74] sm:$0xf]
          %v1688 = vld [vmem:[%s5 + $0x78] sm:$0xff]
          %v1689 = vld [vmem:[%s5 + $0x80] sm:$0xf]
          %v1690 = vld [vmem:[%s5 + $0x84] sm:$0xff]
          %v1691 = vld [vmem:[%s5 + $0x8c] sm:$0xf]
          %v1692 = vld [vmem:[%s5 + $0x90] sm:$0xff]
          %v1693 = vld [vmem:[%s5 + $0x98] sm:$0xf]
          %v1694 = vld [vmem:[%s5 + $0x9c] sm:$0xff]
          %v1695 = vld [vmem:[%s5 + $0xa4] sm:$0xf]
          %v1696 = vld [vmem:[%s5 + $0xa8] sm:$0xff]
          %v1697 = vld [vmem:[%s5 + $0xb0] sm:$0xf]
          %v1698 = vld [vmem:[%s5 + $0xb4] sm:$0xff]
          %v1699 = vld [vmem:[%s5 + $0xbc] sm:$0xf]
          %v1700 = vld [vmem:[%s6] sm:$0x7]
          %v1702 = vlaneseq
          %v1703 = vshrl.u32 %v1702, 7
          %v1704 = vsub.s32 0, %v1703
          %v1705 = vrot.slane %v1700, %v1704
          %v1706 = vlaneseq
          %v1707 = vshrl.u32 %v1706, 7
          %v1708 = vsub.s32 1, %v1707
          %v1709 = vrot.slane %v1700, %v1708
          %v1710 = vlaneseq
          %v1711 = vshrl.u32 %v1710, 7
          %v1712 = vsub.s32 2, %v1711
          %v1713 = vrot.slane %v1700, %v1712
          %v1749 = vunpack.c.l.b16 %v1668
          %v1750 = vunpack.c.h.b16 %v1668
          %v1751 = vunpack.c.l.b16 %v1669
          %v1752 = vunpack.c.l.b16 %v1670
          %v1753 = vunpack.c.h.b16 %v1670
          %v1754 = vunpack.c.l.b16 %v1671
          %v1755 = vunpack.c.l.b16 %v1672
          %v1756 = vunpack.c.h.b16 %v1672
          %v1757 = vunpack.c.l.b16 %v1673
          %v1758 = vunpack.c.l.b16 %v1674
          %v1759 = vunpack.c.h.b16 %v1674
          %v1760 = vunpack.c.l.b16 %v1675
          %v1761 = vunpack.c.l.b16 %v1676
          %v1762 = vunpack.c.h.b16 %v1676
          %v1763 = vunpack.c.l.b16 %v1677
          %v1764 = vunpack.c.l.b16 %v1678
          %v1765 = vunpack.c.h.b16 %v1678
          %v1766 = vunpack.c.l.b16 %v1679
          %v1767 = vunpack.c.l.b16 %v1680
          %v1768 = vunpack.c.h.b16 %v1680
          %v1769 = vunpack.c.l.b16 %v1681
          %v1770 = vunpack.c.l.b16 %v1682
          %v1771 = vunpack.c.h.b16 %v1682
          %v1772 = vunpack.c.l.b16 %v1683
          %v1773 = vunpack.c.l.b16 %v1684
          %v1774 = vunpack.c.h.b16 %v1684
          %v1775 = vunpack.c.l.b16 %v1685
          %v1776 = vunpack.c.l.b16 %v1686
          %v1777 = vunpack.c.h.b16 %v1686
          %v1778 = vunpack.c.l.b16 %v1687
          %v1779 = vunpack.c.l.b16 %v1688
          %v1780 = vunpack.c.h.b16 %v1688
          %v1781 = vunpack.c.l.b16 %v1689
          %v1782 = vunpack.c.l.b16 %v1690
          %v1783 = vunpack.c.h.b16 %v1690
          %v1784 = vunpack.c.l.b16 %v1691
          %v1785 = vunpack.c.l.b16 %v1692
          %v1786 = vunpack.c.h.b16 %v1692
          %v1787 = vunpack.c.l.b16 %v1693
          %v1788 = vunpack.c.l.b16 %v1694
          %v1789 = vunpack.c.h.b16 %v1694
          %v1790 = vunpack.c.l.b16 %v1695
          %v1791 = vunpack.c.l.b16 %v1696
          %v1792 = vunpack.c.h.b16 %v1696
          %v1793 = vunpack.c.l.b16 %v1697
          %v1794 = vunpack.c.l.b16 %v1698
          %v1795 = vunpack.c.h.b16 %v1698
          %v1796 = vunpack.c.l.b16 %v1699
          %v1797 = vpack.c.b16 %v1752, %v1749
          %v1798 = vpack.c.b16 %v1753, %v1750
          %v1799 = vpack.c.b16 %v1754, %v1751
          %v1800 = vpack.c.b16 %v1758, %v1755
          %v1801 = vpack.c.b16 %v1759, %v1756
          %v1802 = vpack.c.b16 %v1760, %v1757
          %v1803 = vpack.c.b16 %v1764, %v1761
          %v1804 = vpack.c.b16 %v1765, %v1762
          %v1805 = vpack.c.b16 %v1766, %v1763
          %v1806 = vpack.c.b16 %v1770, %v1767
          %v1807 = vpack.c.b16 %v1771, %v1768
          %v1808 = vpack.c.b16 %v1772, %v1769
          %v1809 = vpack.c.b16 %v1776, %v1773
          %v1810 = vpack.c.b16 %v1777, %v1774
          %v1811 = vpack.c.b16 %v1778, %v1775
          %v1812 = vpack.c.b16 %v1782, %v1779
          %v1813 = vpack.c.b16 %v1783, %v1780
          %v1814 = vpack.c.b16 %v1784, %v1781
          %v1815 = vpack.c.b16 %v1788, %v1785
          %v1816 = vpack.c.b16 %v1789, %v1786
          %v1817 = vpack.c.b16 %v1790, %v1787
          %v1818 = vpack.c.b16 %v1794, %v1791
          %v1819 = vpack.c.b16 %v1795, %v1792
          %v1820 = vpack.c.b16 %v1796, %v1793
          %1845 = vmatprep.subr.bf16.mxu0 %v1819
          %1846 = vmatpush1.bf16.msra.mxu0 %v1818
          %1847 = vmatprep.subr.bf16.mxu0 %v1816
          %1848 = vmatpush1.bf16.msra.mxu0 %v1815
          %1849 = vmatprep.subr.bf16.mxu0 %v1813
          %1850 = vmatpush1.bf16.msra.mxu0 %v1812
          %1851 = vmatprep.subr.bf16.mxu0 %v1810
          %1852 = vmatpush1.bf16.msra.mxu0 %v1809
          %1853 = vmatprep.subr.bf16.mxu0 %v1807
          %1854 = vmatpush1.bf16.msra.mxu0 %v1806
          %1855 = vmatprep.subr.bf16.mxu0 %v1804
          %1856 = vmatpush1.bf16.msra.mxu0 %v1803
          %1857 = vmatprep.subr.bf16.mxu0 %v1801
          %1858 = vmatpush1.bf16.msra.mxu0 %v1800
          %1859 = vmatprep.subr.bf16.mxu0 %v1798
          %1860 = vmatpush1.bf16.msra.mxu0 %v1797
          %1861 = vmatprep.subr.bf16.mxu0 0
          %1862 = vmatpush2.bf16.msra.mxu0 0
          %1863 = vmatprep.subr.bf16.mxu0 0
          %1864 = vmatpush2.bf16.msra.mxu0 0
          %1865 = vmatprep.subr.bf16.mxu0 0
          %1866 = vmatpush2.bf16.msra.mxu0 0
          %1867 = vmatprep.subr.bf16.mxu0 0
          %1868 = vmatpush2.bf16.msra.mxu0 0
          %1869 = vmatprep.subr.bf16.mxu0 0
          %1870 = vmatpush2.bf16.msra.mxu0 0
          %1871 = vmatprep.subr.bf16.mxu0 0
          %1872 = vmatpush2.bf16.msra.mxu0 0
          %1873 = vmatprep.subr.bf16.mxu0 0
          %1874 = vmatpush2.bf16.msra.mxu0 0
          %1875 = vmatprep.subr.bf16.mxu0 0
          %1876 = vmatpush2.bf16.msra.mxu0 0
          %1877 = vmatprep.mubr.bf16.mxu0 0
          %1878 = vmatmul.mubr.bf16.gmra.mxu0 %v1604
          %v1879 = vpop.f32.mrf.mxu0
          %v1880 = vadd.f32 %v1705, %v1879
          %v1881 = vpop.f32.mrf.mxu0
          %v1882 = vadd.f32 %v1709, %v1881
          %v1883 = vpop.f32.mrf.mxu0
          %v1884 = vadd.f32 %v1705, %v1883
          %v1885 = vpop.f32.mrf.mxu0
          %v1886 = vadd.f32 %v1709, %v1885
          %1887 = vmatprep.mubr.bf16.mxu0 0
          %1888 = vmatmul.mubr.bf16.gmra.mxu0 %v1605
          %v1889 = vpop.f32.mrf.mxu0
          %v1890 = vadd.f32 %v1705, %v1889
          %v1891 = vpop.f32.mrf.mxu0
          %v1892 = vadd.f32 %v1709, %v1891
          %v1893 = vpop.f32.mrf.mxu0
          %v1894 = vadd.f32 %v1705, %v1893
          %v1895 = vpop.f32.mrf.mxu0
          %v1896 = vadd.f32 %v1709, %v1895
          %1897 = vmatprep.mubr.bf16.mxu0 0
          %1898 = vmatmul.mubr.bf16.gmra.mxu0 %v1606
          %v1899 = vpop.f32.mrf.mxu0
          %v1900 = vadd.f32 %v1705, %v1899
          %v1901 = vpop.f32.mrf.mxu0
          %v1902 = vadd.f32 %v1709, %v1901
          %v1903 = vpop.f32.mrf.mxu0
          %v1904 = vadd.f32 %v1705, %v1903
          %v1905 = vpop.f32.mrf.mxu0
          %v1906 = vadd.f32 %v1709, %v1905
          %1907 = vmatprep.mubr.bf16.mxu0 0
          %1908 = vmatmul.mubr.bf16.gmra.mxu0 %v1607
          %v1909 = vpop.f32.mrf.mxu0
          %v1910 = vadd.f32 %v1705, %v1909
          %v1911 = vpop.f32.mrf.mxu0
          %v1912 = vadd.f32 %v1709, %v1911
          %v1913 = vpop.f32.mrf.mxu0
          %v1914 = vadd.f32 %v1705, %v1913
          %v1915 = vpop.f32.mrf.mxu0
          %v1916 = vadd.f32 %v1709, %v1915
          %1917 = vmatprep.mubr.bf16.mxu0 0
          %1918 = vmatmul.mubr.bf16.gmra.mxu0 %v1608
          %v1919 = vpop.f32.mrf.mxu0
          %v1920 = vadd.f32 %v1705, %v1919
          %v1921 = vpop.f32.mrf.mxu0
          %v1922 = vadd.f32 %v1709, %v1921
          %v1923 = vpop.f32.mrf.mxu0
          %v1924 = vadd.f32 %v1705, %v1923
          %v1925 = vpop.f32.mrf.mxu0
          %v1926 = vadd.f32 %v1709, %v1925
          %1927 = vmatprep.mubr.bf16.mxu0 0
          %1928 = vmatmul.mubr.bf16.gmra.mxu0 %v1609
          %v1929 = vpop.f32.mrf.mxu0
          %v1930 = vadd.f32 %v1705, %v1929
          %v1931 = vpop.f32.mrf.mxu0
          %v1932 = vadd.f32 %v1709, %v1931
          %v1933 = vpop.f32.mrf.mxu0
          %v1934 = vadd.f32 %v1705, %v1933
          %v1935 = vpop.f32.mrf.mxu0
          %v1936 = vadd.f32 %v1709, %v1935
          %1937 = vmatprep.mubr.bf16.mxu0 0
          %1938 = vmatmul.mubr.bf16.gmra.mxu0 %v1610
          %v1939 = vpop.f32.mrf.mxu0
          %v1940 = vadd.f32 %v1705, %v1939
          %v1941 = vpop.f32.mrf.mxu0
          %v1942 = vadd.f32 %v1709, %v1941
          %v1943 = vpop.f32.mrf.mxu0
          %v1944 = vadd.f32 %v1705, %v1943
          %v1945 = vpop.f32.mrf.mxu0
          %v1946 = vadd.f32 %v1709, %v1945
          %1947 = vmatprep.mubr.bf16.mxu0 0
          %1948 = vmatmul.mubr.bf16.gmra.mxu0 %v1611
          %v1949 = vpop.f32.mrf.mxu0
          %v1950 = vadd.f32 %v1705, %v1949
          %v1951 = vpop.f32.mrf.mxu0
          %v1952 = vadd.f32 %v1709, %v1951
          %v1953 = vpop.f32.mrf.mxu0
          %v1954 = vadd.f32 %v1705, %v1953
          %v1955 = vpop.f32.mrf.mxu0
          %v1956 = vadd.f32 %v1709, %v1955
          %1957 = vmatprep.mubr.bf16.mxu0 0
          %1958 = vmatmul.mubr.bf16.gmra.mxu0 %v1612
          %v1959 = vpop.f32.mrf.mxu0
          %v1960 = vadd.f32 %v1705, %v1959
          %v1961 = vpop.f32.mrf.mxu0
          %v1962 = vadd.f32 %v1709, %v1961
          %v1963 = vpop.f32.mrf.mxu0
          %v1964 = vadd.f32 %v1705, %v1963
          %v1965 = vpop.f32.mrf.mxu0
          %v1966 = vadd.f32 %v1709, %v1965
          %1967 = vmatprep.mubr.bf16.mxu0 0
          %1968 = vmatmul.mubr.bf16.gmra.mxu0 %v1613
          %v1969 = vpop.f32.mrf.mxu0
          %v1970 = vadd.f32 %v1705, %v1969
          %v1971 = vpop.f32.mrf.mxu0
          %v1972 = vadd.f32 %v1709, %v1971
          %v1973 = vpop.f32.mrf.mxu0
          %v1974 = vadd.f32 %v1705, %v1973
          %v1975 = vpop.f32.mrf.mxu0
          %v1976 = vadd.f32 %v1709, %v1975
          %1977 = vmatprep.mubr.bf16.mxu0 0
          %1978 = vmatmul.mubr.bf16.gmra.mxu0 %v1614
          %v1979 = vpop.f32.mrf.mxu0
          %v1980 = vadd.f32 %v1705, %v1979
          %v1981 = vpop.f32.mrf.mxu0
          %v1982 = vadd.f32 %v1709, %v1981
          %v1983 = vpop.f32.mrf.mxu0
          %v1984 = vadd.f32 %v1705, %v1983
          %v1985 = vpop.f32.mrf.mxu0
          %v1986 = vadd.f32 %v1709, %v1985
          %1987 = vmatprep.mubr.bf16.mxu0 0
          %1988 = vmatmul.mubr.bf16.gmra.mxu0 %v1615
          %v1989 = vpop.f32.mrf.mxu0
          %v1990 = vadd.f32 %v1705, %v1989
          %v1991 = vpop.f32.mrf.mxu0
          %v1992 = vadd.f32 %v1709, %v1991
          %v1993 = vpop.f32.mrf.mxu0
          %v1994 = vadd.f32 %v1705, %v1993
          %v1995 = vpop.f32.mrf.mxu0
          %v1996 = vadd.f32 %v1709, %v1995
          %1997 = vmatprep.mubr.bf16.mxu0 0
          %1998 = vmatmul.mubr.bf16.gmra.mxu0 %v1616
          %v1999 = vpop.f32.mrf.mxu0
          %v2000 = vadd.f32 %v1705, %v1999
          %v2001 = vpop.f32.mrf.mxu0
          %v2002 = vadd.f32 %v1709, %v2001
          %v2003 = vpop.f32.mrf.mxu0
          %v2004 = vadd.f32 %v1705, %v2003
          %v2005 = vpop.f32.mrf.mxu0
          %v2006 = vadd.f32 %v1709, %v2005
          %2007 = vmatprep.mubr.bf16.mxu0 0
          %2008 = vmatmul.mubr.bf16.gmra.mxu0 %v1617
          %v2009 = vpop.f32.mrf.mxu0
          %v2010 = vadd.f32 %v1705, %v2009
          %v2011 = vpop.f32.mrf.mxu0
          %v2012 = vadd.f32 %v1709, %v2011
          %v2013 = vpop.f32.mrf.mxu0
          %v2014 = vadd.f32 %v1705, %v2013
          %v2015 = vpop.f32.mrf.mxu0
          %v2016 = vadd.f32 %v1709, %v2015
          %2017 = vmatprep.mubr.bf16.mxu0 0
          %2018 = vmatmul.mubr.bf16.gmra.mxu0 %v1618
          %v2019 = vpop.f32.mrf.mxu0
          %v2020 = vadd.f32 %v1705, %v2019
          %v2021 = vpop.f32.mrf.mxu0
          %v2022 = vadd.f32 %v1709, %v2021
          %v2023 = vpop.f32.mrf.mxu0
          %v2024 = vadd.f32 %v1705, %v2023
          %v2025 = vpop.f32.mrf.mxu0
          %v2026 = vadd.f32 %v1709, %v2025
          %2027 = vmatprep.mubr.bf16.mxu0 0
          %2028 = vmatmul.mubr.bf16.gmra.mxu0 %v1619
          %v2029 = vpop.f32.mrf.mxu0
          %v2030 = vadd.f32 %v1705, %v2029
          %v2031 = vpop.f32.mrf.mxu0
          %v2032 = vadd.f32 %v1709, %v2031
          %v2033 = vpop.f32.mrf.mxu0
          %v2034 = vadd.f32 %v1705, %v2033
          %v2035 = vpop.f32.mrf.mxu0
          %v2036 = vadd.f32 %v1709, %v2035
          %2037 = vmatprep.mubr.bf16.mxu0 0
          %2038 = vmatmul.mubr.bf16.gmra.mxu0 %v1620
          %v2039 = vpop.f32.mrf.mxu0
          %v2040 = vadd.f32 %v1705, %v2039
          %v2041 = vpop.f32.mrf.mxu0
          %v2042 = vadd.f32 %v1709, %v2041
          %v2043 = vpop.f32.mrf.mxu0
          %v2044 = vadd.f32 %v1705, %v2043
          %v2045 = vpop.f32.mrf.mxu0
          %v2046 = vadd.f32 %v1709, %v2045
          %2047 = vmatprep.mubr.bf16.mxu0 0
          %2048 = vmatmul.mubr.bf16.gmra.mxu0 %v1621
          %v2049 = vpop.f32.mrf.mxu0
          %v2050 = vadd.f32 %v1705, %v2049
          %v2051 = vpop.f32.mrf.mxu0
          %v2052 = vadd.f32 %v1709, %v2051
          %v2053 = vpop.f32.mrf.mxu0
          %v2054 = vadd.f32 %v1705, %v2053
          %v2055 = vpop.f32.mrf.mxu0
          %v2056 = vadd.f32 %v1709, %v2055
          %2057 = vmatprep.mubr.bf16.mxu0 0
          %2058 = vmatmul.mubr.bf16.gmra.mxu0 %v1622
          %v2059 = vpop.f32.mrf.mxu0
          %v2060 = vadd.f32 %v1705, %v2059
          %v2061 = vpop.f32.mrf.mxu0
          %v2062 = vadd.f32 %v1709, %v2061
          %v2063 = vpop.f32.mrf.mxu0
          %v2064 = vadd.f32 %v1705, %v2063
          %v2065 = vpop.f32.mrf.mxu0
          %v2066 = vadd.f32 %v1709, %v2065
          %2067 = vmatprep.mubr.bf16.mxu0 0
          %2068 = vmatmul.mubr.bf16.gmra.mxu0 %v1623
          %v2069 = vpop.f32.mrf.mxu0
          %v2070 = vadd.f32 %v1705, %v2069
          %v2071 = vpop.f32.mrf.mxu0
          %v2072 = vadd.f32 %v1709, %v2071
          %v2073 = vpop.f32.mrf.mxu0
          %v2074 = vadd.f32 %v1705, %v2073
          %v2075 = vpop.f32.mrf.mxu0
          %v2076 = vadd.f32 %v1709, %v2075
          %2077 = vmatprep.mubr.bf16.mxu0 0
          %2078 = vmatmul.mubr.bf16.gmra.mxu0 %v1624
          %v2079 = vpop.f32.mrf.mxu0
          %v2080 = vadd.f32 %v1705, %v2079
          %v2081 = vpop.f32.mrf.mxu0
          %v2082 = vadd.f32 %v1709, %v2081
          %v2083 = vpop.f32.mrf.mxu0
          %v2084 = vadd.f32 %v1705, %v2083
          %v2085 = vpop.f32.mrf.mxu0
          %v2086 = vadd.f32 %v1709, %v2085
          %2087 = vmatprep.mubr.bf16.mxu0 0
          %2088 = vmatmul.mubr.bf16.gmra.mxu0 %v1625
          %v2089 = vpop.f32.mrf.mxu0
          %v2090 = vadd.f32 %v1705, %v2089
          %v2091 = vpop.f32.mrf.mxu0
          %v2092 = vadd.f32 %v1709, %v2091
          %v2093 = vpop.f32.mrf.mxu0
          %v2094 = vadd.f32 %v1705, %v2093
          %v2095 = vpop.f32.mrf.mxu0
          %v2096 = vadd.f32 %v1709, %v2095
          %2097 = vmatprep.mubr.bf16.mxu0 0
          %2098 = vmatmul.mubr.bf16.gmra.mxu0 %v1626
          %v2099 = vpop.f32.mrf.mxu0
          %v2100 = vadd.f32 %v1705, %v2099
          %v2101 = vpop.f32.mrf.mxu0
          %v2102 = vadd.f32 %v1709, %v2101
          %v2103 = vpop.f32.mrf.mxu0
          %v2104 = vadd.f32 %v1705, %v2103
          %v2105 = vpop.f32.mrf.mxu0
          %v2106 = vadd.f32 %v1709, %v2105
          %2107 = vmatprep.mubr.bf16.mxu0 0
          %2108 = vmatmul.mubr.bf16.gmra.mxu0 %v1627
          %v2109 = vpop.f32.mrf.mxu0
          %v2110 = vadd.f32 %v1705, %v2109
          %v2111 = vpop.f32.mrf.mxu0
          %v2112 = vadd.f32 %v1709, %v2111
          %v2113 = vpop.f32.mrf.mxu0
          %v2114 = vadd.f32 %v1705, %v2113
          %v2115 = vpop.f32.mrf.mxu0
          %v2116 = vadd.f32 %v1709, %v2115
          %2117 = vmatprep.mubr.bf16.mxu0 0
          %2118 = vmatmul.mubr.bf16.gmra.mxu0 %v1628
          %v2119 = vpop.f32.mrf.mxu0
          %v2120 = vadd.f32 %v1705, %v2119
          %v2121 = vpop.f32.mrf.mxu0
          %v2122 = vadd.f32 %v1709, %v2121
          %v2123 = vpop.f32.mrf.mxu0
          %v2124 = vadd.f32 %v1705, %v2123
          %v2125 = vpop.f32.mrf.mxu0
          %v2126 = vadd.f32 %v1709, %v2125
          %2127 = vmatprep.mubr.bf16.mxu0 0
          %2128 = vmatmul.mubr.bf16.gmra.mxu0 %v1629
          %v2129 = vpop.f32.mrf.mxu0
          %v2130 = vadd.f32 %v1705, %v2129
          %v2131 = vpop.f32.mrf.mxu0
          %v2132 = vadd.f32 %v1709, %v2131
          %v2133 = vpop.f32.mrf.mxu0
          %v2134 = vadd.f32 %v1705, %v2133
          %v2135 = vpop.f32.mrf.mxu0
          %v2136 = vadd.f32 %v1709, %v2135
          %2137 = vmatprep.mubr.bf16.mxu0 0
          %2138 = vmatmul.mubr.bf16.gmra.mxu0 %v1630
          %v2139 = vpop.f32.mrf.mxu0
          %v2140 = vadd.f32 %v1705, %v2139
          %v2141 = vpop.f32.mrf.mxu0
          %v2142 = vadd.f32 %v1709, %v2141
          %v2143 = vpop.f32.mrf.mxu0
          %v2144 = vadd.f32 %v1705, %v2143
          %v2145 = vpop.f32.mrf.mxu0
          %v2146 = vadd.f32 %v1709, %v2145
          %2147 = vmatprep.mubr.bf16.mxu0 0
          %2148 = vmatmul.mubr.bf16.gmra.mxu0 %v1631
          %v2149 = vpop.f32.mrf.mxu0
          %v2150 = vadd.f32 %v1705, %v2149
          %v2151 = vpop.f32.mrf.mxu0
          %v2152 = vadd.f32 %v1709, %v2151
          %v2153 = vpop.f32.mrf.mxu0
          %v2154 = vadd.f32 %v1705, %v2153
          %v2155 = vpop.f32.mrf.mxu0
          %v2156 = vadd.f32 %v1709, %v2155
          %2157 = vmatprep.mubr.bf16.mxu0 0
          %2158 = vmatmul.mubr.bf16.gmra.mxu0 %v1632
          %v2159 = vpop.f32.mrf.mxu0
          %v2160 = vadd.f32 %v1705, %v2159
          %v2161 = vpop.f32.mrf.mxu0
          %v2162 = vadd.f32 %v1709, %v2161
          %v2163 = vpop.f32.mrf.mxu0
          %v2164 = vadd.f32 %v1705, %v2163
          %v2165 = vpop.f32.mrf.mxu0
          %v2166 = vadd.f32 %v1709, %v2165
          %2167 = vmatprep.mubr.bf16.mxu0 0
          %2168 = vmatmul.mubr.bf16.gmra.mxu0 %v1633
          %v2169 = vpop.f32.mrf.mxu0
          %v2170 = vadd.f32 %v1705, %v2169
          %v2171 = vpop.f32.mrf.mxu0
          %v2172 = vadd.f32 %v1709, %v2171
          %v2173 = vpop.f32.mrf.mxu0
          %v2174 = vadd.f32 %v1705, %v2173
          %v2175 = vpop.f32.mrf.mxu0
          %v2176 = vadd.f32 %v1709, %v2175
          %2177 = vmatprep.mubr.bf16.mxu0 0
          %2178 = vmatmul.mubr.bf16.gmra.mxu0 %v1634
          %v2179 = vpop.f32.mrf.mxu0
          %v2180 = vadd.f32 %v1705, %v2179
          %v2181 = vpop.f32.mrf.mxu0
          %v2182 = vadd.f32 %v1709, %v2181
          %v2183 = vpop.f32.mrf.mxu0
          %v2184 = vadd.f32 %v1705, %v2183
          %v2185 = vpop.f32.mrf.mxu0
          %v2186 = vadd.f32 %v1709, %v2185
          %2187 = vmatprep.mubr.bf16.mxu0 0
          %2188 = vmatmul.mubr.bf16.gmra.mxu0 %v1635
          %v2189 = vpop.f32.mrf.mxu0
          %v2190 = vadd.f32 %v1705, %v2189
          %v2191 = vpop.f32.mrf.mxu0
          %v2192 = vadd.f32 %v1709, %v2191
          %v2193 = vpop.f32.mrf.mxu0
          %v2194 = vadd.f32 %v1705, %v2193
          %v2195 = vpop.f32.mrf.mxu0
          %v2196 = vadd.f32 %v1709, %v2195
          %2197 = vmatprep.mubr.bf16.mxu0 0
          %2198 = vmatmul.mubr.bf16.gmra.mxu0 %v1636
          %v2199 = vpop.f32.mrf.mxu0
          %v2200 = vadd.f32 %v1705, %v2199
          %v2201 = vpop.f32.mrf.mxu0
          %v2202 = vadd.f32 %v1709, %v2201
          %v2203 = vpop.f32.mrf.mxu0
          %v2204 = vadd.f32 %v1705, %v2203
          %v2205 = vpop.f32.mrf.mxu0
          %v2206 = vadd.f32 %v1709, %v2205
          %2207 = vmatprep.mubr.bf16.mxu0 0
          %2208 = vmatmul.mubr.bf16.gmra.mxu0 %v1637
          %v2209 = vpop.f32.mrf.mxu0
          %v2210 = vadd.f32 %v1705, %v2209
          %v2211 = vpop.f32.mrf.mxu0
          %v2212 = vadd.f32 %v1709, %v2211
          %v2213 = vpop.f32.mrf.mxu0
          %v2214 = vadd.f32 %v1705, %v2213
          %v2215 = vpop.f32.mrf.mxu0
          %v2216 = vadd.f32 %v1709, %v2215
          %2217 = vmatprep.mubr.bf16.mxu0 0
          %2218 = vmatmul.mubr.bf16.gmra.mxu0 %v1638
          %v2219 = vpop.f32.mrf.mxu0
          %v2220 = vadd.f32 %v1705, %v2219
          %v2221 = vpop.f32.mrf.mxu0
          %v2222 = vadd.f32 %v1709, %v2221
          %v2223 = vpop.f32.mrf.mxu0
          %v2224 = vadd.f32 %v1705, %v2223
          %v2225 = vpop.f32.mrf.mxu0
          %v2226 = vadd.f32 %v1709, %v2225
          %2227 = vmatprep.mubr.bf16.mxu0 0
          %2228 = vmatmul.mubr.bf16.gmra.mxu0 %v1639
          %v2229 = vpop.f32.mrf.mxu0
          %v2230 = vadd.f32 %v1705, %v2229
          %v2231 = vpop.f32.mrf.mxu0
          %v2232 = vadd.f32 %v1709, %v2231
          %v2233 = vpop.f32.mrf.mxu0
          %v2234 = vadd.f32 %v1705, %v2233
          %v2235 = vpop.f32.mrf.mxu0
          %v2236 = vadd.f32 %v1709, %v2235
          %2237 = vmatprep.mubr.bf16.mxu0 0
          %2238 = vmatmul.mubr.bf16.gmra.mxu0 %v1640
          %v2239 = vpop.f32.mrf.mxu0
          %v2240 = vadd.f32 %v1705, %v2239
          %v2241 = vpop.f32.mrf.mxu0
          %v2242 = vadd.f32 %v1709, %v2241
          %v2243 = vpop.f32.mrf.mxu0
          %v2244 = vadd.f32 %v1705, %v2243
          %v2245 = vpop.f32.mrf.mxu0
          %v2246 = vadd.f32 %v1709, %v2245
          %2247 = vmatprep.mubr.bf16.mxu0 0
          %2248 = vmatmul.mubr.bf16.gmra.mxu0 %v1641
          %v2249 = vpop.f32.mrf.mxu0
          %v2250 = vadd.f32 %v1705, %v2249
          %v2251 = vpop.f32.mrf.mxu0
          %v2252 = vadd.f32 %v1709, %v2251
          %v2253 = vpop.f32.mrf.mxu0
          %v2254 = vadd.f32 %v1705, %v2253
          %v2255 = vpop.f32.mrf.mxu0
          %v2256 = vadd.f32 %v1709, %v2255
          %2257 = vmatprep.mubr.bf16.mxu0 0
          %2258 = vmatmul.mubr.bf16.gmra.mxu0 %v1642
          %v2259 = vpop.f32.mrf.mxu0
          %v2260 = vadd.f32 %v1705, %v2259
          %v2261 = vpop.f32.mrf.mxu0
          %v2262 = vadd.f32 %v1709, %v2261
          %v2263 = vpop.f32.mrf.mxu0
          %v2264 = vadd.f32 %v1705, %v2263
          %v2265 = vpop.f32.mrf.mxu0
          %v2266 = vadd.f32 %v1709, %v2265
          %2267 = vmatprep.mubr.bf16.mxu0 0
          %2268 = vmatmul.mubr.bf16.gmra.mxu0 %v1643
          %v2269 = vpop.f32.mrf.mxu0
          %v2270 = vadd.f32 %v1705, %v2269
          %v2271 = vpop.f32.mrf.mxu0
          %v2272 = vadd.f32 %v1709, %v2271
          %v2273 = vpop.f32.mrf.mxu0
          %v2274 = vadd.f32 %v1705, %v2273
          %v2275 = vpop.f32.mrf.mxu0
          %v2276 = vadd.f32 %v1709, %v2275
          %2277 = vmatprep.mubr.bf16.mxu0 0
          %2278 = vmatmul.mubr.bf16.gmra.mxu0 %v1644
          %v2279 = vpop.f32.mrf.mxu0
          %v2280 = vadd.f32 %v1705, %v2279
          %v2281 = vpop.f32.mrf.mxu0
          %v2282 = vadd.f32 %v1709, %v2281
          %v2283 = vpop.f32.mrf.mxu0
          %v2284 = vadd.f32 %v1705, %v2283
          %v2285 = vpop.f32.mrf.mxu0
          %v2286 = vadd.f32 %v1709, %v2285
          %2287 = vmatprep.mubr.bf16.mxu0 0
          %2288 = vmatmul.mubr.bf16.gmra.mxu0 %v1645
          %v2289 = vpop.f32.mrf.mxu0
          %v2290 = vadd.f32 %v1705, %v2289
          %v2291 = vpop.f32.mrf.mxu0
          %v2292 = vadd.f32 %v1709, %v2291
          %v2293 = vpop.f32.mrf.mxu0
          %v2294 = vadd.f32 %v1705, %v2293
          %v2295 = vpop.f32.mrf.mxu0
          %v2296 = vadd.f32 %v1709, %v2295
          %2297 = vmatprep.mubr.bf16.mxu0 0
          %2298 = vmatmul.mubr.bf16.gmra.mxu0 %v1646
          %v2299 = vpop.f32.mrf.mxu0
          %v2300 = vadd.f32 %v1705, %v2299
          %v2301 = vpop.f32.mrf.mxu0
          %v2302 = vadd.f32 %v1709, %v2301
          %v2303 = vpop.f32.mrf.mxu0
          %v2304 = vadd.f32 %v1705, %v2303
          %v2305 = vpop.f32.mrf.mxu0
          %v2306 = vadd.f32 %v1709, %v2305
          %2307 = vmatprep.mubr.bf16.mxu0 0
          %2308 = vmatmul.mubr.bf16.gmra.mxu0 %v1647
          %v2309 = vpop.f32.mrf.mxu0
          %v2310 = vadd.f32 %v1705, %v2309
          %v2311 = vpop.f32.mrf.mxu0
          %v2312 = vadd.f32 %v1709, %v2311
          %v2313 = vpop.f32.mrf.mxu0
          %v2314 = vadd.f32 %v1705, %v2313
          %v2315 = vpop.f32.mrf.mxu0
          %v2316 = vadd.f32 %v1709, %v2315
          %2317 = vmatprep.mubr.bf16.mxu0 0
          %2318 = vmatmul.mubr.bf16.gmra.mxu0 %v1648
          %v2319 = vpop.f32.mrf.mxu0
          %v2320 = vadd.f32 %v1705, %v2319
          %v2321 = vpop.f32.mrf.mxu0
          %v2322 = vadd.f32 %v1709, %v2321
          %v2323 = vpop.f32.mrf.mxu0
          %v2324 = vadd.f32 %v1705, %v2323
          %v2325 = vpop.f32.mrf.mxu0
          %v2326 = vadd.f32 %v1709, %v2325
          %2327 = vmatprep.mubr.bf16.mxu0 0
          %2328 = vmatmul.mubr.bf16.gmra.mxu0 %v1649
          %v2329 = vpop.f32.mrf.mxu0
          %v2330 = vadd.f32 %v1705, %v2329
          %v2331 = vpop.f32.mrf.mxu0
          %v2332 = vadd.f32 %v1709, %v2331
          %v2333 = vpop.f32.mrf.mxu0
          %v2334 = vadd.f32 %v1705, %v2333
          %v2335 = vpop.f32.mrf.mxu0
          %v2336 = vadd.f32 %v1709, %v2335
          %2337 = vmatprep.mubr.bf16.mxu0 0
          %2338 = vmatmul.mubr.bf16.gmra.mxu0 %v1650
          %v2339 = vpop.f32.mrf.mxu0
          %v2340 = vadd.f32 %v1705, %v2339
          %v2341 = vpop.f32.mrf.mxu0
          %v2342 = vadd.f32 %v1709, %v2341
          %v2343 = vpop.f32.mrf.mxu0
          %v2344 = vadd.f32 %v1705, %v2343
          %v2345 = vpop.f32.mrf.mxu0
          %v2346 = vadd.f32 %v1709, %v2345
          %2347 = vmatprep.mubr.bf16.mxu0 0
          %2348 = vmatmul.mubr.bf16.gmra.mxu0 %v1651
          %v2349 = vpop.f32.mrf.mxu0
          %v2350 = vadd.f32 %v1705, %v2349
          %v2351 = vpop.f32.mrf.mxu0
          %v2352 = vadd.f32 %v1709, %v2351
          %v2353 = vpop.f32.mrf.mxu0
          %v2354 = vadd.f32 %v1705, %v2353
          %v2355 = vpop.f32.mrf.mxu0
          %v2356 = vadd.f32 %v1709, %v2355
          %2357 = vmatprep.mubr.bf16.mxu0 0
          %2358 = vmatmul.mubr.bf16.gmra.mxu0 %v1652
          %v2359 = vpop.f32.mrf.mxu0
          %v2360 = vadd.f32 %v1705, %v2359
          %v2361 = vpop.f32.mrf.mxu0
          %v2362 = vadd.f32 %v1709, %v2361
          %v2363 = vpop.f32.mrf.mxu0
          %v2364 = vadd.f32 %v1705, %v2363
          %v2365 = vpop.f32.mrf.mxu0
          %v2366 = vadd.f32 %v1709, %v2365
          %2367 = vmatprep.mubr.bf16.mxu0 0
          %2368 = vmatmul.mubr.bf16.gmra.mxu0 %v1653
          %v2369 = vpop.f32.mrf.mxu0
          %v2370 = vadd.f32 %v1705, %v2369
          %v2371 = vpop.f32.mrf.mxu0
          %v2372 = vadd.f32 %v1709, %v2371
          %v2373 = vpop.f32.mrf.mxu0
          %v2374 = vadd.f32 %v1705, %v2373
          %v2375 = vpop.f32.mrf.mxu0
          %v2376 = vadd.f32 %v1709, %v2375
          %2377 = vmatprep.mubr.bf16.mxu0 0
          %2378 = vmatmul.mubr.bf16.gmra.mxu0 %v1654
          %v2379 = vpop.f32.mrf.mxu0
          %v2380 = vadd.f32 %v1705, %v2379
          %v2381 = vpop.f32.mrf.mxu0
          %v2382 = vadd.f32 %v1709, %v2381
          %v2383 = vpop.f32.mrf.mxu0
          %v2384 = vadd.f32 %v1705, %v2383
          %v2385 = vpop.f32.mrf.mxu0
          %v2386 = vadd.f32 %v1709, %v2385
          %2387 = vmatprep.mubr.bf16.mxu0 0
          %2388 = vmatmul.mubr.bf16.gmra.mxu0 %v1655
          %v2389 = vpop.f32.mrf.mxu0
          %v2390 = vadd.f32 %v1705, %v2389
          %v2391 = vpop.f32.mrf.mxu0
          %v2392 = vadd.f32 %v1709, %v2391
          %v2393 = vpop.f32.mrf.mxu0
          %v2394 = vadd.f32 %v1705, %v2393
          %v2395 = vpop.f32.mrf.mxu0
          %v2396 = vadd.f32 %v1709, %v2395
          %2397 = vmatprep.mubr.bf16.mxu0 0
          %2398 = vmatmul.mubr.bf16.gmra.mxu0 %v1656
          %v2399 = vpop.f32.mrf.mxu0
          %v2400 = vadd.f32 %v1705, %v2399
          %v2401 = vpop.f32.mrf.mxu0
          %v2402 = vadd.f32 %v1709, %v2401
          %v2403 = vpop.f32.mrf.mxu0
          %v2404 = vadd.f32 %v1705, %v2403
          %v2405 = vpop.f32.mrf.mxu0
          %v2406 = vadd.f32 %v1709, %v2405
          %2407 = vmatprep.mubr.bf16.mxu0 0
          %2408 = vmatmul.mubr.bf16.gmra.mxu0 %v1657
          %v2409 = vpop.f32.mrf.mxu0
          %v2410 = vadd.f32 %v1705, %v2409
          %v2411 = vpop.f32.mrf.mxu0
          %v2412 = vadd.f32 %v1709, %v2411
          %v2413 = vpop.f32.mrf.mxu0
          %v2414 = vadd.f32 %v1705, %v2413
          %v2415 = vpop.f32.mrf.mxu0
          %v2416 = vadd.f32 %v1709, %v2415
          %2417 = vmatprep.mubr.bf16.mxu0 0
          %2418 = vmatmul.mubr.bf16.gmra.mxu0 %v1658
          %v2419 = vpop.f32.mrf.mxu0
          %v2420 = vadd.f32 %v1705, %v2419
          %v2421 = vpop.f32.mrf.mxu0
          %v2422 = vadd.f32 %v1709, %v2421
          %v2423 = vpop.f32.mrf.mxu0
          %v2424 = vadd.f32 %v1705, %v2423
          %v2425 = vpop.f32.mrf.mxu0
          %v2426 = vadd.f32 %v1709, %v2425
          %2427 = vmatprep.mubr.bf16.mxu0 0
          %2428 = vmatmul.mubr.bf16.gmra.mxu0 %v1659
          %v2429 = vpop.f32.mrf.mxu0
          %v2430 = vadd.f32 %v1705, %v2429
          %v2431 = vpop.f32.mrf.mxu0
          %v2432 = vadd.f32 %v1709, %v2431
          %v2433 = vpop.f32.mrf.mxu0
          %v2434 = vadd.f32 %v1705, %v2433
          %v2435 = vpop.f32.mrf.mxu0
          %v2436 = vadd.f32 %v1709, %v2435
          %2437 = vmatprep.mubr.bf16.mxu0 0
          %2438 = vmatmul.mubr.bf16.gmra.mxu0 %v1660
          %v2439 = vpop.f32.mrf.mxu0
          %v2440 = vadd.f32 %v1705, %v2439
          %v2441 = vpop.f32.mrf.mxu0
          %v2442 = vadd.f32 %v1709, %v2441
          %v2443 = vpop.f32.mrf.mxu0
          %v2444 = vadd.f32 %v1705, %v2443
          %v2445 = vpop.f32.mrf.mxu0
          %v2446 = vadd.f32 %v1709, %v2445
          %2447 = vmatprep.mubr.bf16.mxu0 0
          %2448 = vmatmul.mubr.bf16.gmra.mxu0 %v1661
          %v2449 = vpop.f32.mrf.mxu0
          %v2450 = vadd.f32 %v1705, %v2449
          %v2451 = vpop.f32.mrf.mxu0
          %v2452 = vadd.f32 %v1709, %v2451
          %v2453 = vpop.f32.mrf.mxu0
          %v2454 = vadd.f32 %v1705, %v2453
          %v2455 = vpop.f32.mrf.mxu0
          %v2456 = vadd.f32 %v1709, %v2455
          %2457 = vmatprep.mubr.bf16.mxu0 0
          %2458 = vmatmul.mubr.bf16.gmra.mxu0 %v1662
          %v2459 = vpop.f32.mrf.mxu0
          %v2460 = vadd.f32 %v1705, %v2459
          %v2461 = vpop.f32.mrf.mxu0
          %v2462 = vadd.f32 %v1709, %v2461
          %v2463 = vpop.f32.mrf.mxu0
          %v2464 = vadd.f32 %v1705, %v2463
          %v2465 = vpop.f32.mrf.mxu0
          %v2466 = vadd.f32 %v1709, %v2465
          %2467 = vmatprep.mubr.bf16.mxu0 0
          %2468 = vmatmul.mubr.bf16.gmra.mxu0 %v1663
          %v2469 = vpop.f32.mrf.mxu0
          %v2470 = vadd.f32 %v1705, %v2469
          %v2471 = vpop.f32.mrf.mxu0
          %v2472 = vadd.f32 %v1709, %v2471
          %v2473 = vpop.f32.mrf.mxu0
          %v2474 = vadd.f32 %v1705, %v2473
          %v2475 = vpop.f32.mrf.mxu0
          %v2476 = vadd.f32 %v1709, %v2475
          %2477 = vmatprep.mubr.bf16.mxu0 0
          %2478 = vmatmul.mubr.bf16.gmra.mxu0 %v1664
          %v2479 = vpop.f32.mrf.mxu0
          %v2480 = vadd.f32 %v1705, %v2479
          %v2481 = vpop.f32.mrf.mxu0
          %v2482 = vadd.f32 %v1709, %v2481
          %v2483 = vpop.f32.mrf.mxu0
          %v2484 = vadd.f32 %v1705, %v2483
          %v2485 = vpop.f32.mrf.mxu0
          %v2486 = vadd.f32 %v1709, %v2485
          %2487 = vmatprep.mubr.bf16.mxu0 0
          %2488 = vmatmul.mubr.bf16.gmra.mxu0 %v1665
          %v2489 = vpop.f32.mrf.mxu0
          %v2490 = vadd.f32 %v1705, %v2489
          %v2491 = vpop.f32.mrf.mxu0
          %v2492 = vadd.f32 %v1709, %v2491
          %v2493 = vpop.f32.mrf.mxu0
          %v2494 = vadd.f32 %v1705, %v2493
          %v2495 = vpop.f32.mrf.mxu0
          %v2496 = vadd.f32 %v1709, %v2495
          %2497 = vmatprep.mubr.bf16.mxu0 0
          %2498 = vmatmul.mubr.bf16.gmra.mxu0 %v1666
          %v2499 = vpop.f32.mrf.mxu0
          %v2500 = vadd.f32 %v1705, %v2499
          %v2501 = vpop.f32.mrf.mxu0
          %v2502 = vadd.f32 %v1709, %v2501
          %v2503 = vpop.f32.mrf.mxu0
          %v2504 = vadd.f32 %v1705, %v2503
          %v2505 = vpop.f32.mrf.mxu0
          %v2506 = vadd.f32 %v1709, %v2505
          %2507 = vmatprep.mubr.bf16.mxu0 0
          %2508 = vmatmul.mubr.bf16.gmra.mxu0 %v1667
          %v2509 = vpop.f32.mrf.mxu0
          %v2510 = vadd.f32 %v1705, %v2509
          %v2511 = vpop.f32.mrf.mxu0
          %v2512 = vadd.f32 %v1709, %v2511
          %v2513 = vpop.f32.mrf.mxu0
          %v2514 = vadd.f32 %v1705, %v2513
          %v2515 = vpop.f32.mrf.mxu0
          %v2516 = vadd.f32 %v1709, %v2515
          %2517 = vdwg.mxu0
          %2518 = vmatprep.subr.bf16.mxu0 0
          %2519 = vmatpush1.bf16.msra.mxu0 %v1820
          %2520 = vmatprep.subr.bf16.mxu0 0
          %2521 = vmatpush1.bf16.msra.mxu0 %v1817
          %2522 = vmatprep.subr.bf16.mxu0 0
          %2523 = vmatpush1.bf16.msra.mxu0 %v1814
          %2524 = vmatprep.subr.bf16.mxu0 0
          %2525 = vmatpush1.bf16.msra.mxu0 %v1811
          %2526 = vmatprep.subr.bf16.mxu0 0
          %2527 = vmatpush1.bf16.msra.mxu0 %v1808
          %2528 = vmatprep.subr.bf16.mxu0 0
          %2529 = vmatpush1.bf16.msra.mxu0 %v1805
          %2530 = vmatprep.subr.bf16.mxu0 0
          %2531 = vmatpush1.bf16.msra.mxu0 %v1802
          %2532 = vmatprep.subr.bf16.mxu0 0
          %2533 = vmatpush1.bf16.msra.mxu0 %v1799
          %2534 = vmatprep.subr.bf16.mxu0 0
          %2535 = vmatpush2.bf16.msra.mxu0 0
          %2536 = vmatprep.subr.bf16.mxu0 0
          %2537 = vmatpush2.bf16.msra.mxu0 0
          %2538 = vmatprep.subr.bf16.mxu0 0
          %2539 = vmatpush2.bf16.msra.mxu0 0
          %2540 = vmatprep.subr.bf16.mxu0 0
          %2541 = vmatpush2.bf16.msra.mxu0 0
          %2542 = vmatprep.subr.bf16.mxu0 0
          %2543 = vmatpush2.bf16.msra.mxu0 0
          %2544 = vmatprep.subr.bf16.mxu0 0
          %2545 = vmatpush2.bf16.msra.mxu0 0
          %2546 = vmatprep.subr.bf16.mxu0 0
          %2547 = vmatpush2.bf16.msra.mxu0 0
          %2548 = vmatprep.subr.bf16.mxu0 0
          %2549 = vmatpush2.bf16.msra.mxu0 0
          %2550 = vmatprep.mubr.bf16.mxu0 0
          %2551 = vmatmul.mubr.bf16.gmra.mxu0 %v1604
          %v2552 = vpop.f32.mrf.mxu0
          %v2553 = vadd.f32 %v1713, %v2552
          %v2554 = vpop.f32.mrf.mxu0
          %v2555 = vpop.f32.mrf.mxu0
          %v2556 = vadd.f32 %v1713, %v2555
          %v2557 = vpop.f32.mrf.mxu0
          %2558 = vmatprep.mubr.bf16.mxu0 0
          %2559 = vmatmul.mubr.bf16.gmra.mxu0 %v1605
          %v2560 = vpop.f32.mrf.mxu0
          %v2561 = vadd.f32 %v1713, %v2560
          %v2562 = vpop.f32.mrf.mxu0
          %v2563 = vpop.f32.mrf.mxu0
          %v2564 = vadd.f32 %v1713, %v2563
          %v2565 = vpop.f32.mrf.mxu0
          %2566 = vmatprep.mubr.bf16.mxu0 0
          %2567 = vmatmul.mubr.bf16.gmra.mxu0 %v1606
          %v2568 = vpop.f32.mrf.mxu0
          %v2569 = vadd.f32 %v1713, %v2568
          %v2570 = vpop.f32.mrf.mxu0
          %v2571 = vpop.f32.mrf.mxu0
          %v2572 = vadd.f32 %v1713, %v2571
          %v2573 = vpop.f32.mrf.mxu0
          %2574 = vmatprep.mubr.bf16.mxu0 0
          %2575 = vmatmul.mubr.bf16.gmra.mxu0 %v1607
          %v2576 = vpop.f32.mrf.mxu0
          %v2577 = vadd.f32 %v1713, %v2576
          %v2578 = vpop.f32.mrf.mxu0
          %v2579 = vpop.f32.mrf.mxu0
          %v2580 = vadd.f32 %v1713, %v2579
          %v2581 = vpop.f32.mrf.mxu0
          %2582 = vmatprep.mubr.bf16.mxu0 0
          %2583 = vmatmul.mubr.bf16.gmra.mxu0 %v1608
          %v2584 = vpop.f32.mrf.mxu0
          %v2585 = vadd.f32 %v1713, %v2584
          %v2586 = vpop.f32.mrf.mxu0
          %v2587 = vpop.f32.mrf.mxu0
          %v2588 = vadd.f32 %v1713, %v2587
          %v2589 = vpop.f32.mrf.mxu0
          %2590 = vmatprep.mubr.bf16.mxu0 0
          %2591 = vmatmul.mubr.bf16.gmra.mxu0 %v1609
          %v2592 = vpop.f32.mrf.mxu0
          %v2593 = vadd.f32 %v1713, %v2592
          %v2594 = vpop.f32.mrf.mxu0
          %v2595 = vpop.f32.mrf.mxu0
          %v2596 = vadd.f32 %v1713, %v2595
          %v2597 = vpop.f32.mrf.mxu0
          %2598 = vmatprep.mubr.bf16.mxu0 0
          %2599 = vmatmul.mubr.bf16.gmra.mxu0 %v1610
          %v2600 = vpop.f32.mrf.mxu0
          %v2601 = vadd.f32 %v1713, %v2600
          %v2602 = vpop.f32.mrf.mxu0
          %v2603 = vpop.f32.mrf.mxu0
          %v2604 = vadd.f32 %v1713, %v2603
          %v2605 = vpop.f32.mrf.mxu0
          %2606 = vmatprep.mubr.bf16.mxu0 0
          %2607 = vmatmul.mubr.bf16.gmra.mxu0 %v1611
          %v2608 = vpop.f32.mrf.mxu0
          %v2609 = vadd.f32 %v1713, %v2608
          %v2610 = vpop.f32.mrf.mxu0
          %v2611 = vpop.f32.mrf.mxu0
          %v2612 = vadd.f32 %v1713, %v2611
          %v2613 = vpop.f32.mrf.mxu0
          %2614 = vmatprep.mubr.bf16.mxu0 0
          %2615 = vmatmul.mubr.bf16.gmra.mxu0 %v1612
          %v2616 = vpop.f32.mrf.mxu0
          %v2617 = vadd.f32 %v1713, %v2616
          %v2618 = vpop.f32.mrf.mxu0
          %v2619 = vpop.f32.mrf.mxu0
          %v2620 = vadd.f32 %v1713, %v2619
          %v2621 = vpop.f32.mrf.mxu0
          %2622 = vmatprep.mubr.bf16.mxu0 0
          %2623 = vmatmul.mubr.bf16.gmra.mxu0 %v1613
          %v2624 = vpop.f32.mrf.mxu0
          %v2625 = vadd.f32 %v1713, %v2624
          %v2626 = vpop.f32.mrf.mxu0
          %v2627 = vpop.f32.mrf.mxu0
          %v2628 = vadd.f32 %v1713, %v2627
          %v2629 = vpop.f32.mrf.mxu0
          %2630 = vmatprep.mubr.bf16.mxu0 0
          %2631 = vmatmul.mubr.bf16.gmra.mxu0 %v1614
          %v2632 = vpop.f32.mrf.mxu0
          %v2633 = vadd.f32 %v1713, %v2632
          %v2634 = vpop.f32.mrf.mxu0
          %v2635 = vpop.f32.mrf.mxu0
          %v2636 = vadd.f32 %v1713, %v2635
          %v2637 = vpop.f32.mrf.mxu0
          %2638 = vmatprep.mubr.bf16.mxu0 0
          %2639 = vmatmul.mubr.bf16.gmra.mxu0 %v1615
          %v2640 = vpop.f32.mrf.mxu0
          %v2641 = vadd.f32 %v1713, %v2640
          %v2642 = vpop.f32.mrf.mxu0
          %v2643 = vpop.f32.mrf.mxu0
          %v2644 = vadd.f32 %v1713, %v2643
          %v2645 = vpop.f32.mrf.mxu0
          %2646 = vmatprep.mubr.bf16.mxu0 0
          %2647 = vmatmul.mubr.bf16.gmra.mxu0 %v1616
          %v2648 = vpop.f32.mrf.mxu0
          %v2649 = vadd.f32 %v1713, %v2648
          %v2650 = vpop.f32.mrf.mxu0
          %v2651 = vpop.f32.mrf.mxu0
          %v2652 = vadd.f32 %v1713, %v2651
          %v2653 = vpop.f32.mrf.mxu0
          %2654 = vmatprep.mubr.bf16.mxu0 0
          %2655 = vmatmul.mubr.bf16.gmra.mxu0 %v1617
          %v2656 = vpop.f32.mrf.mxu0
          %v2657 = vadd.f32 %v1713, %v2656
          %v2658 = vpop.f32.mrf.mxu0
          %v2659 = vpop.f32.mrf.mxu0
          %v2660 = vadd.f32 %v1713, %v2659
          %v2661 = vpop.f32.mrf.mxu0
          %2662 = vmatprep.mubr.bf16.mxu0 0
          %2663 = vmatmul.mubr.bf16.gmra.mxu0 %v1618
          %v2664 = vpop.f32.mrf.mxu0
          %v2665 = vadd.f32 %v1713, %v2664
          %v2666 = vpop.f32.mrf.mxu0
          %v2667 = vpop.f32.mrf.mxu0
          %v2668 = vadd.f32 %v1713, %v2667
          %v2669 = vpop.f32.mrf.mxu0
          %2670 = vmatprep.mubr.bf16.mxu0 0
          %2671 = vmatmul.mubr.bf16.gmra.mxu0 %v1619
          %v2672 = vpop.f32.mrf.mxu0
          %v2673 = vadd.f32 %v1713, %v2672
          %v2674 = vpop.f32.mrf.mxu0
          %v2675 = vpop.f32.mrf.mxu0
          %v2676 = vadd.f32 %v1713, %v2675
          %v2677 = vpop.f32.mrf.mxu0
          %2678 = vmatprep.mubr.bf16.mxu0 0
          %2679 = vmatmul.mubr.bf16.gmra.mxu0 %v1620
          %v2680 = vpop.f32.mrf.mxu0
          %v2681 = vadd.f32 %v1713, %v2680
          %v2682 = vpop.f32.mrf.mxu0
          %v2683 = vpop.f32.mrf.mxu0
          %v2684 = vadd.f32 %v1713, %v2683
          %v2685 = vpop.f32.mrf.mxu0
          %2686 = vmatprep.mubr.bf16.mxu0 0
          %2687 = vmatmul.mubr.bf16.gmra.mxu0 %v1621
          %v2688 = vpop.f32.mrf.mxu0
          %v2689 = vadd.f32 %v1713, %v2688
          %v2690 = vpop.f32.mrf.mxu0
          %v2691 = vpop.f32.mrf.mxu0
          %v2692 = vadd.f32 %v1713, %v2691
          %v2693 = vpop.f32.mrf.mxu0
          %2694 = vmatprep.mubr.bf16.mxu0 0
          %2695 = vmatmul.mubr.bf16.gmra.mxu0 %v1622
          %v2696 = vpop.f32.mrf.mxu0
          %v2697 = vadd.f32 %v1713, %v2696
          %v2698 = vpop.f32.mrf.mxu0
          %v2699 = vpop.f32.mrf.mxu0
          %v2700 = vadd.f32 %v1713, %v2699
          %v2701 = vpop.f32.mrf.mxu0
          %2702 = vmatprep.mubr.bf16.mxu0 0
          %2703 = vmatmul.mubr.bf16.gmra.mxu0 %v1623
          %v2704 = vpop.f32.mrf.mxu0
          %v2705 = vadd.f32 %v1713, %v2704
          %v2706 = vpop.f32.mrf.mxu0
          %v2707 = vpop.f32.mrf.mxu0
          %v2708 = vadd.f32 %v1713, %v2707
          %v2709 = vpop.f32.mrf.mxu0
          %2710 = vmatprep.mubr.bf16.mxu0 0
          %2711 = vmatmul.mubr.bf16.gmra.mxu0 %v1624
          %v2712 = vpop.f32.mrf.mxu0
          %v2713 = vadd.f32 %v1713, %v2712
          %v2714 = vpop.f32.mrf.mxu0
          %v2715 = vpop.f32.mrf.mxu0
          %v2716 = vadd.f32 %v1713, %v2715
          %v2717 = vpop.f32.mrf.mxu0
          %2718 = vmatprep.mubr.bf16.mxu0 0
          %2719 = vmatmul.mubr.bf16.gmra.mxu0 %v1625
          %v2720 = vpop.f32.mrf.mxu0
          %v2721 = vadd.f32 %v1713, %v2720
          %v2722 = vpop.f32.mrf.mxu0
          %v2723 = vpop.f32.mrf.mxu0
          %v2724 = vadd.f32 %v1713, %v2723
          %v2725 = vpop.f32.mrf.mxu0
          %2726 = vmatprep.mubr.bf16.mxu0 0
          %2727 = vmatmul.mubr.bf16.gmra.mxu0 %v1626
          %v2728 = vpop.f32.mrf.mxu0
          %v2729 = vadd.f32 %v1713, %v2728
          %v2730 = vpop.f32.mrf.mxu0
          %v2731 = vpop.f32.mrf.mxu0
          %v2732 = vadd.f32 %v1713, %v2731
          %v2733 = vpop.f32.mrf.mxu0
          %2734 = vmatprep.mubr.bf16.mxu0 0
          %2735 = vmatmul.mubr.bf16.gmra.mxu0 %v1627
          %v2736 = vpop.f32.mrf.mxu0
          %v2737 = vadd.f32 %v1713, %v2736
          %v2738 = vpop.f32.mrf.mxu0
          %v2739 = vpop.f32.mrf.mxu0
          %v2740 = vadd.f32 %v1713, %v2739
          %v2741 = vpop.f32.mrf.mxu0
          %2742 = vmatprep.mubr.bf16.mxu0 0
          %2743 = vmatmul.mubr.bf16.gmra.mxu0 %v1628
          %v2744 = vpop.f32.mrf.mxu0
          %v2745 = vadd.f32 %v1713, %v2744
          %v2746 = vpop.f32.mrf.mxu0
          %v2747 = vpop.f32.mrf.mxu0
          %v2748 = vadd.f32 %v1713, %v2747
          %v2749 = vpop.f32.mrf.mxu0
          %2750 = vmatprep.mubr.bf16.mxu0 0
          %2751 = vmatmul.mubr.bf16.gmra.mxu0 %v1629
          %v2752 = vpop.f32.mrf.mxu0
          %v2753 = vadd.f32 %v1713, %v2752
          %v2754 = vpop.f32.mrf.mxu0
          %v2755 = vpop.f32.mrf.mxu0
          %v2756 = vadd.f32 %v1713, %v2755
          %v2757 = vpop.f32.mrf.mxu0
          %2758 = vmatprep.mubr.bf16.mxu0 0
          %2759 = vmatmul.mubr.bf16.gmra.mxu0 %v1630
          %v2760 = vpop.f32.mrf.mxu0
          %v2761 = vadd.f32 %v1713, %v2760
          %v2762 = vpop.f32.mrf.mxu0
          %v2763 = vpop.f32.mrf.mxu0
          %v2764 = vadd.f32 %v1713, %v2763
          %v2765 = vpop.f32.mrf.mxu0
          %2766 = vmatprep.mubr.bf16.mxu0 0
          %2767 = vmatmul.mubr.bf16.gmra.mxu0 %v1631
          %v2768 = vpop.f32.mrf.mxu0
          %v2769 = vadd.f32 %v1713, %v2768
          %v2770 = vpop.f32.mrf.mxu0
          %v2771 = vpop.f32.mrf.mxu0
          %v2772 = vadd.f32 %v1713, %v2771
          %v2773 = vpop.f32.mrf.mxu0
          %2774 = vmatprep.mubr.bf16.mxu0 0
          %2775 = vmatmul.mubr.bf16.gmra.mxu0 %v1632
          %v2776 = vpop.f32.mrf.mxu0
          %v2777 = vadd.f32 %v1713, %v2776
          %v2778 = vpop.f32.mrf.mxu0
          %v2779 = vpop.f32.mrf.mxu0
          %v2780 = vadd.f32 %v1713, %v2779
          %v2781 = vpop.f32.mrf.mxu0
          %2782 = vmatprep.mubr.bf16.mxu0 0
          %2783 = vmatmul.mubr.bf16.gmra.mxu0 %v1633
          %v2784 = vpop.f32.mrf.mxu0
          %v2785 = vadd.f32 %v1713, %v2784
          %v2786 = vpop.f32.mrf.mxu0
          %v2787 = vpop.f32.mrf.mxu0
          %v2788 = vadd.f32 %v1713, %v2787
          %v2789 = vpop.f32.mrf.mxu0
          %2790 = vmatprep.mubr.bf16.mxu0 0
          %2791 = vmatmul.mubr.bf16.gmra.mxu0 %v1634
          %v2792 = vpop.f32.mrf.mxu0
          %v2793 = vadd.f32 %v1713, %v2792
          %v2794 = vpop.f32.mrf.mxu0
          %v2795 = vpop.f32.mrf.mxu0
          %v2796 = vadd.f32 %v1713, %v2795
          %v2797 = vpop.f32.mrf.mxu0
          %2798 = vmatprep.mubr.bf16.mxu0 0
          %2799 = vmatmul.mubr.bf16.gmra.mxu0 %v1635
          %v2800 = vpop.f32.mrf.mxu0
          %v2801 = vadd.f32 %v1713, %v2800
          %v2802 = vpop.f32.mrf.mxu0
          %v2803 = vpop.f32.mrf.mxu0
          %v2804 = vadd.f32 %v1713, %v2803
          %v2805 = vpop.f32.mrf.mxu0
          %2806 = vmatprep.mubr.bf16.mxu0 0
          %2807 = vmatmul.mubr.bf16.gmra.mxu0 %v1636
          %v2808 = vpop.f32.mrf.mxu0
          %v2809 = vadd.f32 %v1713, %v2808
          %v2810 = vpop.f32.mrf.mxu0
          %v2811 = vpop.f32.mrf.mxu0
          %v2812 = vadd.f32 %v1713, %v2811
          %v2813 = vpop.f32.mrf.mxu0
          %2814 = vmatprep.mubr.bf16.mxu0 0
          %2815 = vmatmul.mubr.bf16.gmra.mxu0 %v1637
          %v2816 = vpop.f32.mrf.mxu0
          %v2817 = vadd.f32 %v1713, %v2816
          %v2818 = vpop.f32.mrf.mxu0
          %v2819 = vpop.f32.mrf.mxu0
          %v2820 = vadd.f32 %v1713, %v2819
          %v2821 = vpop.f32.mrf.mxu0
          %2822 = vmatprep.mubr.bf16.mxu0 0
          %2823 = vmatmul.mubr.bf16.gmra.mxu0 %v1638
          %v2824 = vpop.f32.mrf.mxu0
          %v2825 = vadd.f32 %v1713, %v2824
          %v2826 = vpop.f32.mrf.mxu0
          %v2827 = vpop.f32.mrf.mxu0
          %v2828 = vadd.f32 %v1713, %v2827
          %v2829 = vpop.f32.mrf.mxu0
          %2830 = vmatprep.mubr.bf16.mxu0 0
          %2831 = vmatmul.mubr.bf16.gmra.mxu0 %v1639
          %v2832 = vpop.f32.mrf.mxu0
          %v2833 = vadd.f32 %v1713, %v2832
          %v2834 = vpop.f32.mrf.mxu0
          %v2835 = vpop.f32.mrf.mxu0
          %v2836 = vadd.f32 %v1713, %v2835
          %v2837 = vpop.f32.mrf.mxu0
          %2838 = vmatprep.mubr.bf16.mxu0 0
          %2839 = vmatmul.mubr.bf16.gmra.mxu0 %v1640
          %v2840 = vpop.f32.mrf.mxu0
          %v2841 = vadd.f32 %v1713, %v2840
          %v2842 = vpop.f32.mrf.mxu0
          %v2843 = vpop.f32.mrf.mxu0
          %v2844 = vadd.f32 %v1713, %v2843
          %v2845 = vpop.f32.mrf.mxu0
          %2846 = vmatprep.mubr.bf16.mxu0 0
          %2847 = vmatmul.mubr.bf16.gmra.mxu0 %v1641
          %v2848 = vpop.f32.mrf.mxu0
          %v2849 = vadd.f32 %v1713, %v2848
          %v2850 = vpop.f32.mrf.mxu0
          %v2851 = vpop.f32.mrf.mxu0
          %v2852 = vadd.f32 %v1713, %v2851
          %v2853 = vpop.f32.mrf.mxu0
          %2854 = vmatprep.mubr.bf16.mxu0 0
          %2855 = vmatmul.mubr.bf16.gmra.mxu0 %v1642
          %v2856 = vpop.f32.mrf.mxu0
          %v2857 = vadd.f32 %v1713, %v2856
          %v2858 = vpop.f32.mrf.mxu0
          %v2859 = vpop.f32.mrf.mxu0
          %v2860 = vadd.f32 %v1713, %v2859
          %v2861 = vpop.f32.mrf.mxu0
          %2862 = vmatprep.mubr.bf16.mxu0 0
          %2863 = vmatmul.mubr.bf16.gmra.mxu0 %v1643
          %v2864 = vpop.f32.mrf.mxu0
          %v2865 = vadd.f32 %v1713, %v2864
          %v2866 = vpop.f32.mrf.mxu0
          %v2867 = vpop.f32.mrf.mxu0
          %v2868 = vadd.f32 %v1713, %v2867
          %v2869 = vpop.f32.mrf.mxu0
          %2870 = vmatprep.mubr.bf16.mxu0 0
          %2871 = vmatmul.mubr.bf16.gmra.mxu0 %v1644
          %v2872 = vpop.f32.mrf.mxu0
          %v2873 = vadd.f32 %v1713, %v2872
          %v2874 = vpop.f32.mrf.mxu0
          %v2875 = vpop.f32.mrf.mxu0
          %v2876 = vadd.f32 %v1713, %v2875
          %v2877 = vpop.f32.mrf.mxu0
          %2878 = vmatprep.mubr.bf16.mxu0 0
          %2879 = vmatmul.mubr.bf16.gmra.mxu0 %v1645
          %v2880 = vpop.f32.mrf.mxu0
          %v2881 = vadd.f32 %v1713, %v2880
          %v2882 = vpop.f32.mrf.mxu0
          %v2883 = vpop.f32.mrf.mxu0
          %v2884 = vadd.f32 %v1713, %v2883
          %v2885 = vpop.f32.mrf.mxu0
          %2886 = vmatprep.mubr.bf16.mxu0 0
          %2887 = vmatmul.mubr.bf16.gmra.mxu0 %v1646
          %v2888 = vpop.f32.mrf.mxu0
          %v2889 = vadd.f32 %v1713, %v2888
          %v2890 = vpop.f32.mrf.mxu0
          %v2891 = vpop.f32.mrf.mxu0
          %v2892 = vadd.f32 %v1713, %v2891
          %v2893 = vpop.f32.mrf.mxu0
          %2894 = vmatprep.mubr.bf16.mxu0 0
          %2895 = vmatmul.mubr.bf16.gmra.mxu0 %v1647
          %v2896 = vpop.f32.mrf.mxu0
          %v2897 = vadd.f32 %v1713, %v2896
          %v2898 = vpop.f32.mrf.mxu0
          %v2899 = vpop.f32.mrf.mxu0
          %v2900 = vadd.f32 %v1713, %v2899
          %v2901 = vpop.f32.mrf.mxu0
          %2902 = vmatprep.mubr.bf16.mxu0 0
          %2903 = vmatmul.mubr.bf16.gmra.mxu0 %v1648
          %v2904 = vpop.f32.mrf.mxu0
          %v2905 = vadd.f32 %v1713, %v2904
          %v2906 = vpop.f32.mrf.mxu0
          %v2907 = vpop.f32.mrf.mxu0
          %v2908 = vadd.f32 %v1713, %v2907
          %v2909 = vpop.f32.mrf.mxu0
          %2910 = vmatprep.mubr.bf16.mxu0 0
          %2911 = vmatmul.mubr.bf16.gmra.mxu0 %v1649
          %v2912 = vpop.f32.mrf.mxu0
          %v2913 = vadd.f32 %v1713, %v2912
          %v2914 = vpop.f32.mrf.mxu0
          %v2915 = vpop.f32.mrf.mxu0
          %v2916 = vadd.f32 %v1713, %v2915
          %v2917 = vpop.f32.mrf.mxu0
          %2918 = vmatprep.mubr.bf16.mxu0 0
          %2919 = vmatmul.mubr.bf16.gmra.mxu0 %v1650
          %v2920 = vpop.f32.mrf.mxu0
          %v2921 = vadd.f32 %v1713, %v2920
          %v2922 = vpop.f32.mrf.mxu0
          %v2923 = vpop.f32.mrf.mxu0
          %v2924 = vadd.f32 %v1713, %v2923
          %v2925 = vpop.f32.mrf.mxu0
          %2926 = vmatprep.mubr.bf16.mxu0 0
          %2927 = vmatmul.mubr.bf16.gmra.mxu0 %v1651
          %v2928 = vpop.f32.mrf.mxu0
          %v2929 = vadd.f32 %v1713, %v2928
          %v2930 = vpop.f32.mrf.mxu0
          %v2931 = vpop.f32.mrf.mxu0
          %v2932 = vadd.f32 %v1713, %v2931
          %v2933 = vpop.f32.mrf.mxu0
          %2934 = vmatprep.mubr.bf16.mxu0 0
          %2935 = vmatmul.mubr.bf16.gmra.mxu0 %v1652
          %v2936 = vpop.f32.mrf.mxu0
          %v2937 = vadd.f32 %v1713, %v2936
          %v2938 = vpop.f32.mrf.mxu0
          %v2939 = vpop.f32.mrf.mxu0
          %v2940 = vadd.f32 %v1713, %v2939
          %v2941 = vpop.f32.mrf.mxu0
          %2942 = vmatprep.mubr.bf16.mxu0 0
          %2943 = vmatmul.mubr.bf16.gmra.mxu0 %v1653
          %v2944 = vpop.f32.mrf.mxu0
          %v2945 = vadd.f32 %v1713, %v2944
          %v2946 = vpop.f32.mrf.mxu0
          %v2947 = vpop.f32.mrf.mxu0
          %v2948 = vadd.f32 %v1713, %v2947
          %v2949 = vpop.f32.mrf.mxu0
          %2950 = vmatprep.mubr.bf16.mxu0 0
          %2951 = vmatmul.mubr.bf16.gmra.mxu0 %v1654
          %v2952 = vpop.f32.mrf.mxu0
          %v2953 = vadd.f32 %v1713, %v2952
          %v2954 = vpop.f32.mrf.mxu0
          %v2955 = vpop.f32.mrf.mxu0
          %v2956 = vadd.f32 %v1713, %v2955
          %v2957 = vpop.f32.mrf.mxu0
          %2958 = vmatprep.mubr.bf16.mxu0 0
          %2959 = vmatmul.mubr.bf16.gmra.mxu0 %v1655
          %v2960 = vpop.f32.mrf.mxu0
          %v2961 = vadd.f32 %v1713, %v2960
          %v2962 = vpop.f32.mrf.mxu0
          %v2963 = vpop.f32.mrf.mxu0
          %v2964 = vadd.f32 %v1713, %v2963
          %v2965 = vpop.f32.mrf.mxu0
          %2966 = vmatprep.mubr.bf16.mxu0 0
          %2967 = vmatmul.mubr.bf16.gmra.mxu0 %v1656
          %v2968 = vpop.f32.mrf.mxu0
          %v2969 = vadd.f32 %v1713, %v2968
          %v2970 = vpop.f32.mrf.mxu0
          %v2971 = vpop.f32.mrf.mxu0
          %v2972 = vadd.f32 %v1713, %v2971
          %v2973 = vpop.f32.mrf.mxu0
          %2974 = vmatprep.mubr.bf16.mxu0 0
          %2975 = vmatmul.mubr.bf16.gmra.mxu0 %v1657
          %v2976 = vpop.f32.mrf.mxu0
          %v2977 = vadd.f32 %v1713, %v2976
          %v2978 = vpop.f32.mrf.mxu0
          %v2979 = vpop.f32.mrf.mxu0
          %v2980 = vadd.f32 %v1713, %v2979
          %v2981 = vpop.f32.mrf.mxu0
          %2982 = vmatprep.mubr.bf16.mxu0 0
          %2983 = vmatmul.mubr.bf16.gmra.mxu0 %v1658
          %v2984 = vpop.f32.mrf.mxu0
          %v2985 = vadd.f32 %v1713, %v2984
          %v2986 = vpop.f32.mrf.mxu0
          %v2987 = vpop.f32.mrf.mxu0
          %v2988 = vadd.f32 %v1713, %v2987
          %v2989 = vpop.f32.mrf.mxu0
          %2990 = vmatprep.mubr.bf16.mxu0 0
          %2991 = vmatmul.mubr.bf16.gmra.mxu0 %v1659
          %v2992 = vpop.f32.mrf.mxu0
          %v2993 = vadd.f32 %v1713, %v2992
          %v2994 = vpop.f32.mrf.mxu0
          %v2995 = vpop.f32.mrf.mxu0
          %v2996 = vadd.f32 %v1713, %v2995
          %v2997 = vpop.f32.mrf.mxu0
          %2998 = vmatprep.mubr.bf16.mxu0 0
          %2999 = vmatmul.mubr.bf16.gmra.mxu0 %v1660
          %v3000 = vpop.f32.mrf.mxu0
          %v3001 = vadd.f32 %v1713, %v3000
          %v3002 = vpop.f32.mrf.mxu0
          %v3003 = vpop.f32.mrf.mxu0
          %v3004 = vadd.f32 %v1713, %v3003
          %v3005 = vpop.f32.mrf.mxu0
          %3006 = vmatprep.mubr.bf16.mxu0 0
          %3007 = vmatmul.mubr.bf16.gmra.mxu0 %v1661
          %v3008 = vpop.f32.mrf.mxu0
          %v3009 = vadd.f32 %v1713, %v3008
          %v3010 = vpop.f32.mrf.mxu0
          %v3011 = vpop.f32.mrf.mxu0
          %v3012 = vadd.f32 %v1713, %v3011
          %v3013 = vpop.f32.mrf.mxu0
          %3014 = vmatprep.mubr.bf16.mxu0 0
          %3015 = vmatmul.mubr.bf16.gmra.mxu0 %v1662
          %v3016 = vpop.f32.mrf.mxu0
          %v3017 = vadd.f32 %v1713, %v3016
          %v3018 = vpop.f32.mrf.mxu0
          %v3019 = vpop.f32.mrf.mxu0
          %v3020 = vadd.f32 %v1713, %v3019
          %v3021 = vpop.f32.mrf.mxu0
          %3022 = vmatprep.mubr.bf16.mxu0 0
          %3023 = vmatmul.mubr.bf16.gmra.mxu0 %v1663
          %v3024 = vpop.f32.mrf.mxu0
          %v3025 = vadd.f32 %v1713, %v3024
          %v3026 = vpop.f32.mrf.mxu0
          %v3027 = vpop.f32.mrf.mxu0
          %v3028 = vadd.f32 %v1713, %v3027
          %v3029 = vpop.f32.mrf.mxu0
          %3030 = vmatprep.mubr.bf16.mxu0 0
          %3031 = vmatmul.mubr.bf16.gmra.mxu0 %v1664
          %v3032 = vpop.f32.mrf.mxu0
          %v3033 = vadd.f32 %v1713, %v3032
          %v3034 = vpop.f32.mrf.mxu0
          %v3035 = vpop.f32.mrf.mxu0
          %v3036 = vadd.f32 %v1713, %v3035
          %v3037 = vpop.f32.mrf.mxu0
          %3038 = vmatprep.mubr.bf16.mxu0 0
          %3039 = vmatmul.mubr.bf16.gmra.mxu0 %v1665
          %v3040 = vpop.f32.mrf.mxu0
          %v3041 = vadd.f32 %v1713, %v3040
          %v3042 = vpop.f32.mrf.mxu0
          %v3043 = vpop.f32.mrf.mxu0
          %v3044 = vadd.f32 %v1713, %v3043
          %v3045 = vpop.f32.mrf.mxu0
          %3046 = vmatprep.mubr.bf16.mxu0 0
          %3047 = vmatmul.mubr.bf16.gmra.mxu0 %v1666
          %v3048 = vpop.f32.mrf.mxu0
          %v3049 = vadd.f32 %v1713, %v3048
          %v3050 = vpop.f32.mrf.mxu0
          %v3051 = vpop.f32.mrf.mxu0
          %v3052 = vadd.f32 %v1713, %v3051
          %v3053 = vpop.f32.mrf.mxu0
          %3054 = vmatprep.mubr.bf16.mxu0 0
          %3055 = vmatmul.mubr.bf16.gmra.mxu0 %v1667
          %v3056 = vpop.f32.mrf.mxu0
          %v3057 = vadd.f32 %v1713, %v3056
          %v3058 = vpop.f32.mrf.mxu0
          %v3059 = vpop.f32.mrf.mxu0
          %v3060 = vadd.f32 %v1713, %v3059
          %v3061 = vpop.f32.mrf.mxu0
          %3062 = vdwg.mxu0
          %v3063 = vpack.c.bf16 %v1884, %v1880
          %v3064 = vpack.c.bf16 %v1894, %v1890
          %v3065 = vpack.c.bf16 %v1904, %v1900
          %v3066 = vpack.c.bf16 %v1914, %v1910
          %v3067 = vpack.c.bf16 %v1924, %v1920
          %v3068 = vpack.c.bf16 %v1934, %v1930
          %v3069 = vpack.c.bf16 %v1944, %v1940
          %v3070 = vpack.c.bf16 %v1954, %v1950
          %v3071 = vpack.c.bf16 %v1964, %v1960
          %v3072 = vpack.c.bf16 %v1974, %v1970
          %v3073 = vpack.c.bf16 %v1984, %v1980
          %v3074 = vpack.c.bf16 %v1994, %v1990
          %v3075 = vpack.c.bf16 %v2004, %v2000
          %v3076 = vpack.c.bf16 %v2014, %v2010
          %v3077 = vpack.c.bf16 %v2024, %v2020
          %v3078 = vpack.c.bf16 %v2034, %v2030
          %v3079 = vpack.c.bf16 %v2044, %v2040
          %v3080 = vpack.c.bf16 %v2054, %v2050
          %v3081 = vpack.c.bf16 %v2064, %v2060
          %v3082 = vpack.c.bf16 %v2074, %v2070
          %v3083 = vpack.c.bf16 %v2084, %v2080
          %v3084 = vpack.c.bf16 %v2094, %v2090
          %v3085 = vpack.c.bf16 %v2104, %v2100
          %v3086 = vpack.c.bf16 %v2114, %v2110
          %v3087 = vpack.c.bf16 %v2124, %v2120
          %v3088 = vpack.c.bf16 %v2134, %v2130
          %v3089 = vpack.c.bf16 %v2144, %v2140
          %v3090 = vpack.c.bf16 %v2154, %v2150
          %v3091 = vpack.c.bf16 %v2164, %v2160
          %v3092 = vpack.c.bf16 %v2174, %v2170
          %v3093 = vpack.c.bf16 %v2184, %v2180
          %v3094 = vpack.c.bf16 %v2194, %v2190
          %v3095 = vpack.c.bf16 %v2204, %v2200
          %v3096 = vpack.c.bf16 %v2214, %v2210
          %v3097 = vpack.c.bf16 %v2224, %v2220
          %v3098 = vpack.c.bf16 %v2234, %v2230
          %v3099 = vpack.c.bf16 %v2244, %v2240
          %v3100 = vpack.c.bf16 %v2254, %v2250
          %v3101 = vpack.c.bf16 %v2264, %v2260
          %v3102 = vpack.c.bf16 %v2274, %v2270
          %v3103 = vpack.c.bf16 %v2284, %v2280
          %v3104 = vpack.c.bf16 %v2294, %v2290
          %v3105 = vpack.c.bf16 %v2304, %v2300
          %v3106 = vpack.c.bf16 %v2314, %v2310
          %v3107 = vpack.c.bf16 %v2324, %v2320
          %v3108 = vpack.c.bf16 %v2334, %v2330
          %v3109 = vpack.c.bf16 %v2344, %v2340
          %v3110 = vpack.c.bf16 %v2354, %v2350
          %v3111 = vpack.c.bf16 %v2364, %v2360
          %v3112 = vpack.c.bf16 %v2374, %v2370
          %v3113 = vpack.c.bf16 %v2384, %v2380
          %v3114 = vpack.c.bf16 %v2394, %v2390
          %v3115 = vpack.c.bf16 %v2404, %v2400
          %v3116 = vpack.c.bf16 %v2414, %v2410
          %v3117 = vpack.c.bf16 %v2424, %v2420
          %v3118 = vpack.c.bf16 %v2434, %v2430
          %v3119 = vpack.c.bf16 %v2444, %v2440
          %v3120 = vpack.c.bf16 %v2454, %v2450
          %v3121 = vpack.c.bf16 %v2464, %v2460
          %v3122 = vpack.c.bf16 %v2474, %v2470
          %v3123 = vpack.c.bf16 %v2484, %v2480
          %v3124 = vpack.c.bf16 %v2494, %v2490
          %v3125 = vpack.c.bf16 %v2504, %v2500
          %v3126 = vpack.c.bf16 %v2514, %v2510
          %v3191 = vunpack.c.l.b16 %v3063
          %v3192 = vunpack.c.h.b16 %v3063
          %v3193 = vunpack.c.l.b16 %v3064
          %v3194 = vunpack.c.h.b16 %v3064
          %v3195 = vunpack.c.l.b16 %v3065
          %v3196 = vunpack.c.h.b16 %v3065
          %v3197 = vunpack.c.l.b16 %v3066
          %v3198 = vunpack.c.h.b16 %v3066
          %v3199 = vunpack.c.l.b16 %v3067
          %v3200 = vunpack.c.h.b16 %v3067
          %v3201 = vunpack.c.l.b16 %v3068
          %v3202 = vunpack.c.h.b16 %v3068
          %v3203 = vunpack.c.l.b16 %v3069
          %v3204 = vunpack.c.h.b16 %v3069
          %v3205 = vunpack.c.l.b16 %v3070
          %v3206 = vunpack.c.h.b16 %v3070
          %v3207 = vunpack.c.l.b16 %v3071
          %v3208 = vunpack.c.h.b16 %v3071
          %v3209 = vunpack.c.l.b16 %v3072
          %v3210 = vunpack.c.h.b16 %v3072
          %v3211 = vunpack.c.l.b16 %v3073
          %v3212 = vunpack.c.h.b16 %v3073
          %v3213 = vunpack.c.l.b16 %v3074
          %v3214 = vunpack.c.h.b16 %v3074
          %v3215 = vunpack.c.l.b16 %v3075
          %v3216 = vunpack.c.h.b16 %v3075
          %v3217 = vunpack.c.l.b16 %v3076
          %v3218 = vunpack.c.h.b16 %v3076
          %v3219 = vunpack.c.l.b16 %v3077
          %v3220 = vunpack.c.h.b16 %v3077
          %v3221 = vunpack.c.l.b16 %v3078
          %v3222 = vunpack.c.h.b16 %v3078
          %v3223 = vunpack.c.l.b16 %v3079
          %v3224 = vunpack.c.h.b16 %v3079
          %v3225 = vunpack.c.l.b16 %v3080
          %v3226 = vunpack.c.h.b16 %v3080
          %v3227 = vunpack.c.l.b16 %v3081
          %v3228 = vunpack.c.h.b16 %v3081
          %v3229 = vunpack.c.l.b16 %v3082
          %v3230 = vunpack.c.h.b16 %v3082
          %v3231 = vunpack.c.l.b16 %v3083
          %v3232 = vunpack.c.h.b16 %v3083
          %v3233 = vunpack.c.l.b16 %v3084
          %v3234 = vunpack.c.h.b16 %v3084
          %v3235 = vunpack.c.l.b16 %v3085
          %v3236 = vunpack.c.h.b16 %v3085
          %v3237 = vunpack.c.l.b16 %v3086
          %v3238 = vunpack.c.h.b16 %v3086
          %v3239 = vunpack.c.l.b16 %v3087
          %v3240 = vunpack.c.h.b16 %v3087
          %v3241 = vunpack.c.l.b16 %v3088
          %v3242 = vunpack.c.h.b16 %v3088
          %v3243 = vunpack.c.l.b16 %v3089
          %v3244 = vunpack.c.h.b16 %v3089
          %v3245 = vunpack.c.l.b16 %v3090
          %v3246 = vunpack.c.h.b16 %v3090
          %v3247 = vunpack.c.l.b16 %v3091
          %v3248 = vunpack.c.h.b16 %v3091
          %v3249 = vunpack.c.l.b16 %v3092
          %v3250 = vunpack.c.h.b16 %v3092
          %v3251 = vunpack.c.l.b16 %v3093
          %v3252 = vunpack.c.h.b16 %v3093
          %v3253 = vunpack.c.l.b16 %v3094
          %v3254 = vunpack.c.h.b16 %v3094
          %v3255 = vunpack.c.l.b16 %v3095
          %v3256 = vunpack.c.h.b16 %v3095
          %v3257 = vunpack.c.l.b16 %v3096
          %v3258 = vunpack.c.h.b16 %v3096
          %v3259 = vunpack.c.l.b16 %v3097
          %v3260 = vunpack.c.h.b16 %v3097
          %v3261 = vunpack.c.l.b16 %v3098
          %v3262 = vunpack.c.h.b16 %v3098
          %v3263 = vunpack.c.l.b16 %v3099
          %v3264 = vunpack.c.h.b16 %v3099
          %v3265 = vunpack.c.l.b16 %v3100
          %v3266 = vunpack.c.h.b16 %v3100
          %v3267 = vunpack.c.l.b16 %v3101
          %v3268 = vunpack.c.h.b16 %v3101
          %v3269 = vunpack.c.l.b16 %v3102
          %v3270 = vunpack.c.h.b16 %v3102
          %v3271 = vunpack.c.l.b16 %v3103
          %v3272 = vunpack.c.h.b16 %v3103
          %v3273 = vunpack.c.l.b16 %v3104
          %v3274 = vunpack.c.h.b16 %v3104
          %v3275 = vunpack.c.l.b16 %v3105
          %v3276 = vunpack.c.h.b16 %v3105
          %v3277 = vunpack.c.l.b16 %v3106
          %v3278 = vunpack.c.h.b16 %v3106
          %v3279 = vunpack.c.l.b16 %v3107
          %v3280 = vunpack.c.h.b16 %v3107
          %v3281 = vunpack.c.l.b16 %v3108
          %v3282 = vunpack.c.h.b16 %v3108
          %v3283 = vunpack.c.l.b16 %v3109
          %v3284 = vunpack.c.h.b16 %v3109
          %v3285 = vunpack.c.l.b16 %v3110
          %v3286 = vunpack.c.h.b16 %v3110
          %v3287 = vunpack.c.l.b16 %v3111
          %v3288 = vunpack.c.h.b16 %v3111
          %v3289 = vunpack.c.l.b16 %v3112
          %v3290 = vunpack.c.h.b16 %v3112
          %v3291 = vunpack.c.l.b16 %v3113
          %v3292 = vunpack.c.h.b16 %v3113
          %v3293 = vunpack.c.l.b16 %v3114
          %v3294 = vunpack.c.h.b16 %v3114
          %v3295 = vunpack.c.l.b16 %v3115
          %v3296 = vunpack.c.h.b16 %v3115
          %v3297 = vunpack.c.l.b16 %v3116
          %v3298 = vunpack.c.h.b16 %v3116
          %v3299 = vunpack.c.l.b16 %v3117
          %v3300 = vunpack.c.h.b16 %v3117
          %v3301 = vunpack.c.l.b16 %v3118
          %v3302 = vunpack.c.h.b16 %v3118
          %v3303 = vunpack.c.l.b16 %v3119
          %v3304 = vunpack.c.h.b16 %v3119
          %v3305 = vunpack.c.l.b16 %v3120
          %v3306 = vunpack.c.h.b16 %v3120
          %v3307 = vunpack.c.l.b16 %v3121
          %v3308 = vunpack.c.h.b16 %v3121
          %v3309 = vunpack.c.l.b16 %v3122
          %v3310 = vunpack.c.h.b16 %v3122
          %v3311 = vunpack.c.l.b16 %v3123
          %v3312 = vunpack.c.h.b16 %v3123
          %v3313 = vunpack.c.l.b16 %v3124
          %v3314 = vunpack.c.h.b16 %v3124
          %v3315 = vunpack.c.l.b16 %v3125
          %v3316 = vunpack.c.h.b16 %v3125
          %v3317 = vunpack.c.l.b16 %v3126
          %v3318 = vunpack.c.h.b16 %v3126
          %v3319 = vpack.c.b16 %v3191, %v3191
          %v3320 = vpack.c.b16 %v3192, %v3192
          %v3321 = vpack.c.b16 %v3193, %v3193
          %v3322 = vpack.c.b16 %v3194, %v3194
          %v3323 = vpack.c.b16 %v3195, %v3195
          %v3324 = vpack.c.b16 %v3196, %v3196
          %v3325 = vpack.c.b16 %v3197, %v3197
          %v3326 = vpack.c.b16 %v3198, %v3198
          %v3327 = vpack.c.b16 %v3199, %v3199
          %v3328 = vpack.c.b16 %v3200, %v3200
          %v3329 = vpack.c.b16 %v3201, %v3201
          %v3330 = vpack.c.b16 %v3202, %v3202
          %v3331 = vpack.c.b16 %v3203, %v3203
          %v3332 = vpack.c.b16 %v3204, %v3204
          %v3333 = vpack.c.b16 %v3205, %v3205
          %v3334 = vpack.c.b16 %v3206, %v3206
          %v3335 = vpack.c.b16 %v3207, %v3207
          %v3336 = vpack.c.b16 %v3208, %v3208
          %v3337 = vpack.c.b16 %v3209, %v3209
          %v3338 = vpack.c.b16 %v3210, %v3210
          %v3339 = vpack.c.b16 %v3211, %v3211
          %v3340 = vpack.c.b16 %v3212, %v3212
          %v3341 = vpack.c.b16 %v3213, %v3213
          %v3342 = vpack.c.b16 %v3214, %v3214
          %v3343 = vpack.c.b16 %v3215, %v3215
          %v3344 = vpack.c.b16 %v3216, %v3216
          %v3345 = vpack.c.b16 %v3217, %v3217
          %v3346 = vpack.c.b16 %v3218, %v3218
          %v3347 = vpack.c.b16 %v3219, %v3219
          %v3348 = vpack.c.b16 %v3220, %v3220
          %v3349 = vpack.c.b16 %v3221, %v3221
          %v3350 = vpack.c.b16 %v3222, %v3222
          %v3351 = vpack.c.b16 %v3223, %v3223
          %v3352 = vpack.c.b16 %v3224, %v3224
          %v3353 = vpack.c.b16 %v3225, %v3225
          %v3354 = vpack.c.b16 %v3226, %v3226
          %v3355 = vpack.c.b16 %v3227, %v3227
          %v3356 = vpack.c.b16 %v3228, %v3228
          %v3357 = vpack.c.b16 %v3229, %v3229
          %v3358 = vpack.c.b16 %v3230, %v3230
          %v3359 = vpack.c.b16 %v3231, %v3231
          %v3360 = vpack.c.b16 %v3232, %v3232
          %v3361 = vpack.c.b16 %v3233, %v3233
          %v3362 = vpack.c.b16 %v3234, %v3234
          %v3363 = vpack.c.b16 %v3235, %v3235
          %v3364 = vpack.c.b16 %v3236, %v3236
          %v3365 = vpack.c.b16 %v3237, %v3237
          %v3366 = vpack.c.b16 %v3238, %v3238
          %v3367 = vpack.c.b16 %v3239, %v3239
          %v3368 = vpack.c.b16 %v3240, %v3240
          %v3369 = vpack.c.b16 %v3241, %v3241
          %v3370 = vpack.c.b16 %v3242, %v3242
          %v3371 = vpack.c.b16 %v3243, %v3243
          %v3372 = vpack.c.b16 %v3244, %v3244
          %v3373 = vpack.c.b16 %v3245, %v3245
          %v3374 = vpack.c.b16 %v3246, %v3246
          %v3375 = vpack.c.b16 %v3247, %v3247
          %v3376 = vpack.c.b16 %v3248, %v3248
          %v3377 = vpack.c.b16 %v3249, %v3249
          %v3378 = vpack.c.b16 %v3250, %v3250
          %v3379 = vpack.c.b16 %v3251, %v3251
          %v3380 = vpack.c.b16 %v3252, %v3252
          %v3381 = vpack.c.b16 %v3253, %v3253
          %v3382 = vpack.c.b16 %v3254, %v3254
          %v3383 = vpack.c.b16 %v3255, %v3255
          %v3384 = vpack.c.b16 %v3256, %v3256
          %v3385 = vpack.c.b16 %v3257, %v3257
          %v3386 = vpack.c.b16 %v3258, %v3258
          %v3387 = vpack.c.b16 %v3259, %v3259
          %v3388 = vpack.c.b16 %v3260, %v3260
          %v3389 = vpack.c.b16 %v3261, %v3261
          %v3390 = vpack.c.b16 %v3262, %v3262
          %v3391 = vpack.c.b16 %v3263, %v3263
          %v3392 = vpack.c.b16 %v3264, %v3264
          %v3393 = vpack.c.b16 %v3265, %v3265
          %v3394 = vpack.c.b16 %v3266, %v3266
          %v3395 = vpack.c.b16 %v3267, %v3267
          %v3396 = vpack.c.b16 %v3268, %v3268
          %v3397 = vpack.c.b16 %v3269, %v3269
          %v3398 = vpack.c.b16 %v3270, %v3270
          %v3399 = vpack.c.b16 %v3271, %v3271
          %v3400 = vpack.c.b16 %v3272, %v3272
          %v3401 = vpack.c.b16 %v3273, %v3273
          %v3402 = vpack.c.b16 %v3274, %v3274
          %v3403 = vpack.c.b16 %v3275, %v3275
          %v3404 = vpack.c.b16 %v3276, %v3276
          %v3405 = vpack.c.b16 %v3277, %v3277
          %v3406 = vpack.c.b16 %v3278, %v3278
          %v3407 = vpack.c.b16 %v3279, %v3279
          %v3408 = vpack.c.b16 %v3280, %v3280
          %v3409 = vpack.c.b16 %v3281, %v3281
          %v3410 = vpack.c.b16 %v3282, %v3282
          %v3411 = vpack.c.b16 %v3283, %v3283
          %v3412 = vpack.c.b16 %v3284, %v3284
          %v3413 = vpack.c.b16 %v3285, %v3285
          %v3414 = vpack.c.b16 %v3286, %v3286
          %v3415 = vpack.c.b16 %v3287, %v3287
          %v3416 = vpack.c.b16 %v3288, %v3288
          %v3417 = vpack.c.b16 %v3289, %v3289
          %v3418 = vpack.c.b16 %v3290, %v3290
          %v3419 = vpack.c.b16 %v3291, %v3291
          %v3420 = vpack.c.b16 %v3292, %v3292
          %v3421 = vpack.c.b16 %v3293, %v3293
          %v3422 = vpack.c.b16 %v3294, %v3294
          %v3423 = vpack.c.b16 %v3295, %v3295
          %v3424 = vpack.c.b16 %v3296, %v3296
          %v3425 = vpack.c.b16 %v3297, %v3297
          %v3426 = vpack.c.b16 %v3298, %v3298
          %v3427 = vpack.c.b16 %v3299, %v3299
          %v3428 = vpack.c.b16 %v3300, %v3300
          %v3429 = vpack.c.b16 %v3301, %v3301
          %v3430 = vpack.c.b16 %v3302, %v3302
          %v3431 = vpack.c.b16 %v3303, %v3303
          %v3432 = vpack.c.b16 %v3304, %v3304
          %v3433 = vpack.c.b16 %v3305, %v3305
          %v3434 = vpack.c.b16 %v3306, %v3306
          %v3435 = vpack.c.b16 %v3307, %v3307
          %v3436 = vpack.c.b16 %v3308, %v3308
          %v3437 = vpack.c.b16 %v3309, %v3309
          %v3438 = vpack.c.b16 %v3310, %v3310
          %v3439 = vpack.c.b16 %v3311, %v3311
          %v3440 = vpack.c.b16 %v3312, %v3312
          %v3441 = vpack.c.b16 %v3313, %v3313
          %v3442 = vpack.c.b16 %v3314, %v3314
          %v3443 = vpack.c.b16 %v3315, %v3315
          %v3444 = vpack.c.b16 %v3316, %v3316
          %v3445 = vpack.c.b16 %v3317, %v3317
          %v3446 = vpack.c.b16 %v3318, %v3318
          %3575 = vst [vmem:[#allocation2] sm:$0xf] %v3319
          %3576 = vst [vmem:[#allocation2 + $0x4] sm:$0xf] %v3320
          %3577 = vst [vmem:[#allocation2 + $0x8] sm:$0xf] %v3321
          %3578 = vst [vmem:[#allocation2 + $0xc] sm:$0xf] %v3322
          %3579 = vst [vmem:[#allocation2 + $0x10] sm:$0xf] %v3323
          %3580 = vst [vmem:[#allocation2 + $0x14] sm:$0xf] %v3324
          %3581 = vst [vmem:[#allocation2 + $0x18] sm:$0xf] %v3325
          %3582 = vst [vmem:[#allocation2 + $0x1c] sm:$0xf] %v3326
          %3583 = vst [vmem:[#allocation2 + $0x20] sm:$0xf] %v3327
          %3584 = vst [vmem:[#allocation2 + $0x24] sm:$0xf] %v3328
          %3585 = vst [vmem:[#allocation2 + $0x28] sm:$0xf] %v3329
          %3586 = vst [vmem:[#allocation2 + $0x2c] sm:$0xf] %v3330
          %3587 = vst [vmem:[#allocation2 + $0x30] sm:$0xf] %v3331
          %3588 = vst [vmem:[#allocation2 + $0x34] sm:$0xf] %v3332
          %3589 = vst [vmem:[#allocation2 + $0x38] sm:$0xf] %v3333
          %3590 = vst [vmem:[#allocation2 + $0x3c] sm:$0xf] %v3334
          %3591 = vst [vmem:[#allocation2 + $0x40] sm:$0xf] %v3335
          %3592 = vst [vmem:[#allocation2 + $0x44] sm:$0xf] %v3336
          %3593 = vst [vmem:[#allocation2 + $0x48] sm:$0xf] %v3337
          %3594 = vst [vmem:[#allocation2 + $0x4c] sm:$0xf] %v3338
          %3595 = vst [vmem:[#allocation2 + $0x50] sm:$0xf] %v3339
          %3596 = vst [vmem:[#allocation2 + $0x54] sm:$0xf] %v3340
          %3597 = vst [vmem:[#allocation2 + $0x58] sm:$0xf] %v3341
          %3598 = vst [vmem:[#allocation2 + $0x5c] sm:$0xf] %v3342
          %3599 = vst [vmem:[#allocation2 + $0x60] sm:$0xf] %v3343
          %3600 = vst [vmem:[#allocation2 + $0x64] sm:$0xf] %v3344
          %3601 = vst [vmem:[#allocation2 + $0x68] sm:$0xf] %v3345
          %3602 = vst [vmem:[#allocation2 + $0x6c] sm:$0xf] %v3346
          %3603 = vst [vmem:[#allocation2 + $0x70] sm:$0xf] %v3347
          %3604 = vst [vmem:[#allocation2 + $0x74] sm:$0xf] %v3348
          %3605 = vst [vmem:[#allocation2 + $0x78] sm:$0xf] %v3349
          %3606 = vst [vmem:[#allocation2 + $0x7c] sm:$0xf] %v3350
          %3607 = vst [vmem:[#allocation2 + $0x80] sm:$0xf] %v3351
          %3608 = vst [vmem:[#allocation2 + $0x84] sm:$0xf] %v3352
          %3609 = vst [vmem:[#allocation2 + $0x88] sm:$0xf] %v3353
          %3610 = vst [vmem:[#allocation2 + $0x8c] sm:$0xf] %v3354
          %3611 = vst [vmem:[#allocation2 + $0x90] sm:$0xf] %v3355
          %3612 = vst [vmem:[#allocation2 + $0x94] sm:$0xf] %v3356
          %3613 = vst [vmem:[#allocation2 + $0x98] sm:$0xf] %v3357
          %3614 = vst [vmem:[#allocation2 + $0x9c] sm:$0xf] %v3358
          %3615 = vst [vmem:[#allocation2 + $0xa0] sm:$0xf] %v3359
          %3616 = vst [vmem:[#allocation2 + $0xa4] sm:$0xf] %v3360
          %3617 = vst [vmem:[#allocation2 + $0xa8] sm:$0xf] %v3361
          %3618 = vst [vmem:[#allocation2 + $0xac] sm:$0xf] %v3362
          %3619 = vst [vmem:[#allocation2 + $0xb0] sm:$0xf] %v3363
          %3620 = vst [vmem:[#allocation2 + $0xb4] sm:$0xf] %v3364
          %3621 = vst [vmem:[#allocation2 + $0xb8] sm:$0xf] %v3365
          %3622 = vst [vmem:[#allocation2 + $0xbc] sm:$0xf] %v3366
          %3623 = vst [vmem:[#allocation2 + $0xc0] sm:$0xf] %v3367
          %3624 = vst [vmem:[#allocation2 + $0xc4] sm:$0xf] %v3368
          %3625 = vst [vmem:[#allocation2 + $0xc8] sm:$0xf] %v3369
          %3626 = vst [vmem:[#allocation2 + $0xcc] sm:$0xf] %v3370
          %3627 = vst [vmem:[#allocation2 + $0xd0] sm:$0xf] %v3371
          %3628 = vst [vmem:[#allocation2 + $0xd4] sm:$0xf] %v3372
          %3629 = vst [vmem:[#allocation2 + $0xd8] sm:$0xf] %v3373
          %3630 = vst [vmem:[#allocation2 + $0xdc] sm:$0xf] %v3374
          %3631 = vst [vmem:[#allocation2 + $0xe0] sm:$0xf] %v3375
          %3632 = vst [vmem:[#allocation2 + $0xe4] sm:$0xf] %v3376
          %3633 = vst [vmem:[#allocation2 + $0xe8] sm:$0xf] %v3377
          %3634 = vst [vmem:[#allocation2 + $0xec] sm:$0xf] %v3378
          %3635 = vst [vmem:[#allocation2 + $0xf0] sm:$0xf] %v3379
          %3636 = vst [vmem:[#allocation2 + $0xf4] sm:$0xf] %v3380
          %3637 = vst [vmem:[#allocation2 + $0xf8] sm:$0xf] %v3381
          %3638 = vst [vmem:[#allocation2 + $0xfc] sm:$0xf] %v3382
          %3639 = vst [vmem:[#allocation2 + $0x100] sm:$0xf] %v3383
          %3640 = vst [vmem:[#allocation2 + $0x104] sm:$0xf] %v3384
          %3641 = vst [vmem:[#allocation2 + $0x108] sm:$0xf] %v3385
          %3642 = vst [vmem:[#allocation2 + $0x10c] sm:$0xf] %v3386
          %3643 = vst [vmem:[#allocation2 + $0x110] sm:$0xf] %v3387
          %3644 = vst [vmem:[#allocation2 + $0x114] sm:$0xf] %v3388
          %3645 = vst [vmem:[#allocation2 + $0x118] sm:$0xf] %v3389
          %3646 = vst [vmem:[#allocation2 + $0x11c] sm:$0xf] %v3390
          %3647 = vst [vmem:[#allocation2 + $0x120] sm:$0xf] %v3391
          %3648 = vst [vmem:[#allocation2 + $0x124] sm:$0xf] %v3392
          %3649 = vst [vmem:[#allocation2 + $0x128] sm:$0xf] %v3393
          %3650 = vst [vmem:[#allocation2 + $0x12c] sm:$0xf] %v3394
          %3651 = vst [vmem:[#allocation2 + $0x130] sm:$0xf] %v3395
          %3652 = vst [vmem:[#allocation2 + $0x134] sm:$0xf] %v3396
          %3653 = vst [vmem:[#allocation2 + $0x138] sm:$0xf] %v3397
          %3654 = vst [vmem:[#allocation2 + $0x13c] sm:$0xf] %v3398
          %3655 = vst [vmem:[#allocation2 + $0x140] sm:$0xf] %v3399
          %3656 = vst [vmem:[#allocation2 + $0x144] sm:$0xf] %v3400
          %3657 = vst [vmem:[#allocation2 + $0x148] sm:$0xf] %v3401
          %3658 = vst [vmem:[#allocation2 + $0x14c] sm:$0xf] %v3402
          %3659 = vst [vmem:[#allocation2 + $0x150] sm:$0xf] %v3403
          %3660 = vst [vmem:[#allocation2 + $0x154] sm:$0xf] %v3404
          %3661 = vst [vmem:[#allocation2 + $0x158] sm:$0xf] %v3405
          %3662 = vst [vmem:[#allocation2 + $0x15c] sm:$0xf] %v3406
          %3663 = vst [vmem:[#allocation2 + $0x160] sm:$0xf] %v3407
          %3664 = vst [vmem:[#allocation2 + $0x164] sm:$0xf] %v3408
          %3665 = vst [vmem:[#allocation2 + $0x168] sm:$0xf] %v3409
          %3666 = vst [vmem:[#allocation2 + $0x16c] sm:$0xf] %v3410
          %3667 = vst [vmem:[#allocation2 + $0x170] sm:$0xf] %v3411
          %3668 = vst [vmem:[#allocation2 + $0x174] sm:$0xf] %v3412
          %3669 = vst [vmem:[#allocation2 + $0x178] sm:$0xf] %v3413
          %3670 = vst [vmem:[#allocation2 + $0x17c] sm:$0xf] %v3414
          %3671 = vst [vmem:[#allocation2 + $0x180] sm:$0xf] %v3415
          %3672 = vst [vmem:[#allocation2 + $0x184] sm:$0xf] %v3416
          %3673 = vst [vmem:[#allocation2 + $0x188] sm:$0xf] %v3417
          %3674 = vst [vmem:[#allocation2 + $0x18c] sm:$0xf] %v3418
          %3675 = vst [vmem:[#allocation2 + $0x190] sm:$0xf] %v3419
          %3676 = vst [vmem:[#allocation2 + $0x194] sm:$0xf] %v3420
          %3677 = vst [vmem:[#allocation2 + $0x198] sm:$0xf] %v3421
          %3678 = vst [vmem:[#allocation2 + $0x19c] sm:$0xf] %v3422
          %3679 = vst [vmem:[#allocation2 + $0x1a0] sm:$0xf] %v3423
          %3680 = vst [vmem:[#allocation2 + $0x1a4] sm:$0xf] %v3424
          %3681 = vst [vmem:[#allocation2 + $0x1a8] sm:$0xf] %v3425
          %3682 = vst [vmem:[#allocation2 + $0x1ac] sm:$0xf] %v3426
          %3683 = vst [vmem:[#allocation2 + $0x1b0] sm:$0xf] %v3427
          %3684 = vst [vmem:[#allocation2 + $0x1b4] sm:$0xf] %v3428
          %3685 = vst [vmem:[#allocation2 + $0x1b8] sm:$0xf] %v3429
          %3686 = vst [vmem:[#allocation2 + $0x1bc] sm:$0xf] %v3430
          %3687 = vst [vmem:[#allocation2 + $0x1c0] sm:$0xf] %v3431
          %3688 = vst [vmem:[#allocation2 + $0x1c4] sm:$0xf] %v3432
          %3689 = vst [vmem:[#allocation2 + $0x1c8] sm:$0xf] %v3433
          %3690 = vst [vmem:[#allocation2 + $0x1cc] sm:$0xf] %v3434
          %3691 = vst [vmem:[#allocation2 + $0x1d0] sm:$0xf] %v3435
          %3692 = vst [vmem:[#allocation2 + $0x1d4] sm:$0xf] %v3436
          %3693 = vst [vmem:[#allocation2 + $0x1d8] sm:$0xf] %v3437
          %3694 = vst [vmem:[#allocation2 + $0x1dc] sm:$0xf] %v3438
          %3695 = vst [vmem:[#allocation2 + $0x1e0] sm:$0xf] %v3439
          %3696 = vst [vmem:[#allocation2 + $0x1e4] sm:$0xf] %v3440
          %3697 = vst [vmem:[#allocation2 + $0x1e8] sm:$0xf] %v3441
          %3698 = vst [vmem:[#allocation2 + $0x1ec] sm:$0xf] %v3442
          %3699 = vst [vmem:[#allocation2 + $0x1f0] sm:$0xf] %v3443
          %3700 = vst [vmem:[#allocation2 + $0x1f4] sm:$0xf] %v3444
          %3701 = vst [vmem:[#allocation2 + $0x1f8] sm:$0xf] %v3445
          %3702 = vst [vmem:[#allocation2 + $0x1fc] sm:$0xf] %v3446
          %v3703 = vpack.c.bf16 %v1886, %v1882
          %v3704 = vpack.c.bf16 %v1896, %v1892
          %v3705 = vpack.c.bf16 %v1906, %v1902
          %v3706 = vpack.c.bf16 %v1916, %v1912
          %v3707 = vpack.c.bf16 %v1926, %v1922
          %v3708 = vpack.c.bf16 %v1936, %v1932
          %v3709 = vpack.c.bf16 %v1946, %v1942
          %v3710 = vpack.c.bf16 %v1956, %v1952
          %v3711 = vpack.c.bf16 %v1966, %v1962
          %v3712 = vpack.c.bf16 %v1976, %v1972
          %v3713 = vpack.c.bf16 %v1986, %v1982
          %v3714 = vpack.c.bf16 %v1996, %v1992
          %v3715 = vpack.c.bf16 %v2006, %v2002
          %v3716 = vpack.c.bf16 %v2016, %v2012
          %v3717 = vpack.c.bf16 %v2026, %v2022
          %v3718 = vpack.c.bf16 %v2036, %v2032
          %v3719 = vpack.c.bf16 %v2046, %v2042
          %v3720 = vpack.c.bf16 %v2056, %v2052
          %v3721 = vpack.c.bf16 %v2066, %v2062
          %v3722 = vpack.c.bf16 %v2076, %v2072
          %v3723 = vpack.c.bf16 %v2086, %v2082
          %v3724 = vpack.c.bf16 %v2096, %v2092
          %v3725 = vpack.c.bf16 %v2106, %v2102
          %v3726 = vpack.c.bf16 %v2116, %v2112
          %v3727 = vpack.c.bf16 %v2126, %v2122
          %v3728 = vpack.c.bf16 %v2136, %v2132
          %v3729 = vpack.c.bf16 %v2146, %v2142
          %v3730 = vpack.c.bf16 %v2156, %v2152
          %v3731 = vpack.c.bf16 %v2166, %v2162
          %v3732 = vpack.c.bf16 %v2176, %v2172
          %v3733 = vpack.c.bf16 %v2186, %v2182
          %v3734 = vpack.c.bf16 %v2196, %v2192
          %v3735 = vpack.c.bf16 %v2206, %v2202
          %v3736 = vpack.c.bf16 %v2216, %v2212
          %v3737 = vpack.c.bf16 %v2226, %v2222
          %v3738 = vpack.c.bf16 %v2236, %v2232
          %v3739 = vpack.c.bf16 %v2246, %v2242
          %v3740 = vpack.c.bf16 %v2256, %v2252
          %v3741 = vpack.c.bf16 %v2266, %v2262
          %v3742 = vpack.c.bf16 %v2276, %v2272
          %v3743 = vpack.c.bf16 %v2286, %v2282
          %v3744 = vpack.c.bf16 %v2296, %v2292
          %v3745 = vpack.c.bf16 %v2306, %v2302
          %v3746 = vpack.c.bf16 %v2316, %v2312
          %v3747 = vpack.c.bf16 %v2326, %v2322
          %v3748 = vpack.c.bf16 %v2336, %v2332
          %v3749 = vpack.c.bf16 %v2346, %v2342
          %v3750 = vpack.c.bf16 %v2356, %v2352
          %v3751 = vpack.c.bf16 %v2366, %v2362
          %v3752 = vpack.c.bf16 %v2376, %v2372
          %v3753 = vpack.c.bf16 %v2386, %v2382
          %v3754 = vpack.c.bf16 %v2396, %v2392
          %v3755 = vpack.c.bf16 %v2406, %v2402
          %v3756 = vpack.c.bf16 %v2416, %v2412
          %v3757 = vpack.c.bf16 %v2426, %v2422
          %v3758 = vpack.c.bf16 %v2436, %v2432
          %v3759 = vpack.c.bf16 %v2446, %v2442
          %v3760 = vpack.c.bf16 %v2456, %v2452
          %v3761 = vpack.c.bf16 %v2466, %v2462
          %v3762 = vpack.c.bf16 %v2476, %v2472
          %v3763 = vpack.c.bf16 %v2486, %v2482
          %v3764 = vpack.c.bf16 %v2496, %v2492
          %v3765 = vpack.c.bf16 %v2506, %v2502
          %v3766 = vpack.c.bf16 %v2516, %v2512
          %v3831 = vunpack.c.l.b16 %v3703
          %v3832 = vunpack.c.h.b16 %v3703
          %v3833 = vunpack.c.l.b16 %v3704
          %v3834 = vunpack.c.h.b16 %v3704
          %v3835 = vunpack.c.l.b16 %v3705
          %v3836 = vunpack.c.h.b16 %v3705
          %v3837 = vunpack.c.l.b16 %v3706
          %v3838 = vunpack.c.h.b16 %v3706
          %v3839 = vunpack.c.l.b16 %v3707
          %v3840 = vunpack.c.h.b16 %v3707
          %v3841 = vunpack.c.l.b16 %v3708
          %v3842 = vunpack.c.h.b16 %v3708
          %v3843 = vunpack.c.l.b16 %v3709
          %v3844 = vunpack.c.h.b16 %v3709
          %v3845 = vunpack.c.l.b16 %v3710
          %v3846 = vunpack.c.h.b16 %v3710
          %v3847 = vunpack.c.l.b16 %v3711
          %v3848 = vunpack.c.h.b16 %v3711
          %v3849 = vunpack.c.l.b16 %v3712
          %v3850 = vunpack.c.h.b16 %v3712
          %v3851 = vunpack.c.l.b16 %v3713
          %v3852 = vunpack.c.h.b16 %v3713
          %v3853 = vunpack.c.l.b16 %v3714
          %v3854 = vunpack.c.h.b16 %v3714
          %v3855 = vunpack.c.l.b16 %v3715
          %v3856 = vunpack.c.h.b16 %v3715
          %v3857 = vunpack.c.l.b16 %v3716
          %v3858 = vunpack.c.h.b16 %v3716
          %v3859 = vunpack.c.l.b16 %v3717
          %v3860 = vunpack.c.h.b16 %v3717
          %v3861 = vunpack.c.l.b16 %v3718
          %v3862 = vunpack.c.h.b16 %v3718
          %v3863 = vunpack.c.l.b16 %v3719
          %v3864 = vunpack.c.h.b16 %v3719
          %v3865 = vunpack.c.l.b16 %v3720
          %v3866 = vunpack.c.h.b16 %v3720
          %v3867 = vunpack.c.l.b16 %v3721
          %v3868 = vunpack.c.h.b16 %v3721
          %v3869 = vunpack.c.l.b16 %v3722
          %v3870 = vunpack.c.h.b16 %v3722
          %v3871 = vunpack.c.l.b16 %v3723
          %v3872 = vunpack.c.h.b16 %v3723
          %v3873 = vunpack.c.l.b16 %v3724
          %v3874 = vunpack.c.h.b16 %v3724
          %v3875 = vunpack.c.l.b16 %v3725
          %v3876 = vunpack.c.h.b16 %v3725
          %v3877 = vunpack.c.l.b16 %v3726
          %v3878 = vunpack.c.h.b16 %v3726
          %v3879 = vunpack.c.l.b16 %v3727
          %v3880 = vunpack.c.h.b16 %v3727
          %v3881 = vunpack.c.l.b16 %v3728
          %v3882 = vunpack.c.h.b16 %v3728
          %v3883 = vunpack.c.l.b16 %v3729
          %v3884 = vunpack.c.h.b16 %v3729
          %v3885 = vunpack.c.l.b16 %v3730
          %v3886 = vunpack.c.h.b16 %v3730
          %v3887 = vunpack.c.l.b16 %v3731
          %v3888 = vunpack.c.h.b16 %v3731
          %v3889 = vunpack.c.l.b16 %v3732
          %v3890 = vunpack.c.h.b16 %v3732
          %v3891 = vunpack.c.l.b16 %v3733
          %v3892 = vunpack.c.h.b16 %v3733
          %v3893 = vunpack.c.l.b16 %v3734
          %v3894 = vunpack.c.h.b16 %v3734
          %v3895 = vunpack.c.l.b16 %v3735
          %v3896 = vunpack.c.h.b16 %v3735
          %v3897 = vunpack.c.l.b16 %v3736
          %v3898 = vunpack.c.h.b16 %v3736
          %v3899 = vunpack.c.l.b16 %v3737
          %v3900 = vunpack.c.h.b16 %v3737
          %v3901 = vunpack.c.l.b16 %v3738
          %v3902 = vunpack.c.h.b16 %v3738
          %v3903 = vunpack.c.l.b16 %v3739
          %v3904 = vunpack.c.h.b16 %v3739
          %v3905 = vunpack.c.l.b16 %v3740
          %v3906 = vunpack.c.h.b16 %v3740
          %v3907 = vunpack.c.l.b16 %v3741
          %v3908 = vunpack.c.h.b16 %v3741
          %v3909 = vunpack.c.l.b16 %v3742
          %v3910 = vunpack.c.h.b16 %v3742
          %v3911 = vunpack.c.l.b16 %v3743
          %v3912 = vunpack.c.h.b16 %v3743
          %v3913 = vunpack.c.l.b16 %v3744
          %v3914 = vunpack.c.h.b16 %v3744
          %v3915 = vunpack.c.l.b16 %v3745
          %v3916 = vunpack.c.h.b16 %v3745
          %v3917 = vunpack.c.l.b16 %v3746
          %v3918 = vunpack.c.h.b16 %v3746
          %v3919 = vunpack.c.l.b16 %v3747
          %v3920 = vunpack.c.h.b16 %v3747
          %v3921 = vunpack.c.l.b16 %v3748
          %v3922 = vunpack.c.h.b16 %v3748
          %v3923 = vunpack.c.l.b16 %v3749
          %v3924 = vunpack.c.h.b16 %v3749
          %v3925 = vunpack.c.l.b16 %v3750
          %v3926 = vunpack.c.h.b16 %v3750
          %v3927 = vunpack.c.l.b16 %v3751
          %v3928 = vunpack.c.h.b16 %v3751
          %v3929 = vunpack.c.l.b16 %v3752
          %v3930 = vunpack.c.h.b16 %v3752
          %v3931 = vunpack.c.l.b16 %v3753
          %v3932 = vunpack.c.h.b16 %v3753
          %v3933 = vunpack.c.l.b16 %v3754
          %v3934 = vunpack.c.h.b16 %v3754
          %v3935 = vunpack.c.l.b16 %v3755
          %v3936 = vunpack.c.h.b16 %v3755
          %v3937 = vunpack.c.l.b16 %v3756
          %v3938 = vunpack.c.h.b16 %v3756
          %v3939 = vunpack.c.l.b16 %v3757
          %v3940 = vunpack.c.h.b16 %v3757
          %v3941 = vunpack.c.l.b16 %v3758
          %v3942 = vunpack.c.h.b16 %v3758
          %v3943 = vunpack.c.l.b16 %v3759
          %v3944 = vunpack.c.h.b16 %v3759
          %v3945 = vunpack.c.l.b16 %v3760
          %v3946 = vunpack.c.h.b16 %v3760
          %v3947 = vunpack.c.l.b16 %v3761
          %v3948 = vunpack.c.h.b16 %v3761
          %v3949 = vunpack.c.l.b16 %v3762
          %v3950 = vunpack.c.h.b16 %v3762
          %v3951 = vunpack.c.l.b16 %v3763
          %v3952 = vunpack.c.h.b16 %v3763
          %v3953 = vunpack.c.l.b16 %v3764
          %v3954 = vunpack.c.h.b16 %v3764
          %v3955 = vunpack.c.l.b16 %v3765
          %v3956 = vunpack.c.h.b16 %v3765
          %v3957 = vunpack.c.l.b16 %v3766
          %v3958 = vunpack.c.h.b16 %v3766
          %v3959 = vpack.c.b16 %v3831, %v3831
          %v3960 = vpack.c.b16 %v3832, %v3832
          %v3961 = vpack.c.b16 %v3833, %v3833
          %v3962 = vpack.c.b16 %v3834, %v3834
          %v3963 = vpack.c.b16 %v3835, %v3835
          %v3964 = vpack.c.b16 %v3836, %v3836
          %v3965 = vpack.c.b16 %v3837, %v3837
          %v3966 = vpack.c.b16 %v3838, %v3838
          %v3967 = vpack.c.b16 %v3839, %v3839
          %v3968 = vpack.c.b16 %v3840, %v3840
          %v3969 = vpack.c.b16 %v3841, %v3841
          %v3970 = vpack.c.b16 %v3842, %v3842
          %v3971 = vpack.c.b16 %v3843, %v3843
          %v3972 = vpack.c.b16 %v3844, %v3844
          %v3973 = vpack.c.b16 %v3845, %v3845
          %v3974 = vpack.c.b16 %v3846, %v3846
          %v3975 = vpack.c.b16 %v3847, %v3847
          %v3976 = vpack.c.b16 %v3848, %v3848
          %v3977 = vpack.c.b16 %v3849, %v3849
          %v3978 = vpack.c.b16 %v3850, %v3850
          %v3979 = vpack.c.b16 %v3851, %v3851
          %v3980 = vpack.c.b16 %v3852, %v3852
          %v3981 = vpack.c.b16 %v3853, %v3853
          %v3982 = vpack.c.b16 %v3854, %v3854
          %v3983 = vpack.c.b16 %v3855, %v3855
          %v3984 = vpack.c.b16 %v3856, %v3856
          %v3985 = vpack.c.b16 %v3857, %v3857
          %v3986 = vpack.c.b16 %v3858, %v3858
          %v3987 = vpack.c.b16 %v3859, %v3859
          %v3988 = vpack.c.b16 %v3860, %v3860
          %v3989 = vpack.c.b16 %v3861, %v3861
          %v3990 = vpack.c.b16 %v3862, %v3862
          %v3991 = vpack.c.b16 %v3863, %v3863
          %v3992 = vpack.c.b16 %v3864, %v3864
          %v3993 = vpack.c.b16 %v3865, %v3865
          %v3994 = vpack.c.b16 %v3866, %v3866
          %v3995 = vpack.c.b16 %v3867, %v3867
          %v3996 = vpack.c.b16 %v3868, %v3868
          %v3997 = vpack.c.b16 %v3869, %v3869
          %v3998 = vpack.c.b16 %v3870, %v3870
          %v3999 = vpack.c.b16 %v3871, %v3871
          %v4000 = vpack.c.b16 %v3872, %v3872
          %v4001 = vpack.c.b16 %v3873, %v3873
          %v4002 = vpack.c.b16 %v3874, %v3874
          %v4003 = vpack.c.b16 %v3875, %v3875
          %v4004 = vpack.c.b16 %v3876, %v3876
          %v4005 = vpack.c.b16 %v3877, %v3877
          %v4006 = vpack.c.b16 %v3878, %v3878
          %v4007 = vpack.c.b16 %v3879, %v3879
          %v4008 = vpack.c.b16 %v3880, %v3880
          %v4009 = vpack.c.b16 %v3881, %v3881
          %v4010 = vpack.c.b16 %v3882, %v3882
          %v4011 = vpack.c.b16 %v3883, %v3883
          %v4012 = vpack.c.b16 %v3884, %v3884
          %v4013 = vpack.c.b16 %v3885, %v3885
          %v4014 = vpack.c.b16 %v3886, %v3886
          %v4015 = vpack.c.b16 %v3887, %v3887
          %v4016 = vpack.c.b16 %v3888, %v3888
          %v4017 = vpack.c.b16 %v3889, %v3889
          %v4018 = vpack.c.b16 %v3890, %v3890
          %v4019 = vpack.c.b16 %v3891, %v3891
          %v4020 = vpack.c.b16 %v3892, %v3892
          %v4021 = vpack.c.b16 %v3893, %v3893
          %v4022 = vpack.c.b16 %v3894, %v3894
          %v4023 = vpack.c.b16 %v3895, %v3895
          %v4024 = vpack.c.b16 %v3896, %v3896
          %v4025 = vpack.c.b16 %v3897, %v3897
          %v4026 = vpack.c.b16 %v3898, %v3898
          %v4027 = vpack.c.b16 %v3899, %v3899
          %v4028 = vpack.c.b16 %v3900, %v3900
          %v4029 = vpack.c.b16 %v3901, %v3901
          %v4030 = vpack.c.b16 %v3902, %v3902
          %v4031 = vpack.c.b16 %v3903, %v3903
          %v4032 = vpack.c.b16 %v3904, %v3904
          %v4033 = vpack.c.b16 %v3905, %v3905
          %v4034 = vpack.c.b16 %v3906, %v3906
          %v4035 = vpack.c.b16 %v3907, %v3907
          %v4036 = vpack.c.b16 %v3908, %v3908
          %v4037 = vpack.c.b16 %v3909, %v3909
          %v4038 = vpack.c.b16 %v3910, %v3910
          %v4039 = vpack.c.b16 %v3911, %v3911
          %v4040 = vpack.c.b16 %v3912, %v3912
          %v4041 = vpack.c.b16 %v3913, %v3913
          %v4042 = vpack.c.b16 %v3914, %v3914
          %v4043 = vpack.c.b16 %v3915, %v3915
          %v4044 = vpack.c.b16 %v3916, %v3916
          %v4045 = vpack.c.b16 %v3917, %v3917
          %v4046 = vpack.c.b16 %v3918, %v3918
          %v4047 = vpack.c.b16 %v3919, %v3919
          %v4048 = vpack.c.b16 %v3920, %v3920
          %v4049 = vpack.c.b16 %v3921, %v3921
          %v4050 = vpack.c.b16 %v3922, %v3922
          %v4051 = vpack.c.b16 %v3923, %v3923
          %v4052 = vpack.c.b16 %v3924, %v3924
          %v4053 = vpack.c.b16 %v3925, %v3925
          %v4054 = vpack.c.b16 %v3926, %v3926
          %v4055 = vpack.c.b16 %v3927, %v3927
          %v4056 = vpack.c.b16 %v3928, %v3928
          %v4057 = vpack.c.b16 %v3929, %v3929
          %v4058 = vpack.c.b16 %v3930, %v3930
          %v4059 = vpack.c.b16 %v3931, %v3931
          %v4060 = vpack.c.b16 %v3932, %v3932
          %v4061 = vpack.c.b16 %v3933, %v3933
          %v4062 = vpack.c.b16 %v3934, %v3934
          %v4063 = vpack.c.b16 %v3935, %v3935
          %v4064 = vpack.c.b16 %v3936, %v3936
          %v4065 = vpack.c.b16 %v3937, %v3937
          %v4066 = vpack.c.b16 %v3938, %v3938
          %v4067 = vpack.c.b16 %v3939, %v3939
          %v4068 = vpack.c.b16 %v3940, %v3940
          %v4069 = vpack.c.b16 %v3941, %v3941
          %v4070 = vpack.c.b16 %v3942, %v3942
          %v4071 = vpack.c.b16 %v3943, %v3943
          %v4072 = vpack.c.b16 %v3944, %v3944
          %v4073 = vpack.c.b16 %v3945, %v3945
          %v4074 = vpack.c.b16 %v3946, %v3946
          %v4075 = vpack.c.b16 %v3947, %v3947
          %v4076 = vpack.c.b16 %v3948, %v3948
          %v4077 = vpack.c.b16 %v3949, %v3949
          %v4078 = vpack.c.b16 %v3950, %v3950
          %v4079 = vpack.c.b16 %v3951, %v3951
          %v4080 = vpack.c.b16 %v3952, %v3952
          %v4081 = vpack.c.b16 %v3953, %v3953
          %v4082 = vpack.c.b16 %v3954, %v3954
          %v4083 = vpack.c.b16 %v3955, %v3955
          %v4084 = vpack.c.b16 %v3956, %v3956
          %v4085 = vpack.c.b16 %v3957, %v3957
          %v4086 = vpack.c.b16 %v3958, %v3958
          %4215 = vst [vmem:[#allocation3] sm:$0xf] %v3959
          %4216 = vst [vmem:[#allocation3 + $0x4] sm:$0xf] %v3960
          %4217 = vst [vmem:[#allocation3 + $0x8] sm:$0xf] %v3961
          %4218 = vst [vmem:[#allocation3 + $0xc] sm:$0xf] %v3962
          %4219 = vst [vmem:[#allocation3 + $0x10] sm:$0xf] %v3963
          %4220 = vst [vmem:[#allocation3 + $0x14] sm:$0xf] %v3964
          %4221 = vst [vmem:[#allocation3 + $0x18] sm:$0xf] %v3965
          %4222 = vst [vmem:[#allocation3 + $0x1c] sm:$0xf] %v3966
          %4223 = vst [vmem:[#allocation3 + $0x20] sm:$0xf] %v3967
          %4224 = vst [vmem:[#allocation3 + $0x24] sm:$0xf] %v3968
          %4225 = vst [vmem:[#allocation3 + $0x28] sm:$0xf] %v3969
          %4226 = vst [vmem:[#allocation3 + $0x2c] sm:$0xf] %v3970
          %4227 = vst [vmem:[#allocation3 + $0x30] sm:$0xf] %v3971
          %4228 = vst [vmem:[#allocation3 + $0x34] sm:$0xf] %v3972
          %4229 = vst [vmem:[#allocation3 + $0x38] sm:$0xf] %v3973
          %4230 = vst [vmem:[#allocation3 + $0x3c] sm:$0xf] %v3974
          %4231 = vst [vmem:[#allocation3 + $0x40] sm:$0xf] %v3975
          %4232 = vst [vmem:[#allocation3 + $0x44] sm:$0xf] %v3976
          %4233 = vst [vmem:[#allocation3 + $0x48] sm:$0xf] %v3977
          %4234 = vst [vmem:[#allocation3 + $0x4c] sm:$0xf] %v3978
          %4235 = vst [vmem:[#allocation3 + $0x50] sm:$0xf] %v3979
          %4236 = vst [vmem:[#allocation3 + $0x54] sm:$0xf] %v3980
          %4237 = vst [vmem:[#allocation3 + $0x58] sm:$0xf] %v3981
          %4238 = vst [vmem:[#allocation3 + $0x5c] sm:$0xf] %v3982
          %4239 = vst [vmem:[#allocation3 + $0x60] sm:$0xf] %v3983
          %4240 = vst [vmem:[#allocation3 + $0x64] sm:$0xf] %v3984
          %4241 = vst [vmem:[#allocation3 + $0x68] sm:$0xf] %v3985
          %4242 = vst [vmem:[#allocation3 + $0x6c] sm:$0xf] %v3986
          %4243 = vst [vmem:[#allocation3 + $0x70] sm:$0xf] %v3987
          %4244 = vst [vmem:[#allocation3 + $0x74] sm:$0xf] %v3988
          %4245 = vst [vmem:[#allocation3 + $0x78] sm:$0xf] %v3989
          %4246 = vst [vmem:[#allocation3 + $0x7c] sm:$0xf] %v3990
          %4247 = vst [vmem:[#allocation3 + $0x80] sm:$0xf] %v3991
          %4248 = vst [vmem:[#allocation3 + $0x84] sm:$0xf] %v3992
          %4249 = vst [vmem:[#allocation3 + $0x88] sm:$0xf] %v3993
          %4250 = vst [vmem:[#allocation3 + $0x8c] sm:$0xf] %v3994
          %4251 = vst [vmem:[#allocation3 + $0x90] sm:$0xf] %v3995
          %4252 = vst [vmem:[#allocation3 + $0x94] sm:$0xf] %v3996
          %4253 = vst [vmem:[#allocation3 + $0x98] sm:$0xf] %v3997
          %4254 = vst [vmem:[#allocation3 + $0x9c] sm:$0xf] %v3998
          %4255 = vst [vmem:[#allocation3 + $0xa0] sm:$0xf] %v3999
          %4256 = vst [vmem:[#allocation3 + $0xa4] sm:$0xf] %v4000
          %4257 = vst [vmem:[#allocation3 + $0xa8] sm:$0xf] %v4001
          %4258 = vst [vmem:[#allocation3 + $0xac] sm:$0xf] %v4002
          %4259 = vst [vmem:[#allocation3 + $0xb0] sm:$0xf] %v4003
          %4260 = vst [vmem:[#allocation3 + $0xb4] sm:$0xf] %v4004
          %4261 = vst [vmem:[#allocation3 + $0xb8] sm:$0xf] %v4005
          %4262 = vst [vmem:[#allocation3 + $0xbc] sm:$0xf] %v4006
          %4263 = vst [vmem:[#allocation3 + $0xc0] sm:$0xf] %v4007
          %4264 = vst [vmem:[#allocation3 + $0xc4] sm:$0xf] %v4008
          %4265 = vst [vmem:[#allocation3 + $0xc8] sm:$0xf] %v4009
          %4266 = vst [vmem:[#allocation3 + $0xcc] sm:$0xf] %v4010
          %4267 = vst [vmem:[#allocation3 + $0xd0] sm:$0xf] %v4011
          %4268 = vst [vmem:[#allocation3 + $0xd4] sm:$0xf] %v4012
          %4269 = vst [vmem:[#allocation3 + $0xd8] sm:$0xf] %v4013
          %4270 = vst [vmem:[#allocation3 + $0xdc] sm:$0xf] %v4014
          %4271 = vst [vmem:[#allocation3 + $0xe0] sm:$0xf] %v4015
          %4272 = vst [vmem:[#allocation3 + $0xe4] sm:$0xf] %v4016
          %4273 = vst [vmem:[#allocation3 + $0xe8] sm:$0xf] %v4017
          %4274 = vst [vmem:[#allocation3 + $0xec] sm:$0xf] %v4018
          %4275 = vst [vmem:[#allocation3 + $0xf0] sm:$0xf] %v4019
          %4276 = vst [vmem:[#allocation3 + $0xf4] sm:$0xf] %v4020
          %4277 = vst [vmem:[#allocation3 + $0xf8] sm:$0xf] %v4021
          %4278 = vst [vmem:[#allocation3 + $0xfc] sm:$0xf] %v4022
          %4279 = vst [vmem:[#allocation3 + $0x100] sm:$0xf] %v4023
          %4280 = vst [vmem:[#allocation3 + $0x104] sm:$0xf] %v4024
          %4281 = vst [vmem:[#allocation3 + $0x108] sm:$0xf] %v4025
          %4282 = vst [vmem:[#allocation3 + $0x10c] sm:$0xf] %v4026
          %4283 = vst [vmem:[#allocation3 + $0x110] sm:$0xf] %v4027
          %4284 = vst [vmem:[#allocation3 + $0x114] sm:$0xf] %v4028
          %4285 = vst [vmem:[#allocation3 + $0x118] sm:$0xf] %v4029
          %4286 = vst [vmem:[#allocation3 + $0x11c] sm:$0xf] %v4030
          %4287 = vst [vmem:[#allocation3 + $0x120] sm:$0xf] %v4031
          %4288 = vst [vmem:[#allocation3 + $0x124] sm:$0xf] %v4032
          %4289 = vst [vmem:[#allocation3 + $0x128] sm:$0xf] %v4033
          %4290 = vst [vmem:[#allocation3 + $0x12c] sm:$0xf] %v4034
          %4291 = vst [vmem:[#allocation3 + $0x130] sm:$0xf] %v4035
          %4292 = vst [vmem:[#allocation3 + $0x134] sm:$0xf] %v4036
          %4293 = vst [vmem:[#allocation3 + $0x138] sm:$0xf] %v4037
          %4294 = vst [vmem:[#allocation3 + $0x13c] sm:$0xf] %v4038
          %4295 = vst [vmem:[#allocation3 + $0x140] sm:$0xf] %v4039
          %4296 = vst [vmem:[#allocation3 + $0x144] sm:$0xf] %v4040
          %4297 = vst [vmem:[#allocation3 + $0x148] sm:$0xf] %v4041
          %4298 = vst [vmem:[#allocation3 + $0x14c] sm:$0xf] %v4042
          %4299 = vst [vmem:[#allocation3 + $0x150] sm:$0xf] %v4043
          %4300 = vst [vmem:[#allocation3 + $0x154] sm:$0xf] %v4044
          %4301 = vst [vmem:[#allocation3 + $0x158] sm:$0xf] %v4045
          %4302 = vst [vmem:[#allocation3 + $0x15c] sm:$0xf] %v4046
          %4303 = vst [vmem:[#allocation3 + $0x160] sm:$0xf] %v4047
          %4304 = vst [vmem:[#allocation3 + $0x164] sm:$0xf] %v4048
          %4305 = vst [vmem:[#allocation3 + $0x168] sm:$0xf] %v4049
          %4306 = vst [vmem:[#allocation3 + $0x16c] sm:$0xf] %v4050
          %4307 = vst [vmem:[#allocation3 + $0x170] sm:$0xf] %v4051
          %4308 = vst [vmem:[#allocation3 + $0x174] sm:$0xf] %v4052
          %4309 = vst [vmem:[#allocation3 + $0x178] sm:$0xf] %v4053
          %4310 = vst [vmem:[#allocation3 + $0x17c] sm:$0xf] %v4054
          %4311 = vst [vmem:[#allocation3 + $0x180] sm:$0xf] %v4055
          %4312 = vst [vmem:[#allocation3 + $0x184] sm:$0xf] %v4056
          %4313 = vst [vmem:[#allocation3 + $0x188] sm:$0xf] %v4057
          %4314 = vst [vmem:[#allocation3 + $0x18c] sm:$0xf] %v4058
          %4315 = vst [vmem:[#allocation3 + $0x190] sm:$0xf] %v4059
          %4316 = vst [vmem:[#allocation3 + $0x194] sm:$0xf] %v4060
          %4317 = vst [vmem:[#allocation3 + $0x198] sm:$0xf] %v4061
          %4318 = vst [vmem:[#allocation3 + $0x19c] sm:$0xf] %v4062
          %4319 = vst [vmem:[#allocation3 + $0x1a0] sm:$0xf] %v4063
          %4320 = vst [vmem:[#allocation3 + $0x1a4] sm:$0xf] %v4064
          %4321 = vst [vmem:[#allocation3 + $0x1a8] sm:$0xf] %v4065
          %4322 = vst [vmem:[#allocation3 + $0x1ac] sm:$0xf] %v4066
          %4323 = vst [vmem:[#allocation3 + $0x1b0] sm:$0xf] %v4067
          %4324 = vst [vmem:[#allocation3 + $0x1b4] sm:$0xf] %v4068
          %4325 = vst [vmem:[#allocation3 + $0x1b8] sm:$0xf] %v4069
          %4326 = vst [vmem:[#allocation3 + $0x1bc] sm:$0xf] %v4070
          %4327 = vst [vmem:[#allocation3 + $0x1c0] sm:$0xf] %v4071
          %4328 = vst [vmem:[#allocation3 + $0x1c4] sm:$0xf] %v4072
          %4329 = vst [vmem:[#allocation3 + $0x1c8] sm:$0xf] %v4073
          %4330 = vst [vmem:[#allocation3 + $0x1cc] sm:$0xf] %v4074
          %4331 = vst [vmem:[#allocation3 + $0x1d0] sm:$0xf] %v4075
          %4332 = vst [vmem:[#allocation3 + $0x1d4] sm:$0xf] %v4076
          %4333 = vst [vmem:[#allocation3 + $0x1d8] sm:$0xf] %v4077
          %4334 = vst [vmem:[#allocation3 + $0x1dc] sm:$0xf] %v4078
          %4335 = vst [vmem:[#allocation3 + $0x1e0] sm:$0xf] %v4079
          %4336 = vst [vmem:[#allocation3 + $0x1e4] sm:$0xf] %v4080
          %4337 = vst [vmem:[#allocation3 + $0x1e8] sm:$0xf] %v4081
          %4338 = vst [vmem:[#allocation3 + $0x1ec] sm:$0xf] %v4082
          %4339 = vst [vmem:[#allocation3 + $0x1f0] sm:$0xf] %v4083
          %4340 = vst [vmem:[#allocation3 + $0x1f4] sm:$0xf] %v4084
          %4341 = vst [vmem:[#allocation3 + $0x1f8] sm:$0xf] %v4085
          %4342 = vst [vmem:[#allocation3 + $0x1fc] sm:$0xf] %v4086
          %v4343 = vpack.c.bf16 %v2556, %v2553
          %v4344 = vpack.c.bf16 %v2564, %v2561
          %v4345 = vpack.c.bf16 %v2572, %v2569
          %v4346 = vpack.c.bf16 %v2580, %v2577
          %v4347 = vpack.c.bf16 %v2588, %v2585
          %v4348 = vpack.c.bf16 %v2596, %v2593
          %v4349 = vpack.c.bf16 %v2604, %v2601
          %v4350 = vpack.c.bf16 %v2612, %v2609
          %v4351 = vpack.c.bf16 %v2620, %v2617
          %v4352 = vpack.c.bf16 %v2628, %v2625
          %v4353 = vpack.c.bf16 %v2636, %v2633
          %v4354 = vpack.c.bf16 %v2644, %v2641
          %v4355 = vpack.c.bf16 %v2652, %v2649
          %v4356 = vpack.c.bf16 %v2660, %v2657
          %v4357 = vpack.c.bf16 %v2668, %v2665
          %v4358 = vpack.c.bf16 %v2676, %v2673
          %v4359 = vpack.c.bf16 %v2684, %v2681
          %v4360 = vpack.c.bf16 %v2692, %v2689
          %v4361 = vpack.c.bf16 %v2700, %v2697
          %v4362 = vpack.c.bf16 %v2708, %v2705
          %v4363 = vpack.c.bf16 %v2716, %v2713
          %v4364 = vpack.c.bf16 %v2724, %v2721
          %v4365 = vpack.c.bf16 %v2732, %v2729
          %v4366 = vpack.c.bf16 %v2740, %v2737
          %v4367 = vpack.c.bf16 %v2748, %v2745
          %v4368 = vpack.c.bf16 %v2756, %v2753
          %v4369 = vpack.c.bf16 %v2764, %v2761
          %v4370 = vpack.c.bf16 %v2772, %v2769
          %v4371 = vpack.c.bf16 %v2780, %v2777
          %v4372 = vpack.c.bf16 %v2788, %v2785
          %v4373 = vpack.c.bf16 %v2796, %v2793
          %v4374 = vpack.c.bf16 %v2804, %v2801
          %v4375 = vpack.c.bf16 %v2812, %v2809
          %v4376 = vpack.c.bf16 %v2820, %v2817
          %v4377 = vpack.c.bf16 %v2828, %v2825
          %v4378 = vpack.c.bf16 %v2836, %v2833
          %v4379 = vpack.c.bf16 %v2844, %v2841
          %v4380 = vpack.c.bf16 %v2852, %v2849
          %v4381 = vpack.c.bf16 %v2860, %v2857
          %v4382 = vpack.c.bf16 %v2868, %v2865
          %v4383 = vpack.c.bf16 %v2876, %v2873
          %v4384 = vpack.c.bf16 %v2884, %v2881
          %v4385 = vpack.c.bf16 %v2892, %v2889
          %v4386 = vpack.c.bf16 %v2900, %v2897
          %v4387 = vpack.c.bf16 %v2908, %v2905
          %v4388 = vpack.c.bf16 %v2916, %v2913
          %v4389 = vpack.c.bf16 %v2924, %v2921
          %v4390 = vpack.c.bf16 %v2932, %v2929
          %v4391 = vpack.c.bf16 %v2940, %v2937
          %v4392 = vpack.c.bf16 %v2948, %v2945
          %v4393 = vpack.c.bf16 %v2956, %v2953
          %v4394 = vpack.c.bf16 %v2964, %v2961
          %v4395 = vpack.c.bf16 %v2972, %v2969
          %v4396 = vpack.c.bf16 %v2980, %v2977
          %v4397 = vpack.c.bf16 %v2988, %v2985
          %v4398 = vpack.c.bf16 %v2996, %v2993
          %v4399 = vpack.c.bf16 %v3004, %v3001
          %v4400 = vpack.c.bf16 %v3012, %v3009
          %v4401 = vpack.c.bf16 %v3020, %v3017
          %v4402 = vpack.c.bf16 %v3028, %v3025
          %v4403 = vpack.c.bf16 %v3036, %v3033
          %v4404 = vpack.c.bf16 %v3044, %v3041
          %v4405 = vpack.c.bf16 %v3052, %v3049
          %v4406 = vpack.c.bf16 %v3060, %v3057
          %v4471 = vunpack.c.l.b16 %v4343
          %v4472 = vunpack.c.h.b16 %v4343
          %v4473 = vunpack.c.l.b16 %v4344
          %v4474 = vunpack.c.h.b16 %v4344
          %v4475 = vunpack.c.l.b16 %v4345
          %v4476 = vunpack.c.h.b16 %v4345
          %v4477 = vunpack.c.l.b16 %v4346
          %v4478 = vunpack.c.h.b16 %v4346
          %v4479 = vunpack.c.l.b16 %v4347
          %v4480 = vunpack.c.h.b16 %v4347
          %v4481 = vunpack.c.l.b16 %v4348
          %v4482 = vunpack.c.h.b16 %v4348
          %v4483 = vunpack.c.l.b16 %v4349
          %v4484 = vunpack.c.h.b16 %v4349
          %v4485 = vunpack.c.l.b16 %v4350
          %v4486 = vunpack.c.h.b16 %v4350
          %v4487 = vunpack.c.l.b16 %v4351
          %v4488 = vunpack.c.h.b16 %v4351
          %v4489 = vunpack.c.l.b16 %v4352
          %v4490 = vunpack.c.h.b16 %v4352
          %v4491 = vunpack.c.l.b16 %v4353
          %v4492 = vunpack.c.h.b16 %v4353
          %v4493 = vunpack.c.l.b16 %v4354
          %v4494 = vunpack.c.h.b16 %v4354
          %v4495 = vunpack.c.l.b16 %v4355
          %v4496 = vunpack.c.h.b16 %v4355
          %v4497 = vunpack.c.l.b16 %v4356
          %v4498 = vunpack.c.h.b16 %v4356
          %v4499 = vunpack.c.l.b16 %v4357
          %v4500 = vunpack.c.h.b16 %v4357
          %v4501 = vunpack.c.l.b16 %v4358
          %v4502 = vunpack.c.h.b16 %v4358
          %v4503 = vunpack.c.l.b16 %v4359
          %v4504 = vunpack.c.h.b16 %v4359
          %v4505 = vunpack.c.l.b16 %v4360
          %v4506 = vunpack.c.h.b16 %v4360
          %v4507 = vunpack.c.l.b16 %v4361
          %v4508 = vunpack.c.h.b16 %v4361
          %v4509 = vunpack.c.l.b16 %v4362
          %v4510 = vunpack.c.h.b16 %v4362
          %v4511 = vunpack.c.l.b16 %v4363
          %v4512 = vunpack.c.h.b16 %v4363
          %v4513 = vunpack.c.l.b16 %v4364
          %v4514 = vunpack.c.h.b16 %v4364
          %v4515 = vunpack.c.l.b16 %v4365
          %v4516 = vunpack.c.h.b16 %v4365
          %v4517 = vunpack.c.l.b16 %v4366
          %v4518 = vunpack.c.h.b16 %v4366
          %v4519 = vunpack.c.l.b16 %v4367
          %v4520 = vunpack.c.h.b16 %v4367
          %v4521 = vunpack.c.l.b16 %v4368
          %v4522 = vunpack.c.h.b16 %v4368
          %v4523 = vunpack.c.l.b16 %v4369
          %v4524 = vunpack.c.h.b16 %v4369
          %v4525 = vunpack.c.l.b16 %v4370
          %v4526 = vunpack.c.h.b16 %v4370
          %v4527 = vunpack.c.l.b16 %v4371
          %v4528 = vunpack.c.h.b16 %v4371
          %v4529 = vunpack.c.l.b16 %v4372
          %v4530 = vunpack.c.h.b16 %v4372
          %v4531 = vunpack.c.l.b16 %v4373
          %v4532 = vunpack.c.h.b16 %v4373
          %v4533 = vunpack.c.l.b16 %v4374
          %v4534 = vunpack.c.h.b16 %v4374
          %v4535 = vunpack.c.l.b16 %v4375
          %v4536 = vunpack.c.h.b16 %v4375
          %v4537 = vunpack.c.l.b16 %v4376
          %v4538 = vunpack.c.h.b16 %v4376
          %v4539 = vunpack.c.l.b16 %v4377
          %v4540 = vunpack.c.h.b16 %v4377
          %v4541 = vunpack.c.l.b16 %v4378
          %v4542 = vunpack.c.h.b16 %v4378
          %v4543 = vunpack.c.l.b16 %v4379
          %v4544 = vunpack.c.h.b16 %v4379
          %v4545 = vunpack.c.l.b16 %v4380
          %v4546 = vunpack.c.h.b16 %v4380
          %v4547 = vunpack.c.l.b16 %v4381
          %v4548 = vunpack.c.h.b16 %v4381
          %v4549 = vunpack.c.l.b16 %v4382
          %v4550 = vunpack.c.h.b16 %v4382
          %v4551 = vunpack.c.l.b16 %v4383
          %v4552 = vunpack.c.h.b16 %v4383
          %v4553 = vunpack.c.l.b16 %v4384
          %v4554 = vunpack.c.h.b16 %v4384
          %v4555 = vunpack.c.l.b16 %v4385
          %v4556 = vunpack.c.h.b16 %v4385
          %v4557 = vunpack.c.l.b16 %v4386
          %v4558 = vunpack.c.h.b16 %v4386
          %v4559 = vunpack.c.l.b16 %v4387
          %v4560 = vunpack.c.h.b16 %v4387
          %v4561 = vunpack.c.l.b16 %v4388
          %v4562 = vunpack.c.h.b16 %v4388
          %v4563 = vunpack.c.l.b16 %v4389
          %v4564 = vunpack.c.h.b16 %v4389
          %v4565 = vunpack.c.l.b16 %v4390
          %v4566 = vunpack.c.h.b16 %v4390
          %v4567 = vunpack.c.l.b16 %v4391
          %v4568 = vunpack.c.h.b16 %v4391
          %v4569 = vunpack.c.l.b16 %v4392
          %v4570 = vunpack.c.h.b16 %v4392
          %v4571 = vunpack.c.l.b16 %v4393
          %v4572 = vunpack.c.h.b16 %v4393
          %v4573 = vunpack.c.l.b16 %v4394
          %v4574 = vunpack.c.h.b16 %v4394
          %v4575 = vunpack.c.l.b16 %v4395
          %v4576 = vunpack.c.h.b16 %v4395
          %v4577 = vunpack.c.l.b16 %v4396
          %v4578 = vunpack.c.h.b16 %v4396
          %v4579 = vunpack.c.l.b16 %v4397
          %v4580 = vunpack.c.h.b16 %v4397
          %v4581 = vunpack.c.l.b16 %v4398
          %v4582 = vunpack.c.h.b16 %v4398
          %v4583 = vunpack.c.l.b16 %v4399
          %v4584 = vunpack.c.h.b16 %v4399
          %v4585 = vunpack.c.l.b16 %v4400
          %v4586 = vunpack.c.h.b16 %v4400
          %v4587 = vunpack.c.l.b16 %v4401
          %v4588 = vunpack.c.h.b16 %v4401
          %v4589 = vunpack.c.l.b16 %v4402
          %v4590 = vunpack.c.h.b16 %v4402
          %v4591 = vunpack.c.l.b16 %v4403
          %v4592 = vunpack.c.h.b16 %v4403
          %v4593 = vunpack.c.l.b16 %v4404
          %v4594 = vunpack.c.h.b16 %v4404
          %v4595 = vunpack.c.l.b16 %v4405
          %v4596 = vunpack.c.h.b16 %v4405
          %v4597 = vunpack.c.l.b16 %v4406
          %v4598 = vunpack.c.h.b16 %v4406
          %v4599 = vpack.c.b16 %v4471, %v4471
          %v4600 = vpack.c.b16 %v4472, %v4472
          %v4601 = vpack.c.b16 %v4473, %v4473
          %v4602 = vpack.c.b16 %v4474, %v4474
          %v4603 = vpack.c.b16 %v4475, %v4475
          %v4604 = vpack.c.b16 %v4476, %v4476
          %v4605 = vpack.c.b16 %v4477, %v4477
          %v4606 = vpack.c.b16 %v4478, %v4478
          %v4607 = vpack.c.b16 %v4479, %v4479
          %v4608 = vpack.c.b16 %v4480, %v4480
          %v4609 = vpack.c.b16 %v4481, %v4481
          %v4610 = vpack.c.b16 %v4482, %v4482
          %v4611 = vpack.c.b16 %v4483, %v4483
          %v4612 = vpack.c.b16 %v4484, %v4484
          %v4613 = vpack.c.b16 %v4485, %v4485
          %v4614 = vpack.c.b16 %v4486, %v4486
          %v4615 = vpack.c.b16 %v4487, %v4487
          %v4616 = vpack.c.b16 %v4488, %v4488
          %v4617 = vpack.c.b16 %v4489, %v4489
          %v4618 = vpack.c.b16 %v4490, %v4490
          %v4619 = vpack.c.b16 %v4491, %v4491
          %v4620 = vpack.c.b16 %v4492, %v4492
          %v4621 = vpack.c.b16 %v4493, %v4493
          %v4622 = vpack.c.b16 %v4494, %v4494
          %v4623 = vpack.c.b16 %v4495, %v4495
          %v4624 = vpack.c.b16 %v4496, %v4496
          %v4625 = vpack.c.b16 %v4497, %v4497
          %v4626 = vpack.c.b16 %v4498, %v4498
          %v4627 = vpack.c.b16 %v4499, %v4499
          %v4628 = vpack.c.b16 %v4500, %v4500
          %v4629 = vpack.c.b16 %v4501, %v4501
          %v4630 = vpack.c.b16 %v4502, %v4502
          %v4631 = vpack.c.b16 %v4503, %v4503
          %v4632 = vpack.c.b16 %v4504, %v4504
          %v4633 = vpack.c.b16 %v4505, %v4505
          %v4634 = vpack.c.b16 %v4506, %v4506
          %v4635 = vpack.c.b16 %v4507, %v4507
          %v4636 = vpack.c.b16 %v4508, %v4508
          %v4637 = vpack.c.b16 %v4509, %v4509
          %v4638 = vpack.c.b16 %v4510, %v4510
          %v4639 = vpack.c.b16 %v4511, %v4511
          %v4640 = vpack.c.b16 %v4512, %v4512
          %v4641 = vpack.c.b16 %v4513, %v4513
          %v4642 = vpack.c.b16 %v4514, %v4514
          %v4643 = vpack.c.b16 %v4515, %v4515
          %v4644 = vpack.c.b16 %v4516, %v4516
          %v4645 = vpack.c.b16 %v4517, %v4517
          %v4646 = vpack.c.b16 %v4518, %v4518
          %v4647 = vpack.c.b16 %v4519, %v4519
          %v4648 = vpack.c.b16 %v4520, %v4520
          %v4649 = vpack.c.b16 %v4521, %v4521
          %v4650 = vpack.c.b16 %v4522, %v4522
          %v4651 = vpack.c.b16 %v4523, %v4523
          %v4652 = vpack.c.b16 %v4524, %v4524
          %v4653 = vpack.c.b16 %v4525, %v4525
          %v4654 = vpack.c.b16 %v4526, %v4526
          %v4655 = vpack.c.b16 %v4527, %v4527
          %v4656 = vpack.c.b16 %v4528, %v4528
          %v4657 = vpack.c.b16 %v4529, %v4529
          %v4658 = vpack.c.b16 %v4530, %v4530
          %v4659 = vpack.c.b16 %v4531, %v4531
          %v4660 = vpack.c.b16 %v4532, %v4532
          %v4661 = vpack.c.b16 %v4533, %v4533
          %v4662 = vpack.c.b16 %v4534, %v4534
          %v4663 = vpack.c.b16 %v4535, %v4535
          %v4664 = vpack.c.b16 %v4536, %v4536
          %v4665 = vpack.c.b16 %v4537, %v4537
          %v4666 = vpack.c.b16 %v4538, %v4538
          %v4667 = vpack.c.b16 %v4539, %v4539
          %v4668 = vpack.c.b16 %v4540, %v4540
          %v4669 = vpack.c.b16 %v4541, %v4541
          %v4670 = vpack.c.b16 %v4542, %v4542
          %v4671 = vpack.c.b16 %v4543, %v4543
          %v4672 = vpack.c.b16 %v4544, %v4544
          %v4673 = vpack.c.b16 %v4545, %v4545
          %v4674 = vpack.c.b16 %v4546, %v4546
          %v4675 = vpack.c.b16 %v4547, %v4547
          %v4676 = vpack.c.b16 %v4548, %v4548
          %v4677 = vpack.c.b16 %v4549, %v4549
          %v4678 = vpack.c.b16 %v4550, %v4550
          %v4679 = vpack.c.b16 %v4551, %v4551
          %v4680 = vpack.c.b16 %v4552, %v4552
          %v4681 = vpack.c.b16 %v4553, %v4553
          %v4682 = vpack.c.b16 %v4554, %v4554
          %v4683 = vpack.c.b16 %v4555, %v4555
          %v4684 = vpack.c.b16 %v4556, %v4556
          %v4685 = vpack.c.b16 %v4557, %v4557
          %v4686 = vpack.c.b16 %v4558, %v4558
          %v4687 = vpack.c.b16 %v4559, %v4559
          %v4688 = vpack.c.b16 %v4560, %v4560
          %v4689 = vpack.c.b16 %v4561, %v4561
          %v4690 = vpack.c.b16 %v4562, %v4562
          %v4691 = vpack.c.b16 %v4563, %v4563
          %v4692 = vpack.c.b16 %v4564, %v4564
          %v4693 = vpack.c.b16 %v4565, %v4565
          %v4694 = vpack.c.b16 %v4566, %v4566
          %v4695 = vpack.c.b16 %v4567, %v4567
          %v4696 = vpack.c.b16 %v4568, %v4568
          %v4697 = vpack.c.b16 %v4569, %v4569
          %v4698 = vpack.c.b16 %v4570, %v4570
          %v4699 = vpack.c.b16 %v4571, %v4571
          %v4700 = vpack.c.b16 %v4572, %v4572
          %v4701 = vpack.c.b16 %v4573, %v4573
          %v4702 = vpack.c.b16 %v4574, %v4574
          %v4703 = vpack.c.b16 %v4575, %v4575
          %v4704 = vpack.c.b16 %v4576, %v4576
          %v4705 = vpack.c.b16 %v4577, %v4577
          %v4706 = vpack.c.b16 %v4578, %v4578
          %v4707 = vpack.c.b16 %v4579, %v4579
          %v4708 = vpack.c.b16 %v4580, %v4580
          %v4709 = vpack.c.b16 %v4581, %v4581
          %v4710 = vpack.c.b16 %v4582, %v4582
          %v4711 = vpack.c.b16 %v4583, %v4583
          %v4712 = vpack.c.b16 %v4584, %v4584
          %v4713 = vpack.c.b16 %v4585, %v4585
          %v4714 = vpack.c.b16 %v4586, %v4586
          %v4715 = vpack.c.b16 %v4587, %v4587
          %v4716 = vpack.c.b16 %v4588, %v4588
          %v4717 = vpack.c.b16 %v4589, %v4589
          %v4718 = vpack.c.b16 %v4590, %v4590
          %v4719 = vpack.c.b16 %v4591, %v4591
          %v4720 = vpack.c.b16 %v4592, %v4592
          %v4721 = vpack.c.b16 %v4593, %v4593
          %v4722 = vpack.c.b16 %v4594, %v4594
          %v4723 = vpack.c.b16 %v4595, %v4595
          %v4724 = vpack.c.b16 %v4596, %v4596
          %v4725 = vpack.c.b16 %v4597, %v4597
          %v4726 = vpack.c.b16 %v4598, %v4598
          %4855 = vst [vmem:[#allocation4] sm:$0xf] %v4599
          %4856 = vst [vmem:[#allocation4 + $0x4] sm:$0xf] %v4600
          %4857 = vst [vmem:[#allocation4 + $0x8] sm:$0xf] %v4601
          %4858 = vst [vmem:[#allocation4 + $0xc] sm:$0xf] %v4602
          %4859 = vst [vmem:[#allocation4 + $0x10] sm:$0xf] %v4603
          %4860 = vst [vmem:[#allocation4 + $0x14] sm:$0xf] %v4604
          %4861 = vst [vmem:[#allocation4 + $0x18] sm:$0xf] %v4605
          %4862 = vst [vmem:[#allocation4 + $0x1c] sm:$0xf] %v4606
          %4863 = vst [vmem:[#allocation4 + $0x20] sm:$0xf] %v4607
          %4864 = vst [vmem:[#allocation4 + $0x24] sm:$0xf] %v4608
          %4865 = vst [vmem:[#allocation4 + $0x28] sm:$0xf] %v4609
          %4866 = vst [vmem:[#allocation4 + $0x2c] sm:$0xf] %v4610
          %4867 = vst [vmem:[#allocation4 + $0x30] sm:$0xf] %v4611
          %4868 = vst [vmem:[#allocation4 + $0x34] sm:$0xf] %v4612
          %4869 = vst [vmem:[#allocation4 + $0x38] sm:$0xf] %v4613
          %4870 = vst [vmem:[#allocation4 + $0x3c] sm:$0xf] %v4614
          %4871 = vst [vmem:[#allocation4 + $0x40] sm:$0xf] %v4615
          %4872 = vst [vmem:[#allocation4 + $0x44] sm:$0xf] %v4616
          %4873 = vst [vmem:[#allocation4 + $0x48] sm:$0xf] %v4617
          %4874 = vst [vmem:[#allocation4 + $0x4c] sm:$0xf] %v4618
          %4875 = vst [vmem:[#allocation4 + $0x50] sm:$0xf] %v4619
          %4876 = vst [vmem:[#allocation4 + $0x54] sm:$0xf] %v4620
          %4877 = vst [vmem:[#allocation4 + $0x58] sm:$0xf] %v4621
          %4878 = vst [vmem:[#allocation4 + $0x5c] sm:$0xf] %v4622
          %4879 = vst [vmem:[#allocation4 + $0x60] sm:$0xf] %v4623
          %4880 = vst [vmem:[#allocation4 + $0x64] sm:$0xf] %v4624
          %4881 = vst [vmem:[#allocation4 + $0x68] sm:$0xf] %v4625
          %4882 = vst [vmem:[#allocation4 + $0x6c] sm:$0xf] %v4626
          %4883 = vst [vmem:[#allocation4 + $0x70] sm:$0xf] %v4627
          %4884 = vst [vmem:[#allocation4 + $0x74] sm:$0xf] %v4628
          %4885 = vst [vmem:[#allocation4 + $0x78] sm:$0xf] %v4629
          %4886 = vst [vmem:[#allocation4 + $0x7c] sm:$0xf] %v4630
          %4887 = vst [vmem:[#allocation4 + $0x80] sm:$0xf] %v4631
          %4888 = vst [vmem:[#allocation4 + $0x84] sm:$0xf] %v4632
          %4889 = vst [vmem:[#allocation4 + $0x88] sm:$0xf] %v4633
          %4890 = vst [vmem:[#allocation4 + $0x8c] sm:$0xf] %v4634
          %4891 = vst [vmem:[#allocation4 + $0x90] sm:$0xf] %v4635
          %4892 = vst [vmem:[#allocation4 + $0x94] sm:$0xf] %v4636
          %4893 = vst [vmem:[#allocation4 + $0x98] sm:$0xf] %v4637
          %4894 = vst [vmem:[#allocation4 + $0x9c] sm:$0xf] %v4638
          %4895 = vst [vmem:[#allocation4 + $0xa0] sm:$0xf] %v4639
          %4896 = vst [vmem:[#allocation4 + $0xa4] sm:$0xf] %v4640
          %4897 = vst [vmem:[#allocation4 + $0xa8] sm:$0xf] %v4641
          %4898 = vst [vmem:[#allocation4 + $0xac] sm:$0xf] %v4642
          %4899 = vst [vmem:[#allocation4 + $0xb0] sm:$0xf] %v4643
          %4900 = vst [vmem:[#allocation4 + $0xb4] sm:$0xf] %v4644
          %4901 = vst [vmem:[#allocation4 + $0xb8] sm:$0xf] %v4645
          %4902 = vst [vmem:[#allocation4 + $0xbc] sm:$0xf] %v4646
          %4903 = vst [vmem:[#allocation4 + $0xc0] sm:$0xf] %v4647
          %4904 = vst [vmem:[#allocation4 + $0xc4] sm:$0xf] %v4648
          %4905 = vst [vmem:[#allocation4 + $0xc8] sm:$0xf] %v4649
          %4906 = vst [vmem:[#allocation4 + $0xcc] sm:$0xf] %v4650
          %4907 = vst [vmem:[#allocation4 + $0xd0] sm:$0xf] %v4651
          %4908 = vst [vmem:[#allocation4 + $0xd4] sm:$0xf] %v4652
          %4909 = vst [vmem:[#allocation4 + $0xd8] sm:$0xf] %v4653
          %4910 = vst [vmem:[#allocation4 + $0xdc] sm:$0xf] %v4654
          %4911 = vst [vmem:[#allocation4 + $0xe0] sm:$0xf] %v4655
          %4912 = vst [vmem:[#allocation4 + $0xe4] sm:$0xf] %v4656
          %4913 = vst [vmem:[#allocation4 + $0xe8] sm:$0xf] %v4657
          %4914 = vst [vmem:[#allocation4 + $0xec] sm:$0xf] %v4658
          %4915 = vst [vmem:[#allocation4 + $0xf0] sm:$0xf] %v4659
          %4916 = vst [vmem:[#allocation4 + $0xf4] sm:$0xf] %v4660
          %4917 = vst [vmem:[#allocation4 + $0xf8] sm:$0xf] %v4661
          %4918 = vst [vmem:[#allocation4 + $0xfc] sm:$0xf] %v4662
          %4919 = vst [vmem:[#allocation4 + $0x100] sm:$0xf] %v4663
          %4920 = vst [vmem:[#allocation4 + $0x104] sm:$0xf] %v4664
          %4921 = vst [vmem:[#allocation4 + $0x108] sm:$0xf] %v4665
          %4922 = vst [vmem:[#allocation4 + $0x10c] sm:$0xf] %v4666
          %4923 = vst [vmem:[#allocation4 + $0x110] sm:$0xf] %v4667
          %4924 = vst [vmem:[#allocation4 + $0x114] sm:$0xf] %v4668
          %4925 = vst [vmem:[#allocation4 + $0x118] sm:$0xf] %v4669
          %4926 = vst [vmem:[#allocation4 + $0x11c] sm:$0xf] %v4670
          %4927 = vst [vmem:[#allocation4 + $0x120] sm:$0xf] %v4671
          %4928 = vst [vmem:[#allocation4 + $0x124] sm:$0xf] %v4672
          %4929 = vst [vmem:[#allocation4 + $0x128] sm:$0xf] %v4673
          %4930 = vst [vmem:[#allocation4 + $0x12c] sm:$0xf] %v4674
          %4931 = vst [vmem:[#allocation4 + $0x130] sm:$0xf] %v4675
          %4932 = vst [vmem:[#allocation4 + $0x134] sm:$0xf] %v4676
          %4933 = vst [vmem:[#allocation4 + $0x138] sm:$0xf] %v4677
          %4934 = vst [vmem:[#allocation4 + $0x13c] sm:$0xf] %v4678
          %4935 = vst [vmem:[#allocation4 + $0x140] sm:$0xf] %v4679
          %4936 = vst [vmem:[#allocation4 + $0x144] sm:$0xf] %v4680
          %4937 = vst [vmem:[#allocation4 + $0x148] sm:$0xf] %v4681
          %4938 = vst [vmem:[#allocation4 + $0x14c] sm:$0xf] %v4682
          %4939 = vst [vmem:[#allocation4 + $0x150] sm:$0xf] %v4683
          %4940 = vst [vmem:[#allocation4 + $0x154] sm:$0xf] %v4684
          %4941 = vst [vmem:[#allocation4 + $0x158] sm:$0xf] %v4685
          %4942 = vst [vmem:[#allocation4 + $0x15c] sm:$0xf] %v4686
          %4943 = vst [vmem:[#allocation4 + $0x160] sm:$0xf] %v4687
          %4944 = vst [vmem:[#allocation4 + $0x164] sm:$0xf] %v4688
          %4945 = vst [vmem:[#allocation4 + $0x168] sm:$0xf] %v4689
          %4946 = vst [vmem:[#allocation4 + $0x16c] sm:$0xf] %v4690
          %4947 = vst [vmem:[#allocation4 + $0x170] sm:$0xf] %v4691
          %4948 = vst [vmem:[#allocation4 + $0x174] sm:$0xf] %v4692
          %4949 = vst [vmem:[#allocation4 + $0x178] sm:$0xf] %v4693
          %4950 = vst [vmem:[#allocation4 + $0x17c] sm:$0xf] %v4694
          %4951 = vst [vmem:[#allocation4 + $0x180] sm:$0xf] %v4695
          %4952 = vst [vmem:[#allocation4 + $0x184] sm:$0xf] %v4696
          %4953 = vst [vmem:[#allocation4 + $0x188] sm:$0xf] %v4697
          %4954 = vst [vmem:[#allocation4 + $0x18c] sm:$0xf] %v4698
          %4955 = vst [vmem:[#allocation4 + $0x190] sm:$0xf] %v4699
          %4956 = vst [vmem:[#allocation4 + $0x194] sm:$0xf] %v4700
          %4957 = vst [vmem:[#allocation4 + $0x198] sm:$0xf] %v4701
          %4958 = vst [vmem:[#allocation4 + $0x19c] sm:$0xf] %v4702
          %4959 = vst [vmem:[#allocation4 + $0x1a0] sm:$0xf] %v4703
          %4960 = vst [vmem:[#allocation4 + $0x1a4] sm:$0xf] %v4704
          %4961 = vst [vmem:[#allocation4 + $0x1a8] sm:$0xf] %v4705
          %4962 = vst [vmem:[#allocation4 + $0x1ac] sm:$0xf] %v4706
          %4963 = vst [vmem:[#allocation4 + $0x1b0] sm:$0xf] %v4707
          %4964 = vst [vmem:[#allocation4 + $0x1b4] sm:$0xf] %v4708
          %4965 = vst [vmem:[#allocation4 + $0x1b8] sm:$0xf] %v4709
          %4966 = vst [vmem:[#allocation4 + $0x1bc] sm:$0xf] %v4710
          %4967 = vst [vmem:[#allocation4 + $0x1c0] sm:$0xf] %v4711
          %4968 = vst [vmem:[#allocation4 + $0x1c4] sm:$0xf] %v4712
          %4969 = vst [vmem:[#allocation4 + $0x1c8] sm:$0xf] %v4713
          %4970 = vst [vmem:[#allocation4 + $0x1cc] sm:$0xf] %v4714
          %4971 = vst [vmem:[#allocation4 + $0x1d0] sm:$0xf] %v4715
          %4972 = vst [vmem:[#allocation4 + $0x1d4] sm:$0xf] %v4716
          %4973 = vst [vmem:[#allocation4 + $0x1d8] sm:$0xf] %v4717
          %4974 = vst [vmem:[#allocation4 + $0x1dc] sm:$0xf] %v4718
          %4975 = vst [vmem:[#allocation4 + $0x1e0] sm:$0xf] %v4719
          %4976 = vst [vmem:[#allocation4 + $0x1e4] sm:$0xf] %v4720
          %4977 = vst [vmem:[#allocation4 + $0x1e8] sm:$0xf] %v4721
          %4978 = vst [vmem:[#allocation4 + $0x1ec] sm:$0xf] %v4722
          %4979 = vst [vmem:[#allocation4 + $0x1f0] sm:$0xf] %v4723
          %4980 = vst [vmem:[#allocation4 + $0x1f4] sm:$0xf] %v4724
          %4981 = vst [vmem:[#allocation4 + $0x1f8] sm:$0xf] %v4725
          %4982 = vst [vmem:[#allocation4 + $0x1fc] sm:$0xf] %v4726
        $region64: #{attn_block.1} parent=55 // pred_fallthru
          _
        %s4983 = smul.u32 %s31, 256
        %s4984 = sshra.s32 %s4983, 3
        %s4985 = sand.u32 %s4983, 7
        %s4986 = smul.addr %s4984, 4
        %s4987 = scalar_lea.vmem [#allocation2], %s4986
        %v4988 = vld [vmem:[%s4987] sm:$0xf]
        %v4989 = vld [vmem:[%s4987 + $0x4] sm:$0xf]
        %v4990 = vld [vmem:[%s4987 + $0x8] sm:$0xf]
        %v4991 = vld [vmem:[%s4987 + $0xc] sm:$0xf]
        %v4992 = vld [vmem:[%s4987 + $0x10] sm:$0xf]
        %v4993 = vld [vmem:[%s4987 + $0x14] sm:$0xf]
        %v4994 = vld [vmem:[%s4987 + $0x18] sm:$0xf]
        %v4995 = vld [vmem:[%s4987 + $0x1c] sm:$0xf]
        %v4996 = vld [vmem:[%s4987 + $0x20] sm:$0xf]
        %v4997 = vld [vmem:[%s4987 + $0x24] sm:$0xf]
        %v4998 = vld [vmem:[%s4987 + $0x28] sm:$0xf]
        %v4999 = vld [vmem:[%s4987 + $0x2c] sm:$0xf]
        %v5000 = vld [vmem:[%s4987 + $0x30] sm:$0xf]
        %v5001 = vld [vmem:[%s4987 + $0x34] sm:$0xf]
        %v5002 = vld [vmem:[%s4987 + $0x38] sm:$0xf]
        %v5003 = vld [vmem:[%s4987 + $0x3c] sm:$0xf]
        %v5004 = vld [vmem:[%s4987 + $0x40] sm:$0xf]
        %v5005 = vld [vmem:[%s4987 + $0x44] sm:$0xf]
        %v5006 = vld [vmem:[%s4987 + $0x48] sm:$0xf]
        %v5007 = vld [vmem:[%s4987 + $0x4c] sm:$0xf]
        %v5008 = vld [vmem:[%s4987 + $0x50] sm:$0xf]
        %v5009 = vld [vmem:[%s4987 + $0x54] sm:$0xf]
        %v5010 = vld [vmem:[%s4987 + $0x58] sm:$0xf]
        %v5011 = vld [vmem:[%s4987 + $0x5c] sm:$0xf]
        %v5012 = vld [vmem:[%s4987 + $0x60] sm:$0xf]
        %v5013 = vld [vmem:[%s4987 + $0x64] sm:$0xf]
        %v5014 = vld [vmem:[%s4987 + $0x68] sm:$0xf]
        %v5015 = vld [vmem:[%s4987 + $0x6c] sm:$0xf]
        %v5016 = vld [vmem:[%s4987 + $0x70] sm:$0xf]
        %v5017 = vld [vmem:[%s4987 + $0x74] sm:$0xf]
        %v5018 = vld [vmem:[%s4987 + $0x78] sm:$0xf]
        %v5019 = vld [vmem:[%s4987 + $0x7c] sm:$0xf]
        %v5020 = vld [vmem:[#allocation3] sm:$0xf]
        %v5021 = vld [vmem:[#allocation3 + $0x4] sm:$0xf]
        %v5022 = vld [vmem:[#allocation3 + $0x8] sm:$0xf]
        %v5023 = vld [vmem:[#allocation3 + $0xc] sm:$0xf]
        %v5024 = vld [vmem:[#allocation3 + $0x10] sm:$0xf]
        %v5025 = vld [vmem:[#allocation3 + $0x14] sm:$0xf]
        %v5026 = vld [vmem:[#allocation3 + $0x18] sm:$0xf]
        %v5027 = vld [vmem:[#allocation3 + $0x1c] sm:$0xf]
        %v5028 = vld [vmem:[#allocation3 + $0x20] sm:$0xf]
        %v5029 = vld [vmem:[#allocation3 + $0x24] sm:$0xf]
        %v5030 = vld [vmem:[#allocation3 + $0x28] sm:$0xf]
        %v5031 = vld [vmem:[#allocation3 + $0x2c] sm:$0xf]
        %v5032 = vld [vmem:[#allocation3 + $0x30] sm:$0xf]
        %v5033 = vld [vmem:[#allocation3 + $0x34] sm:$0xf]
        %v5034 = vld [vmem:[#allocation3 + $0x38] sm:$0xf]
        %v5035 = vld [vmem:[#allocation3 + $0x3c] sm:$0xf]
        %v5036 = vld [vmem:[#allocation3 + $0x40] sm:$0xf]
        %v5037 = vld [vmem:[#allocation3 + $0x44] sm:$0xf]
        %v5038 = vld [vmem:[#allocation3 + $0x48] sm:$0xf]
        %v5039 = vld [vmem:[#allocation3 + $0x4c] sm:$0xf]
        %v5040 = vld [vmem:[#allocation3 + $0x50] sm:$0xf]
        %v5041 = vld [vmem:[#allocation3 + $0x54] sm:$0xf]
        %v5042 = vld [vmem:[#allocation3 + $0x58] sm:$0xf]
        %v5043 = vld [vmem:[#allocation3 + $0x5c] sm:$0xf]
        %v5044 = vld [vmem:[#allocation3 + $0x60] sm:$0xf]
        %v5045 = vld [vmem:[#allocation3 + $0x64] sm:$0xf]
        %v5046 = vld [vmem:[#allocation3 + $0x68] sm:$0xf]
        %v5047 = vld [vmem:[#allocation3 + $0x6c] sm:$0xf]
        %v5048 = vld [vmem:[#allocation3 + $0x70] sm:$0xf]
        %v5049 = vld [vmem:[#allocation3 + $0x74] sm:$0xf]
        %v5050 = vld [vmem:[#allocation3 + $0x78] sm:$0xf]
        %v5051 = vld [vmem:[#allocation3 + $0x7c] sm:$0xf]
        %v5052 = vld [vmem:[#allocation3 + $0x80] sm:$0xf]
        %v5053 = vld [vmem:[#allocation3 + $0x84] sm:$0xf]
        %v5054 = vld [vmem:[#allocation3 + $0x88] sm:$0xf]
        %v5055 = vld [vmem:[#allocation3 + $0x8c] sm:$0xf]
        %v5056 = vld [vmem:[#allocation3 + $0x90] sm:$0xf]
        %v5057 = vld [vmem:[#allocation3 + $0x94] sm:$0xf]
        %v5058 = vld [vmem:[#allocation3 + $0x98] sm:$0xf]
        %v5059 = vld [vmem:[#allocation3 + $0x9c] sm:$0xf]
        %v5060 = vld [vmem:[#allocation3 + $0xa0] sm:$0xf]
        %v5061 = vld [vmem:[#allocation3 + $0xa4] sm:$0xf]
        %v5062 = vld [vmem:[#allocation3 + $0xa8] sm:$0xf]
        %v5063 = vld [vmem:[#allocation3 + $0xac] sm:$0xf]
        %v5064 = vld [vmem:[#allocation3 + $0xb0] sm:$0xf]
        %v5065 = vld [vmem:[#allocation3 + $0xb4] sm:$0xf]
        %v5066 = vld [vmem:[#allocation3 + $0xb8] sm:$0xf]
        %v5067 = vld [vmem:[#allocation3 + $0xbc] sm:$0xf]
        %v5068 = vld [vmem:[#allocation3 + $0xc0] sm:$0xf]
        %v5069 = vld [vmem:[#allocation3 + $0xc4] sm:$0xf]
        %v5070 = vld [vmem:[#allocation3 + $0xc8] sm:$0xf]
        %v5071 = vld [vmem:[#allocation3 + $0xcc] sm:$0xf]
        %v5072 = vld [vmem:[#allocation3 + $0xd0] sm:$0xf]
        %v5073 = vld [vmem:[#allocation3 + $0xd4] sm:$0xf]
        %v5074 = vld [vmem:[#allocation3 + $0xd8] sm:$0xf]
        %v5075 = vld [vmem:[#allocation3 + $0xdc] sm:$0xf]
        %v5076 = vld [vmem:[#allocation3 + $0xe0] sm:$0xf]
        %v5077 = vld [vmem:[#allocation3 + $0xe4] sm:$0xf]
        %v5078 = vld [vmem:[#allocation3 + $0xe8] sm:$0xf]
        %v5079 = vld [vmem:[#allocation3 + $0xec] sm:$0xf]
        %v5080 = vld [vmem:[#allocation3 + $0xf0] sm:$0xf]
        %v5081 = vld [vmem:[#allocation3 + $0xf4] sm:$0xf]
        %v5082 = vld [vmem:[#allocation3 + $0xf8] sm:$0xf]
        %v5083 = vld [vmem:[#allocation3 + $0xfc] sm:$0xf]
        %v5084 = vld [vmem:[#allocation3 + $0x100] sm:$0xf]
        %v5085 = vld [vmem:[#allocation3 + $0x104] sm:$0xf]
        %v5086 = vld [vmem:[#allocation3 + $0x108] sm:$0xf]
        %v5087 = vld [vmem:[#allocation3 + $0x10c] sm:$0xf]
        %v5088 = vld [vmem:[#allocation3 + $0x110] sm:$0xf]
        %v5089 = vld [vmem:[#allocation3 + $0x114] sm:$0xf]
        %v5090 = vld [vmem:[#allocation3 + $0x118] sm:$0xf]
        %v5091 = vld [vmem:[#allocation3 + $0x11c] sm:$0xf]
        %v5092 = vld [vmem:[#allocation3 + $0x120] sm:$0xf]
        %v5093 = vld [vmem:[#allocation3 + $0x124] sm:$0xf]
        %v5094 = vld [vmem:[#allocation3 + $0x128] sm:$0xf]
        %v5095 = vld [vmem:[#allocation3 + $0x12c] sm:$0xf]
        %v5096 = vld [vmem:[#allocation3 + $0x130] sm:$0xf]
        %v5097 = vld [vmem:[#allocation3 + $0x134] sm:$0xf]
        %v5098 = vld [vmem:[#allocation3 + $0x138] sm:$0xf]
        %v5099 = vld [vmem:[#allocation3 + $0x13c] sm:$0xf]
        %v5100 = vld [vmem:[#allocation3 + $0x140] sm:$0xf]
        %v5101 = vld [vmem:[#allocation3 + $0x144] sm:$0xf]
        %v5102 = vld [vmem:[#allocation3 + $0x148] sm:$0xf]
        %v5103 = vld [vmem:[#allocation3 + $0x14c] sm:$0xf]
        %v5104 = vld [vmem:[#allocation3 + $0x150] sm:$0xf]
        %v5105 = vld [vmem:[#allocation3 + $0x154] sm:$0xf]
        %v5106 = vld [vmem:[#allocation3 + $0x158] sm:$0xf]
        %v5107 = vld [vmem:[#allocation3 + $0x15c] sm:$0xf]
        %v5108 = vld [vmem:[#allocation3 + $0x160] sm:$0xf]
        %v5109 = vld [vmem:[#allocation3 + $0x164] sm:$0xf]
        %v5110 = vld [vmem:[#allocation3 + $0x168] sm:$0xf]
        %v5111 = vld [vmem:[#allocation3 + $0x16c] sm:$0xf]
        %v5112 = vld [vmem:[#allocation3 + $0x170] sm:$0xf]
        %v5113 = vld [vmem:[#allocation3 + $0x174] sm:$0xf]
        %v5114 = vld [vmem:[#allocation3 + $0x178] sm:$0xf]
        %v5115 = vld [vmem:[#allocation3 + $0x17c] sm:$0xf]
        %v5116 = vld [vmem:[#allocation3 + $0x180] sm:$0xf]
        %v5117 = vld [vmem:[#allocation3 + $0x184] sm:$0xf]
        %v5118 = vld [vmem:[#allocation3 + $0x188] sm:$0xf]
        %v5119 = vld [vmem:[#allocation3 + $0x18c] sm:$0xf]
        %v5120 = vld [vmem:[#allocation3 + $0x190] sm:$0xf]
        %v5121 = vld [vmem:[#allocation3 + $0x194] sm:$0xf]
        %v5122 = vld [vmem:[#allocation3 + $0x198] sm:$0xf]
        %v5123 = vld [vmem:[#allocation3 + $0x19c] sm:$0xf]
        %v5124 = vld [vmem:[#allocation3 + $0x1a0] sm:$0xf]
        %v5125 = vld [vmem:[#allocation3 + $0x1a4] sm:$0xf]
        %v5126 = vld [vmem:[#allocation3 + $0x1a8] sm:$0xf]
        %v5127 = vld [vmem:[#allocation3 + $0x1ac] sm:$0xf]
        %v5128 = vld [vmem:[#allocation3 + $0x1b0] sm:$0xf]
        %v5129 = vld [vmem:[#allocation3 + $0x1b4] sm:$0xf]
        %v5130 = vld [vmem:[#allocation3 + $0x1b8] sm:$0xf]
        %v5131 = vld [vmem:[#allocation3 + $0x1bc] sm:$0xf]
        %v5132 = vld [vmem:[#allocation3 + $0x1c0] sm:$0xf]
        %v5133 = vld [vmem:[#allocation3 + $0x1c4] sm:$0xf]
        %v5134 = vld [vmem:[#allocation3 + $0x1c8] sm:$0xf]
        %v5135 = vld [vmem:[#allocation3 + $0x1cc] sm:$0xf]
        %v5136 = vld [vmem:[#allocation3 + $0x1d0] sm:$0xf]
        %v5137 = vld [vmem:[#allocation3 + $0x1d4] sm:$0xf]
        %v5138 = vld [vmem:[#allocation3 + $0x1d8] sm:$0xf]
        %v5139 = vld [vmem:[#allocation3 + $0x1dc] sm:$0xf]
        %v5140 = vld [vmem:[#allocation3 + $0x1e0] sm:$0xf]
        %v5141 = vld [vmem:[#allocation3 + $0x1e4] sm:$0xf]
        %v5142 = vld [vmem:[#allocation3 + $0x1e8] sm:$0xf]
        %v5143 = vld [vmem:[#allocation3 + $0x1ec] sm:$0xf]
        %v5144 = vld [vmem:[#allocation3 + $0x1f0] sm:$0xf]
        %v5145 = vld [vmem:[#allocation3 + $0x1f4] sm:$0xf]
        %v5146 = vld [vmem:[#allocation3 + $0x1f8] sm:$0xf]
        %v5147 = vld [vmem:[#allocation3 + $0x1fc] sm:$0xf]
        %v5180 = vunpack.c.l.b16 %v4988
        %v5181 = vunpack.c.l.b16 %v4989
        %v5182 = vunpack.c.l.b16 %v4990
        %v5183 = vunpack.c.l.b16 %v4991
        %v5184 = vunpack.c.l.b16 %v4992
        %v5185 = vunpack.c.l.b16 %v4993
        %v5186 = vunpack.c.l.b16 %v4994
        %v5187 = vunpack.c.l.b16 %v4995
        %v5188 = vunpack.c.l.b16 %v4996
        %v5189 = vunpack.c.l.b16 %v4997
        %v5190 = vunpack.c.l.b16 %v4998
        %v5191 = vunpack.c.l.b16 %v4999
        %v5192 = vunpack.c.l.b16 %v5000
        %v5193 = vunpack.c.l.b16 %v5001
        %v5194 = vunpack.c.l.b16 %v5002
        %v5195 = vunpack.c.l.b16 %v5003
        %v5196 = vunpack.c.l.b16 %v5004
        %v5197 = vunpack.c.l.b16 %v5005
        %v5198 = vunpack.c.l.b16 %v5006
        %v5199 = vunpack.c.l.b16 %v5007
        %v5200 = vunpack.c.l.b16 %v5008
        %v5201 = vunpack.c.l.b16 %v5009
        %v5202 = vunpack.c.l.b16 %v5010
        %v5203 = vunpack.c.l.b16 %v5011
        %v5204 = vunpack.c.l.b16 %v5012
        %v5205 = vunpack.c.l.b16 %v5013
        %v5206 = vunpack.c.l.b16 %v5014
        %v5207 = vunpack.c.l.b16 %v5015
        %v5208 = vunpack.c.l.b16 %v5016
        %v5209 = vunpack.c.l.b16 %v5017
        %v5210 = vunpack.c.l.b16 %v5018
        %v5211 = vunpack.c.l.b16 %v5019
        %v5212 = vpack.c.b16 %v5181, %v5180
        %v5213 = vpack.c.b16 %v5183, %v5182
        %v5214 = vpack.c.b16 %v5185, %v5184
        %v5215 = vpack.c.b16 %v5187, %v5186
        %v5216 = vpack.c.b16 %v5189, %v5188
        %v5217 = vpack.c.b16 %v5191, %v5190
        %v5218 = vpack.c.b16 %v5193, %v5192
        %v5219 = vpack.c.b16 %v5195, %v5194
        %v5220 = vpack.c.b16 %v5197, %v5196
        %v5221 = vpack.c.b16 %v5199, %v5198
        %v5222 = vpack.c.b16 %v5201, %v5200
        %v5223 = vpack.c.b16 %v5203, %v5202
        %v5224 = vpack.c.b16 %v5205, %v5204
        %v5225 = vpack.c.b16 %v5207, %v5206
        %v5226 = vpack.c.b16 %v5209, %v5208
        %v5227 = vpack.c.b16 %v5211, %v5210
        %v5372 = vunpack.c.l.b16 %v5020
        %v5373 = vunpack.c.l.b16 %v5021
        %v5374 = vunpack.c.l.b16 %v5022
        %v5375 = vunpack.c.l.b16 %v5023
        %v5376 = vunpack.c.l.b16 %v5024
        %v5377 = vunpack.c.l.b16 %v5025
        %v5378 = vunpack.c.l.b16 %v5026
        %v5379 = vunpack.c.l.b16 %v5027
        %v5380 = vunpack.c.l.b16 %v5028
        %v5381 = vunpack.c.l.b16 %v5029
        %v5382 = vunpack.c.l.b16 %v5030
        %v5383 = vunpack.c.l.b16 %v5031
        %v5384 = vunpack.c.l.b16 %v5032
        %v5385 = vunpack.c.l.b16 %v5033
        %v5386 = vunpack.c.l.b16 %v5034
        %v5387 = vunpack.c.l.b16 %v5035
        %v5388 = vunpack.c.l.b16 %v5036
        %v5389 = vunpack.c.l.b16 %v5037
        %v5390 = vunpack.c.l.b16 %v5038
        %v5391 = vunpack.c.l.b16 %v5039
        %v5392 = vunpack.c.l.b16 %v5040
        %v5393 = vunpack.c.l.b16 %v5041
        %v5394 = vunpack.c.l.b16 %v5042
        %v5395 = vunpack.c.l.b16 %v5043
        %v5396 = vunpack.c.l.b16 %v5044
        %v5397 = vunpack.c.l.b16 %v5045
        %v5398 = vunpack.c.l.b16 %v5046
        %v5399 = vunpack.c.l.b16 %v5047
        %v5400 = vunpack.c.l.b16 %v5048
        %v5401 = vunpack.c.l.b16 %v5049
        %v5402 = vunpack.c.l.b16 %v5050
        %v5403 = vunpack.c.l.b16 %v5051
        %v5404 = vunpack.c.l.b16 %v5052
        %v5405 = vunpack.c.l.b16 %v5053
        %v5406 = vunpack.c.l.b16 %v5054
        %v5407 = vunpack.c.l.b16 %v5055
        %v5408 = vunpack.c.l.b16 %v5056
        %v5409 = vunpack.c.l.b16 %v5057
        %v5410 = vunpack.c.l.b16 %v5058
        %v5411 = vunpack.c.l.b16 %v5059
        %v5412 = vunpack.c.l.b16 %v5060
        %v5413 = vunpack.c.l.b16 %v5061
        %v5414 = vunpack.c.l.b16 %v5062
        %v5415 = vunpack.c.l.b16 %v5063
        %v5416 = vunpack.c.l.b16 %v5064
        %v5417 = vunpack.c.l.b16 %v5065
        %v5418 = vunpack.c.l.b16 %v5066
        %v5419 = vunpack.c.l.b16 %v5067
        %v5420 = vunpack.c.l.b16 %v5068
        %v5421 = vunpack.c.l.b16 %v5069
        %v5422 = vunpack.c.l.b16 %v5070
        %v5423 = vunpack.c.l.b16 %v5071
        %v5424 = vunpack.c.l.b16 %v5072
        %v5425 = vunpack.c.l.b16 %v5073
        %v5426 = vunpack.c.l.b16 %v5074
        %v5427 = vunpack.c.l.b16 %v5075
        %v5428 = vunpack.c.l.b16 %v5076
        %v5429 = vunpack.c.l.b16 %v5077
        %v5430 = vunpack.c.l.b16 %v5078
        %v5431 = vunpack.c.l.b16 %v5079
        %v5432 = vunpack.c.l.b16 %v5080
        %v5433 = vunpack.c.l.b16 %v5081
        %v5434 = vunpack.c.l.b16 %v5082
        %v5435 = vunpack.c.l.b16 %v5083
        %v5436 = vunpack.c.l.b16 %v5084
        %v5437 = vunpack.c.l.b16 %v5085
        %v5438 = vunpack.c.l.b16 %v5086
        %v5439 = vunpack.c.l.b16 %v5087
        %v5440 = vunpack.c.l.b16 %v5088
        %v5441 = vunpack.c.l.b16 %v5089
        %v5442 = vunpack.c.l.b16 %v5090
        %v5443 = vunpack.c.l.b16 %v5091
        %v5444 = vunpack.c.l.b16 %v5092
        %v5445 = vunpack.c.l.b16 %v5093
        %v5446 = vunpack.c.l.b16 %v5094
        %v5447 = vunpack.c.l.b16 %v5095
        %v5448 = vunpack.c.l.b16 %v5096
        %v5449 = vunpack.c.l.b16 %v5097
        %v5450 = vunpack.c.l.b16 %v5098
        %v5451 = vunpack.c.l.b16 %v5099
        %v5452 = vunpack.c.l.b16 %v5100
        %v5453 = vunpack.c.l.b16 %v5101
        %v5454 = vunpack.c.l.b16 %v5102
        %v5455 = vunpack.c.l.b16 %v5103
        %v5456 = vunpack.c.l.b16 %v5104
        %v5457 = vunpack.c.l.b16 %v5105
        %v5458 = vunpack.c.l.b16 %v5106
        %v5459 = vunpack.c.l.b16 %v5107
        %v5460 = vunpack.c.l.b16 %v5108
        %v5461 = vunpack.c.l.b16 %v5109
        %v5462 = vunpack.c.l.b16 %v5110
        %v5463 = vunpack.c.l.b16 %v5111
        %v5464 = vunpack.c.l.b16 %v5112
        %v5465 = vunpack.c.l.b16 %v5113
        %v5466 = vunpack.c.l.b16 %v5114
        %v5467 = vunpack.c.l.b16 %v5115
        %v5468 = vunpack.c.l.b16 %v5116
        %v5469 = vunpack.c.l.b16 %v5117
        %v5470 = vunpack.c.l.b16 %v5118
        %v5471 = vunpack.c.l.b16 %v5119
        %v5472 = vunpack.c.l.b16 %v5120
        %v5473 = vunpack.c.l.b16 %v5121
        %v5474 = vunpack.c.l.b16 %v5122
        %v5475 = vunpack.c.l.b16 %v5123
        %v5476 = vunpack.c.l.b16 %v5124
        %v5477 = vunpack.c.l.b16 %v5125
        %v5478 = vunpack.c.l.b16 %v5126
        %v5479 = vunpack.c.l.b16 %v5127
        %v5480 = vunpack.c.l.b16 %v5128
        %v5481 = vunpack.c.l.b16 %v5129
        %v5482 = vunpack.c.l.b16 %v5130
        %v5483 = vunpack.c.l.b16 %v5131
        %v5484 = vunpack.c.l.b16 %v5132
        %v5485 = vunpack.c.l.b16 %v5133
        %v5486 = vunpack.c.l.b16 %v5134
        %v5487 = vunpack.c.l.b16 %v5135
        %v5488 = vunpack.c.l.b16 %v5136
        %v5489 = vunpack.c.l.b16 %v5137
        %v5490 = vunpack.c.l.b16 %v5138
        %v5491 = vunpack.c.l.b16 %v5139
        %v5492 = vunpack.c.l.b16 %v5140
        %v5493 = vunpack.c.l.b16 %v5141
        %v5494 = vunpack.c.l.b16 %v5142
        %v5495 = vunpack.c.l.b16 %v5143
        %v5496 = vunpack.c.l.b16 %v5144
        %v5497 = vunpack.c.l.b16 %v5145
        %v5498 = vunpack.c.l.b16 %v5146
        %v5499 = vunpack.c.l.b16 %v5147
        %v5500 = vpack.c.b16 %v5373, %v5372
        %v5501 = vpack.c.b16 %v5375, %v5374
        %v5502 = vpack.c.b16 %v5377, %v5376
        %v5503 = vpack.c.b16 %v5379, %v5378
        %v5504 = vpack.c.b16 %v5381, %v5380
        %v5505 = vpack.c.b16 %v5383, %v5382
        %v5506 = vpack.c.b16 %v5385, %v5384
        %v5507 = vpack.c.b16 %v5387, %v5386
        %v5508 = vpack.c.b16 %v5389, %v5388
        %v5509 = vpack.c.b16 %v5391, %v5390
        %v5510 = vpack.c.b16 %v5393, %v5392
        %v5511 = vpack.c.b16 %v5395, %v5394
        %v5512 = vpack.c.b16 %v5397, %v5396
        %v5513 = vpack.c.b16 %v5399, %v5398
        %v5514 = vpack.c.b16 %v5401, %v5400
        %v5515 = vpack.c.b16 %v5403, %v5402
        %v5516 = vpack.c.b16 %v5405, %v5404
        %v5517 = vpack.c.b16 %v5407, %v5406
        %v5518 = vpack.c.b16 %v5409, %v5408
        %v5519 = vpack.c.b16 %v5411, %v5410
        %v5520 = vpack.c.b16 %v5413, %v5412
        %v5521 = vpack.c.b16 %v5415, %v5414
        %v5522 = vpack.c.b16 %v5417, %v5416
        %v5523 = vpack.c.b16 %v5419, %v5418
        %v5524 = vpack.c.b16 %v5421, %v5420
        %v5525 = vpack.c.b16 %v5423, %v5422
        %v5526 = vpack.c.b16 %v5425, %v5424
        %v5527 = vpack.c.b16 %v5427, %v5426
        %v5528 = vpack.c.b16 %v5429, %v5428
        %v5529 = vpack.c.b16 %v5431, %v5430
        %v5530 = vpack.c.b16 %v5433, %v5432
        %v5531 = vpack.c.b16 %v5435, %v5434
        %v5532 = vpack.c.b16 %v5437, %v5436
        %v5533 = vpack.c.b16 %v5439, %v5438
        %v5534 = vpack.c.b16 %v5441, %v5440
        %v5535 = vpack.c.b16 %v5443, %v5442
        %v5536 = vpack.c.b16 %v5445, %v5444
        %v5537 = vpack.c.b16 %v5447, %v5446
        %v5538 = vpack.c.b16 %v5449, %v5448
        %v5539 = vpack.c.b16 %v5451, %v5450
        %v5540 = vpack.c.b16 %v5453, %v5452
        %v5541 = vpack.c.b16 %v5455, %v5454
        %v5542 = vpack.c.b16 %v5457, %v5456
        %v5543 = vpack.c.b16 %v5459, %v5458
        %v5544 = vpack.c.b16 %v5461, %v5460
        %v5545 = vpack.c.b16 %v5463, %v5462
        %v5546 = vpack.c.b16 %v5465, %v5464
        %v5547 = vpack.c.b16 %v5467, %v5466
        %v5548 = vpack.c.b16 %v5469, %v5468
        %v5549 = vpack.c.b16 %v5471, %v5470
        %v5550 = vpack.c.b16 %v5473, %v5472
        %v5551 = vpack.c.b16 %v5475, %v5474
        %v5552 = vpack.c.b16 %v5477, %v5476
        %v5553 = vpack.c.b16 %v5479, %v5478
        %v5554 = vpack.c.b16 %v5481, %v5480
        %v5555 = vpack.c.b16 %v5483, %v5482
        %v5556 = vpack.c.b16 %v5485, %v5484
        %v5557 = vpack.c.b16 %v5487, %v5486
        %v5558 = vpack.c.b16 %v5489, %v5488
        %v5559 = vpack.c.b16 %v5491, %v5490
        %v5560 = vpack.c.b16 %v5493, %v5492
        %v5561 = vpack.c.b16 %v5495, %v5494
        %v5562 = vpack.c.b16 %v5497, %v5496
        %v5563 = vpack.c.b16 %v5499, %v5498
        %5628 = vmatprep.subr.bf16.mxu0 0
        %5629 = vmatpush1.bf16.xpose.msra.mxu0 %v5507
        %5630 = vmatprep.subr.bf16.mxu0 0
        %5631 = vmatpush1.bf16.xpose.msra.mxu0 %v5506
        %5632 = vmatprep.subr.bf16.mxu0 0
        %5633 = vmatpush1.bf16.xpose.msra.mxu0 %v5505
        %5634 = vmatprep.subr.bf16.mxu0 0
        %5635 = vmatpush1.bf16.xpose.msra.mxu0 %v5504
        %5636 = vmatprep.subr.bf16.mxu0 0
        %5637 = vmatpush1.bf16.xpose.msra.mxu0 %v5503
        %5638 = vmatprep.subr.bf16.mxu0 0
        %5639 = vmatpush1.bf16.xpose.msra.mxu0 %v5502
        %5640 = vmatprep.subr.bf16.mxu0 0
        %5641 = vmatpush1.bf16.xpose.msra.mxu0 %v5501
        %5642 = vmatprep.subr.bf16.mxu0 0
        %5643 = vmatpush1.bf16.xpose.msra.mxu0 %v5500
        %5644 = vmatprep.subr.bf16.mxu0 0
        %5645 = vmatpush2.bf16.xpose.msra.mxu0 %v5515
        %5646 = vmatprep.subr.bf16.mxu0 0
        %5647 = vmatpush2.bf16.xpose.msra.mxu0 %v5514
        %5648 = vmatprep.subr.bf16.mxu0 0
        %5649 = vmatpush2.bf16.xpose.msra.mxu0 %v5513
        %5650 = vmatprep.subr.bf16.mxu0 0
        %5651 = vmatpush2.bf16.xpose.msra.mxu0 %v5512
        %5652 = vmatprep.subr.bf16.mxu0 0
        %5653 = vmatpush2.bf16.xpose.msra.mxu0 %v5511
        %5654 = vmatprep.subr.bf16.mxu0 0
        %5655 = vmatpush2.bf16.xpose.msra.mxu0 %v5510
        %5656 = vmatprep.subr.bf16.mxu0 0
        %5657 = vmatpush2.bf16.xpose.msra.mxu0 %v5509
        %5658 = vmatprep.subr.bf16.mxu0 0
        %5659 = vmatpush2.bf16.xpose.msra.mxu0 %v5508
        %5660 = vmatprep.mubr.bf16.mxu0 0
        %5661 = vmatmul.mubr.bf16.gmra.mxu0 %v5212
        %v5662 = vpop.f32.mrf.mxu0
        %v5663 = vadd.f32 0.0, %v5662
        %v5664 = vpop.f32.mrf.mxu0
        %v5665 = vadd.f32 0.0, %v5664
        %v5666 = vpop.f32.mrf.mxu0
        %v5667 = vadd.f32 0.0, %v5666
        %v5668 = vpop.f32.mrf.mxu0
        %v5669 = vadd.f32 0.0, %v5668
        %5670 = vmatprep.mubr.bf16.mxu0 0
        %5671 = vmatmul.mubr.bf16.gmra.mxu0 %v5213
        %v5672 = vpop.f32.mrf.mxu0
        %v5673 = vadd.f32 0.0, %v5672
        %v5674 = vpop.f32.mrf.mxu0
        %v5675 = vadd.f32 0.0, %v5674
        %v5676 = vpop.f32.mrf.mxu0
        %v5677 = vadd.f32 0.0, %v5676
        %v5678 = vpop.f32.mrf.mxu0
        %v5679 = vadd.f32 0.0, %v5678
        %5680 = vmatprep.mubr.bf16.mxu0 0
        %5681 = vmatmul.mubr.bf16.gmra.mxu0 %v5214
        %v5682 = vpop.f32.mrf.mxu0
        %v5683 = vadd.f32 0.0, %v5682
        %v5684 = vpop.f32.mrf.mxu0
        %v5685 = vadd.f32 0.0, %v5684
        %v5686 = vpop.f32.mrf.mxu0
        %v5687 = vadd.f32 0.0, %v5686
        %v5688 = vpop.f32.mrf.mxu0
        %v5689 = vadd.f32 0.0, %v5688
        %5690 = vmatprep.mubr.bf16.mxu0 0
        %5691 = vmatmul.mubr.bf16.gmra.mxu0 %v5215
        %v5692 = vpop.f32.mrf.mxu0
        %v5693 = vadd.f32 0.0, %v5692
        %v5694 = vpop.f32.mrf.mxu0
        %v5695 = vadd.f32 0.0, %v5694
        %v5696 = vpop.f32.mrf.mxu0
        %v5697 = vadd.f32 0.0, %v5696
        %v5698 = vpop.f32.mrf.mxu0
        %v5699 = vadd.f32 0.0, %v5698
        %5700 = vmatprep.mubr.bf16.mxu0 0
        %5701 = vmatmul.mubr.bf16.gmra.mxu0 %v5216
        %v5702 = vpop.f32.mrf.mxu0
        %v5703 = vadd.f32 0.0, %v5702
        %v5704 = vpop.f32.mrf.mxu0
        %v5705 = vadd.f32 0.0, %v5704
        %v5706 = vpop.f32.mrf.mxu0
        %v5707 = vadd.f32 0.0, %v5706
        %v5708 = vpop.f32.mrf.mxu0
        %v5709 = vadd.f32 0.0, %v5708
        %5710 = vmatprep.mubr.bf16.mxu0 0
        %5711 = vmatmul.mubr.bf16.gmra.mxu0 %v5217
        %v5712 = vpop.f32.mrf.mxu0
        %v5713 = vadd.f32 0.0, %v5712
        %v5714 = vpop.f32.mrf.mxu0
        %v5715 = vadd.f32 0.0, %v5714
        %v5716 = vpop.f32.mrf.mxu0
        %v5717 = vadd.f32 0.0, %v5716
        %v5718 = vpop.f32.mrf.mxu0
        %v5719 = vadd.f32 0.0, %v5718
        %5720 = vmatprep.mubr.bf16.mxu0 0
        %5721 = vmatmul.mubr.bf16.gmra.mxu0 %v5218
        %v5722 = vpop.f32.mrf.mxu0
        %v5723 = vadd.f32 0.0, %v5722
        %v5724 = vpop.f32.mrf.mxu0
        %v5725 = vadd.f32 0.0, %v5724
        %v5726 = vpop.f32.mrf.mxu0
        %v5727 = vadd.f32 0.0, %v5726
        %v5728 = vpop.f32.mrf.mxu0
        %v5729 = vadd.f32 0.0, %v5728
        %5730 = vmatprep.mubr.bf16.mxu0 0
        %5731 = vmatmul.mubr.bf16.gmra.mxu0 %v5219
        %v5732 = vpop.f32.mrf.mxu0
        %v5733 = vadd.f32 0.0, %v5732
        %v5734 = vpop.f32.mrf.mxu0
        %v5735 = vadd.f32 0.0, %v5734
        %v5736 = vpop.f32.mrf.mxu0
        %v5737 = vadd.f32 0.0, %v5736
        %v5738 = vpop.f32.mrf.mxu0
        %v5739 = vadd.f32 0.0, %v5738
        %5740 = vmatprep.mubr.bf16.mxu0 0
        %5741 = vmatmul.mubr.bf16.gmra.mxu0 %v5220
        %v5742 = vpop.f32.mrf.mxu0
        %v5743 = vadd.f32 0.0, %v5742
        %v5744 = vpop.f32.mrf.mxu0
        %v5745 = vadd.f32 0.0, %v5744
        %v5746 = vpop.f32.mrf.mxu0
        %v5747 = vadd.f32 0.0, %v5746
        %v5748 = vpop.f32.mrf.mxu0
        %v5749 = vadd.f32 0.0, %v5748
        %5750 = vmatprep.mubr.bf16.mxu0 0
        %5751 = vmatmul.mubr.bf16.gmra.mxu0 %v5221
        %v5752 = vpop.f32.mrf.mxu0
        %v5753 = vadd.f32 0.0, %v5752
        %v5754 = vpop.f32.mrf.mxu0
        %v5755 = vadd.f32 0.0, %v5754
        %v5756 = vpop.f32.mrf.mxu0
        %v5757 = vadd.f32 0.0, %v5756
        %v5758 = vpop.f32.mrf.mxu0
        %v5759 = vadd.f32 0.0, %v5758
        %5760 = vmatprep.mubr.bf16.mxu0 0
        %5761 = vmatmul.mubr.bf16.gmra.mxu0 %v5222
        %v5762 = vpop.f32.mrf.mxu0
        %v5763 = vadd.f32 0.0, %v5762
        %v5764 = vpop.f32.mrf.mxu0
        %v5765 = vadd.f32 0.0, %v5764
        %v5766 = vpop.f32.mrf.mxu0
        %v5767 = vadd.f32 0.0, %v5766
        %v5768 = vpop.f32.mrf.mxu0
        %v5769 = vadd.f32 0.0, %v5768
        %5770 = vmatprep.mubr.bf16.mxu0 0
        %5771 = vmatmul.mubr.bf16.gmra.mxu0 %v5223
        %v5772 = vpop.f32.mrf.mxu0
        %v5773 = vadd.f32 0.0, %v5772
        %v5774 = vpop.f32.mrf.mxu0
        %v5775 = vadd.f32 0.0, %v5774
        %v5776 = vpop.f32.mrf.mxu0
        %v5777 = vadd.f32 0.0, %v5776
        %v5778 = vpop.f32.mrf.mxu0
        %v5779 = vadd.f32 0.0, %v5778
        %5780 = vmatprep.mubr.bf16.mxu0 0
        %5781 = vmatmul.mubr.bf16.gmra.mxu0 %v5224
        %v5782 = vpop.f32.mrf.mxu0
        %v5783 = vadd.f32 0.0, %v5782
        %v5784 = vpop.f32.mrf.mxu0
        %v5785 = vadd.f32 0.0, %v5784
        %v5786 = vpop.f32.mrf.mxu0
        %v5787 = vadd.f32 0.0, %v5786
        %v5788 = vpop.f32.mrf.mxu0
        %v5789 = vadd.f32 0.0, %v5788
        %5790 = vmatprep.mubr.bf16.mxu0 0
        %5791 = vmatmul.mubr.bf16.gmra.mxu0 %v5225
        %v5792 = vpop.f32.mrf.mxu0
        %v5793 = vadd.f32 0.0, %v5792
        %v5794 = vpop.f32.mrf.mxu0
        %v5795 = vadd.f32 0.0, %v5794
        %v5796 = vpop.f32.mrf.mxu0
        %v5797 = vadd.f32 0.0, %v5796
        %v5798 = vpop.f32.mrf.mxu0
        %v5799 = vadd.f32 0.0, %v5798
        %5800 = vmatprep.mubr.bf16.mxu0 0
        %5801 = vmatmul.mubr.bf16.gmra.mxu0 %v5226
        %v5802 = vpop.f32.mrf.mxu0
        %v5803 = vadd.f32 0.0, %v5802
        %v5804 = vpop.f32.mrf.mxu0
        %v5805 = vadd.f32 0.0, %v5804
        %v5806 = vpop.f32.mrf.mxu0
        %v5807 = vadd.f32 0.0, %v5806
        %v5808 = vpop.f32.mrf.mxu0
        %v5809 = vadd.f32 0.0, %v5808
        %5810 = vmatprep.mubr.bf16.mxu0 0
        %5811 = vmatmul.mubr.bf16.gmra.mxu0 %v5227
        %v5812 = vpop.f32.mrf.mxu0
        %v5813 = vadd.f32 0.0, %v5812
        %v5814 = vpop.f32.mrf.mxu0
        %v5815 = vadd.f32 0.0, %v5814
        %v5816 = vpop.f32.mrf.mxu0
        %v5817 = vadd.f32 0.0, %v5816
        %v5818 = vpop.f32.mrf.mxu0
        %v5819 = vadd.f32 0.0, %v5818
        %5820 = vdwg.mxu0
        %5821 = vmatprep.subr.bf16.mxu0 0
        %5822 = vmatpush1.bf16.xpose.msra.mxu0 %v5523
        %5823 = vmatprep.subr.bf16.mxu0 0
        %5824 = vmatpush1.bf16.xpose.msra.mxu0 %v5522
        %5825 = vmatprep.subr.bf16.mxu0 0
        %5826 = vmatpush1.bf16.xpose.msra.mxu0 %v5521
        %5827 = vmatprep.subr.bf16.mxu0 0
        %5828 = vmatpush1.bf16.xpose.msra.mxu0 %v5520
        %5829 = vmatprep.subr.bf16.mxu0 0
        %5830 = vmatpush1.bf16.xpose.msra.mxu0 %v5519
        %5831 = vmatprep.subr.bf16.mxu0 0
        %5832 = vmatpush1.bf16.xpose.msra.mxu0 %v5518
        %5833 = vmatprep.subr.bf16.mxu0 0
        %5834 = vmatpush1.bf16.xpose.msra.mxu0 %v5517
        %5835 = vmatprep.subr.bf16.mxu0 0
        %5836 = vmatpush1.bf16.xpose.msra.mxu0 %v5516
        %5837 = vmatprep.subr.bf16.mxu0 0
        %5838 = vmatpush2.bf16.xpose.msra.mxu0 %v5531
        %5839 = vmatprep.subr.bf16.mxu0 0
        %5840 = vmatpush2.bf16.xpose.msra.mxu0 %v5530
        %5841 = vmatprep.subr.bf16.mxu0 0
        %5842 = vmatpush2.bf16.xpose.msra.mxu0 %v5529
        %5843 = vmatprep.subr.bf16.mxu0 0
        %5844 = vmatpush2.bf16.xpose.msra.mxu0 %v5528
        %5845 = vmatprep.subr.bf16.mxu0 0
        %5846 = vmatpush2.bf16.xpose.msra.mxu0 %v5527
        %5847 = vmatprep.subr.bf16.mxu0 0
        %5848 = vmatpush2.bf16.xpose.msra.mxu0 %v5526
        %5849 = vmatprep.subr.bf16.mxu0 0
        %5850 = vmatpush2.bf16.xpose.msra.mxu0 %v5525
        %5851 = vmatprep.subr.bf16.mxu0 0
        %5852 = vmatpush2.bf16.xpose.msra.mxu0 %v5524
        %5853 = vmatprep.mubr.bf16.mxu0 0
        %5854 = vmatmul.mubr.bf16.gmra.mxu0 %v5212
        %v5855 = vpop.f32.mrf.mxu0
        %v5856 = vadd.f32 0.0, %v5855
        %v5857 = vpop.f32.mrf.mxu0
        %v5858 = vadd.f32 0.0, %v5857
        %v5859 = vpop.f32.mrf.mxu0
        %v5860 = vadd.f32 0.0, %v5859
        %v5861 = vpop.f32.mrf.mxu0
        %v5862 = vadd.f32 0.0, %v5861
        %5863 = vmatprep.mubr.bf16.mxu0 0
        %5864 = vmatmul.mubr.bf16.gmra.mxu0 %v5213
        %v5865 = vpop.f32.mrf.mxu0
        %v5866 = vadd.f32 0.0, %v5865
        %v5867 = vpop.f32.mrf.mxu0
        %v5868 = vadd.f32 0.0, %v5867
        %v5869 = vpop.f32.mrf.mxu0
        %v5870 = vadd.f32 0.0, %v5869
        %v5871 = vpop.f32.mrf.mxu0
        %v5872 = vadd.f32 0.0, %v5871
        %5873 = vmatprep.mubr.bf16.mxu0 0
        %5874 = vmatmul.mubr.bf16.gmra.mxu0 %v5214
        %v5875 = vpop.f32.mrf.mxu0
        %v5876 = vadd.f32 0.0, %v5875
        %v5877 = vpop.f32.mrf.mxu0
        %v5878 = vadd.f32 0.0, %v5877
        %v5879 = vpop.f32.mrf.mxu0
        %v5880 = vadd.f32 0.0, %v5879
        %v5881 = vpop.f32.mrf.mxu0
        %v5882 = vadd.f32 0.0, %v5881
        %5883 = vmatprep.mubr.bf16.mxu0 0
        %5884 = vmatmul.mubr.bf16.gmra.mxu0 %v5215
        %v5885 = vpop.f32.mrf.mxu0
        %v5886 = vadd.f32 0.0, %v5885
        %v5887 = vpop.f32.mrf.mxu0
        %v5888 = vadd.f32 0.0, %v5887
        %v5889 = vpop.f32.mrf.mxu0
        %v5890 = vadd.f32 0.0, %v5889
        %v5891 = vpop.f32.mrf.mxu0
        %v5892 = vadd.f32 0.0, %v5891
        %5893 = vmatprep.mubr.bf16.mxu0 0
        %5894 = vmatmul.mubr.bf16.gmra.mxu0 %v5216
        %v5895 = vpop.f32.mrf.mxu0
        %v5896 = vadd.f32 0.0, %v5895
        %v5897 = vpop.f32.mrf.mxu0
        %v5898 = vadd.f32 0.0, %v5897
        %v5899 = vpop.f32.mrf.mxu0
        %v5900 = vadd.f32 0.0, %v5899
        %v5901 = vpop.f32.mrf.mxu0
        %v5902 = vadd.f32 0.0, %v5901
        %5903 = vmatprep.mubr.bf16.mxu0 0
        %5904 = vmatmul.mubr.bf16.gmra.mxu0 %v5217
        %v5905 = vpop.f32.mrf.mxu0
        %v5906 = vadd.f32 0.0, %v5905
        %v5907 = vpop.f32.mrf.mxu0
        %v5908 = vadd.f32 0.0, %v5907
        %v5909 = vpop.f32.mrf.mxu0
        %v5910 = vadd.f32 0.0, %v5909
        %v5911 = vpop.f32.mrf.mxu0
        %v5912 = vadd.f32 0.0, %v5911
        %5913 = vmatprep.mubr.bf16.mxu0 0
        %5914 = vmatmul.mubr.bf16.gmra.mxu0 %v5218
        %v5915 = vpop.f32.mrf.mxu0
        %v5916 = vadd.f32 0.0, %v5915
        %v5917 = vpop.f32.mrf.mxu0
        %v5918 = vadd.f32 0.0, %v5917
        %v5919 = vpop.f32.mrf.mxu0
        %v5920 = vadd.f32 0.0, %v5919
        %v5921 = vpop.f32.mrf.mxu0
        %v5922 = vadd.f32 0.0, %v5921
        %5923 = vmatprep.mubr.bf16.mxu0 0
        %5924 = vmatmul.mubr.bf16.gmra.mxu0 %v5219
        %v5925 = vpop.f32.mrf.mxu0
        %v5926 = vadd.f32 0.0, %v5925
        %v5927 = vpop.f32.mrf.mxu0
        %v5928 = vadd.f32 0.0, %v5927
        %v5929 = vpop.f32.mrf.mxu0
        %v5930 = vadd.f32 0.0, %v5929
        %v5931 = vpop.f32.mrf.mxu0
        %v5932 = vadd.f32 0.0, %v5931
        %5933 = vmatprep.mubr.bf16.mxu0 0
        %5934 = vmatmul.mubr.bf16.gmra.mxu0 %v5220
        %v5935 = vpop.f32.mrf.mxu0
        %v5936 = vadd.f32 0.0, %v5935
        %v5937 = vpop.f32.mrf.mxu0
        %v5938 = vadd.f32 0.0, %v5937
        %v5939 = vpop.f32.mrf.mxu0
        %v5940 = vadd.f32 0.0, %v5939
        %v5941 = vpop.f32.mrf.mxu0
        %v5942 = vadd.f32 0.0, %v5941
        %5943 = vmatprep.mubr.bf16.mxu0 0
        %5944 = vmatmul.mubr.bf16.gmra.mxu0 %v5221
        %v5945 = vpop.f32.mrf.mxu0
        %v5946 = vadd.f32 0.0, %v5945
        %v5947 = vpop.f32.mrf.mxu0
        %v5948 = vadd.f32 0.0, %v5947
        %v5949 = vpop.f32.mrf.mxu0
        %v5950 = vadd.f32 0.0, %v5949
        %v5951 = vpop.f32.mrf.mxu0
        %v5952 = vadd.f32 0.0, %v5951
        %5953 = vmatprep.mubr.bf16.mxu0 0
        %5954 = vmatmul.mubr.bf16.gmra.mxu0 %v5222
        %v5955 = vpop.f32.mrf.mxu0
        %v5956 = vadd.f32 0.0, %v5955
        %v5957 = vpop.f32.mrf.mxu0
        %v5958 = vadd.f32 0.0, %v5957
        %v5959 = vpop.f32.mrf.mxu0
        %v5960 = vadd.f32 0.0, %v5959
        %v5961 = vpop.f32.mrf.mxu0
        %v5962 = vadd.f32 0.0, %v5961
        %5963 = vmatprep.mubr.bf16.mxu0 0
        %5964 = vmatmul.mubr.bf16.gmra.mxu0 %v5223
        %v5965 = vpop.f32.mrf.mxu0
        %v5966 = vadd.f32 0.0, %v5965
        %v5967 = vpop.f32.mrf.mxu0
        %v5968 = vadd.f32 0.0, %v5967
        %v5969 = vpop.f32.mrf.mxu0
        %v5970 = vadd.f32 0.0, %v5969
        %v5971 = vpop.f32.mrf.mxu0
        %v5972 = vadd.f32 0.0, %v5971
        %5973 = vmatprep.mubr.bf16.mxu0 0
        %5974 = vmatmul.mubr.bf16.gmra.mxu0 %v5224
        %v5975 = vpop.f32.mrf.mxu0
        %v5976 = vadd.f32 0.0, %v5975
        %v5977 = vpop.f32.mrf.mxu0
        %v5978 = vadd.f32 0.0, %v5977
        %v5979 = vpop.f32.mrf.mxu0
        %v5980 = vadd.f32 0.0, %v5979
        %v5981 = vpop.f32.mrf.mxu0
        %v5982 = vadd.f32 0.0, %v5981
        %5983 = vmatprep.mubr.bf16.mxu0 0
        %5984 = vmatmul.mubr.bf16.gmra.mxu0 %v5225
        %v5985 = vpop.f32.mrf.mxu0
        %v5986 = vadd.f32 0.0, %v5985
        %v5987 = vpop.f32.mrf.mxu0
        %v5988 = vadd.f32 0.0, %v5987
        %v5989 = vpop.f32.mrf.mxu0
        %v5990 = vadd.f32 0.0, %v5989
        %v5991 = vpop.f32.mrf.mxu0
        %v5992 = vadd.f32 0.0, %v5991
        %5993 = vmatprep.mubr.bf16.mxu0 0
        %5994 = vmatmul.mubr.bf16.gmra.mxu0 %v5226
        %v5995 = vpop.f32.mrf.mxu0
        %v5996 = vadd.f32 0.0, %v5995
        %v5997 = vpop.f32.mrf.mxu0
        %v5998 = vadd.f32 0.0, %v5997
        %v5999 = vpop.f32.mrf.mxu0
        %v6000 = vadd.f32 0.0, %v5999
        %v6001 = vpop.f32.mrf.mxu0
        %v6002 = vadd.f32 0.0, %v6001
        %6003 = vmatprep.mubr.bf16.mxu0 0
        %6004 = vmatmul.mubr.bf16.gmra.mxu0 %v5227
        %v6005 = vpop.f32.mrf.mxu0
        %v6006 = vadd.f32 0.0, %v6005
        %v6007 = vpop.f32.mrf.mxu0
        %v6008 = vadd.f32 0.0, %v6007
        %v6009 = vpop.f32.mrf.mxu0
        %v6010 = vadd.f32 0.0, %v6009
        %v6011 = vpop.f32.mrf.mxu0
        %v6012 = vadd.f32 0.0, %v6011
        %6013 = vdwg.mxu0
        %6014 = vmatprep.subr.bf16.mxu0 0
        %6015 = vmatpush1.bf16.xpose.msra.mxu0 %v5539
        %6016 = vmatprep.subr.bf16.mxu0 0
        %6017 = vmatpush1.bf16.xpose.msra.mxu0 %v5538
        %6018 = vmatprep.subr.bf16.mxu0 0
        %6019 = vmatpush1.bf16.xpose.msra.mxu0 %v5537
        %6020 = vmatprep.subr.bf16.mxu0 0
        %6021 = vmatpush1.bf16.xpose.msra.mxu0 %v5536
        %6022 = vmatprep.subr.bf16.mxu0 0
        %6023 = vmatpush1.bf16.xpose.msra.mxu0 %v5535
        %6024 = vmatprep.subr.bf16.mxu0 0
        %6025 = vmatpush1.bf16.xpose.msra.mxu0 %v5534
        %6026 = vmatprep.subr.bf16.mxu0 0
        %6027 = vmatpush1.bf16.xpose.msra.mxu0 %v5533
        %6028 = vmatprep.subr.bf16.mxu0 0
        %6029 = vmatpush1.bf16.xpose.msra.mxu0 %v5532
        %6030 = vmatprep.subr.bf16.mxu0 0
        %6031 = vmatpush2.bf16.xpose.msra.mxu0 %v5547
        %6032 = vmatprep.subr.bf16.mxu0 0
        %6033 = vmatpush2.bf16.xpose.msra.mxu0 %v5546
        %6034 = vmatprep.subr.bf16.mxu0 0
        %6035 = vmatpush2.bf16.xpose.msra.mxu0 %v5545
        %6036 = vmatprep.subr.bf16.mxu0 0
        %6037 = vmatpush2.bf16.xpose.msra.mxu0 %v5544
        %6038 = vmatprep.subr.bf16.mxu0 0
        %6039 = vmatpush2.bf16.xpose.msra.mxu0 %v5543
        %6040 = vmatprep.subr.bf16.mxu0 0
        %6041 = vmatpush2.bf16.xpose.msra.mxu0 %v5542
        %6042 = vmatprep.subr.bf16.mxu0 0
        %6043 = vmatpush2.bf16.xpose.msra.mxu0 %v5541
        %6044 = vmatprep.subr.bf16.mxu0 0
        %6045 = vmatpush2.bf16.xpose.msra.mxu0 %v5540
        %6046 = vmatprep.mubr.bf16.mxu0 0
        %6047 = vmatmul.mubr.bf16.gmra.mxu0 %v5212
        %v6048 = vpop.f32.mrf.mxu0
        %v6049 = vadd.f32 0.0, %v6048
        %v6050 = vpop.f32.mrf.mxu0
        %v6051 = vadd.f32 0.0, %v6050
        %v6052 = vpop.f32.mrf.mxu0
        %v6053 = vadd.f32 0.0, %v6052
        %v6054 = vpop.f32.mrf.mxu0
        %v6055 = vadd.f32 0.0, %v6054
        %6056 = vmatprep.mubr.bf16.mxu0 0
        %6057 = vmatmul.mubr.bf16.gmra.mxu0 %v5213
        %v6058 = vpop.f32.mrf.mxu0
        %v6059 = vadd.f32 0.0, %v6058
        %v6060 = vpop.f32.mrf.mxu0
        %v6061 = vadd.f32 0.0, %v6060
        %v6062 = vpop.f32.mrf.mxu0
        %v6063 = vadd.f32 0.0, %v6062
        %v6064 = vpop.f32.mrf.mxu0
        %v6065 = vadd.f32 0.0, %v6064
        %6066 = vmatprep.mubr.bf16.mxu0 0
        %6067 = vmatmul.mubr.bf16.gmra.mxu0 %v5214
        %v6068 = vpop.f32.mrf.mxu0
        %v6069 = vadd.f32 0.0, %v6068
        %v6070 = vpop.f32.mrf.mxu0
        %v6071 = vadd.f32 0.0, %v6070
        %v6072 = vpop.f32.mrf.mxu0
        %v6073 = vadd.f32 0.0, %v6072
        %v6074 = vpop.f32.mrf.mxu0
        %v6075 = vadd.f32 0.0, %v6074
        %6076 = vmatprep.mubr.bf16.mxu0 0
        %6077 = vmatmul.mubr.bf16.gmra.mxu0 %v5215
        %v6078 = vpop.f32.mrf.mxu0
        %v6079 = vadd.f32 0.0, %v6078
        %v6080 = vpop.f32.mrf.mxu0
        %v6081 = vadd.f32 0.0, %v6080
        %v6082 = vpop.f32.mrf.mxu0
        %v6083 = vadd.f32 0.0, %v6082
        %v6084 = vpop.f32.mrf.mxu0
        %v6085 = vadd.f32 0.0, %v6084
        %6086 = vmatprep.mubr.bf16.mxu0 0
        %6087 = vmatmul.mubr.bf16.gmra.mxu0 %v5216
        %v6088 = vpop.f32.mrf.mxu0
        %v6089 = vadd.f32 0.0, %v6088
        %v6090 = vpop.f32.mrf.mxu0
        %v6091 = vadd.f32 0.0, %v6090
        %v6092 = vpop.f32.mrf.mxu0
        %v6093 = vadd.f32 0.0, %v6092
        %v6094 = vpop.f32.mrf.mxu0
        %v6095 = vadd.f32 0.0, %v6094
        %6096 = vmatprep.mubr.bf16.mxu0 0
        %6097 = vmatmul.mubr.bf16.gmra.mxu0 %v5217
        %v6098 = vpop.f32.mrf.mxu0
        %v6099 = vadd.f32 0.0, %v6098
        %v6100 = vpop.f32.mrf.mxu0
        %v6101 = vadd.f32 0.0, %v6100
        %v6102 = vpop.f32.mrf.mxu0
        %v6103 = vadd.f32 0.0, %v6102
        %v6104 = vpop.f32.mrf.mxu0
        %v6105 = vadd.f32 0.0, %v6104
        %6106 = vmatprep.mubr.bf16.mxu0 0
        %6107 = vmatmul.mubr.bf16.gmra.mxu0 %v5218
        %v6108 = vpop.f32.mrf.mxu0
        %v6109 = vadd.f32 0.0, %v6108
        %v6110 = vpop.f32.mrf.mxu0
        %v6111 = vadd.f32 0.0, %v6110
        %v6112 = vpop.f32.mrf.mxu0
        %v6113 = vadd.f32 0.0, %v6112
        %v6114 = vpop.f32.mrf.mxu0
        %v6115 = vadd.f32 0.0, %v6114
        %6116 = vmatprep.mubr.bf16.mxu0 0
        %6117 = vmatmul.mubr.bf16.gmra.mxu0 %v5219
        %v6118 = vpop.f32.mrf.mxu0
        %v6119 = vadd.f32 0.0, %v6118
        %v6120 = vpop.f32.mrf.mxu0
        %v6121 = vadd.f32 0.0, %v6120
        %v6122 = vpop.f32.mrf.mxu0
        %v6123 = vadd.f32 0.0, %v6122
        %v6124 = vpop.f32.mrf.mxu0
        %v6125 = vadd.f32 0.0, %v6124
        %6126 = vmatprep.mubr.bf16.mxu0 0
        %6127 = vmatmul.mubr.bf16.gmra.mxu0 %v5220
        %v6128 = vpop.f32.mrf.mxu0
        %v6129 = vadd.f32 0.0, %v6128
        %v6130 = vpop.f32.mrf.mxu0
        %v6131 = vadd.f32 0.0, %v6130
        %v6132 = vpop.f32.mrf.mxu0
        %v6133 = vadd.f32 0.0, %v6132
        %v6134 = vpop.f32.mrf.mxu0
        %v6135 = vadd.f32 0.0, %v6134
        %6136 = vmatprep.mubr.bf16.mxu0 0
        %6137 = vmatmul.mubr.bf16.gmra.mxu0 %v5221
        %v6138 = vpop.f32.mrf.mxu0
        %v6139 = vadd.f32 0.0, %v6138
        %v6140 = vpop.f32.mrf.mxu0
        %v6141 = vadd.f32 0.0, %v6140
        %v6142 = vpop.f32.mrf.mxu0
        %v6143 = vadd.f32 0.0, %v6142
        %v6144 = vpop.f32.mrf.mxu0
        %v6145 = vadd.f32 0.0, %v6144
        %6146 = vmatprep.mubr.bf16.mxu0 0
        %6147 = vmatmul.mubr.bf16.gmra.mxu0 %v5222
        %v6148 = vpop.f32.mrf.mxu0
        %v6149 = vadd.f32 0.0, %v6148
        %v6150 = vpop.f32.mrf.mxu0
        %v6151 = vadd.f32 0.0, %v6150
        %v6152 = vpop.f32.mrf.mxu0
        %v6153 = vadd.f32 0.0, %v6152
        %v6154 = vpop.f32.mrf.mxu0
        %v6155 = vadd.f32 0.0, %v6154
        %6156 = vmatprep.mubr.bf16.mxu0 0
        %6157 = vmatmul.mubr.bf16.gmra.mxu0 %v5223
        %v6158 = vpop.f32.mrf.mxu0
        %v6159 = vadd.f32 0.0, %v6158
        %v6160 = vpop.f32.mrf.mxu0
        %v6161 = vadd.f32 0.0, %v6160
        %v6162 = vpop.f32.mrf.mxu0
        %v6163 = vadd.f32 0.0, %v6162
        %v6164 = vpop.f32.mrf.mxu0
        %v6165 = vadd.f32 0.0, %v6164
        %6166 = vmatprep.mubr.bf16.mxu0 0
        %6167 = vmatmul.mubr.bf16.gmra.mxu0 %v5224
        %v6168 = vpop.f32.mrf.mxu0
        %v6169 = vadd.f32 0.0, %v6168
        %v6170 = vpop.f32.mrf.mxu0
        %v6171 = vadd.f32 0.0, %v6170
        %v6172 = vpop.f32.mrf.mxu0
        %v6173 = vadd.f32 0.0, %v6172
        %v6174 = vpop.f32.mrf.mxu0
        %v6175 = vadd.f32 0.0, %v6174
        %6176 = vmatprep.mubr.bf16.mxu0 0
        %6177 = vmatmul.mubr.bf16.gmra.mxu0 %v5225
        %v6178 = vpop.f32.mrf.mxu0
        %v6179 = vadd.f32 0.0, %v6178
        %v6180 = vpop.f32.mrf.mxu0
        %v6181 = vadd.f32 0.0, %v6180
        %v6182 = vpop.f32.mrf.mxu0
        %v6183 = vadd.f32 0.0, %v6182
        %v6184 = vpop.f32.mrf.mxu0
        %v6185 = vadd.f32 0.0, %v6184
        %6186 = vmatprep.mubr.bf16.mxu0 0
        %6187 = vmatmul.mubr.bf16.gmra.mxu0 %v5226
        %v6188 = vpop.f32.mrf.mxu0
        %v6189 = vadd.f32 0.0, %v6188
        %v6190 = vpop.f32.mrf.mxu0
        %v6191 = vadd.f32 0.0, %v6190
        %v6192 = vpop.f32.mrf.mxu0
        %v6193 = vadd.f32 0.0, %v6192
        %v6194 = vpop.f32.mrf.mxu0
        %v6195 = vadd.f32 0.0, %v6194
        %6196 = vmatprep.mubr.bf16.mxu0 0
        %6197 = vmatmul.mubr.bf16.gmra.mxu0 %v5227
        %v6198 = vpop.f32.mrf.mxu0
        %v6199 = vadd.f32 0.0, %v6198
        %v6200 = vpop.f32.mrf.mxu0
        %v6201 = vadd.f32 0.0, %v6200
        %v6202 = vpop.f32.mrf.mxu0
        %v6203 = vadd.f32 0.0, %v6202
        %v6204 = vpop.f32.mrf.mxu0
        %v6205 = vadd.f32 0.0, %v6204
        %6206 = vdwg.mxu0
        %6207 = vmatprep.subr.bf16.mxu0 0
        %6208 = vmatpush1.bf16.xpose.msra.mxu0 %v5555
        %6209 = vmatprep.subr.bf16.mxu0 0
        %6210 = vmatpush1.bf16.xpose.msra.mxu0 %v5554
        %6211 = vmatprep.subr.bf16.mxu0 0
        %6212 = vmatpush1.bf16.xpose.msra.mxu0 %v5553
        %6213 = vmatprep.subr.bf16.mxu0 0
        %6214 = vmatpush1.bf16.xpose.msra.mxu0 %v5552
        %6215 = vmatprep.subr.bf16.mxu0 0
        %6216 = vmatpush1.bf16.xpose.msra.mxu0 %v5551
        %6217 = vmatprep.subr.bf16.mxu0 0
        %6218 = vmatpush1.bf16.xpose.msra.mxu0 %v5550
        %6219 = vmatprep.subr.bf16.mxu0 0
        %6220 = vmatpush1.bf16.xpose.msra.mxu0 %v5549
        %6221 = vmatprep.subr.bf16.mxu0 0
        %6222 = vmatpush1.bf16.xpose.msra.mxu0 %v5548
        %6223 = vmatprep.subr.bf16.mxu0 0
        %6224 = vmatpush2.bf16.xpose.msra.mxu0 %v5563
        %6225 = vmatprep.subr.bf16.mxu0 0
        %6226 = vmatpush2.bf16.xpose.msra.mxu0 %v5562
        %6227 = vmatprep.subr.bf16.mxu0 0
        %6228 = vmatpush2.bf16.xpose.msra.mxu0 %v5561
        %6229 = vmatprep.subr.bf16.mxu0 0
        %6230 = vmatpush2.bf16.xpose.msra.mxu0 %v5560
        %6231 = vmatprep.subr.bf16.mxu0 0
        %6232 = vmatpush2.bf16.xpose.msra.mxu0 %v5559
        %6233 = vmatprep.subr.bf16.mxu0 0
        %6234 = vmatpush2.bf16.xpose.msra.mxu0 %v5558
        %6235 = vmatprep.subr.bf16.mxu0 0
        %6236 = vmatpush2.bf16.xpose.msra.mxu0 %v5557
        %6237 = vmatprep.subr.bf16.mxu0 0
        %6238 = vmatpush2.bf16.xpose.msra.mxu0 %v5556
        %6239 = vmatprep.mubr.bf16.mxu0 0
        %6240 = vmatmul.mubr.bf16.gmra.mxu0 %v5212
        %v6241 = vpop.f32.mrf.mxu0
        %v6242 = vadd.f32 0.0, %v6241
        %v6243 = vpop.f32.mrf.mxu0
        %v6244 = vadd.f32 0.0, %v6243
        %v6245 = vpop.f32.mrf.mxu0
        %v6246 = vadd.f32 0.0, %v6245
        %v6247 = vpop.f32.mrf.mxu0
        %v6248 = vadd.f32 0.0, %v6247
        %6249 = vmatprep.mubr.bf16.mxu0 0
        %6250 = vmatmul.mubr.bf16.gmra.mxu0 %v5213
        %v6251 = vpop.f32.mrf.mxu0
        %v6252 = vadd.f32 0.0, %v6251
        %v6253 = vpop.f32.mrf.mxu0
        %v6254 = vadd.f32 0.0, %v6253
        %v6255 = vpop.f32.mrf.mxu0
        %v6256 = vadd.f32 0.0, %v6255
        %v6257 = vpop.f32.mrf.mxu0
        %v6258 = vadd.f32 0.0, %v6257
        %6259 = vmatprep.mubr.bf16.mxu0 0
        %6260 = vmatmul.mubr.bf16.gmra.mxu0 %v5214
        %v6261 = vpop.f32.mrf.mxu0
        %v6262 = vadd.f32 0.0, %v6261
        %v6263 = vpop.f32.mrf.mxu0
        %v6264 = vadd.f32 0.0, %v6263
        %v6265 = vpop.f32.mrf.mxu0
        %v6266 = vadd.f32 0.0, %v6265
        %v6267 = vpop.f32.mrf.mxu0
        %v6268 = vadd.f32 0.0, %v6267
        %6269 = vmatprep.mubr.bf16.mxu0 0
        %6270 = vmatmul.mubr.bf16.gmra.mxu0 %v5215
        %v6271 = vpop.f32.mrf.mxu0
        %v6272 = vadd.f32 0.0, %v6271
        %v6273 = vpop.f32.mrf.mxu0
        %v6274 = vadd.f32 0.0, %v6273
        %v6275 = vpop.f32.mrf.mxu0
        %v6276 = vadd.f32 0.0, %v6275
        %v6277 = vpop.f32.mrf.mxu0
        %v6278 = vadd.f32 0.0, %v6277
        %6279 = vmatprep.mubr.bf16.mxu0 0
        %6280 = vmatmul.mubr.bf16.gmra.mxu0 %v5216
        %v6281 = vpop.f32.mrf.mxu0
        %v6282 = vadd.f32 0.0, %v6281
        %v6283 = vpop.f32.mrf.mxu0
        %v6284 = vadd.f32 0.0, %v6283
        %v6285 = vpop.f32.mrf.mxu0
        %v6286 = vadd.f32 0.0, %v6285
        %v6287 = vpop.f32.mrf.mxu0
        %v6288 = vadd.f32 0.0, %v6287
        %6289 = vmatprep.mubr.bf16.mxu0 0
        %6290 = vmatmul.mubr.bf16.gmra.mxu0 %v5217
        %v6291 = vpop.f32.mrf.mxu0
        %v6292 = vadd.f32 0.0, %v6291
        %v6293 = vpop.f32.mrf.mxu0
        %v6294 = vadd.f32 0.0, %v6293
        %v6295 = vpop.f32.mrf.mxu0
        %v6296 = vadd.f32 0.0, %v6295
        %v6297 = vpop.f32.mrf.mxu0
        %v6298 = vadd.f32 0.0, %v6297
        %6299 = vmatprep.mubr.bf16.mxu0 0
        %6300 = vmatmul.mubr.bf16.gmra.mxu0 %v5218
        %v6301 = vpop.f32.mrf.mxu0
        %v6302 = vadd.f32 0.0, %v6301
        %v6303 = vpop.f32.mrf.mxu0
        %v6304 = vadd.f32 0.0, %v6303
        %v6305 = vpop.f32.mrf.mxu0
        %v6306 = vadd.f32 0.0, %v6305
        %v6307 = vpop.f32.mrf.mxu0
        %v6308 = vadd.f32 0.0, %v6307
        %6309 = vmatprep.mubr.bf16.mxu0 0
        %6310 = vmatmul.mubr.bf16.gmra.mxu0 %v5219
        %v6311 = vpop.f32.mrf.mxu0
        %v6312 = vadd.f32 0.0, %v6311
        %v6313 = vpop.f32.mrf.mxu0
        %v6314 = vadd.f32 0.0, %v6313
        %v6315 = vpop.f32.mrf.mxu0
        %v6316 = vadd.f32 0.0, %v6315
        %v6317 = vpop.f32.mrf.mxu0
        %v6318 = vadd.f32 0.0, %v6317
        %6319 = vmatprep.mubr.bf16.mxu0 0
        %6320 = vmatmul.mubr.bf16.gmra.mxu0 %v5220
        %v6321 = vpop.f32.mrf.mxu0
        %v6322 = vadd.f32 0.0, %v6321
        %v6323 = vpop.f32.mrf.mxu0
        %v6324 = vadd.f32 0.0, %v6323
        %v6325 = vpop.f32.mrf.mxu0
        %v6326 = vadd.f32 0.0, %v6325
        %v6327 = vpop.f32.mrf.mxu0
        %v6328 = vadd.f32 0.0, %v6327
        %6329 = vmatprep.mubr.bf16.mxu0 0
        %6330 = vmatmul.mubr.bf16.gmra.mxu0 %v5221
        %v6331 = vpop.f32.mrf.mxu0
        %v6332 = vadd.f32 0.0, %v6331
        %v6333 = vpop.f32.mrf.mxu0
        %v6334 = vadd.f32 0.0, %v6333
        %v6335 = vpop.f32.mrf.mxu0
        %v6336 = vadd.f32 0.0, %v6335
        %v6337 = vpop.f32.mrf.mxu0
        %v6338 = vadd.f32 0.0, %v6337
        %6339 = vmatprep.mubr.bf16.mxu0 0
        %6340 = vmatmul.mubr.bf16.gmra.mxu0 %v5222
        %v6341 = vpop.f32.mrf.mxu0
        %v6342 = vadd.f32 0.0, %v6341
        %v6343 = vpop.f32.mrf.mxu0
        %v6344 = vadd.f32 0.0, %v6343
        %v6345 = vpop.f32.mrf.mxu0
        %v6346 = vadd.f32 0.0, %v6345
        %v6347 = vpop.f32.mrf.mxu0
        %v6348 = vadd.f32 0.0, %v6347
        %6349 = vmatprep.mubr.bf16.mxu0 0
        %6350 = vmatmul.mubr.bf16.gmra.mxu0 %v5223
        %v6351 = vpop.f32.mrf.mxu0
        %v6352 = vadd.f32 0.0, %v6351
        %v6353 = vpop.f32.mrf.mxu0
        %v6354 = vadd.f32 0.0, %v6353
        %v6355 = vpop.f32.mrf.mxu0
        %v6356 = vadd.f32 0.0, %v6355
        %v6357 = vpop.f32.mrf.mxu0
        %v6358 = vadd.f32 0.0, %v6357
        %6359 = vmatprep.mubr.bf16.mxu0 0
        %6360 = vmatmul.mubr.bf16.gmra.mxu0 %v5224
        %v6361 = vpop.f32.mrf.mxu0
        %v6362 = vadd.f32 0.0, %v6361
        %v6363 = vpop.f32.mrf.mxu0
        %v6364 = vadd.f32 0.0, %v6363
        %v6365 = vpop.f32.mrf.mxu0
        %v6366 = vadd.f32 0.0, %v6365
        %v6367 = vpop.f32.mrf.mxu0
        %v6368 = vadd.f32 0.0, %v6367
        %6369 = vmatprep.mubr.bf16.mxu0 0
        %6370 = vmatmul.mubr.bf16.gmra.mxu0 %v5225
        %v6371 = vpop.f32.mrf.mxu0
        %v6372 = vadd.f32 0.0, %v6371
        %v6373 = vpop.f32.mrf.mxu0
        %v6374 = vadd.f32 0.0, %v6373
        %v6375 = vpop.f32.mrf.mxu0
        %v6376 = vadd.f32 0.0, %v6375
        %v6377 = vpop.f32.mrf.mxu0
        %v6378 = vadd.f32 0.0, %v6377
        %6379 = vmatprep.mubr.bf16.mxu0 0
        %6380 = vmatmul.mubr.bf16.gmra.mxu0 %v5226
        %v6381 = vpop.f32.mrf.mxu0
        %v6382 = vadd.f32 0.0, %v6381
        %v6383 = vpop.f32.mrf.mxu0
        %v6384 = vadd.f32 0.0, %v6383
        %v6385 = vpop.f32.mrf.mxu0
        %v6386 = vadd.f32 0.0, %v6385
        %v6387 = vpop.f32.mrf.mxu0
        %v6388 = vadd.f32 0.0, %v6387
        %6389 = vmatprep.mubr.bf16.mxu0 0
        %6390 = vmatmul.mubr.bf16.gmra.mxu0 %v5227
        %v6391 = vpop.f32.mrf.mxu0
        %v6392 = vadd.f32 0.0, %v6391
        %v6393 = vpop.f32.mrf.mxu0
        %v6394 = vadd.f32 0.0, %v6393
        %v6395 = vpop.f32.mrf.mxu0
        %v6396 = vadd.f32 0.0, %v6395
        %v6397 = vpop.f32.mrf.mxu0
        %v6398 = vadd.f32 0.0, %v6397
        %6399 = vdwg.mxu0
        %v6400 = vmax.f32 %v5663, %v5665
        %v6401 = vmax.f32 %v6400, %v5856
        %v6402 = vmax.f32 %v6401, %v5858
        %v6403 = vmax.f32 %v6402, %v6049
        %v6404 = vmax.f32 %v6403, %v6051
        %v6405 = vmax.f32 %v6404, %v6242
        %v6406 = vmax.f32 %v6405, %v6244
        %6407 = vmax.xlane.f32.xlu0 %v6406
        %v6408 = vpop.xlane.xlu0 %6407
        %v6409 = vmax.f32 %v5667, %v5669
        %v6410 = vmax.f32 %v6409, %v5860
        %v6411 = vmax.f32 %v6410, %v5862
        %v6412 = vmax.f32 %v6411, %v6053
        %v6413 = vmax.f32 %v6412, %v6055
        %v6414 = vmax.f32 %v6413, %v6246
        %v6415 = vmax.f32 %v6414, %v6248
        %6416 = vmax.xlane.f32.xlu0 %v6415
        %v6417 = vpop.xlane.xlu0 %6416
        %v6418 = vmax.f32 %v5673, %v5675
        %v6419 = vmax.f32 %v6418, %v5866
        %v6420 = vmax.f32 %v6419, %v5868
        %v6421 = vmax.f32 %v6420, %v6059
        %v6422 = vmax.f32 %v6421, %v6061
        %v6423 = vmax.f32 %v6422, %v6252
        %v6424 = vmax.f32 %v6423, %v6254
        %6425 = vmax.xlane.f32.xlu0 %v6424
        %v6426 = vpop.xlane.xlu0 %6425
        %v6427 = vmax.f32 %v5677, %v5679
        %v6428 = vmax.f32 %v6427, %v5870
        %v6429 = vmax.f32 %v6428, %v5872
        %v6430 = vmax.f32 %v6429, %v6063
        %v6431 = vmax.f32 %v6430, %v6065
        %v6432 = vmax.f32 %v6431, %v6256
        %v6433 = vmax.f32 %v6432, %v6258
        %6434 = vmax.xlane.f32.xlu0 %v6433
        %v6435 = vpop.xlane.xlu0 %6434
        %v6436 = vmax.f32 %v5683, %v5685
        %v6437 = vmax.f32 %v6436, %v5876
        %v6438 = vmax.f32 %v6437, %v5878
        %v6439 = vmax.f32 %v6438, %v6069
        %v6440 = vmax.f32 %v6439, %v6071
        %v6441 = vmax.f32 %v6440, %v6262
        %v6442 = vmax.f32 %v6441, %v6264
        %6443 = vmax.xlane.f32.xlu0 %v6442
        %v6444 = vpop.xlane.xlu0 %6443
        %v6445 = vmax.f32 %v5687, %v5689
        %v6446 = vmax.f32 %v6445, %v5880
        %v6447 = vmax.f32 %v6446, %v5882
        %v6448 = vmax.f32 %v6447, %v6073
        %v6449 = vmax.f32 %v6448, %v6075
        %v6450 = vmax.f32 %v6449, %v6266
        %v6451 = vmax.f32 %v6450, %v6268
        %6452 = vmax.xlane.f32.xlu0 %v6451
        %v6453 = vpop.xlane.xlu0 %6452
        %v6454 = vmax.f32 %v5693, %v5695
        %v6455 = vmax.f32 %v6454, %v5886
        %v6456 = vmax.f32 %v6455, %v5888
        %v6457 = vmax.f32 %v6456, %v6079
        %v6458 = vmax.f32 %v6457, %v6081
        %v6459 = vmax.f32 %v6458, %v6272
        %v6460 = vmax.f32 %v6459, %v6274
        %6461 = vmax.xlane.f32.xlu0 %v6460
        %v6462 = vpop.xlane.xlu0 %6461
        %v6463 = vmax.f32 %v5697, %v5699
        %v6464 = vmax.f32 %v6463, %v5890
        %v6465 = vmax.f32 %v6464, %v5892
        %v6466 = vmax.f32 %v6465, %v6083
        %v6467 = vmax.f32 %v6466, %v6085
        %v6468 = vmax.f32 %v6467, %v6276
        %v6469 = vmax.f32 %v6468, %v6278
        %6470 = vmax.xlane.f32.xlu0 %v6469
        %v6471 = vpop.xlane.xlu0 %6470
        %v6472 = vmax.f32 %v5703, %v5705
        %v6473 = vmax.f32 %v6472, %v5896
        %v6474 = vmax.f32 %v6473, %v5898
        %v6475 = vmax.f32 %v6474, %v6089
        %v6476 = vmax.f32 %v6475, %v6091
        %v6477 = vmax.f32 %v6476, %v6282
        %v6478 = vmax.f32 %v6477, %v6284
        %6479 = vmax.xlane.f32.xlu0 %v6478
        %v6480 = vpop.xlane.xlu0 %6479
        %v6481 = vmax.f32 %v5707, %v5709
        %v6482 = vmax.f32 %v6481, %v5900
        %v6483 = vmax.f32 %v6482, %v5902
        %v6484 = vmax.f32 %v6483, %v6093
        %v6485 = vmax.f32 %v6484, %v6095
        %v6486 = vmax.f32 %v6485, %v6286
        %v6487 = vmax.f32 %v6486, %v6288
        %6488 = vmax.xlane.f32.xlu0 %v6487
        %v6489 = vpop.xlane.xlu0 %6488
        %v6490 = vmax.f32 %v5713, %v5715
        %v6491 = vmax.f32 %v6490, %v5906
        %v6492 = vmax.f32 %v6491, %v5908
        %v6493 = vmax.f32 %v6492, %v6099
        %v6494 = vmax.f32 %v6493, %v6101
        %v6495 = vmax.f32 %v6494, %v6292
        %v6496 = vmax.f32 %v6495, %v6294
        %6497 = vmax.xlane.f32.xlu0 %v6496
        %v6498 = vpop.xlane.xlu0 %6497
        %v6499 = vmax.f32 %v5717, %v5719
        %v6500 = vmax.f32 %v6499, %v5910
        %v6501 = vmax.f32 %v6500, %v5912
        %v6502 = vmax.f32 %v6501, %v6103
        %v6503 = vmax.f32 %v6502, %v6105
        %v6504 = vmax.f32 %v6503, %v6296
        %v6505 = vmax.f32 %v6504, %v6298
        %6506 = vmax.xlane.f32.xlu0 %v6505
        %v6507 = vpop.xlane.xlu0 %6506
        %v6508 = vmax.f32 %v5723, %v5725
        %v6509 = vmax.f32 %v6508, %v5916
        %v6510 = vmax.f32 %v6509, %v5918
        %v6511 = vmax.f32 %v6510, %v6109
        %v6512 = vmax.f32 %v6511, %v6111
        %v6513 = vmax.f32 %v6512, %v6302
        %v6514 = vmax.f32 %v6513, %v6304
        %6515 = vmax.xlane.f32.xlu0 %v6514
        %v6516 = vpop.xlane.xlu0 %6515
        %v6517 = vmax.f32 %v5727, %v5729
        %v6518 = vmax.f32 %v6517, %v5920
        %v6519 = vmax.f32 %v6518, %v5922
        %v6520 = vmax.f32 %v6519, %v6113
        %v6521 = vmax.f32 %v6520, %v6115
        %v6522 = vmax.f32 %v6521, %v6306
        %v6523 = vmax.f32 %v6522, %v6308
        %6524 = vmax.xlane.f32.xlu0 %v6523
        %v6525 = vpop.xlane.xlu0 %6524
        %v6526 = vmax.f32 %v5733, %v5735
        %v6527 = vmax.f32 %v6526, %v5926
        %v6528 = vmax.f32 %v6527, %v5928
        %v6529 = vmax.f32 %v6528, %v6119
        %v6530 = vmax.f32 %v6529, %v6121
        %v6531 = vmax.f32 %v6530, %v6312
        %v6532 = vmax.f32 %v6531, %v6314
        %6533 = vmax.xlane.f32.xlu0 %v6532
        %v6534 = vpop.xlane.xlu0 %6533
        %v6535 = vmax.f32 %v5737, %v5739
        %v6536 = vmax.f32 %v6535, %v5930
        %v6537 = vmax.f32 %v6536, %v5932
        %v6538 = vmax.f32 %v6537, %v6123
        %v6539 = vmax.f32 %v6538, %v6125
        %v6540 = vmax.f32 %v6539, %v6316
        %v6541 = vmax.f32 %v6540, %v6318
        %6542 = vmax.xlane.f32.xlu0 %v6541
        %v6543 = vpop.xlane.xlu0 %6542
        %v6544 = vmax.f32 %v5743, %v5745
        %v6545 = vmax.f32 %v6544, %v5936
        %v6546 = vmax.f32 %v6545, %v5938
        %v6547 = vmax.f32 %v6546, %v6129
        %v6548 = vmax.f32 %v6547, %v6131
        %v6549 = vmax.f32 %v6548, %v6322
        %v6550 = vmax.f32 %v6549, %v6324
        %6551 = vmax.xlane.f32.xlu0 %v6550
        %v6552 = vpop.xlane.xlu0 %6551
        %v6553 = vmax.f32 %v5747, %v5749
        %v6554 = vmax.f32 %v6553, %v5940
        %v6555 = vmax.f32 %v6554, %v5942
        %v6556 = vmax.f32 %v6555, %v6133
        %v6557 = vmax.f32 %v6556, %v6135
        %v6558 = vmax.f32 %v6557, %v6326
        %v6559 = vmax.f32 %v6558, %v6328
        %6560 = vmax.xlane.f32.xlu0 %v6559
        %v6561 = vpop.xlane.xlu0 %6560
        %v6562 = vmax.f32 %v5753, %v5755
        %v6563 = vmax.f32 %v6562, %v5946
        %v6564 = vmax.f32 %v6563, %v5948
        %v6565 = vmax.f32 %v6564, %v6139
        %v6566 = vmax.f32 %v6565, %v6141
        %v6567 = vmax.f32 %v6566, %v6332
        %v6568 = vmax.f32 %v6567, %v6334
        %6569 = vmax.xlane.f32.xlu0 %v6568
        %v6570 = vpop.xlane.xlu0 %6569
        %v6571 = vmax.f32 %v5757, %v5759
        %v6572 = vmax.f32 %v6571, %v5950
        %v6573 = vmax.f32 %v6572, %v5952
        %v6574 = vmax.f32 %v6573, %v6143
        %v6575 = vmax.f32 %v6574, %v6145
        %v6576 = vmax.f32 %v6575, %v6336
        %v6577 = vmax.f32 %v6576, %v6338
        %6578 = vmax.xlane.f32.xlu0 %v6577
        %v6579 = vpop.xlane.xlu0 %6578
        %v6580 = vmax.f32 %v5763, %v5765
        %v6581 = vmax.f32 %v6580, %v5956
        %v6582 = vmax.f32 %v6581, %v5958
        %v6583 = vmax.f32 %v6582, %v6149
        %v6584 = vmax.f32 %v6583, %v6151
        %v6585 = vmax.f32 %v6584, %v6342
        %v6586 = vmax.f32 %v6585, %v6344
        %6587 = vmax.xlane.f32.xlu0 %v6586
        %v6588 = vpop.xlane.xlu0 %6587
        %v6589 = vmax.f32 %v5767, %v5769
        %v6590 = vmax.f32 %v6589, %v5960
        %v6591 = vmax.f32 %v6590, %v5962
        %v6592 = vmax.f32 %v6591, %v6153
        %v6593 = vmax.f32 %v6592, %v6155
        %v6594 = vmax.f32 %v6593, %v6346
        %v6595 = vmax.f32 %v6594, %v6348
        %6596 = vmax.xlane.f32.xlu0 %v6595
        %v6597 = vpop.xlane.xlu0 %6596
        %v6598 = vmax.f32 %v5773, %v5775
        %v6599 = vmax.f32 %v6598, %v5966
        %v6600 = vmax.f32 %v6599, %v5968
        %v6601 = vmax.f32 %v6600, %v6159
        %v6602 = vmax.f32 %v6601, %v6161
        %v6603 = vmax.f32 %v6602, %v6352
        %v6604 = vmax.f32 %v6603, %v6354
        %6605 = vmax.xlane.f32.xlu0 %v6604
        %v6606 = vpop.xlane.xlu0 %6605
        %v6607 = vmax.f32 %v5777, %v5779
        %v6608 = vmax.f32 %v6607, %v5970
        %v6609 = vmax.f32 %v6608, %v5972
        %v6610 = vmax.f32 %v6609, %v6163
        %v6611 = vmax.f32 %v6610, %v6165
        %v6612 = vmax.f32 %v6611, %v6356
        %v6613 = vmax.f32 %v6612, %v6358
        %6614 = vmax.xlane.f32.xlu0 %v6613
        %v6615 = vpop.xlane.xlu0 %6614
        %v6616 = vmax.f32 %v5783, %v5785
        %v6617 = vmax.f32 %v6616, %v5976
        %v6618 = vmax.f32 %v6617, %v5978
        %v6619 = vmax.f32 %v6618, %v6169
        %v6620 = vmax.f32 %v6619, %v6171
        %v6621 = vmax.f32 %v6620, %v6362
        %v6622 = vmax.f32 %v6621, %v6364
        %6623 = vmax.xlane.f32.xlu0 %v6622
        %v6624 = vpop.xlane.xlu0 %6623
        %v6625 = vmax.f32 %v5787, %v5789
        %v6626 = vmax.f32 %v6625, %v5980
        %v6627 = vmax.f32 %v6626, %v5982
        %v6628 = vmax.f32 %v6627, %v6173
        %v6629 = vmax.f32 %v6628, %v6175
        %v6630 = vmax.f32 %v6629, %v6366
        %v6631 = vmax.f32 %v6630, %v6368
        %6632 = vmax.xlane.f32.xlu0 %v6631
        %v6633 = vpop.xlane.xlu0 %6632
        %v6634 = vmax.f32 %v5793, %v5795
        %v6635 = vmax.f32 %v6634, %v5986
        %v6636 = vmax.f32 %v6635, %v5988
        %v6637 = vmax.f32 %v6636, %v6179
        %v6638 = vmax.f32 %v6637, %v6181
        %v6639 = vmax.f32 %v6638, %v6372
        %v6640 = vmax.f32 %v6639, %v6374
        %6641 = vmax.xlane.f32.xlu0 %v6640
        %v6642 = vpop.xlane.xlu0 %6641
        %v6643 = vmax.f32 %v5797, %v5799
        %v6644 = vmax.f32 %v6643, %v5990
        %v6645 = vmax.f32 %v6644, %v5992
        %v6646 = vmax.f32 %v6645, %v6183
        %v6647 = vmax.f32 %v6646, %v6185
        %v6648 = vmax.f32 %v6647, %v6376
        %v6649 = vmax.f32 %v6648, %v6378
        %6650 = vmax.xlane.f32.xlu0 %v6649
        %v6651 = vpop.xlane.xlu0 %6650
        %v6652 = vmax.f32 %v5803, %v5805
        %v6653 = vmax.f32 %v6652, %v5996
        %v6654 = vmax.f32 %v6653, %v5998
        %v6655 = vmax.f32 %v6654, %v6189
        %v6656 = vmax.f32 %v6655, %v6191
        %v6657 = vmax.f32 %v6656, %v6382
        %v6658 = vmax.f32 %v6657, %v6384
        %6659 = vmax.xlane.f32.xlu0 %v6658
        %v6660 = vpop.xlane.xlu0 %6659
        %v6661 = vmax.f32 %v5807, %v5809
        %v6662 = vmax.f32 %v6661, %v6000
        %v6663 = vmax.f32 %v6662, %v6002
        %v6664 = vmax.f32 %v6663, %v6193
        %v6665 = vmax.f32 %v6664, %v6195
        %v6666 = vmax.f32 %v6665, %v6386
        %v6667 = vmax.f32 %v6666, %v6388
        %6668 = vmax.xlane.f32.xlu0 %v6667
        %v6669 = vpop.xlane.xlu0 %6668
        %v6670 = vmax.f32 %v5813, %v5815
        %v6671 = vmax.f32 %v6670, %v6006
        %v6672 = vmax.f32 %v6671, %v6008
        %v6673 = vmax.f32 %v6672, %v6199
        %v6674 = vmax.f32 %v6673, %v6201
        %v6675 = vmax.f32 %v6674, %v6392
        %v6676 = vmax.f32 %v6675, %v6394
        %6677 = vmax.xlane.f32.xlu0 %v6676
        %v6678 = vpop.xlane.xlu0 %6677
        %v6679 = vmax.f32 %v5817, %v5819
        %v6680 = vmax.f32 %v6679, %v6010
        %v6681 = vmax.f32 %v6680, %v6012
        %v6682 = vmax.f32 %v6681, %v6203
        %v6683 = vmax.f32 %v6682, %v6205
        %v6684 = vmax.f32 %v6683, %v6396
        %v6685 = vmax.f32 %v6684, %v6398
        %6686 = vmax.xlane.f32.xlu0 %v6685
        %v6687 = vpop.xlane.xlu0 %6686
        %v6688 = vsub.f32 %v5663, %v6408
        %v6689 = vsub.f32 %v5665, %v6408
        %v6690 = vsub.f32 %v5856, %v6408
        %v6691 = vsub.f32 %v5858, %v6408
        %v6692 = vsub.f32 %v6049, %v6408
        %v6693 = vsub.f32 %v6051, %v6408
        %v6694 = vsub.f32 %v6242, %v6408
        %v6695 = vsub.f32 %v6244, %v6408
        %v6696 = vsub.f32 %v5667, %v6417
        %v6697 = vsub.f32 %v5669, %v6417
        %v6698 = vsub.f32 %v5860, %v6417
        %v6699 = vsub.f32 %v5862, %v6417
        %v6700 = vsub.f32 %v6053, %v6417
        %v6701 = vsub.f32 %v6055, %v6417
        %v6702 = vsub.f32 %v6246, %v6417
        %v6703 = vsub.f32 %v6248, %v6417
        %v6704 = vsub.f32 %v5673, %v6426
        %v6705 = vsub.f32 %v5675, %v6426
        %v6706 = vsub.f32 %v5866, %v6426
        %v6707 = vsub.f32 %v5868, %v6426
        %v6708 = vsub.f32 %v6059, %v6426
        %v6709 = vsub.f32 %v6061, %v6426
        %v6710 = vsub.f32 %v6252, %v6426
        %v6711 = vsub.f32 %v6254, %v6426
        %v6712 = vsub.f32 %v5677, %v6435
        %v6713 = vsub.f32 %v5679, %v6435
        %v6714 = vsub.f32 %v5870, %v6435
        %v6715 = vsub.f32 %v5872, %v6435
        %v6716 = vsub.f32 %v6063, %v6435
        %v6717 = vsub.f32 %v6065, %v6435
        %v6718 = vsub.f32 %v6256, %v6435
        %v6719 = vsub.f32 %v6258, %v6435
        %v6720 = vsub.f32 %v5683, %v6444
        %v6721 = vsub.f32 %v5685, %v6444
        %v6722 = vsub.f32 %v5876, %v6444
        %v6723 = vsub.f32 %v5878, %v6444
        %v6724 = vsub.f32 %v6069, %v6444
        %v6725 = vsub.f32 %v6071, %v6444
        %v6726 = vsub.f32 %v6262, %v6444
        %v6727 = vsub.f32 %v6264, %v6444
        %v6728 = vsub.f32 %v5687, %v6453
        %v6729 = vsub.f32 %v5689, %v6453
        %v6730 = vsub.f32 %v5880, %v6453
        %v6731 = vsub.f32 %v5882, %v6453
        %v6732 = vsub.f32 %v6073, %v6453
        %v6733 = vsub.f32 %v6075, %v6453
        %v6734 = vsub.f32 %v6266, %v6453
        %v6735 = vsub.f32 %v6268, %v6453
        %v6736 = vsub.f32 %v5693, %v6462
        %v6737 = vsub.f32 %v5695, %v6462
        %v6738 = vsub.f32 %v5886, %v6462
        %v6739 = vsub.f32 %v5888, %v6462
        %v6740 = vsub.f32 %v6079, %v6462
        %v6741 = vsub.f32 %v6081, %v6462
        %v6742 = vsub.f32 %v6272, %v6462
        %v6743 = vsub.f32 %v6274, %v6462
        %v6744 = vsub.f32 %v5697, %v6471
        %v6745 = vsub.f32 %v5699, %v6471
        %v6746 = vsub.f32 %v5890, %v6471
        %v6747 = vsub.f32 %v5892, %v6471
        %v6748 = vsub.f32 %v6083, %v6471
        %v6749 = vsub.f32 %v6085, %v6471
        %v6750 = vsub.f32 %v6276, %v6471
        %v6751 = vsub.f32 %v6278, %v6471
        %v6752 = vsub.f32 %v5703, %v6480
        %v6753 = vsub.f32 %v5705, %v6480
        %v6754 = vsub.f32 %v5896, %v6480
        %v6755 = vsub.f32 %v5898, %v6480
        %v6756 = vsub.f32 %v6089, %v6480
        %v6757 = vsub.f32 %v6091, %v6480
        %v6758 = vsub.f32 %v6282, %v6480
        %v6759 = vsub.f32 %v6284, %v6480
        %v6760 = vsub.f32 %v5707, %v6489
        %v6761 = vsub.f32 %v5709, %v6489
        %v6762 = vsub.f32 %v5900, %v6489
        %v6763 = vsub.f32 %v5902, %v6489
        %v6764 = vsub.f32 %v6093, %v6489
        %v6765 = vsub.f32 %v6095, %v6489
        %v6766 = vsub.f32 %v6286, %v6489
        %v6767 = vsub.f32 %v6288, %v6489
        %v6768 = vsub.f32 %v5713, %v6498
        %v6769 = vsub.f32 %v5715, %v6498
        %v6770 = vsub.f32 %v5906, %v6498
        %v6771 = vsub.f32 %v5908, %v6498
        %v6772 = vsub.f32 %v6099, %v6498
        %v6773 = vsub.f32 %v6101, %v6498
        %v6774 = vsub.f32 %v6292, %v6498
        %v6775 = vsub.f32 %v6294, %v6498
        %v6776 = vsub.f32 %v5717, %v6507
        %v6777 = vsub.f32 %v5719, %v6507
        %v6778 = vsub.f32 %v5910, %v6507
        %v6779 = vsub.f32 %v5912, %v6507
        %v6780 = vsub.f32 %v6103, %v6507
        %v6781 = vsub.f32 %v6105, %v6507
        %v6782 = vsub.f32 %v6296, %v6507
        %v6783 = vsub.f32 %v6298, %v6507
        %v6784 = vsub.f32 %v5723, %v6516
        %v6785 = vsub.f32 %v5725, %v6516
        %v6786 = vsub.f32 %v5916, %v6516
        %v6787 = vsub.f32 %v5918, %v6516
        %v6788 = vsub.f32 %v6109, %v6516
        %v6789 = vsub.f32 %v6111, %v6516
        %v6790 = vsub.f32 %v6302, %v6516
        %v6791 = vsub.f32 %v6304, %v6516
        %v6792 = vsub.f32 %v5727, %v6525
        %v6793 = vsub.f32 %v5729, %v6525
        %v6794 = vsub.f32 %v5920, %v6525
        %v6795 = vsub.f32 %v5922, %v6525
        %v6796 = vsub.f32 %v6113, %v6525
        %v6797 = vsub.f32 %v6115, %v6525
        %v6798 = vsub.f32 %v6306, %v6525
        %v6799 = vsub.f32 %v6308, %v6525
        %v6800 = vsub.f32 %v5733, %v6534
        %v6801 = vsub.f32 %v5735, %v6534
        %v6802 = vsub.f32 %v5926, %v6534
        %v6803 = vsub.f32 %v5928, %v6534
        %v6804 = vsub.f32 %v6119, %v6534
        %v6805 = vsub.f32 %v6121, %v6534
        %v6806 = vsub.f32 %v6312, %v6534
        %v6807 = vsub.f32 %v6314, %v6534
        %v6808 = vsub.f32 %v5737, %v6543
        %v6809 = vsub.f32 %v5739, %v6543
        %v6810 = vsub.f32 %v5930, %v6543
        %v6811 = vsub.f32 %v5932, %v6543
        %v6812 = vsub.f32 %v6123, %v6543
        %v6813 = vsub.f32 %v6125, %v6543
        %v6814 = vsub.f32 %v6316, %v6543
        %v6815 = vsub.f32 %v6318, %v6543
        %v6816 = vsub.f32 %v5743, %v6552
        %v6817 = vsub.f32 %v5745, %v6552
        %v6818 = vsub.f32 %v5936, %v6552
        %v6819 = vsub.f32 %v5938, %v6552
        %v6820 = vsub.f32 %v6129, %v6552
        %v6821 = vsub.f32 %v6131, %v6552
        %v6822 = vsub.f32 %v6322, %v6552
        %v6823 = vsub.f32 %v6324, %v6552
        %v6824 = vsub.f32 %v5747, %v6561
        %v6825 = vsub.f32 %v5749, %v6561
        %v6826 = vsub.f32 %v5940, %v6561
        %v6827 = vsub.f32 %v5942, %v6561
        %v6828 = vsub.f32 %v6133, %v6561
        %v6829 = vsub.f32 %v6135, %v6561
        %v6830 = vsub.f32 %v6326, %v6561
        %v6831 = vsub.f32 %v6328, %v6561
        %v6832 = vsub.f32 %v5753, %v6570
        %v6833 = vsub.f32 %v5755, %v6570
        %v6834 = vsub.f32 %v5946, %v6570
        %v6835 = vsub.f32 %v5948, %v6570
        %v6836 = vsub.f32 %v6139, %v6570
        %v6837 = vsub.f32 %v6141, %v6570
        %v6838 = vsub.f32 %v6332, %v6570
        %v6839 = vsub.f32 %v6334, %v6570
        %v6840 = vsub.f32 %v5757, %v6579
        %v6841 = vsub.f32 %v5759, %v6579
        %v6842 = vsub.f32 %v5950, %v6579
        %v6843 = vsub.f32 %v5952, %v6579
        %v6844 = vsub.f32 %v6143, %v6579
        %v6845 = vsub.f32 %v6145, %v6579
        %v6846 = vsub.f32 %v6336, %v6579
        %v6847 = vsub.f32 %v6338, %v6579
        %v6848 = vsub.f32 %v5763, %v6588
        %v6849 = vsub.f32 %v5765, %v6588
        %v6850 = vsub.f32 %v5956, %v6588
        %v6851 = vsub.f32 %v5958, %v6588
        %v6852 = vsub.f32 %v6149, %v6588
        %v6853 = vsub.f32 %v6151, %v6588
        %v6854 = vsub.f32 %v6342, %v6588
        %v6855 = vsub.f32 %v6344, %v6588
        %v6856 = vsub.f32 %v5767, %v6597
        %v6857 = vsub.f32 %v5769, %v6597
        %v6858 = vsub.f32 %v5960, %v6597
        %v6859 = vsub.f32 %v5962, %v6597
        %v6860 = vsub.f32 %v6153, %v6597
        %v6861 = vsub.f32 %v6155, %v6597
        %v6862 = vsub.f32 %v6346, %v6597
        %v6863 = vsub.f32 %v6348, %v6597
        %v6864 = vsub.f32 %v5773, %v6606
        %v6865 = vsub.f32 %v5775, %v6606
        %v6866 = vsub.f32 %v5966, %v6606
        %v6867 = vsub.f32 %v5968, %v6606
        %v6868 = vsub.f32 %v6159, %v6606
        %v6869 = vsub.f32 %v6161, %v6606
        %v6870 = vsub.f32 %v6352, %v6606
        %v6871 = vsub.f32 %v6354, %v6606
        %v6872 = vsub.f32 %v5777, %v6615
        %v6873 = vsub.f32 %v5779, %v6615
        %v6874 = vsub.f32 %v5970, %v6615
        %v6875 = vsub.f32 %v5972, %v6615
        %v6876 = vsub.f32 %v6163, %v6615
        %v6877 = vsub.f32 %v6165, %v6615
        %v6878 = vsub.f32 %v6356, %v6615
        %v6879 = vsub.f32 %v6358, %v6615
        %v6880 = vsub.f32 %v5783, %v6624
        %v6881 = vsub.f32 %v5785, %v6624
        %v6882 = vsub.f32 %v5976, %v6624
        %v6883 = vsub.f32 %v5978, %v6624
        %v6884 = vsub.f32 %v6169, %v6624
        %v6885 = vsub.f32 %v6171, %v6624
        %v6886 = vsub.f32 %v6362, %v6624
        %v6887 = vsub.f32 %v6364, %v6624
        %v6888 = vsub.f32 %v5787, %v6633
        %v6889 = vsub.f32 %v5789, %v6633
        %v6890 = vsub.f32 %v5980, %v6633
        %v6891 = vsub.f32 %v5982, %v6633
        %v6892 = vsub.f32 %v6173, %v6633
        %v6893 = vsub.f32 %v6175, %v6633
        %v6894 = vsub.f32 %v6366, %v6633
        %v6895 = vsub.f32 %v6368, %v6633
        %v6896 = vsub.f32 %v5793, %v6642
        %v6897 = vsub.f32 %v5795, %v6642
        %v6898 = vsub.f32 %v5986, %v6642
        %v6899 = vsub.f32 %v5988, %v6642
        %v6900 = vsub.f32 %v6179, %v6642
        %v6901 = vsub.f32 %v6181, %v6642
        %v6902 = vsub.f32 %v6372, %v6642
        %v6903 = vsub.f32 %v6374, %v6642
        %v6904 = vsub.f32 %v5797, %v6651
        %v6905 = vsub.f32 %v5799, %v6651
        %v6906 = vsub.f32 %v5990, %v6651
        %v6907 = vsub.f32 %v5992, %v6651
        %v6908 = vsub.f32 %v6183, %v6651
        %v6909 = vsub.f32 %v6185, %v6651
        %v6910 = vsub.f32 %v6376, %v6651
        %v6911 = vsub.f32 %v6378, %v6651
        %v6912 = vsub.f32 %v5803, %v6660
        %v6913 = vsub.f32 %v5805, %v6660
        %v6914 = vsub.f32 %v5996, %v6660
        %v6915 = vsub.f32 %v5998, %v6660
        %v6916 = vsub.f32 %v6189, %v6660
        %v6917 = vsub.f32 %v6191, %v6660
        %v6918 = vsub.f32 %v6382, %v6660
        %v6919 = vsub.f32 %v6384, %v6660
        %v6920 = vsub.f32 %v5807, %v6669
        %v6921 = vsub.f32 %v5809, %v6669
        %v6922 = vsub.f32 %v6000, %v6669
        %v6923 = vsub.f32 %v6002, %v6669
        %v6924 = vsub.f32 %v6193, %v6669
        %v6925 = vsub.f32 %v6195, %v6669
        %v6926 = vsub.f32 %v6386, %v6669
        %v6927 = vsub.f32 %v6388, %v6669
        %v6928 = vsub.f32 %v5813, %v6678
        %v6929 = vsub.f32 %v5815, %v6678
        %v6930 = vsub.f32 %v6006, %v6678
        %v6931 = vsub.f32 %v6008, %v6678
        %v6932 = vsub.f32 %v6199, %v6678
        %v6933 = vsub.f32 %v6201, %v6678
        %v6934 = vsub.f32 %v6392, %v6678
        %v6935 = vsub.f32 %v6394, %v6678
        %v6936 = vsub.f32 %v5817, %v6687
        %v6937 = vsub.f32 %v5819, %v6687
        %v6938 = vsub.f32 %v6010, %v6687
        %v6939 = vsub.f32 %v6012, %v6687
        %v6940 = vsub.f32 %v6203, %v6687
        %v6941 = vsub.f32 %v6205, %v6687
        %v6942 = vsub.f32 %v6396, %v6687
        %v6943 = vsub.f32 %v6398, %v6687
        %v6944 = vmul.f32 %v6688, 1.442695
        %v6945 = vpow.pop %v6944
        %v6946 = vmul.f32 %v6689, 1.442695
        %v6947 = vpow.pop %v6946
        %v6948 = vmul.f32 %v6690, 1.442695
        %v6949 = vpow.pop %v6948
        %v6950 = vmul.f32 %v6691, 1.442695
        %v6951 = vpow.pop %v6950
        %v6952 = vmul.f32 %v6692, 1.442695
        %v6953 = vpow.pop %v6952
        %v6954 = vmul.f32 %v6693, 1.442695
        %v6955 = vpow.pop %v6954
        %v6956 = vmul.f32 %v6694, 1.442695
        %v6957 = vpow.pop %v6956
        %v6958 = vmul.f32 %v6695, 1.442695
        %v6959 = vpow.pop %v6958
        %v6960 = vmul.f32 %v6696, 1.442695
        %v6961 = vpow.pop %v6960
        %v6962 = vmul.f32 %v6697, 1.442695
        %v6963 = vpow.pop %v6962
        %v6964 = vmul.f32 %v6698, 1.442695
        %v6965 = vpow.pop %v6964
        %v6966 = vmul.f32 %v6699, 1.442695
        %v6967 = vpow.pop %v6966
        %v6968 = vmul.f32 %v6700, 1.442695
        %v6969 = vpow.pop %v6968
        %v6970 = vmul.f32 %v6701, 1.442695
        %v6971 = vpow.pop %v6970
        %v6972 = vmul.f32 %v6702, 1.442695
        %v6973 = vpow.pop %v6972
        %v6974 = vmul.f32 %v6703, 1.442695
        %v6975 = vpow.pop %v6974
        %v6976 = vmul.f32 %v6704, 1.442695
        %v6977 = vpow.pop %v6976
        %v6978 = vmul.f32 %v6705, 1.442695
        %v6979 = vpow.pop %v6978
        %v6980 = vmul.f32 %v6706, 1.442695
        %v6981 = vpow.pop %v6980
        %v6982 = vmul.f32 %v6707, 1.442695
        %v6983 = vpow.pop %v6982
        %v6984 = vmul.f32 %v6708, 1.442695
        %v6985 = vpow.pop %v6984
        %v6986 = vmul.f32 %v6709, 1.442695
        %v6987 = vpow.pop %v6986
        %v6988 = vmul.f32 %v6710, 1.442695
        %v6989 = vpow.pop %v6988
        %v6990 = vmul.f32 %v6711, 1.442695
        %v6991 = vpow.pop %v6990
        %v6992 = vmul.f32 %v6712, 1.442695
        %v6993 = vpow.pop %v6992
        %v6994 = vmul.f32 %v6713, 1.442695
        %v6995 = vpow.pop %v6994
        %v6996 = vmul.f32 %v6714, 1.442695
        %v6997 = vpow.pop %v6996
        %v6998 = vmul.f32 %v6715, 1.442695
        %v6999 = vpow.pop %v6998
        %v7000 = vmul.f32 %v6716, 1.442695
        %v7001 = vpow.pop %v7000
        %v7002 = vmul.f32 %v6717, 1.442695
        %v7003 = vpow.pop %v7002
        %v7004 = vmul.f32 %v6718, 1.442695
        %v7005 = vpow.pop %v7004
        %v7006 = vmul.f32 %v6719, 1.442695
        %v7007 = vpow.pop %v7006
        %v7008 = vmul.f32 %v6720, 1.442695
        %v7009 = vpow.pop %v7008
        %v7010 = vmul.f32 %v6721, 1.442695
        %v7011 = vpow.pop %v7010
        %v7012 = vmul.f32 %v6722, 1.442695
        %v7013 = vpow.pop %v7012
        %v7014 = vmul.f32 %v6723, 1.442695
        %v7015 = vpow.pop %v7014
        %v7016 = vmul.f32 %v6724, 1.442695
        %v7017 = vpow.pop %v7016
        %v7018 = vmul.f32 %v6725, 1.442695
        %v7019 = vpow.pop %v7018
        %v7020 = vmul.f32 %v6726, 1.442695
        %v7021 = vpow.pop %v7020
        %v7022 = vmul.f32 %v6727, 1.442695
        %v7023 = vpow.pop %v7022
        %v7024 = vmul.f32 %v6728, 1.442695
        %v7025 = vpow.pop %v7024
        %v7026 = vmul.f32 %v6729, 1.442695
        %v7027 = vpow.pop %v7026
        %v7028 = vmul.f32 %v6730, 1.442695
        %v7029 = vpow.pop %v7028
        %v7030 = vmul.f32 %v6731, 1.442695
        %v7031 = vpow.pop %v7030
        %v7032 = vmul.f32 %v6732, 1.442695
        %v7033 = vpow.pop %v7032
        %v7034 = vmul.f32 %v6733, 1.442695
        %v7035 = vpow.pop %v7034
        %v7036 = vmul.f32 %v6734, 1.442695
        %v7037 = vpow.pop %v7036
        %v7038 = vmul.f32 %v6735, 1.442695
        %v7039 = vpow.pop %v7038
        %v7040 = vmul.f32 %v6736, 1.442695
        %v7041 = vpow.pop %v7040
        %v7042 = vmul.f32 %v6737, 1.442695
        %v7043 = vpow.pop %v7042
        %v7044 = vmul.f32 %v6738, 1.442695
        %v7045 = vpow.pop %v7044
        %v7046 = vmul.f32 %v6739, 1.442695
        %v7047 = vpow.pop %v7046
        %v7048 = vmul.f32 %v6740, 1.442695
        %v7049 = vpow.pop %v7048
        %v7050 = vmul.f32 %v6741, 1.442695
        %v7051 = vpow.pop %v7050
        %v7052 = vmul.f32 %v6742, 1.442695
        %v7053 = vpow.pop %v7052
        %v7054 = vmul.f32 %v6743, 1.442695
        %v7055 = vpow.pop %v7054
        %v7056 = vmul.f32 %v6744, 1.442695
        %v7057 = vpow.pop %v7056
        %v7058 = vmul.f32 %v6745, 1.442695
        %v7059 = vpow.pop %v7058
        %v7060 = vmul.f32 %v6746, 1.442695
        %v7061 = vpow.pop %v7060
        %v7062 = vmul.f32 %v6747, 1.442695
        %v7063 = vpow.pop %v7062
        %v7064 = vmul.f32 %v6748, 1.442695
        %v7065 = vpow.pop %v7064
        %v7066 = vmul.f32 %v6749, 1.442695
        %v7067 = vpow.pop %v7066
        %v7068 = vmul.f32 %v6750, 1.442695
        %v7069 = vpow.pop %v7068
        %v7070 = vmul.f32 %v6751, 1.442695
        %v7071 = vpow.pop %v7070
        %v7072 = vmul.f32 %v6752, 1.442695
        %v7073 = vpow.pop %v7072
        %v7074 = vmul.f32 %v6753, 1.442695
        %v7075 = vpow.pop %v7074
        %v7076 = vmul.f32 %v6754, 1.442695
        %v7077 = vpow.pop %v7076
        %v7078 = vmul.f32 %v6755, 1.442695
        %v7079 = vpow.pop %v7078
        %v7080 = vmul.f32 %v6756, 1.442695
        %v7081 = vpow.pop %v7080
        %v7082 = vmul.f32 %v6757, 1.442695
        %v7083 = vpow.pop %v7082
        %v7084 = vmul.f32 %v6758, 1.442695
        %v7085 = vpow.pop %v7084
        %v7086 = vmul.f32 %v6759, 1.442695
        %v7087 = vpow.pop %v7086
        %v7088 = vmul.f32 %v6760, 1.442695
        %v7089 = vpow.pop %v7088
        %v7090 = vmul.f32 %v6761, 1.442695
        %v7091 = vpow.pop %v7090
        %v7092 = vmul.f32 %v6762, 1.442695
        %v7093 = vpow.pop %v7092
        %v7094 = vmul.f32 %v6763, 1.442695
        %v7095 = vpow.pop %v7094
        %v7096 = vmul.f32 %v6764, 1.442695
        %v7097 = vpow.pop %v7096
        %v7098 = vmul.f32 %v6765, 1.442695
        %v7099 = vpow.pop %v7098
        %v7100 = vmul.f32 %v6766, 1.442695
        %v7101 = vpow.pop %v7100
        %v7102 = vmul.f32 %v6767, 1.442695
        %v7103 = vpow.pop %v7102
        %v7104 = vmul.f32 %v6768, 1.442695
        %v7105 = vpow.pop %v7104
        %v7106 = vmul.f32 %v6769, 1.442695
        %v7107 = vpow.pop %v7106
        %v7108 = vmul.f32 %v6770, 1.442695
        %v7109 = vpow.pop %v7108
        %v7110 = vmul.f32 %v6771, 1.442695
        %v7111 = vpow.pop %v7110
        %v7112 = vmul.f32 %v6772, 1.442695
        %v7113 = vpow.pop %v7112
        %v7114 = vmul.f32 %v6773, 1.442695
        %v7115 = vpow.pop %v7114
        %v7116 = vmul.f32 %v6774, 1.442695
        %v7117 = vpow.pop %v7116
        %v7118 = vmul.f32 %v6775, 1.442695
        %v7119 = vpow.pop %v7118
        %v7120 = vmul.f32 %v6776, 1.442695
        %v7121 = vpow.pop %v7120
        %v7122 = vmul.f32 %v6777, 1.442695
        %v7123 = vpow.pop %v7122
        %v7124 = vmul.f32 %v6778, 1.442695
        %v7125 = vpow.pop %v7124
        %v7126 = vmul.f32 %v6779, 1.442695
        %v7127 = vpow.pop %v7126
        %v7128 = vmul.f32 %v6780, 1.442695
        %v7129 = vpow.pop %v7128
        %v7130 = vmul.f32 %v6781, 1.442695
        %v7131 = vpow.pop %v7130
        %v7132 = vmul.f32 %v6782, 1.442695
        %v7133 = vpow.pop %v7132
        %v7134 = vmul.f32 %v6783, 1.442695
        %v7135 = vpow.pop %v7134
        %v7136 = vmul.f32 %v6784, 1.442695
        %v7137 = vpow.pop %v7136
        %v7138 = vmul.f32 %v6785, 1.442695
        %v7139 = vpow.pop %v7138
        %v7140 = vmul.f32 %v6786, 1.442695
        %v7141 = vpow.pop %v7140
        %v7142 = vmul.f32 %v6787, 1.442695
        %v7143 = vpow.pop %v7142
        %v7144 = vmul.f32 %v6788, 1.442695
        %v7145 = vpow.pop %v7144
        %v7146 = vmul.f32 %v6789, 1.442695
        %v7147 = vpow.pop %v7146
        %v7148 = vmul.f32 %v6790, 1.442695
        %v7149 = vpow.pop %v7148
        %v7150 = vmul.f32 %v6791, 1.442695
        %v7151 = vpow.pop %v7150
        %v7152 = vmul.f32 %v6792, 1.442695
        %v7153 = vpow.pop %v7152
        %v7154 = vmul.f32 %v6793, 1.442695
        %v7155 = vpow.pop %v7154
        %v7156 = vmul.f32 %v6794, 1.442695
        %v7157 = vpow.pop %v7156
        %v7158 = vmul.f32 %v6795, 1.442695
        %v7159 = vpow.pop %v7158
        %v7160 = vmul.f32 %v6796, 1.442695
        %v7161 = vpow.pop %v7160
        %v7162 = vmul.f32 %v6797, 1.442695
        %v7163 = vpow.pop %v7162
        %v7164 = vmul.f32 %v6798, 1.442695
        %v7165 = vpow.pop %v7164
        %v7166 = vmul.f32 %v6799, 1.442695
        %v7167 = vpow.pop %v7166
        %v7168 = vmul.f32 %v6800, 1.442695
        %v7169 = vpow.pop %v7168
        %v7170 = vmul.f32 %v6801, 1.442695
        %v7171 = vpow.pop %v7170
        %v7172 = vmul.f32 %v6802, 1.442695
        %v7173 = vpow.pop %v7172
        %v7174 = vmul.f32 %v6803, 1.442695
        %v7175 = vpow.pop %v7174
        %v7176 = vmul.f32 %v6804, 1.442695
        %v7177 = vpow.pop %v7176
        %v7178 = vmul.f32 %v6805, 1.442695
        %v7179 = vpow.pop %v7178
        %v7180 = vmul.f32 %v6806, 1.442695
        %v7181 = vpow.pop %v7180
        %v7182 = vmul.f32 %v6807, 1.442695
        %v7183 = vpow.pop %v7182
        %v7184 = vmul.f32 %v6808, 1.442695
        %v7185 = vpow.pop %v7184
        %v7186 = vmul.f32 %v6809, 1.442695
        %v7187 = vpow.pop %v7186
        %v7188 = vmul.f32 %v6810, 1.442695
        %v7189 = vpow.pop %v7188
        %v7190 = vmul.f32 %v6811, 1.442695
        %v7191 = vpow.pop %v7190
        %v7192 = vmul.f32 %v6812, 1.442695
        %v7193 = vpow.pop %v7192
        %v7194 = vmul.f32 %v6813, 1.442695
        %v7195 = vpow.pop %v7194
        %v7196 = vmul.f32 %v6814, 1.442695
        %v7197 = vpow.pop %v7196
        %v7198 = vmul.f32 %v6815, 1.442695
        %v7199 = vpow.pop %v7198
        %v7200 = vmul.f32 %v6816, 1.442695
        %v7201 = vpow.pop %v7200
        %v7202 = vmul.f32 %v6817, 1.442695
        %v7203 = vpow.pop %v7202
        %v7204 = vmul.f32 %v6818, 1.442695
        %v7205 = vpow.pop %v7204
        %v7206 = vmul.f32 %v6819, 1.442695
        %v7207 = vpow.pop %v7206
        %v7208 = vmul.f32 %v6820, 1.442695
        %v7209 = vpow.pop %v7208
        %v7210 = vmul.f32 %v6821, 1.442695
        %v7211 = vpow.pop %v7210
        %v7212 = vmul.f32 %v6822, 1.442695
        %v7213 = vpow.pop %v7212
        %v7214 = vmul.f32 %v6823, 1.442695
        %v7215 = vpow.pop %v7214
        %v7216 = vmul.f32 %v6824, 1.442695
        %v7217 = vpow.pop %v7216
        %v7218 = vmul.f32 %v6825, 1.442695
        %v7219 = vpow.pop %v7218
        %v7220 = vmul.f32 %v6826, 1.442695
        %v7221 = vpow.pop %v7220
        %v7222 = vmul.f32 %v6827, 1.442695
        %v7223 = vpow.pop %v7222
        %v7224 = vmul.f32 %v6828, 1.442695
        %v7225 = vpow.pop %v7224
        %v7226 = vmul.f32 %v6829, 1.442695
        %v7227 = vpow.pop %v7226
        %v7228 = vmul.f32 %v6830, 1.442695
        %v7229 = vpow.pop %v7228
        %v7230 = vmul.f32 %v6831, 1.442695
        %v7231 = vpow.pop %v7230
        %v7232 = vmul.f32 %v6832, 1.442695
        %v7233 = vpow.pop %v7232
        %v7234 = vmul.f32 %v6833, 1.442695
        %v7235 = vpow.pop %v7234
        %v7236 = vmul.f32 %v6834, 1.442695
        %v7237 = vpow.pop %v7236
        %v7238 = vmul.f32 %v6835, 1.442695
        %v7239 = vpow.pop %v7238
        %v7240 = vmul.f32 %v6836, 1.442695
        %v7241 = vpow.pop %v7240
        %v7242 = vmul.f32 %v6837, 1.442695
        %v7243 = vpow.pop %v7242
        %v7244 = vmul.f32 %v6838, 1.442695
        %v7245 = vpow.pop %v7244
        %v7246 = vmul.f32 %v6839, 1.442695
        %v7247 = vpow.pop %v7246
        %v7248 = vmul.f32 %v6840, 1.442695
        %v7249 = vpow.pop %v7248
        %v7250 = vmul.f32 %v6841, 1.442695
        %v7251 = vpow.pop %v7250
        %v7252 = vmul.f32 %v6842, 1.442695
        %v7253 = vpow.pop %v7252
        %v7254 = vmul.f32 %v6843, 1.442695
        %v7255 = vpow.pop %v7254
        %v7256 = vmul.f32 %v6844, 1.442695
        %v7257 = vpow.pop %v7256
        %v7258 = vmul.f32 %v6845, 1.442695
        %v7259 = vpow.pop %v7258
        %v7260 = vmul.f32 %v6846, 1.442695
        %v7261 = vpow.pop %v7260
        %v7262 = vmul.f32 %v6847, 1.442695
        %v7263 = vpow.pop %v7262
        %v7264 = vmul.f32 %v6848, 1.442695
        %v7265 = vpow.pop %v7264
        %v7266 = vmul.f32 %v6849, 1.442695
        %v7267 = vpow.pop %v7266
        %v7268 = vmul.f32 %v6850, 1.442695
        %v7269 = vpow.pop %v7268
        %v7270 = vmul.f32 %v6851, 1.442695
        %v7271 = vpow.pop %v7270
        %v7272 = vmul.f32 %v6852, 1.442695
        %v7273 = vpow.pop %v7272
        %v7274 = vmul.f32 %v6853, 1.442695
        %v7275 = vpow.pop %v7274
        %v7276 = vmul.f32 %v6854, 1.442695
        %v7277 = vpow.pop %v7276
        %v7278 = vmul.f32 %v6855, 1.442695
        %v7279 = vpow.pop %v7278
        %v7280 = vmul.f32 %v6856, 1.442695
        %v7281 = vpow.pop %v7280
        %v7282 = vmul.f32 %v6857, 1.442695
        %v7283 = vpow.pop %v7282
        %v7284 = vmul.f32 %v6858, 1.442695
        %v7285 = vpow.pop %v7284
        %v7286 = vmul.f32 %v6859, 1.442695
        %v7287 = vpow.pop %v7286
        %v7288 = vmul.f32 %v6860, 1.442695
        %v7289 = vpow.pop %v7288
        %v7290 = vmul.f32 %v6861, 1.442695
        %v7291 = vpow.pop %v7290
        %v7292 = vmul.f32 %v6862, 1.442695
        %v7293 = vpow.pop %v7292
        %v7294 = vmul.f32 %v6863, 1.442695
        %v7295 = vpow.pop %v7294
        %v7296 = vmul.f32 %v6864, 1.442695
        %v7297 = vpow.pop %v7296
        %v7298 = vmul.f32 %v6865, 1.442695
        %v7299 = vpow.pop %v7298
        %v7300 = vmul.f32 %v6866, 1.442695
        %v7301 = vpow.pop %v7300
        %v7302 = vmul.f32 %v6867, 1.442695
        %v7303 = vpow.pop %v7302
        %v7304 = vmul.f32 %v6868, 1.442695
        %v7305 = vpow.pop %v7304
        %v7306 = vmul.f32 %v6869, 1.442695
        %v7307 = vpow.pop %v7306
        %v7308 = vmul.f32 %v6870, 1.442695
        %v7309 = vpow.pop %v7308
        %v7310 = vmul.f32 %v6871, 1.442695
        %v7311 = vpow.pop %v7310
        %v7312 = vmul.f32 %v6872, 1.442695
        %v7313 = vpow.pop %v7312
        %v7314 = vmul.f32 %v6873, 1.442695
        %v7315 = vpow.pop %v7314
        %v7316 = vmul.f32 %v6874, 1.442695
        %v7317 = vpow.pop %v7316
        %v7318 = vmul.f32 %v6875, 1.442695
        %v7319 = vpow.pop %v7318
        %v7320 = vmul.f32 %v6876, 1.442695
        %v7321 = vpow.pop %v7320
        %v7322 = vmul.f32 %v6877, 1.442695
        %v7323 = vpow.pop %v7322
        %v7324 = vmul.f32 %v6878, 1.442695
        %v7325 = vpow.pop %v7324
        %v7326 = vmul.f32 %v6879, 1.442695
        %v7327 = vpow.pop %v7326
        %v7328 = vmul.f32 %v6880, 1.442695
        %v7329 = vpow.pop %v7328
        %v7330 = vmul.f32 %v6881, 1.442695
        %v7331 = vpow.pop %v7330
        %v7332 = vmul.f32 %v6882, 1.442695
        %v7333 = vpow.pop %v7332
        %v7334 = vmul.f32 %v6883, 1.442695
        %v7335 = vpow.pop %v7334
        %v7336 = vmul.f32 %v6884, 1.442695
        %v7337 = vpow.pop %v7336
        %v7338 = vmul.f32 %v6885, 1.442695
        %v7339 = vpow.pop %v7338
        %v7340 = vmul.f32 %v6886, 1.442695
        %v7341 = vpow.pop %v7340
        %v7342 = vmul.f32 %v6887, 1.442695
        %v7343 = vpow.pop %v7342
        %v7344 = vmul.f32 %v6888, 1.442695
        %v7345 = vpow.pop %v7344
        %v7346 = vmul.f32 %v6889, 1.442695
        %v7347 = vpow.pop %v7346
        %v7348 = vmul.f32 %v6890, 1.442695
        %v7349 = vpow.pop %v7348
        %v7350 = vmul.f32 %v6891, 1.442695
        %v7351 = vpow.pop %v7350
        %v7352 = vmul.f32 %v6892, 1.442695
        %v7353 = vpow.pop %v7352
        %v7354 = vmul.f32 %v6893, 1.442695
        %v7355 = vpow.pop %v7354
        %v7356 = vmul.f32 %v6894, 1.442695
        %v7357 = vpow.pop %v7356
        %v7358 = vmul.f32 %v6895, 1.442695
        %v7359 = vpow.pop %v7358
        %v7360 = vmul.f32 %v6896, 1.442695
        %v7361 = vpow.pop %v7360
        %v7362 = vmul.f32 %v6897, 1.442695
        %v7363 = vpow.pop %v7362
        %v7364 = vmul.f32 %v6898, 1.442695
        %v7365 = vpow.pop %v7364
        %v7366 = vmul.f32 %v6899, 1.442695
        %v7367 = vpow.pop %v7366
        %v7368 = vmul.f32 %v6900, 1.442695
        %v7369 = vpow.pop %v7368
        %v7370 = vmul.f32 %v6901, 1.442695
        %v7371 = vpow.pop %v7370
        %v7372 = vmul.f32 %v6902, 1.442695
        %v7373 = vpow.pop %v7372
        %v7374 = vmul.f32 %v6903, 1.442695
        %v7375 = vpow.pop %v7374
        %v7376 = vmul.f32 %v6904, 1.442695
        %v7377 = vpow.pop %v7376
        %v7378 = vmul.f32 %v6905, 1.442695
        %v7379 = vpow.pop %v7378
        %v7380 = vmul.f32 %v6906, 1.442695
        %v7381 = vpow.pop %v7380
        %v7382 = vmul.f32 %v6907, 1.442695
        %v7383 = vpow.pop %v7382
        %v7384 = vmul.f32 %v6908, 1.442695
        %v7385 = vpow.pop %v7384
        %v7386 = vmul.f32 %v6909, 1.442695
        %v7387 = vpow.pop %v7386
        %v7388 = vmul.f32 %v6910, 1.442695
        %v7389 = vpow.pop %v7388
        %v7390 = vmul.f32 %v6911, 1.442695
        %v7391 = vpow.pop %v7390
        %v7392 = vmul.f32 %v6912, 1.442695
        %v7393 = vpow.pop %v7392
        %v7394 = vmul.f32 %v6913, 1.442695
        %v7395 = vpow.pop %v7394
        %v7396 = vmul.f32 %v6914, 1.442695
        %v7397 = vpow.pop %v7396
        %v7398 = vmul.f32 %v6915, 1.442695
        %v7399 = vpow.pop %v7398
        %v7400 = vmul.f32 %v6916, 1.442695
        %v7401 = vpow.pop %v7400
        %v7402 = vmul.f32 %v6917, 1.442695
        %v7403 = vpow.pop %v7402
        %v7404 = vmul.f32 %v6918, 1.442695
        %v7405 = vpow.pop %v7404
        %v7406 = vmul.f32 %v6919, 1.442695
        %v7407 = vpow.pop %v7406
        %v7408 = vmul.f32 %v6920, 1.442695
        %v7409 = vpow.pop %v7408
        %v7410 = vmul.f32 %v6921, 1.442695
        %v7411 = vpow.pop %v7410
        %v7412 = vmul.f32 %v6922, 1.442695
        %v7413 = vpow.pop %v7412
        %v7414 = vmul.f32 %v6923, 1.442695
        %v7415 = vpow.pop %v7414
        %v7416 = vmul.f32 %v6924, 1.442695
        %v7417 = vpow.pop %v7416
        %v7418 = vmul.f32 %v6925, 1.442695
        %v7419 = vpow.pop %v7418
        %v7420 = vmul.f32 %v6926, 1.442695
        %v7421 = vpow.pop %v7420
        %v7422 = vmul.f32 %v6927, 1.442695
        %v7423 = vpow.pop %v7422
        %v7424 = vmul.f32 %v6928, 1.442695
        %v7425 = vpow.pop %v7424
        %v7426 = vmul.f32 %v6929, 1.442695
        %v7427 = vpow.pop %v7426
        %v7428 = vmul.f32 %v6930, 1.442695
        %v7429 = vpow.pop %v7428
        %v7430 = vmul.f32 %v6931, 1.442695
        %v7431 = vpow.pop %v7430
        %v7432 = vmul.f32 %v6932, 1.442695
        %v7433 = vpow.pop %v7432
        %v7434 = vmul.f32 %v6933, 1.442695
        %v7435 = vpow.pop %v7434
        %v7436 = vmul.f32 %v6934, 1.442695
        %v7437 = vpow.pop %v7436
        %v7438 = vmul.f32 %v6935, 1.442695
        %v7439 = vpow.pop %v7438
        %v7440 = vmul.f32 %v6936, 1.442695
        %v7441 = vpow.pop %v7440
        %v7442 = vmul.f32 %v6937, 1.442695
        %v7443 = vpow.pop %v7442
        %v7444 = vmul.f32 %v6938, 1.442695
        %v7445 = vpow.pop %v7444
        %v7446 = vmul.f32 %v6939, 1.442695
        %v7447 = vpow.pop %v7446
        %v7448 = vmul.f32 %v6940, 1.442695
        %v7449 = vpow.pop %v7448
        %v7450 = vmul.f32 %v6941, 1.442695
        %v7451 = vpow.pop %v7450
        %v7452 = vmul.f32 %v6942, 1.442695
        %v7453 = vpow.pop %v7452
        %v7454 = vmul.f32 %v6943, 1.442695
        %v7455 = vpow.pop %v7454
        %v7456 = vpack.c.bf16 %v6961, %v6945
        %v7457 = vpack.c.bf16 %v6963, %v6947
        %v7458 = vpack.c.bf16 %v6965, %v6949
        %v7459 = vpack.c.bf16 %v6967, %v6951
        %v7460 = vpack.c.bf16 %v6969, %v6953
        %v7461 = vpack.c.bf16 %v6971, %v6955
        %v7462 = vpack.c.bf16 %v6973, %v6957
        %v7463 = vpack.c.bf16 %v6975, %v6959
        %v7464 = vpack.c.bf16 %v6993, %v6977
        %v7465 = vpack.c.bf16 %v6995, %v6979
        %v7466 = vpack.c.bf16 %v6997, %v6981
        %v7467 = vpack.c.bf16 %v6999, %v6983
        %v7468 = vpack.c.bf16 %v7001, %v6985
        %v7469 = vpack.c.bf16 %v7003, %v6987
        %v7470 = vpack.c.bf16 %v7005, %v6989
        %v7471 = vpack.c.bf16 %v7007, %v6991
        %v7472 = vpack.c.bf16 %v7025, %v7009
        %v7473 = vpack.c.bf16 %v7027, %v7011
        %v7474 = vpack.c.bf16 %v7029, %v7013
        %v7475 = vpack.c.bf16 %v7031, %v7015
        %v7476 = vpack.c.bf16 %v7033, %v7017
        %v7477 = vpack.c.bf16 %v7035, %v7019
        %v7478 = vpack.c.bf16 %v7037, %v7021
        %v7479 = vpack.c.bf16 %v7039, %v7023
        %v7480 = vpack.c.bf16 %v7057, %v7041
        %v7481 = vpack.c.bf16 %v7059, %v7043
        %v7482 = vpack.c.bf16 %v7061, %v7045
        %v7483 = vpack.c.bf16 %v7063, %v7047
        %v7484 = vpack.c.bf16 %v7065, %v7049
        %v7485 = vpack.c.bf16 %v7067, %v7051
        %v7486 = vpack.c.bf16 %v7069, %v7053
        %v7487 = vpack.c.bf16 %v7071, %v7055
        %v7488 = vpack.c.bf16 %v7089, %v7073
        %v7489 = vpack.c.bf16 %v7091, %v7075
        %v7490 = vpack.c.bf16 %v7093, %v7077
        %v7491 = vpack.c.bf16 %v7095, %v7079
        %v7492 = vpack.c.bf16 %v7097, %v7081
        %v7493 = vpack.c.bf16 %v7099, %v7083
        %v7494 = vpack.c.bf16 %v7101, %v7085
        %v7495 = vpack.c.bf16 %v7103, %v7087
        %v7496 = vpack.c.bf16 %v7121, %v7105
        %v7497 = vpack.c.bf16 %v7123, %v7107
        %v7498 = vpack.c.bf16 %v7125, %v7109
        %v7499 = vpack.c.bf16 %v7127, %v7111
        %v7500 = vpack.c.bf16 %v7129, %v7113
        %v7501 = vpack.c.bf16 %v7131, %v7115
        %v7502 = vpack.c.bf16 %v7133, %v7117
        %v7503 = vpack.c.bf16 %v7135, %v7119
        %v7504 = vpack.c.bf16 %v7153, %v7137
        %v7505 = vpack.c.bf16 %v7155, %v7139
        %v7506 = vpack.c.bf16 %v7157, %v7141
        %v7507 = vpack.c.bf16 %v7159, %v7143
        %v7508 = vpack.c.bf16 %v7161, %v7145
        %v7509 = vpack.c.bf16 %v7163, %v7147
        %v7510 = vpack.c.bf16 %v7165, %v7149
        %v7511 = vpack.c.bf16 %v7167, %v7151
        %v7512 = vpack.c.bf16 %v7185, %v7169
        %v7513 = vpack.c.bf16 %v7187, %v7171
        %v7514 = vpack.c.bf16 %v7189, %v7173
        %v7515 = vpack.c.bf16 %v7191, %v7175
        %v7516 = vpack.c.bf16 %v7193, %v7177
        %v7517 = vpack.c.bf16 %v7195, %v7179
        %v7518 = vpack.c.bf16 %v7197, %v7181
        %v7519 = vpack.c.bf16 %v7199, %v7183
        %v7520 = vpack.c.bf16 %v7217, %v7201
        %v7521 = vpack.c.bf16 %v7219, %v7203
        %v7522 = vpack.c.bf16 %v7221, %v7205
        %v7523 = vpack.c.bf16 %v7223, %v7207
        %v7524 = vpack.c.bf16 %v7225, %v7209
        %v7525 = vpack.c.bf16 %v7227, %v7211
        %v7526 = vpack.c.bf16 %v7229, %v7213
        %v7527 = vpack.c.bf16 %v7231, %v7215
        %v7528 = vpack.c.bf16 %v7249, %v7233
        %v7529 = vpack.c.bf16 %v7251, %v7235
        %v7530 = vpack.c.bf16 %v7253, %v7237
        %v7531 = vpack.c.bf16 %v7255, %v7239
        %v7532 = vpack.c.bf16 %v7257, %v7241
        %v7533 = vpack.c.bf16 %v7259, %v7243
        %v7534 = vpack.c.bf16 %v7261, %v7245
        %v7535 = vpack.c.bf16 %v7263, %v7247
        %v7536 = vpack.c.bf16 %v7281, %v7265
        %v7537 = vpack.c.bf16 %v7283, %v7267
        %v7538 = vpack.c.bf16 %v7285, %v7269
        %v7539 = vpack.c.bf16 %v7287, %v7271
        %v7540 = vpack.c.bf16 %v7289, %v7273
        %v7541 = vpack.c.bf16 %v7291, %v7275
        %v7542 = vpack.c.bf16 %v7293, %v7277
        %v7543 = vpack.c.bf16 %v7295, %v7279
        %v7544 = vpack.c.bf16 %v7313, %v7297
        %v7545 = vpack.c.bf16 %v7315, %v7299
        %v7546 = vpack.c.bf16 %v7317, %v7301
        %v7547 = vpack.c.bf16 %v7319, %v7303
        %v7548 = vpack.c.bf16 %v7321, %v7305
        %v7549 = vpack.c.bf16 %v7323, %v7307
        %v7550 = vpack.c.bf16 %v7325, %v7309
        %v7551 = vpack.c.bf16 %v7327, %v7311
        %v7552 = vpack.c.bf16 %v7345, %v7329
        %v7553 = vpack.c.bf16 %v7347, %v7331
        %v7554 = vpack.c.bf16 %v7349, %v7333
        %v7555 = vpack.c.bf16 %v7351, %v7335
        %v7556 = vpack.c.bf16 %v7353, %v7337
        %v7557 = vpack.c.bf16 %v7355, %v7339
        %v7558 = vpack.c.bf16 %v7357, %v7341
        %v7559 = vpack.c.bf16 %v7359, %v7343
        %v7560 = vpack.c.bf16 %v7377, %v7361
        %v7561 = vpack.c.bf16 %v7379, %v7363
        %v7562 = vpack.c.bf16 %v7381, %v7365
        %v7563 = vpack.c.bf16 %v7383, %v7367
        %v7564 = vpack.c.bf16 %v7385, %v7369
        %v7565 = vpack.c.bf16 %v7387, %v7371
        %v7566 = vpack.c.bf16 %v7389, %v7373
        %v7567 = vpack.c.bf16 %v7391, %v7375
        %v7568 = vpack.c.bf16 %v7409, %v7393
        %v7569 = vpack.c.bf16 %v7411, %v7395
        %v7570 = vpack.c.bf16 %v7413, %v7397
        %v7571 = vpack.c.bf16 %v7415, %v7399
        %v7572 = vpack.c.bf16 %v7417, %v7401
        %v7573 = vpack.c.bf16 %v7419, %v7403
        %v7574 = vpack.c.bf16 %v7421, %v7405
        %v7575 = vpack.c.bf16 %v7423, %v7407
        %v7576 = vpack.c.bf16 %v7441, %v7425
        %v7577 = vpack.c.bf16 %v7443, %v7427
        %v7578 = vpack.c.bf16 %v7445, %v7429
        %v7579 = vpack.c.bf16 %v7447, %v7431
        %v7580 = vpack.c.bf16 %v7449, %v7433
        %v7581 = vpack.c.bf16 %v7451, %v7435
        %v7582 = vpack.c.bf16 %v7453, %v7437
        %v7583 = vpack.c.bf16 %v7455, %v7439
        %v7584 = vld [vmem:[#allocation4] sm:$0xf]
        %v7585 = vld [vmem:[#allocation4 + $0x4] sm:$0xf]
        %v7586 = vld [vmem:[#allocation4 + $0x8] sm:$0xf]
        %v7587 = vld [vmem:[#allocation4 + $0xc] sm:$0xf]
        %v7588 = vld [vmem:[#allocation4 + $0x10] sm:$0xf]
        %v7589 = vld [vmem:[#allocation4 + $0x14] sm:$0xf]
        %v7590 = vld [vmem:[#allocation4 + $0x18] sm:$0xf]
        %v7591 = vld [vmem:[#allocation4 + $0x1c] sm:$0xf]
        %v7592 = vld [vmem:[#allocation4 + $0x20] sm:$0xf]
        %v7593 = vld [vmem:[#allocation4 + $0x24] sm:$0xf]
        %v7594 = vld [vmem:[#allocation4 + $0x28] sm:$0xf]
        %v7595 = vld [vmem:[#allocation4 + $0x2c] sm:$0xf]
        %v7596 = vld [vmem:[#allocation4 + $0x30] sm:$0xf]
        %v7597 = vld [vmem:[#allocation4 + $0x34] sm:$0xf]
        %v7598 = vld [vmem:[#allocation4 + $0x38] sm:$0xf]
        %v7599 = vld [vmem:[#allocation4 + $0x3c] sm:$0xf]
        %v7600 = vld [vmem:[#allocation4 + $0x40] sm:$0xf]
        %v7601 = vld [vmem:[#allocation4 + $0x44] sm:$0xf]
        %v7602 = vld [vmem:[#allocation4 + $0x48] sm:$0xf]
        %v7603 = vld [vmem:[#allocation4 + $0x4c] sm:$0xf]
        %v7604 = vld [vmem:[#allocation4 + $0x50] sm:$0xf]
        %v7605 = vld [vmem:[#allocation4 + $0x54] sm:$0xf]
        %v7606 = vld [vmem:[#allocation4 + $0x58] sm:$0xf]
        %v7607 = vld [vmem:[#allocation4 + $0x5c] sm:$0xf]
        %v7608 = vld [vmem:[#allocation4 + $0x60] sm:$0xf]
        %v7609 = vld [vmem:[#allocation4 + $0x64] sm:$0xf]
        %v7610 = vld [vmem:[#allocation4 + $0x68] sm:$0xf]
        %v7611 = vld [vmem:[#allocation4 + $0x6c] sm:$0xf]
        %v7612 = vld [vmem:[#allocation4 + $0x70] sm:$0xf]
        %v7613 = vld [vmem:[#allocation4 + $0x74] sm:$0xf]
        %v7614 = vld [vmem:[#allocation4 + $0x78] sm:$0xf]
        %v7615 = vld [vmem:[#allocation4 + $0x7c] sm:$0xf]
        %v7616 = vld [vmem:[#allocation4 + $0x80] sm:$0xf]
        %v7617 = vld [vmem:[#allocation4 + $0x84] sm:$0xf]
        %v7618 = vld [vmem:[#allocation4 + $0x88] sm:$0xf]
        %v7619 = vld [vmem:[#allocation4 + $0x8c] sm:$0xf]
        %v7620 = vld [vmem:[#allocation4 + $0x90] sm:$0xf]
        %v7621 = vld [vmem:[#allocation4 + $0x94] sm:$0xf]
        %v7622 = vld [vmem:[#allocation4 + $0x98] sm:$0xf]
        %v7623 = vld [vmem:[#allocation4 + $0x9c] sm:$0xf]
        %v7624 = vld [vmem:[#allocation4 + $0xa0] sm:$0xf]
        %v7625 = vld [vmem:[#allocation4 + $0xa4] sm:$0xf]
        %v7626 = vld [vmem:[#allocation4 + $0xa8] sm:$0xf]
        %v7627 = vld [vmem:[#allocation4 + $0xac] sm:$0xf]
        %v7628 = vld [vmem:[#allocation4 + $0xb0] sm:$0xf]
        %v7629 = vld [vmem:[#allocation4 + $0xb4] sm:$0xf]
        %v7630 = vld [vmem:[#allocation4 + $0xb8] sm:$0xf]
        %v7631 = vld [vmem:[#allocation4 + $0xbc] sm:$0xf]
        %v7632 = vld [vmem:[#allocation4 + $0xc0] sm:$0xf]
        %v7633 = vld [vmem:[#allocation4 + $0xc4] sm:$0xf]
        %v7634 = vld [vmem:[#allocation4 + $0xc8] sm:$0xf]
        %v7635 = vld [vmem:[#allocation4 + $0xcc] sm:$0xf]
        %v7636 = vld [vmem:[#allocation4 + $0xd0] sm:$0xf]
        %v7637 = vld [vmem:[#allocation4 + $0xd4] sm:$0xf]
        %v7638 = vld [vmem:[#allocation4 + $0xd8] sm:$0xf]
        %v7639 = vld [vmem:[#allocation4 + $0xdc] sm:$0xf]
        %v7640 = vld [vmem:[#allocation4 + $0xe0] sm:$0xf]
        %v7641 = vld [vmem:[#allocation4 + $0xe4] sm:$0xf]
        %v7642 = vld [vmem:[#allocation4 + $0xe8] sm:$0xf]
        %v7643 = vld [vmem:[#allocation4 + $0xec] sm:$0xf]
        %v7644 = vld [vmem:[#allocation4 + $0xf0] sm:$0xf]
        %v7645 = vld [vmem:[#allocation4 + $0xf4] sm:$0xf]
        %v7646 = vld [vmem:[#allocation4 + $0xf8] sm:$0xf]
        %v7647 = vld [vmem:[#allocation4 + $0xfc] sm:$0xf]
        %v7648 = vld [vmem:[#allocation4 + $0x100] sm:$0xf]
        %v7649 = vld [vmem:[#allocation4 + $0x104] sm:$0xf]
        %v7650 = vld [vmem:[#allocation4 + $0x108] sm:$0xf]
        %v7651 = vld [vmem:[#allocation4 + $0x10c] sm:$0xf]
        %v7652 = vld [vmem:[#allocation4 + $0x110] sm:$0xf]
        %v7653 = vld [vmem:[#allocation4 + $0x114] sm:$0xf]
        %v7654 = vld [vmem:[#allocation4 + $0x118] sm:$0xf]
        %v7655 = vld [vmem:[#allocation4 + $0x11c] sm:$0xf]
        %v7656 = vld [vmem:[#allocation4 + $0x120] sm:$0xf]
        %v7657 = vld [vmem:[#allocation4 + $0x124] sm:$0xf]
        %v7658 = vld [vmem:[#allocation4 + $0x128] sm:$0xf]
        %v7659 = vld [vmem:[#allocation4 + $0x12c] sm:$0xf]
        %v7660 = vld [vmem:[#allocation4 + $0x130] sm:$0xf]
        %v7661 = vld [vmem:[#allocation4 + $0x134] sm:$0xf]
        %v7662 = vld [vmem:[#allocation4 + $0x138] sm:$0xf]
        %v7663 = vld [vmem:[#allocation4 + $0x13c] sm:$0xf]
        %v7664 = vld [vmem:[#allocation4 + $0x140] sm:$0xf]
        %v7665 = vld [vmem:[#allocation4 + $0x144] sm:$0xf]
        %v7666 = vld [vmem:[#allocation4 + $0x148] sm:$0xf]
        %v7667 = vld [vmem:[#allocation4 + $0x14c] sm:$0xf]
        %v7668 = vld [vmem:[#allocation4 + $0x150] sm:$0xf]
        %v7669 = vld [vmem:[#allocation4 + $0x154] sm:$0xf]
        %v7670 = vld [vmem:[#allocation4 + $0x158] sm:$0xf]
        %v7671 = vld [vmem:[#allocation4 + $0x15c] sm:$0xf]
        %v7672 = vld [vmem:[#allocation4 + $0x160] sm:$0xf]
        %v7673 = vld [vmem:[#allocation4 + $0x164] sm:$0xf]
        %v7674 = vld [vmem:[#allocation4 + $0x168] sm:$0xf]
        %v7675 = vld [vmem:[#allocation4 + $0x16c] sm:$0xf]
        %v7676 = vld [vmem:[#allocation4 + $0x170] sm:$0xf]
        %v7677 = vld [vmem:[#allocation4 + $0x174] sm:$0xf]
        %v7678 = vld [vmem:[#allocation4 + $0x178] sm:$0xf]
        %v7679 = vld [vmem:[#allocation4 + $0x17c] sm:$0xf]
        %v7680 = vld [vmem:[#allocation4 + $0x180] sm:$0xf]
        %v7681 = vld [vmem:[#allocation4 + $0x184] sm:$0xf]
        %v7682 = vld [vmem:[#allocation4 + $0x188] sm:$0xf]
        %v7683 = vld [vmem:[#allocation4 + $0x18c] sm:$0xf]
        %v7684 = vld [vmem:[#allocation4 + $0x190] sm:$0xf]
        %v7685 = vld [vmem:[#allocation4 + $0x194] sm:$0xf]
        %v7686 = vld [vmem:[#allocation4 + $0x198] sm:$0xf]
        %v7687 = vld [vmem:[#allocation4 + $0x19c] sm:$0xf]
        %v7688 = vld [vmem:[#allocation4 + $0x1a0] sm:$0xf]
        %v7689 = vld [vmem:[#allocation4 + $0x1a4] sm:$0xf]
        %v7690 = vld [vmem:[#allocation4 + $0x1a8] sm:$0xf]
        %v7691 = vld [vmem:[#allocation4 + $0x1ac] sm:$0xf]
        %v7692 = vld [vmem:[#allocation4 + $0x1b0] sm:$0xf]
        %v7693 = vld [vmem:[#allocation4 + $0x1b4] sm:$0xf]
        %v7694 = vld [vmem:[#allocation4 + $0x1b8] sm:$0xf]
        %v7695 = vld [vmem:[#allocation4 + $0x1bc] sm:$0xf]
        %v7696 = vld [vmem:[#allocation4 + $0x1c0] sm:$0xf]
        %v7697 = vld [vmem:[#allocation4 + $0x1c4] sm:$0xf]
        %v7698 = vld [vmem:[#allocation4 + $0x1c8] sm:$0xf]
        %v7699 = vld [vmem:[#allocation4 + $0x1cc] sm:$0xf]
        %v7700 = vld [vmem:[#allocation4 + $0x1d0] sm:$0xf]
        %v7701 = vld [vmem:[#allocation4 + $0x1d4] sm:$0xf]
        %v7702 = vld [vmem:[#allocation4 + $0x1d8] sm:$0xf]
        %v7703 = vld [vmem:[#allocation4 + $0x1dc] sm:$0xf]
        %v7704 = vld [vmem:[#allocation4 + $0x1e0] sm:$0xf]
        %v7705 = vld [vmem:[#allocation4 + $0x1e4] sm:$0xf]
        %v7706 = vld [vmem:[#allocation4 + $0x1e8] sm:$0xf]
        %v7707 = vld [vmem:[#allocation4 + $0x1ec] sm:$0xf]
        %v7708 = vld [vmem:[#allocation4 + $0x1f0] sm:$0xf]
        %v7709 = vld [vmem:[#allocation4 + $0x1f4] sm:$0xf]
        %v7710 = vld [vmem:[#allocation4 + $0x1f8] sm:$0xf]
        %v7711 = vld [vmem:[#allocation4 + $0x1fc] sm:$0xf]
        %v7840 = vunpack.c.l.b16 %v7584
        %v7841 = vunpack.c.l.b16 %v7585
        %v7842 = vunpack.c.l.b16 %v7586
        %v7843 = vunpack.c.l.b16 %v7587
        %v7844 = vunpack.c.l.b16 %v7588
        %v7845 = vunpack.c.l.b16 %v7589
        %v7846 = vunpack.c.l.b16 %v7590
        %v7847 = vunpack.c.l.b16 %v7591
        %v7848 = vunpack.c.l.b16 %v7592
        %v7849 = vunpack.c.l.b16 %v7593
        %v7850 = vunpack.c.l.b16 %v7594
        %v7851 = vunpack.c.l.b16 %v7595
        %v7852 = vunpack.c.l.b16 %v7596
        %v7853 = vunpack.c.l.b16 %v7597
        %v7854 = vunpack.c.l.b16 %v7598
        %v7855 = vunpack.c.l.b16 %v7599
        %v7856 = vunpack.c.l.b16 %v7600
        %v7857 = vunpack.c.l.b16 %v7601
        %v7858 = vunpack.c.l.b16 %v7602
        %v7859 = vunpack.c.l.b16 %v7603
        %v7860 = vunpack.c.l.b16 %v7604
        %v7861 = vunpack.c.l.b16 %v7605
        %v7862 = vunpack.c.l.b16 %v7606
        %v7863 = vunpack.c.l.b16 %v7607
        %v7864 = vunpack.c.l.b16 %v7608
        %v7865 = vunpack.c.l.b16 %v7609
        %v7866 = vunpack.c.l.b16 %v7610
        %v7867 = vunpack.c.l.b16 %v7611
        %v7868 = vunpack.c.l.b16 %v7612
        %v7869 = vunpack.c.l.b16 %v7613
        %v7870 = vunpack.c.l.b16 %v7614
        %v7871 = vunpack.c.l.b16 %v7615
        %v7872 = vunpack.c.l.b16 %v7616
        %v7873 = vunpack.c.l.b16 %v7617
        %v7874 = vunpack.c.l.b16 %v7618
        %v7875 = vunpack.c.l.b16 %v7619
        %v7876 = vunpack.c.l.b16 %v7620
        %v7877 = vunpack.c.l.b16 %v7621
        %v7878 = vunpack.c.l.b16 %v7622
        %v7879 = vunpack.c.l.b16 %v7623
        %v7880 = vunpack.c.l.b16 %v7624
        %v7881 = vunpack.c.l.b16 %v7625
        %v7882 = vunpack.c.l.b16 %v7626
        %v7883 = vunpack.c.l.b16 %v7627
        %v7884 = vunpack.c.l.b16 %v7628
        %v7885 = vunpack.c.l.b16 %v7629
        %v7886 = vunpack.c.l.b16 %v7630
        %v7887 = vunpack.c.l.b16 %v7631
        %v7888 = vunpack.c.l.b16 %v7632
        %v7889 = vunpack.c.l.b16 %v7633
        %v7890 = vunpack.c.l.b16 %v7634
        %v7891 = vunpack.c.l.b16 %v7635
        %v7892 = vunpack.c.l.b16 %v7636
        %v7893 = vunpack.c.l.b16 %v7637
        %v7894 = vunpack.c.l.b16 %v7638
        %v7895 = vunpack.c.l.b16 %v7639
        %v7896 = vunpack.c.l.b16 %v7640
        %v7897 = vunpack.c.l.b16 %v7641
        %v7898 = vunpack.c.l.b16 %v7642
        %v7899 = vunpack.c.l.b16 %v7643
        %v7900 = vunpack.c.l.b16 %v7644
        %v7901 = vunpack.c.l.b16 %v7645
        %v7902 = vunpack.c.l.b16 %v7646
        %v7903 = vunpack.c.l.b16 %v7647
        %v7904 = vunpack.c.l.b16 %v7648
        %v7905 = vunpack.c.l.b16 %v7649
        %v7906 = vunpack.c.l.b16 %v7650
        %v7907 = vunpack.c.l.b16 %v7651
        %v7908 = vunpack.c.l.b16 %v7652
        %v7909 = vunpack.c.l.b16 %v7653
        %v7910 = vunpack.c.l.b16 %v7654
        %v7911 = vunpack.c.l.b16 %v7655
        %v7912 = vunpack.c.l.b16 %v7656
        %v7913 = vunpack.c.l.b16 %v7657
        %v7914 = vunpack.c.l.b16 %v7658
        %v7915 = vunpack.c.l.b16 %v7659
        %v7916 = vunpack.c.l.b16 %v7660
        %v7917 = vunpack.c.l.b16 %v7661
        %v7918 = vunpack.c.l.b16 %v7662
        %v7919 = vunpack.c.l.b16 %v7663
        %v7920 = vunpack.c.l.b16 %v7664
        %v7921 = vunpack.c.l.b16 %v7665
        %v7922 = vunpack.c.l.b16 %v7666
        %v7923 = vunpack.c.l.b16 %v7667
        %v7924 = vunpack.c.l.b16 %v7668
        %v7925 = vunpack.c.l.b16 %v7669
        %v7926 = vunpack.c.l.b16 %v7670
        %v7927 = vunpack.c.l.b16 %v7671
        %v7928 = vunpack.c.l.b16 %v7672
        %v7929 = vunpack.c.l.b16 %v7673
        %v7930 = vunpack.c.l.b16 %v7674
        %v7931 = vunpack.c.l.b16 %v7675
        %v7932 = vunpack.c.l.b16 %v7676
        %v7933 = vunpack.c.l.b16 %v7677
        %v7934 = vunpack.c.l.b16 %v7678
        %v7935 = vunpack.c.l.b16 %v7679
        %v7936 = vunpack.c.l.b16 %v7680
        %v7937 = vunpack.c.l.b16 %v7681
        %v7938 = vunpack.c.l.b16 %v7682
        %v7939 = vunpack.c.l.b16 %v7683
        %v7940 = vunpack.c.l.b16 %v7684
        %v7941 = vunpack.c.l.b16 %v7685
        %v7942 = vunpack.c.l.b16 %v7686
        %v7943 = vunpack.c.l.b16 %v7687
        %v7944 = vunpack.c.l.b16 %v7688
        %v7945 = vunpack.c.l.b16 %v7689
        %v7946 = vunpack.c.l.b16 %v7690
        %v7947 = vunpack.c.l.b16 %v7691
        %v7948 = vunpack.c.l.b16 %v7692
        %v7949 = vunpack.c.l.b16 %v7693
        %v7950 = vunpack.c.l.b16 %v7694
        %v7951 = vunpack.c.l.b16 %v7695
        %v7952 = vunpack.c.l.b16 %v7696
        %v7953 = vunpack.c.l.b16 %v7697
        %v7954 = vunpack.c.l.b16 %v7698
        %v7955 = vunpack.c.l.b16 %v7699
        %v7956 = vunpack.c.l.b16 %v7700
        %v7957 = vunpack.c.l.b16 %v7701
        %v7958 = vunpack.c.l.b16 %v7702
        %v7959 = vunpack.c.l.b16 %v7703
        %v7960 = vunpack.c.l.b16 %v7704
        %v7961 = vunpack.c.l.b16 %v7705
        %v7962 = vunpack.c.l.b16 %v7706
        %v7963 = vunpack.c.l.b16 %v7707
        %v7964 = vunpack.c.l.b16 %v7708
        %v7965 = vunpack.c.l.b16 %v7709
        %v7966 = vunpack.c.l.b16 %v7710
        %v7967 = vunpack.c.l.b16 %v7711
        %v7968 = vpack.c.b16 %v7841, %v7840
        %v7969 = vpack.c.b16 %v7843, %v7842
        %v7970 = vpack.c.b16 %v7845, %v7844
        %v7971 = vpack.c.b16 %v7847, %v7846
        %v7972 = vpack.c.b16 %v7849, %v7848
        %v7973 = vpack.c.b16 %v7851, %v7850
        %v7974 = vpack.c.b16 %v7853, %v7852
        %v7975 = vpack.c.b16 %v7855, %v7854
        %v7976 = vpack.c.b16 %v7857, %v7856
        %v7977 = vpack.c.b16 %v7859, %v7858
        %v7978 = vpack.c.b16 %v7861, %v7860
        %v7979 = vpack.c.b16 %v7863, %v7862
        %v7980 = vpack.c.b16 %v7865, %v7864
        %v7981 = vpack.c.b16 %v7867, %v7866
        %v7982 = vpack.c.b16 %v7869, %v7868
        %v7983 = vpack.c.b16 %v7871, %v7870
        %v7984 = vpack.c.b16 %v7873, %v7872
        %v7985 = vpack.c.b16 %v7875, %v7874
        %v7986 = vpack.c.b16 %v7877, %v7876
        %v7987 = vpack.c.b16 %v7879, %v7878
        %v7988 = vpack.c.b16 %v7881, %v7880
        %v7989 = vpack.c.b16 %v7883, %v7882
        %v7990 = vpack.c.b16 %v7885, %v7884
        %v7991 = vpack.c.b16 %v7887, %v7886
        %v7992 = vpack.c.b16 %v7889, %v7888
        %v7993 = vpack.c.b16 %v7891, %v7890
        %v7994 = vpack.c.b16 %v7893, %v7892
        %v7995 = vpack.c.b16 %v7895, %v7894
        %v7996 = vpack.c.b16 %v7897, %v7896
        %v7997 = vpack.c.b16 %v7899, %v7898
        %v7998 = vpack.c.b16 %v7901, %v7900
        %v7999 = vpack.c.b16 %v7903, %v7902
        %v8000 = vpack.c.b16 %v7905, %v7904
        %v8001 = vpack.c.b16 %v7907, %v7906
        %v8002 = vpack.c.b16 %v7909, %v7908
        %v8003 = vpack.c.b16 %v7911, %v7910
        %v8004 = vpack.c.b16 %v7913, %v7912
        %v8005 = vpack.c.b16 %v7915, %v7914
        %v8006 = vpack.c.b16 %v7917, %v7916
        %v8007 = vpack.c.b16 %v7919, %v7918
        %v8008 = vpack.c.b16 %v7921, %v7920
        %v8009 = vpack.c.b16 %v7923, %v7922
        %v8010 = vpack.c.b16 %v7925, %v7924
        %v8011 = vpack.c.b16 %v7927, %v7926
        %v8012 = vpack.c.b16 %v7929, %v7928
        %v8013 = vpack.c.b16 %v7931, %v7930
        %v8014 = vpack.c.b16 %v7933, %v7932
        %v8015 = vpack.c.b16 %v7935, %v7934
        %v8016 = vpack.c.b16 %v7937, %v7936
        %v8017 = vpack.c.b16 %v7939, %v7938
        %v8018 = vpack.c.b16 %v7941, %v7940
        %v8019 = vpack.c.b16 %v7943, %v7942
        %v8020 = vpack.c.b16 %v7945, %v7944
        %v8021 = vpack.c.b16 %v7947, %v7946
        %v8022 = vpack.c.b16 %v7949, %v7948
        %v8023 = vpack.c.b16 %v7951, %v7950
        %v8024 = vpack.c.b16 %v7953, %v7952
        %v8025 = vpack.c.b16 %v7955, %v7954
        %v8026 = vpack.c.b16 %v7957, %v7956
        %v8027 = vpack.c.b16 %v7959, %v7958
        %v8028 = vpack.c.b16 %v7961, %v7960
        %v8029 = vpack.c.b16 %v7963, %v7962
        %v8030 = vpack.c.b16 %v7965, %v7964
        %v8031 = vpack.c.b16 %v7967, %v7966
        %8096 = vmatprep.subr.bf16.mxu0 0
        %8097 = vmatpush1.bf16.msra.mxu0 %v7975
        %8098 = vmatprep.subr.bf16.mxu0 0
        %8099 = vmatpush1.bf16.msra.mxu0 %v7974
        %8100 = vmatprep.subr.bf16.mxu0 0
        %8101 = vmatpush1.bf16.msra.mxu0 %v7973
        %8102 = vmatprep.subr.bf16.mxu0 0
        %8103 = vmatpush1.bf16.msra.mxu0 %v7972
        %8104 = vmatprep.subr.bf16.mxu0 0
        %8105 = vmatpush1.bf16.msra.mxu0 %v7971
        %8106 = vmatprep.subr.bf16.mxu0 0
        %8107 = vmatpush1.bf16.msra.mxu0 %v7970
        %8108 = vmatprep.subr.bf16.mxu0 0
        %8109 = vmatpush1.bf16.msra.mxu0 %v7969
        %8110 = vmatprep.subr.bf16.mxu0 0
        %8111 = vmatpush1.bf16.msra.mxu0 %v7968
        %8112 = vmatprep.subr.bf16.mxu0 0
        %8113 = vmatpush2.bf16.msra.mxu0 %v7983
        %8114 = vmatprep.subr.bf16.mxu0 0
        %8115 = vmatpush2.bf16.msra.mxu0 %v7982
        %8116 = vmatprep.subr.bf16.mxu0 0
        %8117 = vmatpush2.bf16.msra.mxu0 %v7981
        %8118 = vmatprep.subr.bf16.mxu0 0
        %8119 = vmatpush2.bf16.msra.mxu0 %v7980
        %8120 = vmatprep.subr.bf16.mxu0 0
        %8121 = vmatpush2.bf16.msra.mxu0 %v7979
        %8122 = vmatprep.subr.bf16.mxu0 0
        %8123 = vmatpush2.bf16.msra.mxu0 %v7978
        %8124 = vmatprep.subr.bf16.mxu0 0
        %8125 = vmatpush2.bf16.msra.mxu0 %v7977
        %8126 = vmatprep.subr.bf16.mxu0 0
        %8127 = vmatpush2.bf16.msra.mxu0 %v7976
        %8128 = vmatprep.mubr.bf16.mxu0 %v7457
        %8129 = vmatmul.mubr.bf16.gmra.mxu0 %v7456
        %v8130 = vpop.f32.mrf.mxu0
        %v8131 = vadd.f32 0.0, %v8130
        %v8132 = vpop.f32.mrf.mxu0
        %v8133 = vpop.f32.mrf.mxu0
        %v8134 = vadd.f32 0.0, %v8133
        %v8135 = vpop.f32.mrf.mxu0
        %8136 = vmatprep.mubr.bf16.mxu0 %v7465
        %8137 = vmatmul.mubr.bf16.gmra.mxu0 %v7464
        %v8138 = vpop.f32.mrf.mxu0
        %v8139 = vadd.f32 0.0, %v8138
        %v8140 = vpop.f32.mrf.mxu0
        %v8141 = vpop.f32.mrf.mxu0
        %v8142 = vadd.f32 0.0, %v8141
        %v8143 = vpop.f32.mrf.mxu0
        %8144 = vmatprep.mubr.bf16.mxu0 %v7473
        %8145 = vmatmul.mubr.bf16.gmra.mxu0 %v7472
        %v8146 = vpop.f32.mrf.mxu0
        %v8147 = vadd.f32 0.0, %v8146
        %v8148 = vpop.f32.mrf.mxu0
        %v8149 = vpop.f32.mrf.mxu0
        %v8150 = vadd.f32 0.0, %v8149
        %v8151 = vpop.f32.mrf.mxu0
        %8152 = vmatprep.mubr.bf16.mxu0 %v7481
        %8153 = vmatmul.mubr.bf16.gmra.mxu0 %v7480
        %v8154 = vpop.f32.mrf.mxu0
        %v8155 = vadd.f32 0.0, %v8154
        %v8156 = vpop.f32.mrf.mxu0
        %v8157 = vpop.f32.mrf.mxu0
        %v8158 = vadd.f32 0.0, %v8157
        %v8159 = vpop.f32.mrf.mxu0
        %8160 = vmatprep.mubr.bf16.mxu0 %v7489
        %8161 = vmatmul.mubr.bf16.gmra.mxu0 %v7488
        %v8162 = vpop.f32.mrf.mxu0
        %v8163 = vadd.f32 0.0, %v8162
        %v8164 = vpop.f32.mrf.mxu0
        %v8165 = vpop.f32.mrf.mxu0
        %v8166 = vadd.f32 0.0, %v8165
        %v8167 = vpop.f32.mrf.mxu0
        %8168 = vmatprep.mubr.bf16.mxu0 %v7497
        %8169 = vmatmul.mubr.bf16.gmra.mxu0 %v7496
        %v8170 = vpop.f32.mrf.mxu0
        %v8171 = vadd.f32 0.0, %v8170
        %v8172 = vpop.f32.mrf.mxu0
        %v8173 = vpop.f32.mrf.mxu0
        %v8174 = vadd.f32 0.0, %v8173
        %v8175 = vpop.f32.mrf.mxu0
        %8176 = vmatprep.mubr.bf16.mxu0 %v7505
        %8177 = vmatmul.mubr.bf16.gmra.mxu0 %v7504
        %v8178 = vpop.f32.mrf.mxu0
        %v8179 = vadd.f32 0.0, %v8178
        %v8180 = vpop.f32.mrf.mxu0
        %v8181 = vpop.f32.mrf.mxu0
        %v8182 = vadd.f32 0.0, %v8181
        %v8183 = vpop.f32.mrf.mxu0
        %8184 = vmatprep.mubr.bf16.mxu0 %v7513
        %8185 = vmatmul.mubr.bf16.gmra.mxu0 %v7512
        %v8186 = vpop.f32.mrf.mxu0
        %v8187 = vadd.f32 0.0, %v8186
        %v8188 = vpop.f32.mrf.mxu0
        %v8189 = vpop.f32.mrf.mxu0
        %v8190 = vadd.f32 0.0, %v8189
        %v8191 = vpop.f32.mrf.mxu0
        %8192 = vmatprep.mubr.bf16.mxu0 %v7521
        %8193 = vmatmul.mubr.bf16.gmra.mxu0 %v7520
        %v8194 = vpop.f32.mrf.mxu0
        %v8195 = vadd.f32 0.0, %v8194
        %v8196 = vpop.f32.mrf.mxu0
        %v8197 = vpop.f32.mrf.mxu0
        %v8198 = vadd.f32 0.0, %v8197
        %v8199 = vpop.f32.mrf.mxu0
        %8200 = vmatprep.mubr.bf16.mxu0 %v7529
        %8201 = vmatmul.mubr.bf16.gmra.mxu0 %v7528
        %v8202 = vpop.f32.mrf.mxu0
        %v8203 = vadd.f32 0.0, %v8202
        %v8204 = vpop.f32.mrf.mxu0
        %v8205 = vpop.f32.mrf.mxu0
        %v8206 = vadd.f32 0.0, %v8205
        %v8207 = vpop.f32.mrf.mxu0
        %8208 = vmatprep.mubr.bf16.mxu0 %v7537
        %8209 = vmatmul.mubr.bf16.gmra.mxu0 %v7536
        %v8210 = vpop.f32.mrf.mxu0
        %v8211 = vadd.f32 0.0, %v8210
        %v8212 = vpop.f32.mrf.mxu0
        %v8213 = vpop.f32.mrf.mxu0
        %v8214 = vadd.f32 0.0, %v8213
        %v8215 = vpop.f32.mrf.mxu0
        %8216 = vmatprep.mubr.bf16.mxu0 %v7545
        %8217 = vmatmul.mubr.bf16.gmra.mxu0 %v7544
        %v8218 = vpop.f32.mrf.mxu0
        %v8219 = vadd.f32 0.0, %v8218
        %v8220 = vpop.f32.mrf.mxu0
        %v8221 = vpop.f32.mrf.mxu0
        %v8222 = vadd.f32 0.0, %v8221
        %v8223 = vpop.f32.mrf.mxu0
        %8224 = vmatprep.mubr.bf16.mxu0 %v7553
        %8225 = vmatmul.mubr.bf16.gmra.mxu0 %v7552
        %v8226 = vpop.f32.mrf.mxu0
        %v8227 = vadd.f32 0.0, %v8226
        %v8228 = vpop.f32.mrf.mxu0
        %v8229 = vpop.f32.mrf.mxu0
        %v8230 = vadd.f32 0.0, %v8229
        %v8231 = vpop.f32.mrf.mxu0
        %8232 = vmatprep.mubr.bf16.mxu0 %v7561
        %8233 = vmatmul.mubr.bf16.gmra.mxu0 %v7560
        %v8234 = vpop.f32.mrf.mxu0
        %v8235 = vadd.f32 0.0, %v8234
        %v8236 = vpop.f32.mrf.mxu0
        %v8237 = vpop.f32.mrf.mxu0
        %v8238 = vadd.f32 0.0, %v8237
        %v8239 = vpop.f32.mrf.mxu0
        %8240 = vmatprep.mubr.bf16.mxu0 %v7569
        %8241 = vmatmul.mubr.bf16.gmra.mxu0 %v7568
        %v8242 = vpop.f32.mrf.mxu0
        %v8243 = vadd.f32 0.0, %v8242
        %v8244 = vpop.f32.mrf.mxu0
        %v8245 = vpop.f32.mrf.mxu0
        %v8246 = vadd.f32 0.0, %v8245
        %v8247 = vpop.f32.mrf.mxu0
        %8248 = vmatprep.mubr.bf16.mxu0 %v7577
        %8249 = vmatmul.mubr.bf16.gmra.mxu0 %v7576
        %v8250 = vpop.f32.mrf.mxu0
        %v8251 = vadd.f32 0.0, %v8250
        %v8252 = vpop.f32.mrf.mxu0
        %v8253 = vpop.f32.mrf.mxu0
        %v8254 = vadd.f32 0.0, %v8253
        %v8255 = vpop.f32.mrf.mxu0
        %8256 = vdwg.mxu0
        %8257 = vmatprep.subr.bf16.mxu0 0
        %8258 = vmatpush1.bf16.msra.mxu0 %v7991
        %8259 = vmatprep.subr.bf16.mxu0 0
        %8260 = vmatpush1.bf16.msra.mxu0 %v7990
        %8261 = vmatprep.subr.bf16.mxu0 0
        %8262 = vmatpush1.bf16.msra.mxu0 %v7989
        %8263 = vmatprep.subr.bf16.mxu0 0
        %8264 = vmatpush1.bf16.msra.mxu0 %v7988
        %8265 = vmatprep.subr.bf16.mxu0 0
        %8266 = vmatpush1.bf16.msra.mxu0 %v7987
        %8267 = vmatprep.subr.bf16.mxu0 0
        %8268 = vmatpush1.bf16.msra.mxu0 %v7986
        %8269 = vmatprep.subr.bf16.mxu0 0
        %8270 = vmatpush1.bf16.msra.mxu0 %v7985
        %8271 = vmatprep.subr.bf16.mxu0 0
        %8272 = vmatpush1.bf16.msra.mxu0 %v7984
        %8273 = vmatprep.subr.bf16.mxu0 0
        %8274 = vmatpush2.bf16.msra.mxu0 %v7999
        %8275 = vmatprep.subr.bf16.mxu0 0
        %8276 = vmatpush2.bf16.msra.mxu0 %v7998
        %8277 = vmatprep.subr.bf16.mxu0 0
        %8278 = vmatpush2.bf16.msra.mxu0 %v7997
        %8279 = vmatprep.subr.bf16.mxu0 0
        %8280 = vmatpush2.bf16.msra.mxu0 %v7996
        %8281 = vmatprep.subr.bf16.mxu0 0
        %8282 = vmatpush2.bf16.msra.mxu0 %v7995
        %8283 = vmatprep.subr.bf16.mxu0 0
        %8284 = vmatpush2.bf16.msra.mxu0 %v7994
        %8285 = vmatprep.subr.bf16.mxu0 0
        %8286 = vmatpush2.bf16.msra.mxu0 %v7993
        %8287 = vmatprep.subr.bf16.mxu0 0
        %8288 = vmatpush2.bf16.msra.mxu0 %v7992
        %8289 = vmatprep.mubr.bf16.mxu0 %v7459
        %8290 = vmatmul.mubr.bf16.gmra.mxu0 %v7458
        %v8291 = vpop.f32.mrf.mxu0
        %v8292 = vadd.f32 %v8131, %v8291
        %v8293 = vpop.f32.mrf.mxu0
        %v8294 = vpop.f32.mrf.mxu0
        %v8295 = vadd.f32 %v8134, %v8294
        %v8296 = vpop.f32.mrf.mxu0
        %8297 = vmatprep.mubr.bf16.mxu0 %v7467
        %8298 = vmatmul.mubr.bf16.gmra.mxu0 %v7466
        %v8299 = vpop.f32.mrf.mxu0
        %v8300 = vadd.f32 %v8139, %v8299
        %v8301 = vpop.f32.mrf.mxu0
        %v8302 = vpop.f32.mrf.mxu0
        %v8303 = vadd.f32 %v8142, %v8302
        %v8304 = vpop.f32.mrf.mxu0
        %8305 = vmatprep.mubr.bf16.mxu0 %v7475
        %8306 = vmatmul.mubr.bf16.gmra.mxu0 %v7474
        %v8307 = vpop.f32.mrf.mxu0
        %v8308 = vadd.f32 %v8147, %v8307
        %v8309 = vpop.f32.mrf.mxu0
        %v8310 = vpop.f32.mrf.mxu0
        %v8311 = vadd.f32 %v8150, %v8310
        %v8312 = vpop.f32.mrf.mxu0
        %8313 = vmatprep.mubr.bf16.mxu0 %v7483
        %8314 = vmatmul.mubr.bf16.gmra.mxu0 %v7482
        %v8315 = vpop.f32.mrf.mxu0
        %v8316 = vadd.f32 %v8155, %v8315
        %v8317 = vpop.f32.mrf.mxu0
        %v8318 = vpop.f32.mrf.mxu0
        %v8319 = vadd.f32 %v8158, %v8318
        %v8320 = vpop.f32.mrf.mxu0
        %8321 = vmatprep.mubr.bf16.mxu0 %v7491
        %8322 = vmatmul.mubr.bf16.gmra.mxu0 %v7490
        %v8323 = vpop.f32.mrf.mxu0
        %v8324 = vadd.f32 %v8163, %v8323
        %v8325 = vpop.f32.mrf.mxu0
        %v8326 = vpop.f32.mrf.mxu0
        %v8327 = vadd.f32 %v8166, %v8326
        %v8328 = vpop.f32.mrf.mxu0
        %8329 = vmatprep.mubr.bf16.mxu0 %v7499
        %8330 = vmatmul.mubr.bf16.gmra.mxu0 %v7498
        %v8331 = vpop.f32.mrf.mxu0
        %v8332 = vadd.f32 %v8171, %v8331
        %v8333 = vpop.f32.mrf.mxu0
        %v8334 = vpop.f32.mrf.mxu0
        %v8335 = vadd.f32 %v8174, %v8334
        %v8336 = vpop.f32.mrf.mxu0
        %8337 = vmatprep.mubr.bf16.mxu0 %v7507
        %8338 = vmatmul.mubr.bf16.gmra.mxu0 %v7506
        %v8339 = vpop.f32.mrf.mxu0
        %v8340 = vadd.f32 %v8179, %v8339
        %v8341 = vpop.f32.mrf.mxu0
        %v8342 = vpop.f32.mrf.mxu0
        %v8343 = vadd.f32 %v8182, %v8342
        %v8344 = vpop.f32.mrf.mxu0
        %8345 = vmatprep.mubr.bf16.mxu0 %v7515
        %8346 = vmatmul.mubr.bf16.gmra.mxu0 %v7514
        %v8347 = vpop.f32.mrf.mxu0
        %v8348 = vadd.f32 %v8187, %v8347
        %v8349 = vpop.f32.mrf.mxu0
        %v8350 = vpop.f32.mrf.mxu0
        %v8351 = vadd.f32 %v8190, %v8350
        %v8352 = vpop.f32.mrf.mxu0
        %8353 = vmatprep.mubr.bf16.mxu0 %v7523
        %8354 = vmatmul.mubr.bf16.gmra.mxu0 %v7522
        %v8355 = vpop.f32.mrf.mxu0
        %v8356 = vadd.f32 %v8195, %v8355
        %v8357 = vpop.f32.mrf.mxu0
        %v8358 = vpop.f32.mrf.mxu0
        %v8359 = vadd.f32 %v8198, %v8358
        %v8360 = vpop.f32.mrf.mxu0
        %8361 = vmatprep.mubr.bf16.mxu0 %v7531
        %8362 = vmatmul.mubr.bf16.gmra.mxu0 %v7530
        %v8363 = vpop.f32.mrf.mxu0
        %v8364 = vadd.f32 %v8203, %v8363
        %v8365 = vpop.f32.mrf.mxu0
        %v8366 = vpop.f32.mrf.mxu0
        %v8367 = vadd.f32 %v8206, %v8366
        %v8368 = vpop.f32.mrf.mxu0
        %8369 = vmatprep.mubr.bf16.mxu0 %v7539
        %8370 = vmatmul.mubr.bf16.gmra.mxu0 %v7538
        %v8371 = vpop.f32.mrf.mxu0
        %v8372 = vadd.f32 %v8211, %v8371
        %v8373 = vpop.f32.mrf.mxu0
        %v8374 = vpop.f32.mrf.mxu0
        %v8375 = vadd.f32 %v8214, %v8374
        %v8376 = vpop.f32.mrf.mxu0
        %8377 = vmatprep.mubr.bf16.mxu0 %v7547
        %8378 = vmatmul.mubr.bf16.gmra.mxu0 %v7546
        %v8379 = vpop.f32.mrf.mxu0
        %v8380 = vadd.f32 %v8219, %v8379
        %v8381 = vpop.f32.mrf.mxu0
        %v8382 = vpop.f32.mrf.mxu0
        %v8383 = vadd.f32 %v8222, %v8382
        %v8384 = vpop.f32.mrf.mxu0
        %8385 = vmatprep.mubr.bf16.mxu0 %v7555
        %8386 = vmatmul.mubr.bf16.gmra.mxu0 %v7554
        %v8387 = vpop.f32.mrf.mxu0
        %v8388 = vadd.f32 %v8227, %v8387
        %v8389 = vpop.f32.mrf.mxu0
        %v8390 = vpop.f32.mrf.mxu0
        %v8391 = vadd.f32 %v8230, %v8390
        %v8392 = vpop.f32.mrf.mxu0
        %8393 = vmatprep.mubr.bf16.mxu0 %v7563
        %8394 = vmatmul.mubr.bf16.gmra.mxu0 %v7562
        %v8395 = vpop.f32.mrf.mxu0
        %v8396 = vadd.f32 %v8235, %v8395
        %v8397 = vpop.f32.mrf.mxu0
        %v8398 = vpop.f32.mrf.mxu0
        %v8399 = vadd.f32 %v8238, %v8398
        %v8400 = vpop.f32.mrf.mxu0
        %8401 = vmatprep.mubr.bf16.mxu0 %v7571
        %8402 = vmatmul.mubr.bf16.gmra.mxu0 %v7570
        %v8403 = vpop.f32.mrf.mxu0
        %v8404 = vadd.f32 %v8243, %v8403
        %v8405 = vpop.f32.mrf.mxu0
        %v8406 = vpop.f32.mrf.mxu0
        %v8407 = vadd.f32 %v8246, %v8406
        %v8408 = vpop.f32.mrf.mxu0
        %8409 = vmatprep.mubr.bf16.mxu0 %v7579
        %8410 = vmatmul.mubr.bf16.gmra.mxu0 %v7578
        %v8411 = vpop.f32.mrf.mxu0
        %v8412 = vadd.f32 %v8251, %v8411
        %v8413 = vpop.f32.mrf.mxu0
        %v8414 = vpop.f32.mrf.mxu0
        %v8415 = vadd.f32 %v8254, %v8414
        %v8416 = vpop.f32.mrf.mxu0
        %8417 = vdwg.mxu0
        %8418 = vmatprep.subr.bf16.mxu0 0
        %8419 = vmatpush1.bf16.msra.mxu0 %v8007
        %8420 = vmatprep.subr.bf16.mxu0 0
        %8421 = vmatpush1.bf16.msra.mxu0 %v8006
        %8422 = vmatprep.subr.bf16.mxu0 0
        %8423 = vmatpush1.bf16.msra.mxu0 %v8005
        %8424 = vmatprep.subr.bf16.mxu0 0
        %8425 = vmatpush1.bf16.msra.mxu0 %v8004
        %8426 = vmatprep.subr.bf16.mxu0 0
        %8427 = vmatpush1.bf16.msra.mxu0 %v8003
        %8428 = vmatprep.subr.bf16.mxu0 0
        %8429 = vmatpush1.bf16.msra.mxu0 %v8002
        %8430 = vmatprep.subr.bf16.mxu0 0
        %8431 = vmatpush1.bf16.msra.mxu0 %v8001
        %8432 = vmatprep.subr.bf16.mxu0 0
        %8433 = vmatpush1.bf16.msra.mxu0 %v8000
        %8434 = vmatprep.subr.bf16.mxu0 0
        %8435 = vmatpush2.bf16.msra.mxu0 %v8015
        %8436 = vmatprep.subr.bf16.mxu0 0
        %8437 = vmatpush2.bf16.msra.mxu0 %v8014
        %8438 = vmatprep.subr.bf16.mxu0 0
        %8439 = vmatpush2.bf16.msra.mxu0 %v8013
        %8440 = vmatprep.subr.bf16.mxu0 0
        %8441 = vmatpush2.bf16.msra.mxu0 %v8012
        %8442 = vmatprep.subr.bf16.mxu0 0
        %8443 = vmatpush2.bf16.msra.mxu0 %v8011
        %8444 = vmatprep.subr.bf16.mxu0 0
        %8445 = vmatpush2.bf16.msra.mxu0 %v8010
        %8446 = vmatprep.subr.bf16.mxu0 0
        %8447 = vmatpush2.bf16.msra.mxu0 %v8009
        %8448 = vmatprep.subr.bf16.mxu0 0
        %8449 = vmatpush2.bf16.msra.mxu0 %v8008
        %8450 = vmatprep.mubr.bf16.mxu0 %v7461
        %8451 = vmatmul.mubr.bf16.gmra.mxu0 %v7460
        %v8452 = vpop.f32.mrf.mxu0
        %v8453 = vadd.f32 %v8292, %v8452
        %v8454 = vpop.f32.mrf.mxu0
        %v8455 = vpop.f32.mrf.mxu0
        %v8456 = vadd.f32 %v8295, %v8455
        %v8457 = vpop.f32.mrf.mxu0
        %8458 = vmatprep.mubr.bf16.mxu0 %v7469
        %8459 = vmatmul.mubr.bf16.gmra.mxu0 %v7468
        %v8460 = vpop.f32.mrf.mxu0
        %v8461 = vadd.f32 %v8300, %v8460
        %v8462 = vpop.f32.mrf.mxu0
        %v8463 = vpop.f32.mrf.mxu0
        %v8464 = vadd.f32 %v8303, %v8463
        %v8465 = vpop.f32.mrf.mxu0
        %8466 = vmatprep.mubr.bf16.mxu0 %v7477
        %8467 = vmatmul.mubr.bf16.gmra.mxu0 %v7476
        %v8468 = vpop.f32.mrf.mxu0
        %v8469 = vadd.f32 %v8308, %v8468
        %v8470 = vpop.f32.mrf.mxu0
        %v8471 = vpop.f32.mrf.mxu0
        %v8472 = vadd.f32 %v8311, %v8471
        %v8473 = vpop.f32.mrf.mxu0
        %8474 = vmatprep.mubr.bf16.mxu0 %v7485
        %8475 = vmatmul.mubr.bf16.gmra.mxu0 %v7484
        %v8476 = vpop.f32.mrf.mxu0
        %v8477 = vadd.f32 %v8316, %v8476
        %v8478 = vpop.f32.mrf.mxu0
        %v8479 = vpop.f32.mrf.mxu0
        %v8480 = vadd.f32 %v8319, %v8479
        %v8481 = vpop.f32.mrf.mxu0
        %8482 = vmatprep.mubr.bf16.mxu0 %v7493
        %8483 = vmatmul.mubr.bf16.gmra.mxu0 %v7492
        %v8484 = vpop.f32.mrf.mxu0
        %v8485 = vadd.f32 %v8324, %v8484
        %v8486 = vpop.f32.mrf.mxu0
        %v8487 = vpop.f32.mrf.mxu0
        %v8488 = vadd.f32 %v8327, %v8487
        %v8489 = vpop.f32.mrf.mxu0
        %8490 = vmatprep.mubr.bf16.mxu0 %v7501
        %8491 = vmatmul.mubr.bf16.gmra.mxu0 %v7500
        %v8492 = vpop.f32.mrf.mxu0
        %v8493 = vadd.f32 %v8332, %v8492
        %v8494 = vpop.f32.mrf.mxu0
        %v8495 = vpop.f32.mrf.mxu0
        %v8496 = vadd.f32 %v8335, %v8495
        %v8497 = vpop.f32.mrf.mxu0
        %8498 = vmatprep.mubr.bf16.mxu0 %v7509
        %8499 = vmatmul.mubr.bf16.gmra.mxu0 %v7508
        %v8500 = vpop.f32.mrf.mxu0
        %v8501 = vadd.f32 %v8340, %v8500
        %v8502 = vpop.f32.mrf.mxu0
        %v8503 = vpop.f32.mrf.mxu0
        %v8504 = vadd.f32 %v8343, %v8503
        %v8505 = vpop.f32.mrf.mxu0
        %8506 = vmatprep.mubr.bf16.mxu0 %v7517
        %8507 = vmatmul.mubr.bf16.gmra.mxu0 %v7516
        %v8508 = vpop.f32.mrf.mxu0
        %v8509 = vadd.f32 %v8348, %v8508
        %v8510 = vpop.f32.mrf.mxu0
        %v8511 = vpop.f32.mrf.mxu0
        %v8512 = vadd.f32 %v8351, %v8511
        %v8513 = vpop.f32.mrf.mxu0
        %8514 = vmatprep.mubr.bf16.mxu0 %v7525
        %8515 = vmatmul.mubr.bf16.gmra.mxu0 %v7524
        %v8516 = vpop.f32.mrf.mxu0
        %v8517 = vadd.f32 %v8356, %v8516
        %v8518 = vpop.f32.mrf.mxu0
        %v8519 = vpop.f32.mrf.mxu0
        %v8520 = vadd.f32 %v8359, %v8519
        %v8521 = vpop.f32.mrf.mxu0
        %8522 = vmatprep.mubr.bf16.mxu0 %v7533
        %8523 = vmatmul.mubr.bf16.gmra.mxu0 %v7532
        %v8524 = vpop.f32.mrf.mxu0
        %v8525 = vadd.f32 %v8364, %v8524
        %v8526 = vpop.f32.mrf.mxu0
        %v8527 = vpop.f32.mrf.mxu0
        %v8528 = vadd.f32 %v8367, %v8527
        %v8529 = vpop.f32.mrf.mxu0
        %8530 = vmatprep.mubr.bf16.mxu0 %v7541
        %8531 = vmatmul.mubr.bf16.gmra.mxu0 %v7540
        %v8532 = vpop.f32.mrf.mxu0
        %v8533 = vadd.f32 %v8372, %v8532
        %v8534 = vpop.f32.mrf.mxu0
        %v8535 = vpop.f32.mrf.mxu0
        %v8536 = vadd.f32 %v8375, %v8535
        %v8537 = vpop.f32.mrf.mxu0
        %8538 = vmatprep.mubr.bf16.mxu0 %v7549
        %8539 = vmatmul.mubr.bf16.gmra.mxu0 %v7548
        %v8540 = vpop.f32.mrf.mxu0
        %v8541 = vadd.f32 %v8380, %v8540
        %v8542 = vpop.f32.mrf.mxu0
        %v8543 = vpop.f32.mrf.mxu0
        %v8544 = vadd.f32 %v8383, %v8543
        %v8545 = vpop.f32.mrf.mxu0
        %8546 = vmatprep.mubr.bf16.mxu0 %v7557
        %8547 = vmatmul.mubr.bf16.gmra.mxu0 %v7556
        %v8548 = vpop.f32.mrf.mxu0
        %v8549 = vadd.f32 %v8388, %v8548
        %v8550 = vpop.f32.mrf.mxu0
        %v8551 = vpop.f32.mrf.mxu0
        %v8552 = vadd.f32 %v8391, %v8551
        %v8553 = vpop.f32.mrf.mxu0
        %8554 = vmatprep.mubr.bf16.mxu0 %v7565
        %8555 = vmatmul.mubr.bf16.gmra.mxu0 %v7564
        %v8556 = vpop.f32.mrf.mxu0
        %v8557 = vadd.f32 %v8396, %v8556
        %v8558 = vpop.f32.mrf.mxu0
        %v8559 = vpop.f32.mrf.mxu0
        %v8560 = vadd.f32 %v8399, %v8559
        %v8561 = vpop.f32.mrf.mxu0
        %8562 = vmatprep.mubr.bf16.mxu0 %v7573
        %8563 = vmatmul.mubr.bf16.gmra.mxu0 %v7572
        %v8564 = vpop.f32.mrf.mxu0
        %v8565 = vadd.f32 %v8404, %v8564
        %v8566 = vpop.f32.mrf.mxu0
        %v8567 = vpop.f32.mrf.mxu0
        %v8568 = vadd.f32 %v8407, %v8567
        %v8569 = vpop.f32.mrf.mxu0
        %8570 = vmatprep.mubr.bf16.mxu0 %v7581
        %8571 = vmatmul.mubr.bf16.gmra.mxu0 %v7580
        %v8572 = vpop.f32.mrf.mxu0
        %v8573 = vadd.f32 %v8412, %v8572
        %v8574 = vpop.f32.mrf.mxu0
        %v8575 = vpop.f32.mrf.mxu0
        %v8576 = vadd.f32 %v8415, %v8575
        %v8577 = vpop.f32.mrf.mxu0
        %8578 = vdwg.mxu0
        %8579 = vmatprep.subr.bf16.mxu0 0
        %8580 = vmatpush1.bf16.msra.mxu0 %v8023
        %8581 = vmatprep.subr.bf16.mxu0 0
        %8582 = vmatpush1.bf16.msra.mxu0 %v8022
        %8583 = vmatprep.subr.bf16.mxu0 0
        %8584 = vmatpush1.bf16.msra.mxu0 %v8021
        %8585 = vmatprep.subr.bf16.mxu0 0
        %8586 = vmatpush1.bf16.msra.mxu0 %v8020
        %8587 = vmatprep.subr.bf16.mxu0 0
        %8588 = vmatpush1.bf16.msra.mxu0 %v8019
        %8589 = vmatprep.subr.bf16.mxu0 0
        %8590 = vmatpush1.bf16.msra.mxu0 %v8018
        %8591 = vmatprep.subr.bf16.mxu0 0
        %8592 = vmatpush1.bf16.msra.mxu0 %v8017
        %8593 = vmatprep.subr.bf16.mxu0 0
        %8594 = vmatpush1.bf16.msra.mxu0 %v8016
        %8595 = vmatprep.subr.bf16.mxu0 0
        %8596 = vmatpush2.bf16.msra.mxu0 %v8031
        %8597 = vmatprep.subr.bf16.mxu0 0
        %8598 = vmatpush2.bf16.msra.mxu0 %v8030
        %8599 = vmatprep.subr.bf16.mxu0 0
        %8600 = vmatpush2.bf16.msra.mxu0 %v8029
        %8601 = vmatprep.subr.bf16.mxu0 0
        %8602 = vmatpush2.bf16.msra.mxu0 %v8028
        %8603 = vmatprep.subr.bf16.mxu0 0
        %8604 = vmatpush2.bf16.msra.mxu0 %v8027
        %8605 = vmatprep.subr.bf16.mxu0 0
        %8606 = vmatpush2.bf16.msra.mxu0 %v8026
        %8607 = vmatprep.subr.bf16.mxu0 0
        %8608 = vmatpush2.bf16.msra.mxu0 %v8025
        %8609 = vmatprep.subr.bf16.mxu0 0
        %8610 = vmatpush2.bf16.msra.mxu0 %v8024
        %8611 = vmatprep.mubr.bf16.mxu0 %v7463
        %8612 = vmatmul.mubr.bf16.gmra.mxu0 %v7462
        %v8613 = vpop.f32.mrf.mxu0
        %v8614 = vadd.f32 %v8453, %v8613
        %v8615 = vpop.f32.mrf.mxu0
        %v8616 = vpop.f32.mrf.mxu0
        %v8617 = vadd.f32 %v8456, %v8616
        %v8618 = vpop.f32.mrf.mxu0
        %8619 = vmatprep.mubr.bf16.mxu0 %v7471
        %8620 = vmatmul.mubr.bf16.gmra.mxu0 %v7470
        %v8621 = vpop.f32.mrf.mxu0
        %v8622 = vadd.f32 %v8461, %v8621
        %v8623 = vpop.f32.mrf.mxu0
        %v8624 = vpop.f32.mrf.mxu0
        %v8625 = vadd.f32 %v8464, %v8624
        %v8626 = vpop.f32.mrf.mxu0
        %8627 = vmatprep.mubr.bf16.mxu0 %v7479
        %8628 = vmatmul.mubr.bf16.gmra.mxu0 %v7478
        %v8629 = vpop.f32.mrf.mxu0
        %v8630 = vadd.f32 %v8469, %v8629
        %v8631 = vpop.f32.mrf.mxu0
        %v8632 = vpop.f32.mrf.mxu0
        %v8633 = vadd.f32 %v8472, %v8632
        %v8634 = vpop.f32.mrf.mxu0
        %8635 = vmatprep.mubr.bf16.mxu0 %v7487
        %8636 = vmatmul.mubr.bf16.gmra.mxu0 %v7486
        %v8637 = vpop.f32.mrf.mxu0
        %v8638 = vadd.f32 %v8477, %v8637
        %v8639 = vpop.f32.mrf.mxu0
        %v8640 = vpop.f32.mrf.mxu0
        %v8641 = vadd.f32 %v8480, %v8640
        %v8642 = vpop.f32.mrf.mxu0
        %8643 = vmatprep.mubr.bf16.mxu0 %v7495
        %8644 = vmatmul.mubr.bf16.gmra.mxu0 %v7494
        %v8645 = vpop.f32.mrf.mxu0
        %v8646 = vadd.f32 %v8485, %v8645
        %v8647 = vpop.f32.mrf.mxu0
        %v8648 = vpop.f32.mrf.mxu0
        %v8649 = vadd.f32 %v8488, %v8648
        %v8650 = vpop.f32.mrf.mxu0
        %8651 = vmatprep.mubr.bf16.mxu0 %v7503
        %8652 = vmatmul.mubr.bf16.gmra.mxu0 %v7502
        %v8653 = vpop.f32.mrf.mxu0
        %v8654 = vadd.f32 %v8493, %v8653
        %v8655 = vpop.f32.mrf.mxu0
        %v8656 = vpop.f32.mrf.mxu0
        %v8657 = vadd.f32 %v8496, %v8656
        %v8658 = vpop.f32.mrf.mxu0
        %8659 = vmatprep.mubr.bf16.mxu0 %v7511
        %8660 = vmatmul.mubr.bf16.gmra.mxu0 %v7510
        %v8661 = vpop.f32.mrf.mxu0
        %v8662 = vadd.f32 %v8501, %v8661
        %v8663 = vpop.f32.mrf.mxu0
        %v8664 = vpop.f32.mrf.mxu0
        %v8665 = vadd.f32 %v8504, %v8664
        %v8666 = vpop.f32.mrf.mxu0
        %8667 = vmatprep.mubr.bf16.mxu0 %v7519
        %8668 = vmatmul.mubr.bf16.gmra.mxu0 %v7518
        %v8669 = vpop.f32.mrf.mxu0
        %v8670 = vadd.f32 %v8509, %v8669
        %v8671 = vpop.f32.mrf.mxu0
        %v8672 = vpop.f32.mrf.mxu0
        %v8673 = vadd.f32 %v8512, %v8672
        %v8674 = vpop.f32.mrf.mxu0
        %8675 = vmatprep.mubr.bf16.mxu0 %v7527
        %8676 = vmatmul.mubr.bf16.gmra.mxu0 %v7526
        %v8677 = vpop.f32.mrf.mxu0
        %v8678 = vadd.f32 %v8517, %v8677
        %v8679 = vpop.f32.mrf.mxu0
        %v8680 = vpop.f32.mrf.mxu0
        %v8681 = vadd.f32 %v8520, %v8680
        %v8682 = vpop.f32.mrf.mxu0
        %8683 = vmatprep.mubr.bf16.mxu0 %v7535
        %8684 = vmatmul.mubr.bf16.gmra.mxu0 %v7534
        %v8685 = vpop.f32.mrf.mxu0
        %v8686 = vadd.f32 %v8525, %v8685
        %v8687 = vpop.f32.mrf.mxu0
        %v8688 = vpop.f32.mrf.mxu0
        %v8689 = vadd.f32 %v8528, %v8688
        %v8690 = vpop.f32.mrf.mxu0
        %8691 = vmatprep.mubr.bf16.mxu0 %v7543
        %8692 = vmatmul.mubr.bf16.gmra.mxu0 %v7542
        %v8693 = vpop.f32.mrf.mxu0
        %v8694 = vadd.f32 %v8533, %v8693
        %v8695 = vpop.f32.mrf.mxu0
        %v8696 = vpop.f32.mrf.mxu0
        %v8697 = vadd.f32 %v8536, %v8696
        %v8698 = vpop.f32.mrf.mxu0
        %8699 = vmatprep.mubr.bf16.mxu0 %v7551
        %8700 = vmatmul.mubr.bf16.gmra.mxu0 %v7550
        %v8701 = vpop.f32.mrf.mxu0
        %v8702 = vadd.f32 %v8541, %v8701
        %v8703 = vpop.f32.mrf.mxu0
        %v8704 = vpop.f32.mrf.mxu0
        %v8705 = vadd.f32 %v8544, %v8704
        %v8706 = vpop.f32.mrf.mxu0
        %8707 = vmatprep.mubr.bf16.mxu0 %v7559
        %8708 = vmatmul.mubr.bf16.gmra.mxu0 %v7558
        %v8709 = vpop.f32.mrf.mxu0
        %v8710 = vadd.f32 %v8549, %v8709
        %v8711 = vpop.f32.mrf.mxu0
        %v8712 = vpop.f32.mrf.mxu0
        %v8713 = vadd.f32 %v8552, %v8712
        %v8714 = vpop.f32.mrf.mxu0
        %8715 = vmatprep.mubr.bf16.mxu0 %v7567
        %8716 = vmatmul.mubr.bf16.gmra.mxu0 %v7566
        %v8717 = vpop.f32.mrf.mxu0
        %v8718 = vadd.f32 %v8557, %v8717
        %v8719 = vpop.f32.mrf.mxu0
        %v8720 = vpop.f32.mrf.mxu0
        %v8721 = vadd.f32 %v8560, %v8720
        %v8722 = vpop.f32.mrf.mxu0
        %8723 = vmatprep.mubr.bf16.mxu0 %v7575
        %8724 = vmatmul.mubr.bf16.gmra.mxu0 %v7574
        %v8725 = vpop.f32.mrf.mxu0
        %v8726 = vadd.f32 %v8565, %v8725
        %v8727 = vpop.f32.mrf.mxu0
        %v8728 = vpop.f32.mrf.mxu0
        %v8729 = vadd.f32 %v8568, %v8728
        %v8730 = vpop.f32.mrf.mxu0
        %8731 = vmatprep.mubr.bf16.mxu0 %v7583
        %8732 = vmatmul.mubr.bf16.gmra.mxu0 %v7582
        %v8733 = vpop.f32.mrf.mxu0
        %v8734 = vadd.f32 %v8573, %v8733
        %v8735 = vpop.f32.mrf.mxu0
        %v8736 = vpop.f32.mrf.mxu0
        %v8737 = vadd.f32 %v8576, %v8736
        %v8738 = vpop.f32.mrf.mxu0
        %8739 = vdwg.mxu0
        %v8740 = vadd.f32 %v6945, %v6947
        %v8741 = vadd.f32 %v8740, %v6949
        %v8742 = vadd.f32 %v8741, %v6951
        %v8743 = vadd.f32 %v8742, %v6953
        %v8744 = vadd.f32 %v8743, %v6955
        %v8745 = vadd.f32 %v8744, %v6957
        %v8746 = vadd.f32 %v8745, %v6959
        %8747 = vadd.xlane.f32.xlu0 %v8746
        %v8748 = vpop.xlane.xlu0 %8747
        %v8749 = vadd.f32 %v6961, %v6963
        %v8750 = vadd.f32 %v8749, %v6965
        %v8751 = vadd.f32 %v8750, %v6967
        %v8752 = vadd.f32 %v8751, %v6969
        %v8753 = vadd.f32 %v8752, %v6971
        %v8754 = vadd.f32 %v8753, %v6973
        %v8755 = vadd.f32 %v8754, %v6975
        %8756 = vadd.xlane.f32.xlu0 %v8755
        %v8757 = vpop.xlane.xlu0 %8756
        %v8758 = vadd.f32 %v6977, %v6979
        %v8759 = vadd.f32 %v8758, %v6981
        %v8760 = vadd.f32 %v8759, %v6983
        %v8761 = vadd.f32 %v8760, %v6985
        %v8762 = vadd.f32 %v8761, %v6987
        %v8763 = vadd.f32 %v8762, %v6989
        %v8764 = vadd.f32 %v8763, %v6991
        %8765 = vadd.xlane.f32.xlu0 %v8764
        %v8766 = vpop.xlane.xlu0 %8765
        %v8767 = vadd.f32 %v6993, %v6995
        %v8768 = vadd.f32 %v8767, %v6997
        %v8769 = vadd.f32 %v8768, %v6999
        %v8770 = vadd.f32 %v8769, %v7001
        %v8771 = vadd.f32 %v8770, %v7003
        %v8772 = vadd.f32 %v8771, %v7005
        %v8773 = vadd.f32 %v8772, %v7007
        %8774 = vadd.xlane.f32.xlu0 %v8773
        %v8775 = vpop.xlane.xlu0 %8774
        %v8776 = vadd.f32 %v7009, %v7011
        %v8777 = vadd.f32 %v8776, %v7013
        %v8778 = vadd.f32 %v8777, %v7015
        %v8779 = vadd.f32 %v8778, %v7017
        %v8780 = vadd.f32 %v8779, %v7019
        %v8781 = vadd.f32 %v8780, %v7021
        %v8782 = vadd.f32 %v8781, %v7023
        %8783 = vadd.xlane.f32.xlu0 %v8782
        %v8784 = vpop.xlane.xlu0 %8783
        %v8785 = vadd.f32 %v7025, %v7027
        %v8786 = vadd.f32 %v8785, %v7029
        %v8787 = vadd.f32 %v8786, %v7031
        %v8788 = vadd.f32 %v8787, %v7033
        %v8789 = vadd.f32 %v8788, %v7035
        %v8790 = vadd.f32 %v8789, %v7037
        %v8791 = vadd.f32 %v8790, %v7039
        %8792 = vadd.xlane.f32.xlu0 %v8791
        %v8793 = vpop.xlane.xlu0 %8792
        %v8794 = vadd.f32 %v7041, %v7043
        %v8795 = vadd.f32 %v8794, %v7045
        %v8796 = vadd.f32 %v8795, %v7047
        %v8797 = vadd.f32 %v8796, %v7049
        %v8798 = vadd.f32 %v8797, %v7051
        %v8799 = vadd.f32 %v8798, %v7053
        %v8800 = vadd.f32 %v8799, %v7055
        %8801 = vadd.xlane.f32.xlu0 %v8800
        %v8802 = vpop.xlane.xlu0 %8801
        %v8803 = vadd.f32 %v7057, %v7059
        %v8804 = vadd.f32 %v8803, %v7061
        %v8805 = vadd.f32 %v8804, %v7063
        %v8806 = vadd.f32 %v8805, %v7065
        %v8807 = vadd.f32 %v8806, %v7067
        %v8808 = vadd.f32 %v8807, %v7069
        %v8809 = vadd.f32 %v8808, %v7071
        %8810 = vadd.xlane.f32.xlu0 %v8809
        %v8811 = vpop.xlane.xlu0 %8810
        %v8812 = vadd.f32 %v7073, %v7075
        %v8813 = vadd.f32 %v8812, %v7077
        %v8814 = vadd.f32 %v8813, %v7079
        %v8815 = vadd.f32 %v8814, %v7081
        %v8816 = vadd.f32 %v8815, %v7083
        %v8817 = vadd.f32 %v8816, %v7085
        %v8818 = vadd.f32 %v8817, %v7087
        %8819 = vadd.xlane.f32.xlu0 %v8818
        %v8820 = vpop.xlane.xlu0 %8819
        %v8821 = vadd.f32 %v7089, %v7091
        %v8822 = vadd.f32 %v8821, %v7093
        %v8823 = vadd.f32 %v8822, %v7095
        %v8824 = vadd.f32 %v8823, %v7097
        %v8825 = vadd.f32 %v8824, %v7099
        %v8826 = vadd.f32 %v8825, %v7101
        %v8827 = vadd.f32 %v8826, %v7103
        %8828 = vadd.xlane.f32.xlu0 %v8827
        %v8829 = vpop.xlane.xlu0 %8828
        %v8830 = vadd.f32 %v7105, %v7107
        %v8831 = vadd.f32 %v8830, %v7109
        %v8832 = vadd.f32 %v8831, %v7111
        %v8833 = vadd.f32 %v8832, %v7113
        %v8834 = vadd.f32 %v8833, %v7115
        %v8835 = vadd.f32 %v8834, %v7117
        %v8836 = vadd.f32 %v8835, %v7119
        %8837 = vadd.xlane.f32.xlu0 %v8836
        %v8838 = vpop.xlane.xlu0 %8837
        %v8839 = vadd.f32 %v7121, %v7123
        %v8840 = vadd.f32 %v8839, %v7125
        %v8841 = vadd.f32 %v8840, %v7127
        %v8842 = vadd.f32 %v8841, %v7129
        %v8843 = vadd.f32 %v8842, %v7131
        %v8844 = vadd.f32 %v8843, %v7133
        %v8845 = vadd.f32 %v8844, %v7135
        %8846 = vadd.xlane.f32.xlu0 %v8845
        %v8847 = vpop.xlane.xlu0 %8846
        %v8848 = vadd.f32 %v7137, %v7139
        %v8849 = vadd.f32 %v8848, %v7141
        %v8850 = vadd.f32 %v8849, %v7143
        %v8851 = vadd.f32 %v8850, %v7145
        %v8852 = vadd.f32 %v8851, %v7147
        %v8853 = vadd.f32 %v8852, %v7149
        %v8854 = vadd.f32 %v8853, %v7151
        %8855 = vadd.xlane.f32.xlu0 %v8854
        %v8856 = vpop.xlane.xlu0 %8855
        %v8857 = vadd.f32 %v7153, %v7155
        %v8858 = vadd.f32 %v8857, %v7157
        %v8859 = vadd.f32 %v8858, %v7159
        %v8860 = vadd.f32 %v8859, %v7161
        %v8861 = vadd.f32 %v8860, %v7163
        %v8862 = vadd.f32 %v8861, %v7165
        %v8863 = vadd.f32 %v8862, %v7167
        %8864 = vadd.xlane.f32.xlu0 %v8863
        %v8865 = vpop.xlane.xlu0 %8864
        %v8866 = vadd.f32 %v7169, %v7171
        %v8867 = vadd.f32 %v8866, %v7173
        %v8868 = vadd.f32 %v8867, %v7175
        %v8869 = vadd.f32 %v8868, %v7177
        %v8870 = vadd.f32 %v8869, %v7179
        %v8871 = vadd.f32 %v8870, %v7181
        %v8872 = vadd.f32 %v8871, %v7183
        %8873 = vadd.xlane.f32.xlu0 %v8872
        %v8874 = vpop.xlane.xlu0 %8873
        %v8875 = vadd.f32 %v7185, %v7187
        %v8876 = vadd.f32 %v8875, %v7189
        %v8877 = vadd.f32 %v8876, %v7191
        %v8878 = vadd.f32 %v8877, %v7193
        %v8879 = vadd.f32 %v8878, %v7195
        %v8880 = vadd.f32 %v8879, %v7197
        %v8881 = vadd.f32 %v8880, %v7199
        %8882 = vadd.xlane.f32.xlu0 %v8881
        %v8883 = vpop.xlane.xlu0 %8882
        %v8884 = vadd.f32 %v7201, %v7203
        %v8885 = vadd.f32 %v8884, %v7205
        %v8886 = vadd.f32 %v8885, %v7207
        %v8887 = vadd.f32 %v8886, %v7209
        %v8888 = vadd.f32 %v8887, %v7211
        %v8889 = vadd.f32 %v8888, %v7213
        %v8890 = vadd.f32 %v8889, %v7215
        %8891 = vadd.xlane.f32.xlu0 %v8890
        %v8892 = vpop.xlane.xlu0 %8891
        %v8893 = vadd.f32 %v7217, %v7219
        %v8894 = vadd.f32 %v8893, %v7221
        %v8895 = vadd.f32 %v8894, %v7223
        %v8896 = vadd.f32 %v8895, %v7225
        %v8897 = vadd.f32 %v8896, %v7227
        %v8898 = vadd.f32 %v8897, %v7229
        %v8899 = vadd.f32 %v8898, %v7231
        %8900 = vadd.xlane.f32.xlu0 %v8899
        %v8901 = vpop.xlane.xlu0 %8900
        %v8902 = vadd.f32 %v7233, %v7235
        %v8903 = vadd.f32 %v8902, %v7237
        %v8904 = vadd.f32 %v8903, %v7239
        %v8905 = vadd.f32 %v8904, %v7241
        %v8906 = vadd.f32 %v8905, %v7243
        %v8907 = vadd.f32 %v8906, %v7245
        %v8908 = vadd.f32 %v8907, %v7247
        %8909 = vadd.xlane.f32.xlu0 %v8908
        %v8910 = vpop.xlane.xlu0 %8909
        %v8911 = vadd.f32 %v7249, %v7251
        %v8912 = vadd.f32 %v8911, %v7253
        %v8913 = vadd.f32 %v8912, %v7255
        %v8914 = vadd.f32 %v8913, %v7257
        %v8915 = vadd.f32 %v8914, %v7259
        %v8916 = vadd.f32 %v8915, %v7261
        %v8917 = vadd.f32 %v8916, %v7263
        %8918 = vadd.xlane.f32.xlu0 %v8917
        %v8919 = vpop.xlane.xlu0 %8918
        %v8920 = vadd.f32 %v7265, %v7267
        %v8921 = vadd.f32 %v8920, %v7269
        %v8922 = vadd.f32 %v8921, %v7271
        %v8923 = vadd.f32 %v8922, %v7273
        %v8924 = vadd.f32 %v8923, %v7275
        %v8925 = vadd.f32 %v8924, %v7277
        %v8926 = vadd.f32 %v8925, %v7279
        %8927 = vadd.xlane.f32.xlu0 %v8926
        %v8928 = vpop.xlane.xlu0 %8927
        %v8929 = vadd.f32 %v7281, %v7283
        %v8930 = vadd.f32 %v8929, %v7285
        %v8931 = vadd.f32 %v8930, %v7287
        %v8932 = vadd.f32 %v8931, %v7289
        %v8933 = vadd.f32 %v8932, %v7291
        %v8934 = vadd.f32 %v8933, %v7293
        %v8935 = vadd.f32 %v8934, %v7295
        %8936 = vadd.xlane.f32.xlu0 %v8935
        %v8937 = vpop.xlane.xlu0 %8936
        %v8938 = vadd.f32 %v7297, %v7299
        %v8939 = vadd.f32 %v8938, %v7301
        %v8940 = vadd.f32 %v8939, %v7303
        %v8941 = vadd.f32 %v8940, %v7305
        %v8942 = vadd.f32 %v8941, %v7307
        %v8943 = vadd.f32 %v8942, %v7309
        %v8944 = vadd.f32 %v8943, %v7311
        %8945 = vadd.xlane.f32.xlu0 %v8944
        %v8946 = vpop.xlane.xlu0 %8945
        %v8947 = vadd.f32 %v7313, %v7315
        %v8948 = vadd.f32 %v8947, %v7317
        %v8949 = vadd.f32 %v8948, %v7319
        %v8950 = vadd.f32 %v8949, %v7321
        %v8951 = vadd.f32 %v8950, %v7323
        %v8952 = vadd.f32 %v8951, %v7325
        %v8953 = vadd.f32 %v8952, %v7327
        %8954 = vadd.xlane.f32.xlu0 %v8953
        %v8955 = vpop.xlane.xlu0 %8954
        %v8956 = vadd.f32 %v7329, %v7331
        %v8957 = vadd.f32 %v8956, %v7333
        %v8958 = vadd.f32 %v8957, %v7335
        %v8959 = vadd.f32 %v8958, %v7337
        %v8960 = vadd.f32 %v8959, %v7339
        %v8961 = vadd.f32 %v8960, %v7341
        %v8962 = vadd.f32 %v8961, %v7343
        %8963 = vadd.xlane.f32.xlu0 %v8962
        %v8964 = vpop.xlane.xlu0 %8963
        %v8965 = vadd.f32 %v7345, %v7347
        %v8966 = vadd.f32 %v8965, %v7349
        %v8967 = vadd.f32 %v8966, %v7351
        %v8968 = vadd.f32 %v8967, %v7353
        %v8969 = vadd.f32 %v8968, %v7355
        %v8970 = vadd.f32 %v8969, %v7357
        %v8971 = vadd.f32 %v8970, %v7359
        %8972 = vadd.xlane.f32.xlu0 %v8971
        %v8973 = vpop.xlane.xlu0 %8972
        %v8974 = vadd.f32 %v7361, %v7363
        %v8975 = vadd.f32 %v8974, %v7365
        %v8976 = vadd.f32 %v8975, %v7367
        %v8977 = vadd.f32 %v8976, %v7369
        %v8978 = vadd.f32 %v8977, %v7371
        %v8979 = vadd.f32 %v8978, %v7373
        %v8980 = vadd.f32 %v8979, %v7375
        %8981 = vadd.xlane.f32.xlu0 %v8980
        %v8982 = vpop.xlane.xlu0 %8981
        %v8983 = vadd.f32 %v7377, %v7379
        %v8984 = vadd.f32 %v8983, %v7381
        %v8985 = vadd.f32 %v8984, %v7383
        %v8986 = vadd.f32 %v8985, %v7385
        %v8987 = vadd.f32 %v8986, %v7387
        %v8988 = vadd.f32 %v8987, %v7389
        %v8989 = vadd.f32 %v8988, %v7391
        %8990 = vadd.xlane.f32.xlu0 %v8989
        %v8991 = vpop.xlane.xlu0 %8990
        %v8992 = vadd.f32 %v7393, %v7395
        %v8993 = vadd.f32 %v8992, %v7397
        %v8994 = vadd.f32 %v8993, %v7399
        %v8995 = vadd.f32 %v8994, %v7401
        %v8996 = vadd.f32 %v8995, %v7403
        %v8997 = vadd.f32 %v8996, %v7405
        %v8998 = vadd.f32 %v8997, %v7407
        %8999 = vadd.xlane.f32.xlu0 %v8998
        %v9000 = vpop.xlane.xlu0 %8999
        %v9001 = vadd.f32 %v7409, %v7411
        %v9002 = vadd.f32 %v9001, %v7413
        %v9003 = vadd.f32 %v9002, %v7415
        %v9004 = vadd.f32 %v9003, %v7417
        %v9005 = vadd.f32 %v9004, %v7419
        %v9006 = vadd.f32 %v9005, %v7421
        %v9007 = vadd.f32 %v9006, %v7423
        %9008 = vadd.xlane.f32.xlu0 %v9007
        %v9009 = vpop.xlane.xlu0 %9008
        %v9010 = vadd.f32 %v7425, %v7427
        %v9011 = vadd.f32 %v9010, %v7429
        %v9012 = vadd.f32 %v9011, %v7431
        %v9013 = vadd.f32 %v9012, %v7433
        %v9014 = vadd.f32 %v9013, %v7435
        %v9015 = vadd.f32 %v9014, %v7437
        %v9016 = vadd.f32 %v9015, %v7439
        %9017 = vadd.xlane.f32.xlu0 %v9016
        %v9018 = vpop.xlane.xlu0 %9017
        %v9019 = vadd.f32 %v7441, %v7443
        %v9020 = vadd.f32 %v9019, %v7445
        %v9021 = vadd.f32 %v9020, %v7447
        %v9022 = vadd.f32 %v9021, %v7449
        %v9023 = vadd.f32 %v9022, %v7451
        %v9024 = vadd.f32 %v9023, %v7453
        %v9025 = vadd.f32 %v9024, %v7455
        %9026 = vadd.xlane.f32.xlu0 %v9025
        %v9027 = vpop.xlane.xlu0 %9026
        %v9028 = vrcp.pop %v8748
        %v9029 = vrcp.pop %v8757
        %v9030 = vrcp.pop %v8766
        %v9031 = vrcp.pop %v8775
        %v9032 = vrcp.pop %v8784
        %v9033 = vrcp.pop %v8793
        %v9034 = vrcp.pop %v8802
        %v9035 = vrcp.pop %v8811
        %v9036 = vrcp.pop %v8820
        %v9037 = vrcp.pop %v8829
        %v9038 = vrcp.pop %v8838
        %v9039 = vrcp.pop %v8847
        %v9040 = vrcp.pop %v8856
        %v9041 = vrcp.pop %v8865
        %v9042 = vrcp.pop %v8874
        %v9043 = vrcp.pop %v8883
        %v9044 = vrcp.pop %v8892
        %v9045 = vrcp.pop %v8901
        %v9046 = vrcp.pop %v8910
        %v9047 = vrcp.pop %v8919
        %v9048 = vrcp.pop %v8928
        %v9049 = vrcp.pop %v8937
        %v9050 = vrcp.pop %v8946
        %v9051 = vrcp.pop %v8955
        %v9052 = vrcp.pop %v8964
        %v9053 = vrcp.pop %v8973
        %v9054 = vrcp.pop %v8982
        %v9055 = vrcp.pop %v8991
        %v9056 = vrcp.pop %v9000
        %v9057 = vrcp.pop %v9009
        %v9058 = vrcp.pop %v9018
        %v9059 = vrcp.pop %v9027
        %v9060 = vmul.f32 %v8614, %v9028
        %v9061 = vmul.f32 %v8617, %v9029
        %v9062 = vmul.f32 %v8622, %v9030
        %v9063 = vmul.f32 %v8625, %v9031
        %v9064 = vmul.f32 %v8630, %v9032
        %v9065 = vmul.f32 %v8633, %v9033
        %v9066 = vmul.f32 %v8638, %v9034
        %v9067 = vmul.f32 %v8641, %v9035
        %v9068 = vmul.f32 %v8646, %v9036
        %v9069 = vmul.f32 %v8649, %v9037
        %v9070 = vmul.f32 %v8654, %v9038
        %v9071 = vmul.f32 %v8657, %v9039
        %v9072 = vmul.f32 %v8662, %v9040
        %v9073 = vmul.f32 %v8665, %v9041
        %v9074 = vmul.f32 %v8670, %v9042
        %v9075 = vmul.f32 %v8673, %v9043
        %v9076 = vmul.f32 %v8678, %v9044
        %v9077 = vmul.f32 %v8681, %v9045
        %v9078 = vmul.f32 %v8686, %v9046
        %v9079 = vmul.f32 %v8689, %v9047
        %v9080 = vmul.f32 %v8694, %v9048
        %v9081 = vmul.f32 %v8697, %v9049
        %v9082 = vmul.f32 %v8702, %v9050
        %v9083 = vmul.f32 %v8705, %v9051
        %v9084 = vmul.f32 %v8710, %v9052
        %v9085 = vmul.f32 %v8713, %v9053
        %v9086 = vmul.f32 %v8718, %v9054
        %v9087 = vmul.f32 %v8721, %v9055
        %v9088 = vmul.f32 %v8726, %v9056
        %v9089 = vmul.f32 %v8729, %v9057
        %v9090 = vmul.f32 %v8734, %v9058
        %v9091 = vmul.f32 %v8737, %v9059
        %v9092 = vpack.c.bf16 %v9061, %v9060
        %v9093 = vpack.c.bf16 %v9063, %v9062
        %v9094 = vpack.c.bf16 %v9065, %v9064
        %v9095 = vpack.c.bf16 %v9067, %v9066
        %v9096 = vpack.c.bf16 %v9069, %v9068
        %v9097 = vpack.c.bf16 %v9071, %v9070
        %v9098 = vpack.c.bf16 %v9073, %v9072
        %v9099 = vpack.c.bf16 %v9075, %v9074
        %v9100 = vpack.c.bf16 %v9077, %v9076
        %v9101 = vpack.c.bf16 %v9079, %v9078
        %v9102 = vpack.c.bf16 %v9081, %v9080
        %v9103 = vpack.c.bf16 %v9083, %v9082
        %v9104 = vpack.c.bf16 %v9085, %v9084
        %v9105 = vpack.c.bf16 %v9087, %v9086
        %v9106 = vpack.c.bf16 %v9089, %v9088
        %v9107 = vpack.c.bf16 %v9091, %v9090
        %v9108 = vld [vmem:[%s7] sm:$0xf]
        %v9109 = vld [vmem:[%s7 + $0x4] sm:$0xf]
        %v9110 = vld [vmem:[%s7 + $0x8] sm:$0xf]
        %v9111 = vld [vmem:[%s7 + $0xc] sm:$0xf]
        %v9112 = vld [vmem:[%s7 + $0x10] sm:$0xf]
        %v9113 = vld [vmem:[%s7 + $0x14] sm:$0xf]
        %v9114 = vld [vmem:[%s7 + $0x18] sm:$0xf]
        %v9115 = vld [vmem:[%s7 + $0x1c] sm:$0xf]
        %v9116 = vld [vmem:[%s7 + $0x20] sm:$0xf]
        %v9117 = vld [vmem:[%s7 + $0x24] sm:$0xf]
        %v9118 = vld [vmem:[%s7 + $0x28] sm:$0xf]
        %v9119 = vld [vmem:[%s7 + $0x2c] sm:$0xf]
        %v9120 = vld [vmem:[%s7 + $0x30] sm:$0xf]
        %v9121 = vld [vmem:[%s7 + $0x34] sm:$0xf]
        %v9122 = vld [vmem:[%s7 + $0x38] sm:$0xf]
        %v9123 = vld [vmem:[%s7 + $0x3c] sm:$0xf]
        %v9124 = vld [vmem:[%s8] sm:$0x1]
        %v9126 = vlaneseq
        %v9127 = vshrl.u32 %v9126, 7
        %v9128 = vsub.s32 0, %v9127
        %v9129 = vrot.slane %v9124, %v9128
        %v9147 = vunpack.c.l.b16 %v9108
        %v9148 = vunpack.c.l.b16 %v9109
        %v9149 = vunpack.c.l.b16 %v9110
        %v9150 = vunpack.c.l.b16 %v9111
        %v9151 = vunpack.c.l.b16 %v9112
        %v9152 = vunpack.c.l.b16 %v9113
        %v9153 = vunpack.c.l.b16 %v9114
        %v9154 = vunpack.c.l.b16 %v9115
        %v9155 = vunpack.c.l.b16 %v9116
        %v9156 = vunpack.c.l.b16 %v9117
        %v9157 = vunpack.c.l.b16 %v9118
        %v9158 = vunpack.c.l.b16 %v9119
        %v9159 = vunpack.c.l.b16 %v9120
        %v9160 = vunpack.c.l.b16 %v9121
        %v9161 = vunpack.c.l.b16 %v9122
        %v9162 = vunpack.c.l.b16 %v9123
        %v9163 = vpack.c.b16 %v9148, %v9147
        %v9164 = vpack.c.b16 %v9150, %v9149
        %v9165 = vpack.c.b16 %v9152, %v9151
        %v9166 = vpack.c.b16 %v9154, %v9153
        %v9167 = vpack.c.b16 %v9156, %v9155
        %v9168 = vpack.c.b16 %v9158, %v9157
        %v9169 = vpack.c.b16 %v9160, %v9159
        %v9170 = vpack.c.b16 %v9162, %v9161
        %9179 = vmatprep.subr.bf16.mxu0 0
        %9180 = vmatpush1.bf16.msra.mxu0 %v9170
        %9181 = vmatprep.subr.bf16.mxu0 0
        %9182 = vmatpush1.bf16.msra.mxu0 %v9169
        %9183 = vmatprep.subr.bf16.mxu0 0
        %9184 = vmatpush1.bf16.msra.mxu0 %v9168
        %9185 = vmatprep.subr.bf16.mxu0 0
        %9186 = vmatpush1.bf16.msra.mxu0 %v9167
        %9187 = vmatprep.subr.bf16.mxu0 0
        %9188 = vmatpush1.bf16.msra.mxu0 %v9166
        %9189 = vmatprep.subr.bf16.mxu0 0
        %9190 = vmatpush1.bf16.msra.mxu0 %v9165
        %9191 = vmatprep.subr.bf16.mxu0 0
        %9192 = vmatpush1.bf16.msra.mxu0 %v9164
        %9193 = vmatprep.subr.bf16.mxu0 0
        %9194 = vmatpush1.bf16.msra.mxu0 %v9163
        %9195 = vmatprep.subr.bf16.mxu0 0
        %9196 = vmatpush2.bf16.msra.mxu0 0
        %9197 = vmatprep.subr.bf16.mxu0 0
        %9198 = vmatpush2.bf16.msra.mxu0 0
        %9199 = vmatprep.subr.bf16.mxu0 0
        %9200 = vmatpush2.bf16.msra.mxu0 0
        %9201 = vmatprep.subr.bf16.mxu0 0
        %9202 = vmatpush2.bf16.msra.mxu0 0
        %9203 = vmatprep.subr.bf16.mxu0 0
        %9204 = vmatpush2.bf16.msra.mxu0 0
        %9205 = vmatprep.subr.bf16.mxu0 0
        %9206 = vmatpush2.bf16.msra.mxu0 0
        %9207 = vmatprep.subr.bf16.mxu0 0
        %9208 = vmatpush2.bf16.msra.mxu0 0
        %9209 = vmatprep.subr.bf16.mxu0 0
        %9210 = vmatpush2.bf16.msra.mxu0 0
        %9211 = vmatprep.mubr.bf16.mxu0 0
        %9212 = vmatmul.mubr.bf16.gmra.mxu0 %v9092
        %v9213 = vpop.f32.mrf.mxu0
        %v9214 = vadd.f32 %v9129, %v9213
        %v9215 = vpop.f32.mrf.mxu0
        %v9216 = vpop.f32.mrf.mxu0
        %v9217 = vadd.f32 %v9129, %v9216
        %v9218 = vpop.f32.mrf.mxu0
        %9219 = vmatprep.mubr.bf16.mxu0 0
        %9220 = vmatmul.mubr.bf16.gmra.mxu0 %v9093
        %v9221 = vpop.f32.mrf.mxu0
        %v9222 = vadd.f32 %v9129, %v9221
        %v9223 = vpop.f32.mrf.mxu0
        %v9224 = vpop.f32.mrf.mxu0
        %v9225 = vadd.f32 %v9129, %v9224
        %v9226 = vpop.f32.mrf.mxu0
        %9227 = vmatprep.mubr.bf16.mxu0 0
        %9228 = vmatmul.mubr.bf16.gmra.mxu0 %v9094
        %v9229 = vpop.f32.mrf.mxu0
        %v9230 = vadd.f32 %v9129, %v9229
        %v9231 = vpop.f32.mrf.mxu0
        %v9232 = vpop.f32.mrf.mxu0
        %v9233 = vadd.f32 %v9129, %v9232
        %v9234 = vpop.f32.mrf.mxu0
        %9235 = vmatprep.mubr.bf16.mxu0 0
        %9236 = vmatmul.mubr.bf16.gmra.mxu0 %v9095
        %v9237 = vpop.f32.mrf.mxu0
        %v9238 = vadd.f32 %v9129, %v9237
        %v9239 = vpop.f32.mrf.mxu0
        %v9240 = vpop.f32.mrf.mxu0
        %v9241 = vadd.f32 %v9129, %v9240
        %v9242 = vpop.f32.mrf.mxu0
        %9243 = vmatprep.mubr.bf16.mxu0 0
        %9244 = vmatmul.mubr.bf16.gmra.mxu0 %v9096
        %v9245 = vpop.f32.mrf.mxu0
        %v9246 = vadd.f32 %v9129, %v9245
        %v9247 = vpop.f32.mrf.mxu0
        %v9248 = vpop.f32.mrf.mxu0
        %v9249 = vadd.f32 %v9129, %v9248
        %v9250 = vpop.f32.mrf.mxu0
        %9251 = vmatprep.mubr.bf16.mxu0 0
        %9252 = vmatmul.mubr.bf16.gmra.mxu0 %v9097
        %v9253 = vpop.f32.mrf.mxu0
        %v9254 = vadd.f32 %v9129, %v9253
        %v9255 = vpop.f32.mrf.mxu0
        %v9256 = vpop.f32.mrf.mxu0
        %v9257 = vadd.f32 %v9129, %v9256
        %v9258 = vpop.f32.mrf.mxu0
        %9259 = vmatprep.mubr.bf16.mxu0 0
        %9260 = vmatmul.mubr.bf16.gmra.mxu0 %v9098
        %v9261 = vpop.f32.mrf.mxu0
        %v9262 = vadd.f32 %v9129, %v9261
        %v9263 = vpop.f32.mrf.mxu0
        %v9264 = vpop.f32.mrf.mxu0
        %v9265 = vadd.f32 %v9129, %v9264
        %v9266 = vpop.f32.mrf.mxu0
        %9267 = vmatprep.mubr.bf16.mxu0 0
        %9268 = vmatmul.mubr.bf16.gmra.mxu0 %v9099
        %v9269 = vpop.f32.mrf.mxu0
        %v9270 = vadd.f32 %v9129, %v9269
        %v9271 = vpop.f32.mrf.mxu0
        %v9272 = vpop.f32.mrf.mxu0
        %v9273 = vadd.f32 %v9129, %v9272
        %v9274 = vpop.f32.mrf.mxu0
        %9275 = vmatprep.mubr.bf16.mxu0 0
        %9276 = vmatmul.mubr.bf16.gmra.mxu0 %v9100
        %v9277 = vpop.f32.mrf.mxu0
        %v9278 = vadd.f32 %v9129, %v9277
        %v9279 = vpop.f32.mrf.mxu0
        %v9280 = vpop.f32.mrf.mxu0
        %v9281 = vadd.f32 %v9129, %v9280
        %v9282 = vpop.f32.mrf.mxu0
        %9283 = vmatprep.mubr.bf16.mxu0 0
        %9284 = vmatmul.mubr.bf16.gmra.mxu0 %v9101
        %v9285 = vpop.f32.mrf.mxu0
        %v9286 = vadd.f32 %v9129, %v9285
        %v9287 = vpop.f32.mrf.mxu0
        %v9288 = vpop.f32.mrf.mxu0
        %v9289 = vadd.f32 %v9129, %v9288
        %v9290 = vpop.f32.mrf.mxu0
        %9291 = vmatprep.mubr.bf16.mxu0 0
        %9292 = vmatmul.mubr.bf16.gmra.mxu0 %v9102
        %v9293 = vpop.f32.mrf.mxu0
        %v9294 = vadd.f32 %v9129, %v9293
        %v9295 = vpop.f32.mrf.mxu0
        %v9296 = vpop.f32.mrf.mxu0
        %v9297 = vadd.f32 %v9129, %v9296
        %v9298 = vpop.f32.mrf.mxu0
        %9299 = vmatprep.mubr.bf16.mxu0 0
        %9300 = vmatmul.mubr.bf16.gmra.mxu0 %v9103
        %v9301 = vpop.f32.mrf.mxu0
        %v9302 = vadd.f32 %v9129, %v9301
        %v9303 = vpop.f32.mrf.mxu0
        %v9304 = vpop.f32.mrf.mxu0
        %v9305 = vadd.f32 %v9129, %v9304
        %v9306 = vpop.f32.mrf.mxu0
        %9307 = vmatprep.mubr.bf16.mxu0 0
        %9308 = vmatmul.mubr.bf16.gmra.mxu0 %v9104
        %v9309 = vpop.f32.mrf.mxu0
        %v9310 = vadd.f32 %v9129, %v9309
        %v9311 = vpop.f32.mrf.mxu0
        %v9312 = vpop.f32.mrf.mxu0
        %v9313 = vadd.f32 %v9129, %v9312
        %v9314 = vpop.f32.mrf.mxu0
        %9315 = vmatprep.mubr.bf16.mxu0 0
        %9316 = vmatmul.mubr.bf16.gmra.mxu0 %v9105
        %v9317 = vpop.f32.mrf.mxu0
        %v9318 = vadd.f32 %v9129, %v9317
        %v9319 = vpop.f32.mrf.mxu0
        %v9320 = vpop.f32.mrf.mxu0
        %v9321 = vadd.f32 %v9129, %v9320
        %v9322 = vpop.f32.mrf.mxu0
        %9323 = vmatprep.mubr.bf16.mxu0 0
        %9324 = vmatmul.mubr.bf16.gmra.mxu0 %v9106
        %v9325 = vpop.f32.mrf.mxu0
        %v9326 = vadd.f32 %v9129, %v9325
        %v9327 = vpop.f32.mrf.mxu0
        %v9328 = vpop.f32.mrf.mxu0
        %v9329 = vadd.f32 %v9129, %v9328
        %v9330 = vpop.f32.mrf.mxu0
        %9331 = vmatprep.mubr.bf16.mxu0 0
        %9332 = vmatmul.mubr.bf16.gmra.mxu0 %v9107
        %v9333 = vpop.f32.mrf.mxu0
        %v9334 = vadd.f32 %v9129, %v9333
        %v9335 = vpop.f32.mrf.mxu0
        %v9336 = vpop.f32.mrf.mxu0
        %v9337 = vadd.f32 %v9129, %v9336
        %v9338 = vpop.f32.mrf.mxu0
        %9339 = vdwg.mxu0
        %s9340 = scalar_lea.vmem %s330, %s4983 [#allocation5]
        %v9341 = vld [vmem:[%s9340] sm:$0xff]
        %v9342 = vld [vmem:[%s9340 + $0x8] sm:$0xff]
        %v9343 = vld [vmem:[%s9340 + $0x10] sm:$0xff]
        %v9344 = vld [vmem:[%s9340 + $0x18] sm:$0xff]
        %v9345 = vld [vmem:[%s9340 + $0x20] sm:$0xff]
        %v9346 = vld [vmem:[%s9340 + $0x28] sm:$0xff]
        %v9347 = vld [vmem:[%s9340 + $0x30] sm:$0xff]
        %v9348 = vld [vmem:[%s9340 + $0x38] sm:$0xff]
        %v9349 = vld [vmem:[%s9340 + $0x40] sm:$0xff]
        %v9350 = vld [vmem:[%s9340 + $0x48] sm:$0xff]
        %v9351 = vld [vmem:[%s9340 + $0x50] sm:$0xff]
        %v9352 = vld [vmem:[%s9340 + $0x58] sm:$0xff]
        %v9353 = vld [vmem:[%s9340 + $0x60] sm:$0xff]
        %v9354 = vld [vmem:[%s9340 + $0x68] sm:$0xff]
        %v9355 = vld [vmem:[%s9340 + $0x70] sm:$0xff]
        %v9356 = vld [vmem:[%s9340 + $0x78] sm:$0xff]
        %v9357 = vld [vmem:[%s9340 + $0x80] sm:$0xff]
        %v9358 = vld [vmem:[%s9340 + $0x88] sm:$0xff]
        %v9359 = vld [vmem:[%s9340 + $0x90] sm:$0xff]
        %v9360 = vld [vmem:[%s9340 + $0x98] sm:$0xff]
        %v9361 = vld [vmem:[%s9340 + $0xa0] sm:$0xff]
        %v9362 = vld [vmem:[%s9340 + $0xa8] sm:$0xff]
        %v9363 = vld [vmem:[%s9340 + $0xb0] sm:$0xff]
        %v9364 = vld [vmem:[%s9340 + $0xb8] sm:$0xff]
        %v9365 = vld [vmem:[%s9340 + $0xc0] sm:$0xff]
        %v9366 = vld [vmem:[%s9340 + $0xc8] sm:$0xff]
        %v9367 = vld [vmem:[%s9340 + $0xd0] sm:$0xff]
        %v9368 = vld [vmem:[%s9340 + $0xd8] sm:$0xff]
        %v9369 = vld [vmem:[%s9340 + $0xe0] sm:$0xff]
        %v9370 = vld [vmem:[%s9340 + $0xe8] sm:$0xff]
        %v9371 = vld [vmem:[%s9340 + $0xf0] sm:$0xff]
        %v9372 = vld [vmem:[%s9340 + $0xf8] sm:$0xff]
        %v9373 = vadd.f32 %v9341, %v9214
        %v9374 = vadd.f32 %v9342, %v9217
        %v9375 = vadd.f32 %v9343, %v9222
        %v9376 = vadd.f32 %v9344, %v9225
        %v9377 = vadd.f32 %v9345, %v9230
        %v9378 = vadd.f32 %v9346, %v9233
        %v9379 = vadd.f32 %v9347, %v9238
        %v9380 = vadd.f32 %v9348, %v9241
        %v9381 = vadd.f32 %v9349, %v9246
        %v9382 = vadd.f32 %v9350, %v9249
        %v9383 = vadd.f32 %v9351, %v9254
        %v9384 = vadd.f32 %v9352, %v9257
        %v9385 = vadd.f32 %v9353, %v9262
        %v9386 = vadd.f32 %v9354, %v9265
        %v9387 = vadd.f32 %v9355, %v9270
        %v9388 = vadd.f32 %v9356, %v9273
        %v9389 = vadd.f32 %v9357, %v9278
        %v9390 = vadd.f32 %v9358, %v9281
        %v9391 = vadd.f32 %v9359, %v9286
        %v9392 = vadd.f32 %v9360, %v9289
        %v9393 = vadd.f32 %v9361, %v9294
        %v9394 = vadd.f32 %v9362, %v9297
        %v9395 = vadd.f32 %v9363, %v9302
        %v9396 = vadd.f32 %v9364, %v9305
        %v9397 = vadd.f32 %v9365, %v9310
        %v9398 = vadd.f32 %v9366, %v9313
        %v9399 = vadd.f32 %v9367, %v9318
        %v9400 = vadd.f32 %v9368, %v9321
        %v9401 = vadd.f32 %v9369, %v9326
        %v9402 = vadd.f32 %v9370, %v9329
        %v9403 = vadd.f32 %v9371, %v9334
        %v9404 = vadd.f32 %v9372, %v9337
        %9405 = vst [vmem:[%s364] sm:$0xff] %v9373
        %9406 = vst [vmem:[%s364 + $0x8] sm:$0xff] %v9374
        %9407 = vst [vmem:[%s364 + $0x10] sm:$0xff] %v9375
        %9408 = vst [vmem:[%s364 + $0x18] sm:$0xff] %v9376
        %9409 = vst [vmem:[%s364 + $0x20] sm:$0xff] %v9377
        %9410 = vst [vmem:[%s364 + $0x28] sm:$0xff] %v9378
        %9411 = vst [vmem:[%s364 + $0x30] sm:$0xff] %v9379
        %9412 = vst [vmem:[%s364 + $0x38] sm:$0xff] %v9380
        %9413 = vst [vmem:[%s364 + $0x40] sm:$0xff] %v9381
        %9414 = vst [vmem:[%s364 + $0x48] sm:$0xff] %v9382
        %9415 = vst [vmem:[%s364 + $0x50] sm:$0xff] %v9383
        %9416 = vst [vmem:[%s364 + $0x58] sm:$0xff] %v9384
        %9417 = vst [vmem:[%s364 + $0x60] sm:$0xff] %v9385
        %9418 = vst [vmem:[%s364 + $0x68] sm:$0xff] %v9386
        %9419 = vst [vmem:[%s364 + $0x70] sm:$0xff] %v9387
        %9420 = vst [vmem:[%s364 + $0x78] sm:$0xff] %v9388
        %9421 = vst [vmem:[%s364 + $0x80] sm:$0xff] %v9389
        %9422 = vst [vmem:[%s364 + $0x88] sm:$0xff] %v9390
        %9423 = vst [vmem:[%s364 + $0x90] sm:$0xff] %v9391
        %9424 = vst [vmem:[%s364 + $0x98] sm:$0xff] %v9392
        %9425 = vst [vmem:[%s364 + $0xa0] sm:$0xff] %v9393
        %9426 = vst [vmem:[%s364 + $0xa8] sm:$0xff] %v9394
        %9427 = vst [vmem:[%s364 + $0xb0] sm:$0xff] %v9395
        %9428 = vst [vmem:[%s364 + $0xb8] sm:$0xff] %v9396
        %9429 = vst [vmem:[%s364 + $0xc0] sm:$0xff] %v9397
        %9430 = vst [vmem:[%s364 + $0xc8] sm:$0xff] %v9398
        %9431 = vst [vmem:[%s364 + $0xd0] sm:$0xff] %v9399
        %9432 = vst [vmem:[%s364 + $0xd8] sm:$0xff] %v9400
        %9433 = vst [vmem:[%s364 + $0xe0] sm:$0xff] %v9401
        %9434 = vst [vmem:[%s364 + $0xe8] sm:$0xff] %v9402
        %9435 = vst [vmem:[%s364 + $0xf0] sm:$0xff] %v9403
        %9436 = vst [vmem:[%s364 + $0xf8] sm:$0xff] %v9404
        %s9437 = sand.u32 %s242, 1
        %s9438 = scalar_lea.sflag [#allocation7], %s9437
        %s9439 = sand.u32 %s242, 1
        %s9440 = smul.addr %s9439, 256
        %s9441 = scalar_lea.vmem [#allocation8], %s9440
        // Predicated region
        $region65: #{attn_block.1} parent=55 // pred_check
          %p9442 = pneg %p252
        $region66: #{attn_block.1} parent=55 // pred_check_branch
          %9444 = sbr.rel (%p9442) target = $region68
        $region67: #{attn_block.1} parent=55 // pred_region
          %s9445 = smul.u32 32, %s31
          %s9447 = ssub.s32 4096, 4096
          %9448 = vsyncadd %s9438, %s9447
          %s9449 = smul.addr %s30, 128
          %s9450 = sadd.s32 %s9445, %s9449
          %s9451 = smul.addr %s9450, 128
          %s9452 = scalar_lea.hbm %s9, %s9451
          %s9453 = sshll.u32 %s9441, 4
          %s9454 = int_to_ptr.vmem [resolvable:$true] %s9453
          %9459 = dma.vmem_to_hbm [thread:$0]  %s9454, 4096, %s9452, %s9438, 128, 128, 8
        $region68: #{attn_block.1} parent=55 // pred_fallthru
          _
      $region56: #{attn_block.1} parent=5 // pred_fallthru
        _
      %p9460 = scmp.le.s32.totalorder 2, %s21
      // Predicated region
      $region69: #{attn_block.1} parent=5 // pred_check
        %p9461 = pneg %p9460
      $region70: #{attn_block.1} parent=5 // pred_check_branch
        %9463 = sbr.rel (%p9461) target = $region72
      $region71: #{attn_block.1} parent=5 // pred_region
        %s9464 = ssub.s32 %s21, 2
        // Predicated region
        $region73: #{attn_block.1} parent=71 // pred_check
          %p9465 = pneg %p258
        $region74: #{attn_block.1} parent=71 // pred_check_branch
          %9467 = sbr.rel (%p9465) target = $region76
        $region75: #{attn_block.1} parent=71 // pred_region
          %s9468 = sand.u32 %s243, 1
          %s9469 = scalar_lea.sflag [#allocation7], %s9468
          %s9470 = sand.u32 %s243, 1
          %s9471 = smul.addr %s9470, 256
          %s9472 = scalar_lea.vmem [#allocation8], %s9471
          %9473 = dma.done %s9469, 4096
        $region76: #{attn_block.1} parent=71 // pred_fallthru
          _
      $region72: #{attn_block.1} parent=5 // pred_fallthru
        _
    $region6: #{attn_block.1} parent=1 // loop_footer
      %s25 = sadd.s32 1, %s21
    $region7: #{attn_block.1} parent=1 // loop_footer_branch
      %20 = sbr.rel target = $region3
    $region8: #{attn_block.1} parent=1 // loop_exit
      _
    %9474 = vsyncpa [#allocation6], 1
    %s9475 = scalar_lea.sflag [#allocation6], 1
    %9476 = vsyncpa %s9475, 1
    %9477 = vsyncpa [#allocation7], 1
    %s9478 = scalar_lea.sflag [#allocation7], 1
    %9479 = vsyncpa %s9478, 1

</llo_original>
